<compile_context>
chip_gen: v6e
topology: v6e:2x2x1
jax: 0.10.0
libtpu: 0.0.40
codegen_flags: <defaults>
</compile_context>

<pallas_src>
import numpy as np

import jax
import jax.numpy as jnp
from jax import lax
from jax.experimental import pallas as pl
from jax.experimental.pallas import tpu as pltpu


def _ru(x, m):
    return (x + m - 1) // m * m


# ----------------------------------------------------------------------------
# Fused kernel builder (closure over static dims)
# ----------------------------------------------------------------------------
def _make_cnn4_kernel(B, C, layer_hw):
    """Fused CNN4 forward.

    Every feature map lives in a flat zero-padded VMEM buffer of shape
    (rows, C) with row index b*(H+2)*(W+2) + i*(W+2) + j.  A 3x3 conv tap
    (di, dj) is then the contiguous row-slice starting at di*(W+2)+dj; the 9
    taps are packed into an im2col slab (M, 9*C) and the conv is ONE matmul.
    Rows whose (i, j) fall outside [0,H)x[0,W) are "junk" conv outputs; they
    are masked out of the BN statistics and never touched by the pooling reads.
    """
    L = len(layer_hw)
    Hf, Wf = layer_hw[-1][0] // 2, layer_hw[-1][1] // 2
    HW = Hf * Wf

    # static per-layer geometry
    geom = []
    for (H, W) in layer_hw:
        Hp, Wp = H + 2, W + 2
        Mfull = B * Hp * Wp
        Mcalc = _ru(Mfull, 8)            # rows actually pushed through the matmul
        geom.append((H, W, Hp, Wp, Mfull, Mcalc))

    def kernel(x_ref, w_ref, g_ref, bt_ref, mask_ref, wc_ref, bc_ref,
               out_ref, *scratch):
        pbufs = list(scratch[:L - 1])    # padded-flat inputs for layers 2..L
        slab = scratch[L - 1]            # (Mcalc0, 9*C) im2col slab, reused per layer
        zbuf = scratch[L]                # conv+BN+ReLU output (flat), reused per layer
        fbuf = scratch[L + 1]            # final pooled features (B*Hf*Wf, C)

        # Padded buffers must start as zeros: border rows are the conv zero padding,
        # tail rows must be finite so the masked stats matmul can't see NaN garbage.
        for pb in pbufs:
            pb[...] = jnp.zeros(pb.shape, jnp.float32)

        in_refs = [x_ref] + pbufs
        dst_refs = pbufs + [fbuf]

        for l, (H, W, Hp, Wp, Mfull, Mcalc) in enumerate(geom):
            Ho, Wo = H // 2, W // 2
            pin = in_refs[l]

            # ---- conv3x3 (padding=1): im2col slab + ONE K=9*C matmul ----
            for t in range(9):
                di, dj = t // 3, t % 3
                off = di * Wp + dj
                slab[0:Mcalc, t * C:(t + 1) * C] = pin[off:off + Mcalc, :]
            o = jnp.dot(slab[0:Mcalc, :], w_ref[l],
                        preferred_element_type=jnp.float32)      # (Mcalc, C)
            # conv bias intentionally NOT added: cancelled by train-mode BN below.

            # ---- BatchNorm (training-mode batch stats), junk rows masked out ----
            msk = mask_ref[l:l + 1, 0:Mcalc]                     # (1, Mcalc) 0/1
            cnt = float(B * H * W)
            s1 = jnp.dot(msk, o, preferred_element_type=jnp.float32)       # (1, C)
            s2 = jnp.dot(msk, o * o, preferred_element_type=jnp.float32)   # (1, C)
            mean = s1 / cnt
            var = s2 / cnt - mean * mean                         # biased (as torch)
            scale = g_ref[l] * lax.rsqrt(var + 1e-5)
            z = jnp.maximum((o - mean) * scale + bt_ref[l], 0.0)  # BN + ReLU
            zbuf[0:Mcalc, :] = z

            # ---- 2x2 max-pool (stride 2) -> next layer's padded buffer / features ----
            dst_ref = dst_refs[l]
            last = (l == L - 1)
            Hp2, Wp2 = Ho + 2, Wo + 2
            for b in range(B):
                for ho in range(Ho):
                    s = b * Hp * Wp + 2 * ho * Wp
                    r00 = zbuf[pl.ds(s, Wo, 2), :]
                    r01 = zbuf[pl.ds(s + 1, Wo, 2), :]
                    r10 = zbuf[pl.ds(s + Wp, Wo, 2), :]
                    r11 = zbuf[pl.ds(s + Wp + 1, Wo, 2), :]
                    pr = jnp.maximum(jnp.maximum(r00, r01), jnp.maximum(r10, r11))
                    if last:
                        dst = b * (Ho * Wo) + ho * Wo
                    else:
                        dst = b * Hp2 * Wp2 + (ho + 1) * Wp2 + 1
                    dst_ref[dst:dst + Wo, :] = pr                # (Wo, C)

        # ---- classifier (fused): features in NHWC order; weights pre-permuted ----
        acc = None
        for p in range(HW):
            idx = pl.ds(p, B, HW) if HW > 1 else pl.ds(0, B)
            feat = fbuf[idx, :]                                  # (B, C)
            part = jnp.dot(feat, wc_ref[p * C:(p + 1) * C, :],
                           preferred_element_type=jnp.float32)
            acc = part if acc is None else acc + part
        out_ref[...] = acc + bc_ref[...]

    return kernel


# ----------------------------------------------------------------------------
# Wrapper: parameter re-layout (tiny, trace-time) + single pallas_call
# ----------------------------------------------------------------------------
def cnn4_forward(x_nchw, conv_ws, conv_bs, bn_gammas, bn_betas, w_cls, b_cls):
    B, Cin0, S, S2 = x_nchw.shape
    assert S == S2
    L = len(conv_ws)
    C = conv_ws[0].shape[0]                       # hidden channels
    assert Cin0 <= C
    layer_hw = [(S // (2 ** l), S // (2 ** l)) for l in range(L)]
    Hf = Wf = S // (2 ** L)
    out_size = w_cls.shape[0]

    # conv_bs is accepted for API parity but unused: a per-channel constant before
    # training-mode BatchNorm is exactly cancelled by the mean subtraction.
    del conv_bs

    # -- static geometry (must match the kernel closure) --
    geom = []
    for (H, W) in layer_hw:
        Hp, Wp = H + 2, W + 2
        Mfull = B * Hp * Wp
        Mcalc = _ru(Mfull, 8)
        rows = Mcalc + _ru(2 * Wp + 2, 8)         # slack so every tap slice is in-bounds
        geom.append((H, W, Hp, Wp, Mfull, Mcalc, rows))
    Mmax = geom[0][5]                             # Mcalc of layer 0

    # -- input: NCHW -> NHWC, pad channels to C, 1-ring spatial zero pad, flatten --
    H0, W0, Hp0, Wp0, Mfull0, Mcalc0, rows0 = geom[0]
    x = jnp.transpose(x_nchw, (0, 2, 3, 1)).astype(jnp.float32)
    x = jnp.pad(x, ((0, 0), (1, 1), (1, 1), (0, C - Cin0)))
    x_flat = x.reshape(Mfull0, C)
    x_flat = jnp.pad(x_flat, ((0, rows0 - Mfull0), (0, 0)))      # zero slack rows

    # -- conv weights: (Cout,Cin,3,3) -> (9*C, Cout) (tap-major, Cin zero-padded) --
    w_list, g_list, bt_list = [], [], []
    for w, g, bt in zip(conv_ws, bn_gammas, bn_betas):
        cin = w.shape[1]
        wt = jnp.transpose(w, (2, 3, 1, 0))                      # (3,3,cin,Cout)
        wt = jnp.pad(wt, ((0, 0), (0, 0), (0, C - cin), (0, 0)))
        w_list.append(wt.reshape(9 * C, C))
        g_list.append(g.reshape(1, C))
        bt_list.append(bt.reshape(1, C))
    w_stack = jnp.stack(w_list)                                  # (L, 9C, C)
    g_stack = jnp.stack(g_list)                                  # (L, 1, C)
    bt_stack = jnp.stack(bt_list)                                # (L, 1, C)

    # -- 0/1 masks marking which flat rows are real conv-output pixels --
    mrows = []
    for (H, W, Hp, Wp, Mfull, Mcalc, rows) in geom:
        m = np.zeros((Mmax,), np.float32)
        for b in range(B):
            for i in range(H):
                st = b * Hp * Wp + i * Wp
                m[st:st + W] = 1.0
        mrows.append(m)
    mask_stack = jnp.asarray(np.stack(mrows))                    # (L, Mmax)

    # -- classifier weight: PyTorch flattens NCHW -> permute rows to (h, w, c) order --
    wc = jnp.transpose(w_cls.reshape(out_size, C, Hf, Wf), (2, 3, 1, 0))
    wc = wc.reshape(Hf * Wf * C, out_size)
    bc = b_cls.reshape(1, out_size)

    # -- VMEM scratch: padded buffers (layers 2..L), im2col slab, z buffer, features --
    scratch_shapes = []
    for (H, W, Hp, Wp, Mfull, Mcalc, rows) in geom[1:]:
        scratch_shapes.append(pltpu.VMEM((rows, C), jnp.float32))
    scratch_shapes.append(pltpu.VMEM((Mcalc0, 9 * C), jnp.float32))     # im2col slab
    scratch_shapes.append(pltpu.VMEM((Mcalc0, C), jnp.float32))         # zbuf
    scratch_shapes.append(pltpu.VMEM((B * Hf * Wf, C), jnp.float32))    # fbuf

    kernel = _make_cnn4_kernel(B, C, layer_hw)

    def full(shape):
        return pl.BlockSpec(shape, lambda i: (0,) * len(shape))

    return pl.pallas_call(
        kernel,
        out_shape=jax.ShapeDtypeStruct((B, out_size), jnp.float32),
        grid_spec=pltpu.PrefetchScalarGridSpec(
            num_scalar_prefetch=0,
            grid=(1,),
            in_specs=[
                full(x_flat.shape), full(w_stack.shape),
                full(g_stack.shape), full(bt_stack.shape), full(mask_stack.shape),
                full(wc.shape), full(bc.shape),
            ],
            out_specs=full((B, out_size)),
            scratch_shapes=scratch_shapes,
        ),
        # single-step grid: do not megacore-shard a ~microsecond kernel
        compiler_params=pltpu.CompilerParams(
            dimension_semantics=("arbitrary",),
            vmem_limit_bytes=32 * 1024 * 1024,
        ),
    )(x_flat, w_stack, g_stack, bt_stack, mask_stack, wc, bc)
    # TODO(synk): BatchNorm running_mean/var buffer updates (side effects) are not
    # modeled; they do not affect the training-mode forward output.


# ----------------------------------------------------------------------------
# Pure-JAX reference (for numerical sanity)
# ----------------------------------------------------------------------------
def _reference_forward(x, conv_ws, conv_bs, gammas, betas, w_cls, b_cls):
    a = jnp.transpose(x, (0, 2, 3, 1))
    for w, b, g, bt in zip(conv_ws, conv_bs, gammas, betas):
        wt = jnp.transpose(w, (2, 3, 1, 0))     # HWIO
        y = lax.conv_general_dilated(
            a, wt, (1, 1), "SAME",
            dimension_numbers=("NHWC", "HWIO", "NHWC"),
            precision=lax.Precision.HIGHEST) + b
        mean = jnp.mean(y, axis=(0, 1, 2), keepdims=True)
        var = jnp.mean((y - mean) ** 2, axis=(0, 1, 2), keepdims=True)
        y = (y - mean) * g * lax.rsqrt(var + 1e-5) + bt
        y = jnp.maximum(y, 0.0)
        Bn, Hn, Wn, Cn = y.shape
        a = y.reshape(Bn, Hn // 2, 2, Wn // 2, 2, Cn).max(axis=(2, 4))
    feat = jnp.transpose(a, (0, 3, 1, 2)).reshape(a.shape[0], -1)
    return jnp.dot(feat, w_cls.T, precision=lax.Precision.HIGHEST) + b_cls


# ----------------------------------------------------------------------------
# Deterministic small example (xavier_uniform weights, zero biases,
# uniform(0,1) BN gamma, zero BN beta)
# ----------------------------------------------------------------------------
if __name__ == "__main__":
    B, C_in, S = 2, 3, 16
    hidden, layers, out_size = 32, 4, 8

    key = jax.random.PRNGKey(0)
    keys = jax.random.split(key, 2 * layers + 2)

    conv_ws, conv_bs, gammas, betas = [], [], [], []
    cin = C_in
    for l in range(layers):
        fan_in, fan_out = cin * 9, hidden * 9
        bound = (6.0 / (fan_in + fan_out)) ** 0.5
        conv_ws.append(jax.random.uniform(keys[2 * l], (hidden, cin, 3, 3),
                                          jnp.float32, -bound, bound))
        conv_bs.append(jnp.zeros((hidden,), jnp.float32))
        gammas.append(jax.random.uniform(keys[2 * l + 1], (hidden,),
                                         jnp.float32, 0.0, 1.0))
        betas.append(jnp.zeros((hidden,), jnp.float32))
        cin = hidden

    emb = hidden * (S // (2 ** layers)) ** 2                  # 32 * 1 * 1
    bound = (6.0 / (emb + out_size)) ** 0.5
    w_cls = jax.random.uniform(keys[-2], (out_size, emb), jnp.float32, -bound, bound)
    b_cls = jnp.zeros((out_size,), jnp.float32)

    x = jax.random.normal(keys[-1], (B, C_in, S, S), jnp.float32)

    fwd = jax.jit(cnn4_forward)
    out = fwd(x, tuple(conv_ws), tuple(conv_bs), tuple(gammas), tuple(betas),
              w_cls, b_cls)
    out = jax.block_until_ready(out)
    assert out.shape == (B, out_size) and out.dtype == jnp.float32

    ref = _reference_forward(x, conv_ws, conv_bs, gammas, betas, w_cls, b_cls)
    assert jnp.allclose(out, ref, atol=5e-3, rtol=5e-3)

    print("KERNEL_OK")
</pallas_src>

<mosaic_0001>
module attributes {stable_mosaic.version = 11 : i64} {
  func.func @kernel(%arg0: i32, %arg1: memref<688x32xf32, #tpu.memory_space<vmem>>, %arg2: memref<4x288x32xf32, #tpu.memory_space<vmem>>, %arg3: memref<4x1x32xf32, #tpu.memory_space<vmem>>, %arg4: memref<4x1x32xf32, #tpu.memory_space<vmem>>, %arg5: memref<4x648xf32, #tpu.memory_space<vmem>>, %arg6: memref<32x8xf32, #tpu.memory_space<vmem>>, %arg7: memref<1x8xf32, #tpu.memory_space<vmem>>, %arg8: memref<2x8xf32, #tpu.memory_space<vmem>>, %arg9: memref<224x32xf32, #tpu.memory_space<vmem>>, %arg10: memref<88x32xf32, #tpu.memory_space<vmem>>, %arg11: memref<48x32xf32, #tpu.memory_space<vmem>>, %arg12: memref<648x288xf32, #tpu.memory_space<vmem>>, %arg13: memref<648x32xf32, #tpu.memory_space<vmem>>, %arg14: memref<2x32xf32, #tpu.memory_space<vmem>>) attributes {dimension_semantics = [#tpu.dimension_semantics<arbitrary>], iteration_bounds = array<i64: 1>, scalar_prefetch = 0 : i64, scratch_operands = 6 : i64, tpu.core_type = #tpu.core_type<tc>, window_params = [{pipeline_mode = #tpu.pipeline_mode<synchronous>, transform_indices = @transform_0, window_bounds = array<i64: 688, 32>}, {pipeline_mode = #tpu.pipeline_mode<synchronous>, transform_indices = @transform_1, window_bounds = array<i64: 4, 288, 32>}, {pipeline_mode = #tpu.pipeline_mode<synchronous>, transform_indices = @transform_2, window_bounds = array<i64: 4, 1, 32>}, {pipeline_mode = #tpu.pipeline_mode<synchronous>, transform_indices = @transform_3, window_bounds = array<i64: 4, 1, 32>}, {pipeline_mode = #tpu.pipeline_mode<synchronous>, transform_indices = @transform_4, window_bounds = array<i64: 4, 648>}, {pipeline_mode = #tpu.pipeline_mode<synchronous>, transform_indices = @transform_5, window_bounds = array<i64: 32, 8>}, {pipeline_mode = #tpu.pipeline_mode<synchronous>, transform_indices = @transform_6, window_bounds = array<i64: 1, 8>}, {pipeline_mode = #tpu.pipeline_mode<synchronous>, transform_indices = @transform_7, window_bounds = array<i64: 2, 8>}]} {
    %cst = arith.constant 0.000000e+00 : f32
    %0 = vector.broadcast %cst : f32 to vector<224x32xf32>
    %c0 = arith.constant 0 : index
    %c0_0 = arith.constant 0 : index
    %1 = vector.load %arg9[%c0, %c0_0] : memref<224x32xf32, #tpu.memory_space<vmem>>, vector<224x32xf32>
    tpu.vector_store %arg9[%c0, %c0_0], %0 {strides = array<i32>} : memref<224x32xf32, #tpu.memory_space<vmem>>, vector<224x32xf32>,
    %cst_1 = arith.constant 0.000000e+00 : f32
    %2 = vector.broadcast %cst_1 : f32 to vector<88x32xf32>
    %c0_2 = arith.constant 0 : index
    %c0_3 = arith.constant 0 : index
    %3 = vector.load %arg10[%c0_2, %c0_3] : memref<88x32xf32, #tpu.memory_space<vmem>>, vector<88x32xf32>
    tpu.vector_store %arg10[%c0_2, %c0_3], %2 {strides = array<i32>} : memref<88x32xf32, #tpu.memory_space<vmem>>, vector<88x32xf32>,
    %cst_4 = arith.constant 0.000000e+00 : f32
    %4 = vector.broadcast %cst_4 : f32 to vector<48x32xf32>
    %c0_5 = arith.constant 0 : index
    %c0_6 = arith.constant 0 : index
    %5 = vector.load %arg11[%c0_5, %c0_6] : memref<48x32xf32, #tpu.memory_space<vmem>>, vector<48x32xf32>
    tpu.vector_store %arg11[%c0_5, %c0_6], %4 {strides = array<i32>} : memref<48x32xf32, #tpu.memory_space<vmem>>, vector<48x32xf32>,
    %c0_7 = arith.constant 0 : index
    %c0_8 = arith.constant 0 : index
    %6 = vector.load %arg1[%c0_7, %c0_8] : memref<688x32xf32, #tpu.memory_space<vmem>>, vector<648x32xf32>
    %c0_9 = arith.constant 0 : index
    %c0_10 = arith.constant 0 : index
    %7 = vector.load %arg12[%c0_9, %c0_10] : memref<648x288xf32, #tpu.memory_space<vmem>>, vector<648x32xf32>
    tpu.vector_store %arg12[%c0_9, %c0_10], %6 {strides = array<i32>} : memref<648x288xf32, #tpu.memory_space<vmem>>, vector<648x32xf32>,
    %c1 = arith.constant 1 : index
    %c0_11 = arith.constant 0 : index
    %8 = vector.load %arg1[%c1, %c0_11] : memref<688x32xf32, #tpu.memory_space<vmem>>, vector<648x32xf32>
    %c0_12 = arith.constant 0 : index
    %c32 = arith.constant 32 : index
    %9 = vector.load %arg12[%c0_12, %c32] : memref<648x288xf32, #tpu.memory_space<vmem>>, vector<648x32xf32>
    tpu.vector_store %arg12[%c0_12, %c32], %8 {strides = array<i32>} : memref<648x288xf32, #tpu.memory_space<vmem>>, vector<648x32xf32>,
    %c2 = arith.constant 2 : index
    %c0_13 = arith.constant 0 : index
    %10 = vector.load %arg1[%c2, %c0_13] : memref<688x32xf32, #tpu.memory_space<vmem>>, vector<648x32xf32>
    %c0_14 = arith.constant 0 : index
    %c64 = arith.constant 64 : index
    %11 = vector.load %arg12[%c0_14, %c64] : memref<648x288xf32, #tpu.memory_space<vmem>>, vector<648x32xf32>
    tpu.vector_store %arg12[%c0_14, %c64], %10 {strides = array<i32>} : memref<648x288xf32, #tpu.memory_space<vmem>>, vector<648x32xf32>,
    %c18 = arith.constant 18 : index
    %c0_15 = arith.constant 0 : index
    %12 = vector.load %arg1[%c18, %c0_15] : memref<688x32xf32, #tpu.memory_space<vmem>>, vector<648x32xf32>
    %c0_16 = arith.constant 0 : index
    %c96 = arith.constant 96 : index
    %13 = vector.load %arg12[%c0_16, %c96] : memref<648x288xf32, #tpu.memory_space<vmem>>, vector<648x32xf32>
    tpu.vector_store %arg12[%c0_16, %c96], %12 {strides = array<i32>} : memref<648x288xf32, #tpu.memory_space<vmem>>, vector<648x32xf32>,
    %c19 = arith.constant 19 : index
    %c0_17 = arith.constant 0 : index
    %14 = vector.load %arg1[%c19, %c0_17] : memref<688x32xf32, #tpu.memory_space<vmem>>, vector<648x32xf32>
    %c0_18 = arith.constant 0 : index
    %c128 = arith.constant 128 : index
    %15 = vector.load %arg12[%c0_18, %c128] : memref<648x288xf32, #tpu.memory_space<vmem>>, vector<648x32xf32>
    tpu.vector_store %arg12[%c0_18, %c128], %14 {strides = array<i32>} : memref<648x288xf32, #tpu.memory_space<vmem>>, vector<648x32xf32>,
    %c20 = arith.constant 20 : index
    %c0_19 = arith.constant 0 : index
    %16 = vector.load %arg1[%c20, %c0_19] : memref<688x32xf32, #tpu.memory_space<vmem>>, vector<648x32xf32>
    %c0_20 = arith.constant 0 : index
    %c160 = arith.constant 160 : index
    %17 = vector.load %arg12[%c0_20, %c160] : memref<648x288xf32, #tpu.memory_space<vmem>>, vector<648x32xf32>
    tpu.vector_store %arg12[%c0_20, %c160], %16 {strides = array<i32>} : memref<648x288xf32, #tpu.memory_space<vmem>>, vector<648x32xf32>,
    %c36 = arith.constant 36 : index
    %c0_21 = arith.constant 0 : index
    %18 = vector.load %arg1[%c36, %c0_21] : memref<688x32xf32, #tpu.memory_space<vmem>>, vector<648x32xf32>
    %c0_22 = arith.constant 0 : index
    %c192 = arith.constant 192 : index
    %19 = vector.load %arg12[%c0_22, %c192] : memref<648x288xf32, #tpu.memory_space<vmem>>, vector<648x32xf32>
    tpu.vector_store %arg12[%c0_22, %c192], %18 {strides = array<i32>} : memref<648x288xf32, #tpu.memory_space<vmem>>, vector<648x32xf32>,
    %c37 = arith.constant 37 : index
    %c0_23 = arith.constant 0 : index
    %20 = vector.load %arg1[%c37, %c0_23] : memref<688x32xf32, #tpu.memory_space<vmem>>, vector<648x32xf32>
    %c0_24 = arith.constant 0 : index
    %c224 = arith.constant 224 : index
    %21 = vector.load %arg12[%c0_24, %c224] : memref<648x288xf32, #tpu.memory_space<vmem>>, vector<648x32xf32>
    tpu.vector_store %arg12[%c0_24, %c224], %20 {strides = array<i32>} : memref<648x288xf32, #tpu.memory_space<vmem>>, vector<648x32xf32>,
    %c38 = arith.constant 38 : index
    %c0_25 = arith.constant 0 : index
    %22 = vector.load %arg1[%c38, %c0_25] : memref<688x32xf32, #tpu.memory_space<vmem>>, vector<648x32xf32>
    %c0_26 = arith.constant 0 : index
    %c256 = arith.constant 256 : index
    %23 = vector.load %arg12[%c0_26, %c256] : memref<648x288xf32, #tpu.memory_space<vmem>>, vector<648x32xf32>
    tpu.vector_store %arg12[%c0_26, %c256], %22 {strides = array<i32>} : memref<648x288xf32, #tpu.memory_space<vmem>>, vector<648x32xf32>,
    %c0_27 = arith.constant 0 : index
    %c0_28 = arith.constant 0 : index
    %24 = vector.load %arg12[%c0_27, %c0_28] : memref<648x288xf32, #tpu.memory_space<vmem>>, vector<648x288xf32>
    %c0_29 = arith.constant 0 : index
    %c0_30 = arith.constant 0 : index
    %c0_31 = arith.constant 0 : index
    %25 = vector.load %arg2[%c0_29, %c0_30, %c0_31] : memref<4x288x32xf32, #tpu.memory_space<vmem>>, vector<1x288x32xf32>
    %26 = vector.shape_cast %25 : vector<1x288x32xf32> to vector<288x32xf32>
    %cst_32 = arith.constant dense<0.000000e+00> : vector<648x32xf32>
    %27 = tpu.matmul %24, %26, %cst_32 {dimension_numbers = #tpu.dot_dimension_numbers<[1], [0], [0], [1], [0, 0, 1, 1], [], []>} : vector<648x288xf32>, vector<288x32xf32>, vector<648x32xf32> -> vector<648x32xf32>
    %c0_33 = arith.constant 0 : index
    %c0_34 = arith.constant 0 : index
    %28 = vector.load %arg5[%c0_33, %c0_34] : memref<4x648xf32, #tpu.memory_space<vmem>>, vector<1x648xf32>
    %cst_35 = arith.constant dense<0.000000e+00> : vector<1x32xf32>
    %29 = tpu.matmul %28, %27, %cst_35 {dimension_numbers = #tpu.dot_dimension_numbers<[1], [0], [0], [1], [0, 0, 1, 1], [], []>} : vector<1x648xf32>, vector<648x32xf32>, vector<1x32xf32> -> vector<1x32xf32>
    %30 = arith.mulf %27, %27 : vector<648x32xf32>
    %cst_36 = arith.constant dense<0.000000e+00> : vector<1x32xf32>
    %31 = tpu.matmul %28, %30, %cst_36 {dimension_numbers = #tpu.dot_dimension_numbers<[1], [0], [0], [1], [0, 0, 1, 1], [], []>} : vector<1x648xf32>, vector<648x32xf32>, vector<1x32xf32> -> vector<1x32xf32>
    %cst_37 = arith.constant 5.120000e+02 : f32
    %32 = vector.broadcast %cst_37 : f32 to vector<1x32xf32>
    %33 = arith.divf %29, %32 : vector<1x32xf32>
    %cst_38 = arith.constant 5.120000e+02 : f32
    %34 = vector.broadcast %cst_38 : f32 to vector<1x32xf32>
    %35 = arith.divf %31, %34 : vector<1x32xf32>
    %36 = arith.mulf %33, %33 : vector<1x32xf32>
    %37 = arith.subf %35, %36 : vector<1x32xf32>
    %c0_39 = arith.constant 0 : index
    %c0_40 = arith.constant 0 : index
    %c0_41 = arith.constant 0 : index
    %38 = vector.load %arg3[%c0_39, %c0_40, %c0_41] : memref<4x1x32xf32, #tpu.memory_space<vmem>>, vector<1x1x32xf32>
    %39 = vector.shape_cast %38 : vector<1x1x32xf32> to vector<1x32xf32>
    %cst_42 = arith.constant 9.99999974E-6 : f32
    %40 = vector.broadcast %cst_42 : f32 to vector<1x32xf32>
    %41 = arith.addf %37, %40 : vector<1x32xf32>
    %42 = math.rsqrt %41 : vector<1x32xf32>
    %43 = arith.mulf %39, %42 : vector<1x32xf32>
    %44 = vector.broadcast %33 : vector<1x32xf32> to vector<648x32xf32>
    %45 = arith.subf %27, %44 : vector<648x32xf32>
    %46 = vector.broadcast %43 : vector<1x32xf32> to vector<648x32xf32>
    %47 = arith.mulf %45, %46 : vector<648x32xf32>
    %c0_43 = arith.constant 0 : index
    %c0_44 = arith.constant 0 : index
    %c0_45 = arith.constant 0 : index
    %48 = vector.load %arg4[%c0_43, %c0_44, %c0_45] : memref<4x1x32xf32, #tpu.memory_space<vmem>>, vector<1x1x32xf32>
    %49 = vector.shape_cast %48 : vector<1x1x32xf32> to vector<1x32xf32>
    %50 = vector.broadcast %49 : vector<1x32xf32> to vector<648x32xf32>
    %51 = arith.addf %47, %50 : vector<648x32xf32>
    %cst_46 = arith.constant 0.000000e+00 : f32
    %52 = vector.broadcast %cst_46 : f32 to vector<648x32xf32>
    %53 = arith.maximumf %51, %52 : vector<648x32xf32>
    %c0_47 = arith.constant 0 : index
    %c0_48 = arith.constant 0 : index
    %54 = vector.load %arg13[%c0_47, %c0_48] : memref<648x32xf32, #tpu.memory_space<vmem>>, vector<648x32xf32>
    tpu.vector_store %arg13[%c0_47, %c0_48], %53 {strides = array<i32>} : memref<648x32xf32, #tpu.memory_space<vmem>>, vector<648x32xf32>,
    %c0_49 = arith.constant 0 : index
    %c0_50 = arith.constant 0 : index
    %55 = tpu.strided_load %arg13[%c0_49, %c0_50] {strides = array<i32: 2, 1>} : memref<648x32xf32, #tpu.memory_space<vmem>>, vector<8x32xf32>
    %c1_51 = arith.constant 1 : index
    %c0_52 = arith.constant 0 : index
    %56 = tpu.strided_load %arg13[%c1_51, %c0_52] {strides = array<i32: 2, 1>} : memref<648x32xf32, #tpu.memory_space<vmem>>, vector<8x32xf32>
    %c18_53 = arith.constant 18 : index
    %c0_54 = arith.constant 0 : index
    %57 = tpu.strided_load %arg13[%c18_53, %c0_54] {strides = array<i32: 2, 1>} : memref<648x32xf32, #tpu.memory_space<vmem>>, vector<8x32xf32>
    %c19_55 = arith.constant 19 : index
    %c0_56 = arith.constant 0 : index
    %58 = tpu.strided_load %arg13[%c19_55, %c0_56] {strides = array<i32: 2, 1>} : memref<648x32xf32, #tpu.memory_space<vmem>>, vector<8x32xf32>
    %59 = arith.maximumf %55, %56 : vector<8x32xf32>
    %60 = arith.maximumf %57, %58 : vector<8x32xf32>
    %61 = arith.maximumf %59, %60 : vector<8x32xf32>
    %c11 = arith.constant 11 : index
    %c0_57 = arith.constant 0 : index
    %62 = vector.load %arg9[%c11, %c0_57] : memref<224x32xf32, #tpu.memory_space<vmem>>, vector<8x32xf32>
    tpu.vector_store %arg9[%c11, %c0_57], %61 {strides = array<i32>} : memref<224x32xf32, #tpu.memory_space<vmem>>, vector<8x32xf32>,
    %c36_58 = arith.constant 36 : index
    %c0_59 = arith.constant 0 : index
    %63 = tpu.strided_load %arg13[%c36_58, %c0_59] {strides = array<i32: 2, 1>} : memref<648x32xf32, #tpu.memory_space<vmem>>, vector<8x32xf32>
    %c37_60 = arith.constant 37 : index
    %c0_61 = arith.constant 0 : index
    %64 = tpu.strided_load %arg13[%c37_60, %c0_61] {strides = array<i32: 2, 1>} : memref<648x32xf32, #tpu.memory_space<vmem>>, vector<8x32xf32>
    %c54 = arith.constant 54 : index
    %c0_62 = arith.constant 0 : index
    %65 = tpu.strided_load %arg13[%c54, %c0_62] {strides = array<i32: 2, 1>} : memref<648x32xf32, #tpu.memory_space<vmem>>, vector<8x32xf32>
    %c55 = arith.constant 55 : index
    %c0_63 = arith.constant 0 : index
    %66 = tpu.strided_load %arg13[%c55, %c0_63] {strides = array<i32: 2, 1>} : memref<648x32xf32, #tpu.memory_space<vmem>>, vector<8x32xf32>
    %67 = arith.maximumf %63, %64 : vector<8x32xf32>
    %68 = arith.maximumf %65, %66 : vector<8x32xf32>
    %69 = arith.maximumf %67, %68 : vector<8x32xf32>
    %c21 = arith.constant 21 : index
    %c0_64 = arith.constant 0 : index
    %70 = vector.load %arg9[%c21, %c0_64] : memref<224x32xf32, #tpu.memory_space<vmem>>, vector<8x32xf32>
    tpu.vector_store %arg9[%c21, %c0_64], %69 {strides = array<i32>} : memref<224x32xf32, #tpu.memory_space<vmem>>, vector<8x32xf32>,
    %c72 = arith.constant 72 : index
    %c0_65 = arith.constant 0 : index
    %71 = tpu.strided_load %arg13[%c72, %c0_65] {strides = array<i32: 2, 1>} : memref<648x32xf32, #tpu.memory_space<vmem>>, vector<8x32xf32>
    %c73 = arith.constant 73 : index
    %c0_66 = arith.constant 0 : index
    %72 = tpu.strided_load %arg13[%c73, %c0_66] {strides = array<i32: 2, 1>} : memref<648x32xf32, #tpu.memory_space<vmem>>, vector<8x32xf32>
    %c90 = arith.constant 90 : index
    %c0_67 = arith.constant 0 : index
    %73 = tpu.strided_load %arg13[%c90, %c0_67] {strides = array<i32: 2, 1>} : memref<648x32xf32, #tpu.memory_space<vmem>>, vector<8x32xf32>
    %c91 = arith.constant 91 : index
    %c0_68 = arith.constant 0 : index
    %74 = tpu.strided_load %arg13[%c91, %c0_68] {strides = array<i32: 2, 1>} : memref<648x32xf32, #tpu.memory_space<vmem>>, vector<8x32xf32>
    %75 = arith.maximumf %71, %72 : vector<8x32xf32>
    %76 = arith.maximumf %73, %74 : vector<8x32xf32>
    %77 = arith.maximumf %75, %76 : vector<8x32xf32>
    %c31 = arith.constant 31 : index
    %c0_69 = arith.constant 0 : index
    %78 = vector.load %arg9[%c31, %c0_69] : memref<224x32xf32, #tpu.memory_space<vmem>>, vector<8x32xf32>
    tpu.vector_store %arg9[%c31, %c0_69], %77 {strides = array<i32>} : memref<224x32xf32, #tpu.memory_space<vmem>>, vector<8x32xf32>,
    %c108 = arith.constant 108 : index
    %c0_70 = arith.constant 0 : index
    %79 = tpu.strided_load %arg13[%c108, %c0_70] {strides = array<i32: 2, 1>} : memref<648x32xf32, #tpu.memory_space<vmem>>, vector<8x32xf32>
    %c109 = arith.constant 109 : index
    %c0_71 = arith.constant 0 : index
    %80 = tpu.strided_load %arg13[%c109, %c0_71] {strides = array<i32: 2, 1>} : memref<648x32xf32, #tpu.memory_space<vmem>>, vector<8x32xf32>
    %c126 = arith.constant 126 : index
    %c0_72 = arith.constant 0 : index
    %81 = tpu.strided_load %arg13[%c126, %c0_72] {strides = array<i32: 2, 1>} : memref<648x32xf32, #tpu.memory_space<vmem>>, vector<8x32xf32>
    %c127 = arith.constant 127 : index
    %c0_73 = arith.constant 0 : index
    %82 = tpu.strided_load %arg13[%c127, %c0_73] {strides = array<i32: 2, 1>} : memref<648x32xf32, #tpu.memory_space<vmem>>, vector<8x32xf32>
    %83 = arith.maximumf %79, %80 : vector<8x32xf32>
    %84 = arith.maximumf %81, %82 : vector<8x32xf32>
    %85 = arith.maximumf %83, %84 : vector<8x32xf32>
    %c41 = arith.constant 41 : index
    %c0_74 = arith.constant 0 : index
    %86 = vector.load %arg9[%c41, %c0_74] : memref<224x32xf32, #tpu.memory_space<vmem>>, vector<8x32xf32>
    tpu.vector_store %arg9[%c41, %c0_74], %85 {strides = array<i32>} : memref<224x32xf32, #tpu.memory_space<vmem>>, vector<8x32xf32>,
    %c144 = arith.constant 144 : index
    %c0_75 = arith.constant 0 : index
    %87 = tpu.strided_load %arg13[%c144, %c0_75] {strides = array<i32: 2, 1>} : memref<648x32xf32, #tpu.memory_space<vmem>>, vector<8x32xf32>
    %c145 = arith.constant 145 : index
    %c0_76 = arith.constant 0 : index
    %88 = tpu.strided_load %arg13[%c145, %c0_76] {strides = array<i32: 2, 1>} : memref<648x32xf32, #tpu.memory_space<vmem>>, vector<8x32xf32>
    %c162 = arith.constant 162 : index
    %c0_77 = arith.constant 0 : index
    %89 = tpu.strided_load %arg13[%c162, %c0_77] {strides = array<i32: 2, 1>} : memref<648x32xf32, #tpu.memory_space<vmem>>, vector<8x32xf32>
    %c163 = arith.constant 163 : index
    %c0_78 = arith.constant 0 : index
    %90 = tpu.strided_load %arg13[%c163, %c0_78] {strides = array<i32: 2, 1>} : memref<648x32xf32, #tpu.memory_space<vmem>>, vector<8x32xf32>
    %91 = arith.maximumf %87, %88 : vector<8x32xf32>
    %92 = arith.maximumf %89, %90 : vector<8x32xf32>
    %93 = arith.maximumf %91, %92 : vector<8x32xf32>
    %c51 = arith.constant 51 : index
    %c0_79 = arith.constant 0 : index
    %94 = vector.load %arg9[%c51, %c0_79] : memref<224x32xf32, #tpu.memory_space<vmem>>, vector<8x32xf32>
    tpu.vector_store %arg9[%c51, %c0_79], %93 {strides = array<i32>} : memref<224x32xf32, #tpu.memory_space<vmem>>, vector<8x32xf32>,
    %c180 = arith.constant 180 : index
    %c0_80 = arith.constant 0 : index
    %95 = tpu.strided_load %arg13[%c180, %c0_80] {strides = array<i32: 2, 1>} : memref<648x32xf32, #tpu.memory_space<vmem>>, vector<8x32xf32>
    %c181 = arith.constant 181 : index
    %c0_81 = arith.constant 0 : index
    %96 = tpu.strided_load %arg13[%c181, %c0_81] {strides = array<i32: 2, 1>} : memref<648x32xf32, #tpu.memory_space<vmem>>, vector<8x32xf32>
    %c198 = arith.constant 198 : index
    %c0_82 = arith.constant 0 : index
    %97 = tpu.strided_load %arg13[%c198, %c0_82] {strides = array<i32: 2, 1>} : memref<648x32xf32, #tpu.memory_space<vmem>>, vector<8x32xf32>
    %c199 = arith.constant 199 : index
    %c0_83 = arith.constant 0 : index
    %98 = tpu.strided_load %arg13[%c199, %c0_83] {strides = array<i32: 2, 1>} : memref<648x32xf32, #tpu.memory_space<vmem>>, vector<8x32xf32>
    %99 = arith.maximumf %95, %96 : vector<8x32xf32>
    %100 = arith.maximumf %97, %98 : vector<8x32xf32>
    %101 = arith.maximumf %99, %100 : vector<8x32xf32>
    %c61 = arith.constant 61 : index
    %c0_84 = arith.constant 0 : index
    %102 = vector.load %arg9[%c61, %c0_84] : memref<224x32xf32, #tpu.memory_space<vmem>>, vector<8x32xf32>
    tpu.vector_store %arg9[%c61, %c0_84], %101 {strides = array<i32>} : memref<224x32xf32, #tpu.memory_space<vmem>>, vector<8x32xf32>,
    %c216 = arith.constant 216 : index
    %c0_85 = arith.constant 0 : index
    %103 = tpu.strided_load %arg13[%c216, %c0_85] {strides = array<i32: 2, 1>} : memref<648x32xf32, #tpu.memory_space<vmem>>, vector<8x32xf32>
    %c217 = arith.constant 217 : index
    %c0_86 = arith.constant 0 : index
    %104 = tpu.strided_load %arg13[%c217, %c0_86] {strides = array<i32: 2, 1>} : memref<648x32xf32, #tpu.memory_space<vmem>>, vector<8x32xf32>
    %c234 = arith.constant 234 : index
    %c0_87 = arith.constant 0 : index
    %105 = tpu.strided_load %arg13[%c234, %c0_87] {strides = array<i32: 2, 1>} : memref<648x32xf32, #tpu.memory_space<vmem>>, vector<8x32xf32>
    %c235 = arith.constant 235 : index
    %c0_88 = arith.constant 0 : index
    %106 = tpu.strided_load %arg13[%c235, %c0_88] {strides = array<i32: 2, 1>} : memref<648x32xf32, #tpu.memory_space<vmem>>, vector<8x32xf32>
    %107 = arith.maximumf %103, %104 : vector<8x32xf32>
    %108 = arith.maximumf %105, %106 : vector<8x32xf32>
    %109 = arith.maximumf %107, %108 : vector<8x32xf32>
    %c71 = arith.constant 71 : index
    %c0_89 = arith.constant 0 : index
    %110 = vector.load %arg9[%c71, %c0_89] : memref<224x32xf32, #tpu.memory_space<vmem>>, vector<8x32xf32>
    tpu.vector_store %arg9[%c71, %c0_89], %109 {strides = array<i32>} : memref<224x32xf32, #tpu.memory_space<vmem>>, vector<8x32xf32>,
    %c252 = arith.constant 252 : index
    %c0_90 = arith.constant 0 : index
    %111 = tpu.strided_load %arg13[%c252, %c0_90] {strides = array<i32: 2, 1>} : memref<648x32xf32, #tpu.memory_space<vmem>>, vector<8x32xf32>
    %c253 = arith.constant 253 : index
    %c0_91 = arith.constant 0 : index
    %112 = tpu.strided_load %arg13[%c253, %c0_91] {strides = array<i32: 2, 1>} : memref<648x32xf32, #tpu.memory_space<vmem>>, vector<8x32xf32>
    %c270 = arith.constant 270 : index
    %c0_92 = arith.constant 0 : index
    %113 = tpu.strided_load %arg13[%c270, %c0_92] {strides = array<i32: 2, 1>} : memref<648x32xf32, #tpu.memory_space<vmem>>, vector<8x32xf32>
    %c271 = arith.constant 271 : index
    %c0_93 = arith.constant 0 : index
    %114 = tpu.strided_load %arg13[%c271, %c0_93] {strides = array<i32: 2, 1>} : memref<648x32xf32, #tpu.memory_space<vmem>>, vector<8x32xf32>
    %115 = arith.maximumf %111, %112 : vector<8x32xf32>
    %116 = arith.maximumf %113, %114 : vector<8x32xf32>
    %117 = arith.maximumf %115, %116 : vector<8x32xf32>
    %c81 = arith.constant 81 : index
    %c0_94 = arith.constant 0 : index
    %118 = vector.load %arg9[%c81, %c0_94] : memref<224x32xf32, #tpu.memory_space<vmem>>, vector<8x32xf32>
    tpu.vector_store %arg9[%c81, %c0_94], %117 {strides = array<i32>} : memref<224x32xf32, #tpu.memory_space<vmem>>, vector<8x32xf32>,
    %c324 = arith.constant 324 : index
    %c0_95 = arith.constant 0 : index
    %119 = tpu.strided_load %arg13[%c324, %c0_95] {strides = array<i32: 2, 1>} : memref<648x32xf32, #tpu.memory_space<vmem>>, vector<8x32xf32>
    %c325 = arith.constant 325 : index
    %c0_96 = arith.constant 0 : index
    %120 = tpu.strided_load %arg13[%c325, %c0_96] {strides = array<i32: 2, 1>} : memref<648x32xf32, #tpu.memory_space<vmem>>, vector<8x32xf32>
    %c342 = arith.constant 342 : index
    %c0_97 = arith.constant 0 : index
    %121 = tpu.strided_load %arg13[%c342, %c0_97] {strides = array<i32: 2, 1>} : memref<648x32xf32, #tpu.memory_space<vmem>>, vector<8x32xf32>
    %c343 = arith.constant 343 : index
    %c0_98 = arith.constant 0 : index
    %122 = tpu.strided_load %arg13[%c343, %c0_98] {strides = array<i32: 2, 1>} : memref<648x32xf32, #tpu.memory_space<vmem>>, vector<8x32xf32>
    %123 = arith.maximumf %119, %120 : vector<8x32xf32>
    %124 = arith.maximumf %121, %122 : vector<8x32xf32>
    %125 = arith.maximumf %123, %124 : vector<8x32xf32>
    %c111 = arith.constant 111 : index
    %c0_99 = arith.constant 0 : index
    %126 = vector.load %arg9[%c111, %c0_99] : memref<224x32xf32, #tpu.memory_space<vmem>>, vector<8x32xf32>
    tpu.vector_store %arg9[%c111, %c0_99], %125 {strides = array<i32>} : memref<224x32xf32, #tpu.memory_space<vmem>>, vector<8x32xf32>,
    %c360 = arith.constant 360 : index
    %c0_100 = arith.constant 0 : index
    %127 = tpu.strided_load %arg13[%c360, %c0_100] {strides = array<i32: 2, 1>} : memref<648x32xf32, #tpu.memory_space<vmem>>, vector<8x32xf32>
    %c361 = arith.constant 361 : index
    %c0_101 = arith.constant 0 : index
    %128 = tpu.strided_load %arg13[%c361, %c0_101] {strides = array<i32: 2, 1>} : memref<648x32xf32, #tpu.memory_space<vmem>>, vector<8x32xf32>
    %c378 = arith.constant 378 : index
    %c0_102 = arith.constant 0 : index
    %129 = tpu.strided_load %arg13[%c378, %c0_102] {strides = array<i32: 2, 1>} : memref<648x32xf32, #tpu.memory_space<vmem>>, vector<8x32xf32>
    %c379 = arith.constant 379 : index
    %c0_103 = arith.constant 0 : index
    %130 = tpu.strided_load %arg13[%c379, %c0_103] {strides = array<i32: 2, 1>} : memref<648x32xf32, #tpu.memory_space<vmem>>, vector<8x32xf32>
    %131 = arith.maximumf %127, %128 : vector<8x32xf32>
    %132 = arith.maximumf %129, %130 : vector<8x32xf32>
    %133 = arith.maximumf %131, %132 : vector<8x32xf32>
    %c121 = arith.constant 121 : index
    %c0_104 = arith.constant 0 : index
    %134 = vector.load %arg9[%c121, %c0_104] : memref<224x32xf32, #tpu.memory_space<vmem>>, vector<8x32xf32>
    tpu.vector_store %arg9[%c121, %c0_104], %133 {strides = array<i32>} : memref<224x32xf32, #tpu.memory_space<vmem>>, vector<8x32xf32>,
    %c396 = arith.constant 396 : index
    %c0_105 = arith.constant 0 : index
    %135 = tpu.strided_load %arg13[%c396, %c0_105] {strides = array<i32: 2, 1>} : memref<648x32xf32, #tpu.memory_space<vmem>>, vector<8x32xf32>
    %c397 = arith.constant 397 : index
    %c0_106 = arith.constant 0 : index
    %136 = tpu.strided_load %arg13[%c397, %c0_106] {strides = array<i32: 2, 1>} : memref<648x32xf32, #tpu.memory_space<vmem>>, vector<8x32xf32>
    %c414 = arith.constant 414 : index
    %c0_107 = arith.constant 0 : index
    %137 = tpu.strided_load %arg13[%c414, %c0_107] {strides = array<i32: 2, 1>} : memref<648x32xf32, #tpu.memory_space<vmem>>, vector<8x32xf32>
    %c415 = arith.constant 415 : index
    %c0_108 = arith.constant 0 : index
    %138 = tpu.strided_load %arg13[%c415, %c0_108] {strides = array<i32: 2, 1>} : memref<648x32xf32, #tpu.memory_space<vmem>>, vector<8x32xf32>
    %139 = arith.maximumf %135, %136 : vector<8x32xf32>
    %140 = arith.maximumf %137, %138 : vector<8x32xf32>
    %141 = arith.maximumf %139, %140 : vector<8x32xf32>
    %c131 = arith.constant 131 : index
    %c0_109 = arith.constant 0 : index
    %142 = vector.load %arg9[%c131, %c0_109] : memref<224x32xf32, #tpu.memory_space<vmem>>, vector<8x32xf32>
    tpu.vector_store %arg9[%c131, %c0_109], %141 {strides = array<i32>} : memref<224x32xf32, #tpu.memory_space<vmem>>, vector<8x32xf32>,
    %c432 = arith.constant 432 : index
    %c0_110 = arith.constant 0 : index
    %143 = tpu.strided_load %arg13[%c432, %c0_110] {strides = array<i32: 2, 1>} : memref<648x32xf32, #tpu.memory_space<vmem>>, vector<8x32xf32>
    %c433 = arith.constant 433 : index
    %c0_111 = arith.constant 0 : index
    %144 = tpu.strided_load %arg13[%c433, %c0_111] {strides = array<i32: 2, 1>} : memref<648x32xf32, #tpu.memory_space<vmem>>, vector<8x32xf32>
    %c450 = arith.constant 450 : index
    %c0_112 = arith.constant 0 : index
    %145 = tpu.strided_load %arg13[%c450, %c0_112] {strides = array<i32: 2, 1>} : memref<648x32xf32, #tpu.memory_space<vmem>>, vector<8x32xf32>
    %c451 = arith.constant 451 : index
    %c0_113 = arith.constant 0 : index
    %146 = tpu.strided_load %arg13[%c451, %c0_113] {strides = array<i32: 2, 1>} : memref<648x32xf32, #tpu.memory_space<vmem>>, vector<8x32xf32>
    %147 = arith.maximumf %143, %144 : vector<8x32xf32>
    %148 = arith.maximumf %145, %146 : vector<8x32xf32>
    %149 = arith.maximumf %147, %148 : vector<8x32xf32>
    %c141 = arith.constant 141 : index
    %c0_114 = arith.constant 0 : index
    %150 = vector.load %arg9[%c141, %c0_114] : memref<224x32xf32, #tpu.memory_space<vmem>>, vector<8x32xf32>
    tpu.vector_store %arg9[%c141, %c0_114], %149 {strides = array<i32>} : memref<224x32xf32, #tpu.memory_space<vmem>>, vector<8x32xf32>,
    %c468 = arith.constant 468 : index
    %c0_115 = arith.constant 0 : index
    %151 = tpu.strided_load %arg13[%c468, %c0_115] {strides = array<i32: 2, 1>} : memref<648x32xf32, #tpu.memory_space<vmem>>, vector<8x32xf32>
    %c469 = arith.constant 469 : index
    %c0_116 = arith.constant 0 : index
    %152 = tpu.strided_load %arg13[%c469, %c0_116] {strides = array<i32: 2, 1>} : memref<648x32xf32, #tpu.memory_space<vmem>>, vector<8x32xf32>
    %c486 = arith.constant 486 : index
    %c0_117 = arith.constant 0 : index
    %153 = tpu.strided_load %arg13[%c486, %c0_117] {strides = array<i32: 2, 1>} : memref<648x32xf32, #tpu.memory_space<vmem>>, vector<8x32xf32>
    %c487 = arith.constant 487 : index
    %c0_118 = arith.constant 0 : index
    %154 = tpu.strided_load %arg13[%c487, %c0_118] {strides = array<i32: 2, 1>} : memref<648x32xf32, #tpu.memory_space<vmem>>, vector<8x32xf32>
    %155 = arith.maximumf %151, %152 : vector<8x32xf32>
    %156 = arith.maximumf %153, %154 : vector<8x32xf32>
    %157 = arith.maximumf %155, %156 : vector<8x32xf32>
    %c151 = arith.constant 151 : index
    %c0_119 = arith.constant 0 : index
    %158 = vector.load %arg9[%c151, %c0_119] : memref<224x32xf32, #tpu.memory_space<vmem>>, vector<8x32xf32>
    tpu.vector_store %arg9[%c151, %c0_119], %157 {strides = array<i32>} : memref<224x32xf32, #tpu.memory_space<vmem>>, vector<8x32xf32>,
    %c504 = arith.constant 504 : index
    %c0_120 = arith.constant 0 : index
    %159 = tpu.strided_load %arg13[%c504, %c0_120] {strides = array<i32: 2, 1>} : memref<648x32xf32, #tpu.memory_space<vmem>>, vector<8x32xf32>
    %c505 = arith.constant 505 : index
    %c0_121 = arith.constant 0 : index
    %160 = tpu.strided_load %arg13[%c505, %c0_121] {strides = array<i32: 2, 1>} : memref<648x32xf32, #tpu.memory_space<vmem>>, vector<8x32xf32>
    %c522 = arith.constant 522 : index
    %c0_122 = arith.constant 0 : index
    %161 = tpu.strided_load %arg13[%c522, %c0_122] {strides = array<i32: 2, 1>} : memref<648x32xf32, #tpu.memory_space<vmem>>, vector<8x32xf32>
    %c523 = arith.constant 523 : index
    %c0_123 = arith.constant 0 : index
    %162 = tpu.strided_load %arg13[%c523, %c0_123] {strides = array<i32: 2, 1>} : memref<648x32xf32, #tpu.memory_space<vmem>>, vector<8x32xf32>
    %163 = arith.maximumf %159, %160 : vector<8x32xf32>
    %164 = arith.maximumf %161, %162 : vector<8x32xf32>
    %165 = arith.maximumf %163, %164 : vector<8x32xf32>
    %c161 = arith.constant 161 : index
    %c0_124 = arith.constant 0 : index
    %166 = vector.load %arg9[%c161, %c0_124] : memref<224x32xf32, #tpu.memory_space<vmem>>, vector<8x32xf32>
    tpu.vector_store %arg9[%c161, %c0_124], %165 {strides = array<i32>} : memref<224x32xf32, #tpu.memory_space<vmem>>, vector<8x32xf32>,
    %c540 = arith.constant 540 : index
    %c0_125 = arith.constant 0 : index
    %167 = tpu.strided_load %arg13[%c540, %c0_125] {strides = array<i32: 2, 1>} : memref<648x32xf32, #tpu.memory_space<vmem>>, vector<8x32xf32>
    %c541 = arith.constant 541 : index
    %c0_126 = arith.constant 0 : index
    %168 = tpu.strided_load %arg13[%c541, %c0_126] {strides = array<i32: 2, 1>} : memref<648x32xf32, #tpu.memory_space<vmem>>, vector<8x32xf32>
    %c558 = arith.constant 558 : index
    %c0_127 = arith.constant 0 : index
    %169 = tpu.strided_load %arg13[%c558, %c0_127] {strides = array<i32: 2, 1>} : memref<648x32xf32, #tpu.memory_space<vmem>>, vector<8x32xf32>
    %c559 = arith.constant 559 : index
    %c0_128 = arith.constant 0 : index
    %170 = tpu.strided_load %arg13[%c559, %c0_128] {strides = array<i32: 2, 1>} : memref<648x32xf32, #tpu.memory_space<vmem>>, vector<8x32xf32>
    %171 = arith.maximumf %167, %168 : vector<8x32xf32>
    %172 = arith.maximumf %169, %170 : vector<8x32xf32>
    %173 = arith.maximumf %171, %172 : vector<8x32xf32>
    %c171 = arith.constant 171 : index
    %c0_129 = arith.constant 0 : index
    %174 = vector.load %arg9[%c171, %c0_129] : memref<224x32xf32, #tpu.memory_space<vmem>>, vector<8x32xf32>
    tpu.vector_store %arg9[%c171, %c0_129], %173 {strides = array<i32>} : memref<224x32xf32, #tpu.memory_space<vmem>>, vector<8x32xf32>,
    %c576 = arith.constant 576 : index
    %c0_130 = arith.constant 0 : index
    %175 = tpu.strided_load %arg13[%c576, %c0_130] {strides = array<i32: 2, 1>} : memref<648x32xf32, #tpu.memory_space<vmem>>, vector<8x32xf32>
    %c577 = arith.constant 577 : index
    %c0_131 = arith.constant 0 : index
    %176 = tpu.strided_load %arg13[%c577, %c0_131] {strides = array<i32: 2, 1>} : memref<648x32xf32, #tpu.memory_space<vmem>>, vector<8x32xf32>
    %c594 = arith.constant 594 : index
    %c0_132 = arith.constant 0 : index
    %177 = tpu.strided_load %arg13[%c594, %c0_132] {strides = array<i32: 2, 1>} : memref<648x32xf32, #tpu.memory_space<vmem>>, vector<8x32xf32>
    %c595 = arith.constant 595 : index
    %c0_133 = arith.constant 0 : index
    %178 = tpu.strided_load %arg13[%c595, %c0_133] {strides = array<i32: 2, 1>} : memref<648x32xf32, #tpu.memory_space<vmem>>, vector<8x32xf32>
    %179 = arith.maximumf %175, %176 : vector<8x32xf32>
    %180 = arith.maximumf %177, %178 : vector<8x32xf32>
    %181 = arith.maximumf %179, %180 : vector<8x32xf32>
    %c181_134 = arith.constant 181 : index
    %c0_135 = arith.constant 0 : index
    %182 = vector.load %arg9[%c181_134, %c0_135] : memref<224x32xf32, #tpu.memory_space<vmem>>, vector<8x32xf32>
    tpu.vector_store %arg9[%c181_134, %c0_135], %181 {strides = array<i32>} : memref<224x32xf32, #tpu.memory_space<vmem>>, vector<8x32xf32>,
    %c0_136 = arith.constant 0 : index
    %c0_137 = arith.constant 0 : index
    %183 = vector.load %arg9[%c0_136, %c0_137] : memref<224x32xf32, #tpu.memory_space<vmem>>, vector<200x32xf32>
    %c0_138 = arith.constant 0 : index
    %c0_139 = arith.constant 0 : index
    %184 = vector.load %arg12[%c0_138, %c0_139] : memref<648x288xf32, #tpu.memory_space<vmem>>, vector<200x32xf32>
    tpu.vector_store %arg12[%c0_138, %c0_139], %183 {strides = array<i32>} : memref<648x288xf32, #tpu.memory_space<vmem>>, vector<200x32xf32>,
    %c1_140 = arith.constant 1 : index
    %c0_141 = arith.constant 0 : index
    %185 = vector.load %arg9[%c1_140, %c0_141] : memref<224x32xf32, #tpu.memory_space<vmem>>, vector<200x32xf32>
    %c0_142 = arith.constant 0 : index
    %c32_143 = arith.constant 32 : index
    %186 = vector.load %arg12[%c0_142, %c32_143] : memref<648x288xf32, #tpu.memory_space<vmem>>, vector<200x32xf32>
    tpu.vector_store %arg12[%c0_142, %c32_143], %185 {strides = array<i32>} : memref<648x288xf32, #tpu.memory_space<vmem>>, vector<200x32xf32>,
    %c2_144 = arith.constant 2 : index
    %c0_145 = arith.constant 0 : index
    %187 = vector.load %arg9[%c2_144, %c0_145] : memref<224x32xf32, #tpu.memory_space<vmem>>, vector<200x32xf32>
    %c0_146 = arith.constant 0 : index
    %c64_147 = arith.constant 64 : index
    %188 = vector.load %arg12[%c0_146, %c64_147] : memref<648x288xf32, #tpu.memory_space<vmem>>, vector<200x32xf32>
    tpu.vector_store %arg12[%c0_146, %c64_147], %187 {strides = array<i32>} : memref<648x288xf32, #tpu.memory_space<vmem>>, vector<200x32xf32>,
    %c10 = arith.constant 10 : index
    %c0_148 = arith.constant 0 : index
    %189 = vector.load %arg9[%c10, %c0_148] : memref<224x32xf32, #tpu.memory_space<vmem>>, vector<200x32xf32>
    %c0_149 = arith.constant 0 : index
    %c96_150 = arith.constant 96 : index
    %190 = vector.load %arg12[%c0_149, %c96_150] : memref<648x288xf32, #tpu.memory_space<vmem>>, vector<200x32xf32>
    tpu.vector_store %arg12[%c0_149, %c96_150], %189 {strides = array<i32>} : memref<648x288xf32, #tpu.memory_space<vmem>>, vector<200x32xf32>,
    %c11_151 = arith.constant 11 : index
    %c0_152 = arith.constant 0 : index
    %191 = vector.load %arg9[%c11_151, %c0_152] : memref<224x32xf32, #tpu.memory_space<vmem>>, vector<200x32xf32>
    %c0_153 = arith.constant 0 : index
    %c128_154 = arith.constant 128 : index
    %192 = vector.load %arg12[%c0_153, %c128_154] : memref<648x288xf32, #tpu.memory_space<vmem>>, vector<200x32xf32>
    tpu.vector_store %arg12[%c0_153, %c128_154], %191 {strides = array<i32>} : memref<648x288xf32, #tpu.memory_space<vmem>>, vector<200x32xf32>,
    %c12 = arith.constant 12 : index
    %c0_155 = arith.constant 0 : index
    %193 = vector.load %arg9[%c12, %c0_155] : memref<224x32xf32, #tpu.memory_space<vmem>>, vector<200x32xf32>
    %c0_156 = arith.constant 0 : index
    %c160_157 = arith.constant 160 : index
    %194 = vector.load %arg12[%c0_156, %c160_157] : memref<648x288xf32, #tpu.memory_space<vmem>>, vector<200x32xf32>
    tpu.vector_store %arg12[%c0_156, %c160_157], %193 {strides = array<i32>} : memref<648x288xf32, #tpu.memory_space<vmem>>, vector<200x32xf32>,
    %c20_158 = arith.constant 20 : index
    %c0_159 = arith.constant 0 : index
    %195 = vector.load %arg9[%c20_158, %c0_159] : memref<224x32xf32, #tpu.memory_space<vmem>>, vector<200x32xf32>
    %c0_160 = arith.constant 0 : index
    %c192_161 = arith.constant 192 : index
    %196 = vector.load %arg12[%c0_160, %c192_161] : memref<648x288xf32, #tpu.memory_space<vmem>>, vector<200x32xf32>
    tpu.vector_store %arg12[%c0_160, %c192_161], %195 {strides = array<i32>} : memref<648x288xf32, #tpu.memory_space<vmem>>, vector<200x32xf32>,
    %c21_162 = arith.constant 21 : index
    %c0_163 = arith.constant 0 : index
    %197 = vector.load %arg9[%c21_162, %c0_163] : memref<224x32xf32, #tpu.memory_space<vmem>>, vector<200x32xf32>
    %c0_164 = arith.constant 0 : index
    %c224_165 = arith.constant 224 : index
    %198 = vector.load %arg12[%c0_164, %c224_165] : memref<648x288xf32, #tpu.memory_space<vmem>>, vector<200x32xf32>
    tpu.vector_store %arg12[%c0_164, %c224_165], %197 {strides = array<i32>} : memref<648x288xf32, #tpu.memory_space<vmem>>, vector<200x32xf32>,
    %c22 = arith.constant 22 : index
    %c0_166 = arith.constant 0 : index
    %199 = vector.load %arg9[%c22, %c0_166] : memref<224x32xf32, #tpu.memory_space<vmem>>, vector<200x32xf32>
    %c0_167 = arith.constant 0 : index
    %c256_168 = arith.constant 256 : index
    %200 = vector.load %arg12[%c0_167, %c256_168] : memref<648x288xf32, #tpu.memory_space<vmem>>, vector<200x32xf32>
    tpu.vector_store %arg12[%c0_167, %c256_168], %199 {strides = array<i32>} : memref<648x288xf32, #tpu.memory_space<vmem>>, vector<200x32xf32>,
    %c0_169 = arith.constant 0 : index
    %c0_170 = arith.constant 0 : index
    %201 = vector.load %arg12[%c0_169, %c0_170] : memref<648x288xf32, #tpu.memory_space<vmem>>, vector<200x288xf32>
    %c1_171 = arith.constant 1 : index
    %c0_172 = arith.constant 0 : index
    %c0_173 = arith.constant 0 : index
    %202 = vector.load %arg2[%c1_171, %c0_172, %c0_173] : memref<4x288x32xf32, #tpu.memory_space<vmem>>, vector<1x288x32xf32>
    %203 = vector.shape_cast %202 : vector<1x288x32xf32> to vector<288x32xf32>
    %cst_174 = arith.constant dense<0.000000e+00> : vector<200x32xf32>
    %204 = tpu.matmul %201, %203, %cst_174 {dimension_numbers = #tpu.dot_dimension_numbers<[1], [0], [0], [1], [0, 0, 1, 1], [], []>} : vector<200x288xf32>, vector<288x32xf32>, vector<200x32xf32> -> vector<200x32xf32>
    %c1_175 = arith.constant 1 : index
    %c0_176 = arith.constant 0 : index
    %205 = vector.load %arg5[%c1_175, %c0_176] : memref<4x648xf32, #tpu.memory_space<vmem>>, vector<1x200xf32>
    %cst_177 = arith.constant dense<0.000000e+00> : vector<1x32xf32>
    %206 = tpu.matmul %205, %204, %cst_177 {dimension_numbers = #tpu.dot_dimension_numbers<[1], [0], [0], [1], [0, 0, 1, 1], [], []>} : vector<1x200xf32>, vector<200x32xf32>, vector<1x32xf32> -> vector<1x32xf32>
    %207 = arith.mulf %204, %204 : vector<200x32xf32>
    %cst_178 = arith.constant dense<0.000000e+00> : vector<1x32xf32>
    %208 = tpu.matmul %205, %207, %cst_178 {dimension_numbers = #tpu.dot_dimension_numbers<[1], [0], [0], [1], [0, 0, 1, 1], [], []>} : vector<1x200xf32>, vector<200x32xf32>, vector<1x32xf32> -> vector<1x32xf32>
    %cst_179 = arith.constant 1.280000e+02 : f32
    %209 = vector.broadcast %cst_179 : f32 to vector<1x32xf32>
    %210 = arith.divf %206, %209 : vector<1x32xf32>
    %cst_180 = arith.constant 1.280000e+02 : f32
    %211 = vector.broadcast %cst_180 : f32 to vector<1x32xf32>
    %212 = arith.divf %208, %211 : vector<1x32xf32>
    %213 = arith.mulf %210, %210 : vector<1x32xf32>
    %214 = arith.subf %212, %213 : vector<1x32xf32>
    %c1_181 = arith.constant 1 : index
    %c0_182 = arith.constant 0 : index
    %c0_183 = arith.constant 0 : index
    %215 = vector.load %arg3[%c1_181, %c0_182, %c0_183] : memref<4x1x32xf32, #tpu.memory_space<vmem>>, vector<1x1x32xf32>
    %216 = vector.shape_cast %215 : vector<1x1x32xf32> to vector<1x32xf32>
    %cst_184 = arith.constant 9.99999974E-6 : f32
    %217 = vector.broadcast %cst_184 : f32 to vector<1x32xf32>
    %218 = arith.addf %214, %217 : vector<1x32xf32>
    %219 = math.rsqrt %218 : vector<1x32xf32>
    %220 = arith.mulf %216, %219 : vector<1x32xf32>
    %221 = vector.broadcast %210 : vector<1x32xf32> to vector<200x32xf32>
    %222 = arith.subf %204, %221 : vector<200x32xf32>
    %223 = vector.broadcast %220 : vector<1x32xf32> to vector<200x32xf32>
    %224 = arith.mulf %222, %223 : vector<200x32xf32>
    %c1_185 = arith.constant 1 : index
    %c0_186 = arith.constant 0 : index
    %c0_187 = arith.constant 0 : index
    %225 = vector.load %arg4[%c1_185, %c0_186, %c0_187] : memref<4x1x32xf32, #tpu.memory_space<vmem>>, vector<1x1x32xf32>
    %226 = vector.shape_cast %225 : vector<1x1x32xf32> to vector<1x32xf32>
    %227 = vector.broadcast %226 : vector<1x32xf32> to vector<200x32xf32>
    %228 = arith.addf %224, %227 : vector<200x32xf32>
    %cst_188 = arith.constant 0.000000e+00 : f32
    %229 = vector.broadcast %cst_188 : f32 to vector<200x32xf32>
    %230 = arith.maximumf %228, %229 : vector<200x32xf32>
    %c0_189 = arith.constant 0 : index
    %c0_190 = arith.constant 0 : index
    %231 = vector.load %arg13[%c0_189, %c0_190] : memref<648x32xf32, #tpu.memory_space<vmem>>, vector<200x32xf32>
    tpu.vector_store %arg13[%c0_189, %c0_190], %230 {strides = array<i32>} : memref<648x32xf32, #tpu.memory_space<vmem>>, vector<200x32xf32>,
    %c0_191 = arith.constant 0 : index
    %c0_192 = arith.constant 0 : index
    %232 = tpu.strided_load %arg13[%c0_191, %c0_192] {strides = array<i32: 2, 1>} : memref<648x32xf32, #tpu.memory_space<vmem>>, vector<4x32xf32>
    %c1_193 = arith.constant 1 : index
    %c0_194 = arith.constant 0 : index
    %233 = tpu.strided_load %arg13[%c1_193, %c0_194] {strides = array<i32: 2, 1>} : memref<648x32xf32, #tpu.memory_space<vmem>>, vector<4x32xf32>
    %c10_195 = arith.constant 10 : index
    %c0_196 = arith.constant 0 : index
    %234 = tpu.strided_load %arg13[%c10_195, %c0_196] {strides = array<i32: 2, 1>} : memref<648x32xf32, #tpu.memory_space<vmem>>, vector<4x32xf32>
    %c11_197 = arith.constant 11 : index
    %c0_198 = arith.constant 0 : index
    %235 = tpu.strided_load %arg13[%c11_197, %c0_198] {strides = array<i32: 2, 1>} : memref<648x32xf32, #tpu.memory_space<vmem>>, vector<4x32xf32>
    %236 = arith.maximumf %232, %233 : vector<4x32xf32>
    %237 = arith.maximumf %234, %235 : vector<4x32xf32>
    %238 = arith.maximumf %236, %237 : vector<4x32xf32>
    %c7 = arith.constant 7 : index
    %c0_199 = arith.constant 0 : index
    %239 = vector.load %arg10[%c7, %c0_199] : memref<88x32xf32, #tpu.memory_space<vmem>>, vector<4x32xf32>
    tpu.vector_store %arg10[%c7, %c0_199], %238 {strides = array<i32>} : memref<88x32xf32, #tpu.memory_space<vmem>>, vector<4x32xf32>,
    %c20_200 = arith.constant 20 : index
    %c0_201 = arith.constant 0 : index
    %240 = tpu.strided_load %arg13[%c20_200, %c0_201] {strides = array<i32: 2, 1>} : memref<648x32xf32, #tpu.memory_space<vmem>>, vector<4x32xf32>
    %c21_202 = arith.constant 21 : index
    %c0_203 = arith.constant 0 : index
    %241 = tpu.strided_load %arg13[%c21_202, %c0_203] {strides = array<i32: 2, 1>} : memref<648x32xf32, #tpu.memory_space<vmem>>, vector<4x32xf32>
    %c30 = arith.constant 30 : index
    %c0_204 = arith.constant 0 : index
    %242 = tpu.strided_load %arg13[%c30, %c0_204] {strides = array<i32: 2, 1>} : memref<648x32xf32, #tpu.memory_space<vmem>>, vector<4x32xf32>
    %c31_205 = arith.constant 31 : index
    %c0_206 = arith.constant 0 : index
    %243 = tpu.strided_load %arg13[%c31_205, %c0_206] {strides = array<i32: 2, 1>} : memref<648x32xf32, #tpu.memory_space<vmem>>, vector<4x32xf32>
    %244 = arith.maximumf %240, %241 : vector<4x32xf32>
    %245 = arith.maximumf %242, %243 : vector<4x32xf32>
    %246 = arith.maximumf %244, %245 : vector<4x32xf32>
    %c13 = arith.constant 13 : index
    %c0_207 = arith.constant 0 : index
    %247 = vector.load %arg10[%c13, %c0_207] : memref<88x32xf32, #tpu.memory_space<vmem>>, vector<4x32xf32>
    tpu.vector_store %arg10[%c13, %c0_207], %246 {strides = array<i32>} : memref<88x32xf32, #tpu.memory_space<vmem>>, vector<4x32xf32>,
    %c40 = arith.constant 40 : index
    %c0_208 = arith.constant 0 : index
    %248 = tpu.strided_load %arg13[%c40, %c0_208] {strides = array<i32: 2, 1>} : memref<648x32xf32, #tpu.memory_space<vmem>>, vector<4x32xf32>
    %c41_209 = arith.constant 41 : index
    %c0_210 = arith.constant 0 : index
    %249 = tpu.strided_load %arg13[%c41_209, %c0_210] {strides = array<i32: 2, 1>} : memref<648x32xf32, #tpu.memory_space<vmem>>, vector<4x32xf32>
    %c50 = arith.constant 50 : index
    %c0_211 = arith.constant 0 : index
    %250 = tpu.strided_load %arg13[%c50, %c0_211] {strides = array<i32: 2, 1>} : memref<648x32xf32, #tpu.memory_space<vmem>>, vector<4x32xf32>
    %c51_212 = arith.constant 51 : index
    %c0_213 = arith.constant 0 : index
    %251 = tpu.strided_load %arg13[%c51_212, %c0_213] {strides = array<i32: 2, 1>} : memref<648x32xf32, #tpu.memory_space<vmem>>, vector<4x32xf32>
    %252 = arith.maximumf %248, %249 : vector<4x32xf32>
    %253 = arith.maximumf %250, %251 : vector<4x32xf32>
    %254 = arith.maximumf %252, %253 : vector<4x32xf32>
    %c19_214 = arith.constant 19 : index
    %c0_215 = arith.constant 0 : index
    %255 = vector.load %arg10[%c19_214, %c0_215] : memref<88x32xf32, #tpu.memory_space<vmem>>, vector<4x32xf32>
    tpu.vector_store %arg10[%c19_214, %c0_215], %254 {strides = array<i32>} : memref<88x32xf32, #tpu.memory_space<vmem>>, vector<4x32xf32>,
    %c60 = arith.constant 60 : index
    %c0_216 = arith.constant 0 : index
    %256 = tpu.strided_load %arg13[%c60, %c0_216] {strides = array<i32: 2, 1>} : memref<648x32xf32, #tpu.memory_space<vmem>>, vector<4x32xf32>
    %c61_217 = arith.constant 61 : index
    %c0_218 = arith.constant 0 : index
    %257 = tpu.strided_load %arg13[%c61_217, %c0_218] {strides = array<i32: 2, 1>} : memref<648x32xf32, #tpu.memory_space<vmem>>, vector<4x32xf32>
    %c70 = arith.constant 70 : index
    %c0_219 = arith.constant 0 : index
    %258 = tpu.strided_load %arg13[%c70, %c0_219] {strides = array<i32: 2, 1>} : memref<648x32xf32, #tpu.memory_space<vmem>>, vector<4x32xf32>
    %c71_220 = arith.constant 71 : index
    %c0_221 = arith.constant 0 : index
    %259 = tpu.strided_load %arg13[%c71_220, %c0_221] {strides = array<i32: 2, 1>} : memref<648x32xf32, #tpu.memory_space<vmem>>, vector<4x32xf32>
    %260 = arith.maximumf %256, %257 : vector<4x32xf32>
    %261 = arith.maximumf %258, %259 : vector<4x32xf32>
    %262 = arith.maximumf %260, %261 : vector<4x32xf32>
    %c25 = arith.constant 25 : index
    %c0_222 = arith.constant 0 : index
    %263 = vector.load %arg10[%c25, %c0_222] : memref<88x32xf32, #tpu.memory_space<vmem>>, vector<4x32xf32>
    tpu.vector_store %arg10[%c25, %c0_222], %262 {strides = array<i32>} : memref<88x32xf32, #tpu.memory_space<vmem>>, vector<4x32xf32>,
    %c100 = arith.constant 100 : index
    %c0_223 = arith.constant 0 : index
    %264 = tpu.strided_load %arg13[%c100, %c0_223] {strides = array<i32: 2, 1>} : memref<648x32xf32, #tpu.memory_space<vmem>>, vector<4x32xf32>
    %c101 = arith.constant 101 : index
    %c0_224 = arith.constant 0 : index
    %265 = tpu.strided_load %arg13[%c101, %c0_224] {strides = array<i32: 2, 1>} : memref<648x32xf32, #tpu.memory_space<vmem>>, vector<4x32xf32>
    %c110 = arith.constant 110 : index
    %c0_225 = arith.constant 0 : index
    %266 = tpu.strided_load %arg13[%c110, %c0_225] {strides = array<i32: 2, 1>} : memref<648x32xf32, #tpu.memory_space<vmem>>, vector<4x32xf32>
    %c111_226 = arith.constant 111 : index
    %c0_227 = arith.constant 0 : index
    %267 = tpu.strided_load %arg13[%c111_226, %c0_227] {strides = array<i32: 2, 1>} : memref<648x32xf32, #tpu.memory_space<vmem>>, vector<4x32xf32>
    %268 = arith.maximumf %264, %265 : vector<4x32xf32>
    %269 = arith.maximumf %266, %267 : vector<4x32xf32>
    %270 = arith.maximumf %268, %269 : vector<4x32xf32>
    %c43 = arith.constant 43 : index
    %c0_228 = arith.constant 0 : index
    %271 = vector.load %arg10[%c43, %c0_228] : memref<88x32xf32, #tpu.memory_space<vmem>>, vector<4x32xf32>
    tpu.vector_store %arg10[%c43, %c0_228], %270 {strides = array<i32>} : memref<88x32xf32, #tpu.memory_space<vmem>>, vector<4x32xf32>,
    %c120 = arith.constant 120 : index
    %c0_229 = arith.constant 0 : index
    %272 = tpu.strided_load %arg13[%c120, %c0_229] {strides = array<i32: 2, 1>} : memref<648x32xf32, #tpu.memory_space<vmem>>, vector<4x32xf32>
    %c121_230 = arith.constant 121 : index
    %c0_231 = arith.constant 0 : index
    %273 = tpu.strided_load %arg13[%c121_230, %c0_231] {strides = array<i32: 2, 1>} : memref<648x32xf32, #tpu.memory_space<vmem>>, vector<4x32xf32>
    %c130 = arith.constant 130 : index
    %c0_232 = arith.constant 0 : index
    %274 = tpu.strided_load %arg13[%c130, %c0_232] {strides = array<i32: 2, 1>} : memref<648x32xf32, #tpu.memory_space<vmem>>, vector<4x32xf32>
    %c131_233 = arith.constant 131 : index
    %c0_234 = arith.constant 0 : index
    %275 = tpu.strided_load %arg13[%c131_233, %c0_234] {strides = array<i32: 2, 1>} : memref<648x32xf32, #tpu.memory_space<vmem>>, vector<4x32xf32>
    %276 = arith.maximumf %272, %273 : vector<4x32xf32>
    %277 = arith.maximumf %274, %275 : vector<4x32xf32>
    %278 = arith.maximumf %276, %277 : vector<4x32xf32>
    %c49 = arith.constant 49 : index
    %c0_235 = arith.constant 0 : index
    %279 = vector.load %arg10[%c49, %c0_235] : memref<88x32xf32, #tpu.memory_space<vmem>>, vector<4x32xf32>
    tpu.vector_store %arg10[%c49, %c0_235], %278 {strides = array<i32>} : memref<88x32xf32, #tpu.memory_space<vmem>>, vector<4x32xf32>,
    %c140 = arith.constant 140 : index
    %c0_236 = arith.constant 0 : index
    %280 = tpu.strided_load %arg13[%c140, %c0_236] {strides = array<i32: 2, 1>} : memref<648x32xf32, #tpu.memory_space<vmem>>, vector<4x32xf32>
    %c141_237 = arith.constant 141 : index
    %c0_238 = arith.constant 0 : index
    %281 = tpu.strided_load %arg13[%c141_237, %c0_238] {strides = array<i32: 2, 1>} : memref<648x32xf32, #tpu.memory_space<vmem>>, vector<4x32xf32>
    %c150 = arith.constant 150 : index
    %c0_239 = arith.constant 0 : index
    %282 = tpu.strided_load %arg13[%c150, %c0_239] {strides = array<i32: 2, 1>} : memref<648x32xf32, #tpu.memory_space<vmem>>, vector<4x32xf32>
    %c151_240 = arith.constant 151 : index
    %c0_241 = arith.constant 0 : index
    %283 = tpu.strided_load %arg13[%c151_240, %c0_241] {strides = array<i32: 2, 1>} : memref<648x32xf32, #tpu.memory_space<vmem>>, vector<4x32xf32>
    %284 = arith.maximumf %280, %281 : vector<4x32xf32>
    %285 = arith.maximumf %282, %283 : vector<4x32xf32>
    %286 = arith.maximumf %284, %285 : vector<4x32xf32>
    %c55_242 = arith.constant 55 : index
    %c0_243 = arith.constant 0 : index
    %287 = vector.load %arg10[%c55_242, %c0_243] : memref<88x32xf32, #tpu.memory_space<vmem>>, vector<4x32xf32>
    tpu.vector_store %arg10[%c55_242, %c0_243], %286 {strides = array<i32>} : memref<88x32xf32, #tpu.memory_space<vmem>>, vector<4x32xf32>,
    %c160_244 = arith.constant 160 : index
    %c0_245 = arith.constant 0 : index
    %288 = tpu.strided_load %arg13[%c160_244, %c0_245] {strides = array<i32: 2, 1>} : memref<648x32xf32, #tpu.memory_space<vmem>>, vector<4x32xf32>
    %c161_246 = arith.constant 161 : index
    %c0_247 = arith.constant 0 : index
    %289 = tpu.strided_load %arg13[%c161_246, %c0_247] {strides = array<i32: 2, 1>} : memref<648x32xf32, #tpu.memory_space<vmem>>, vector<4x32xf32>
    %c170 = arith.constant 170 : index
    %c0_248 = arith.constant 0 : index
    %290 = tpu.strided_load %arg13[%c170, %c0_248] {strides = array<i32: 2, 1>} : memref<648x32xf32, #tpu.memory_space<vmem>>, vector<4x32xf32>
    %c171_249 = arith.constant 171 : index
    %c0_250 = arith.constant 0 : index
    %291 = tpu.strided_load %arg13[%c171_249, %c0_250] {strides = array<i32: 2, 1>} : memref<648x32xf32, #tpu.memory_space<vmem>>, vector<4x32xf32>
    %292 = arith.maximumf %288, %289 : vector<4x32xf32>
    %293 = arith.maximumf %290, %291 : vector<4x32xf32>
    %294 = arith.maximumf %292, %293 : vector<4x32xf32>
    %c61_251 = arith.constant 61 : index
    %c0_252 = arith.constant 0 : index
    %295 = vector.load %arg10[%c61_251, %c0_252] : memref<88x32xf32, #tpu.memory_space<vmem>>, vector<4x32xf32>
    tpu.vector_store %arg10[%c61_251, %c0_252], %294 {strides = array<i32>} : memref<88x32xf32, #tpu.memory_space<vmem>>, vector<4x32xf32>,
    %c0_253 = arith.constant 0 : index
    %c0_254 = arith.constant 0 : index
    %296 = vector.load %arg10[%c0_253, %c0_254] : memref<88x32xf32, #tpu.memory_space<vmem>>, vector<72x32xf32>
    %c0_255 = arith.constant 0 : index
    %c0_256 = arith.constant 0 : index
    %297 = vector.load %arg12[%c0_255, %c0_256] : memref<648x288xf32, #tpu.memory_space<vmem>>, vector<72x32xf32>
    tpu.vector_store %arg12[%c0_255, %c0_256], %296 {strides = array<i32>} : memref<648x288xf32, #tpu.memory_space<vmem>>, vector<72x32xf32>,
    %c1_257 = arith.constant 1 : index
    %c0_258 = arith.constant 0 : index
    %298 = vector.load %arg10[%c1_257, %c0_258] : memref<88x32xf32, #tpu.memory_space<vmem>>, vector<72x32xf32>
    %c0_259 = arith.constant 0 : index
    %c32_260 = arith.constant 32 : index
    %299 = vector.load %arg12[%c0_259, %c32_260] : memref<648x288xf32, #tpu.memory_space<vmem>>, vector<72x32xf32>
    tpu.vector_store %arg12[%c0_259, %c32_260], %298 {strides = array<i32>} : memref<648x288xf32, #tpu.memory_space<vmem>>, vector<72x32xf32>,
    %c2_261 = arith.constant 2 : index
    %c0_262 = arith.constant 0 : index
    %300 = vector.load %arg10[%c2_261, %c0_262] : memref<88x32xf32, #tpu.memory_space<vmem>>, vector<72x32xf32>
    %c0_263 = arith.constant 0 : index
    %c64_264 = arith.constant 64 : index
    %301 = vector.load %arg12[%c0_263, %c64_264] : memref<648x288xf32, #tpu.memory_space<vmem>>, vector<72x32xf32>
    tpu.vector_store %arg12[%c0_263, %c64_264], %300 {strides = array<i32>} : memref<648x288xf32, #tpu.memory_space<vmem>>, vector<72x32xf32>,
    %c6 = arith.constant 6 : index
    %c0_265 = arith.constant 0 : index
    %302 = vector.load %arg10[%c6, %c0_265] : memref<88x32xf32, #tpu.memory_space<vmem>>, vector<72x32xf32>
    %c0_266 = arith.constant 0 : index
    %c96_267 = arith.constant 96 : index
    %303 = vector.load %arg12[%c0_266, %c96_267] : memref<648x288xf32, #tpu.memory_space<vmem>>, vector<72x32xf32>
    tpu.vector_store %arg12[%c0_266, %c96_267], %302 {strides = array<i32>} : memref<648x288xf32, #tpu.memory_space<vmem>>, vector<72x32xf32>,
    %c7_268 = arith.constant 7 : index
    %c0_269 = arith.constant 0 : index
    %304 = vector.load %arg10[%c7_268, %c0_269] : memref<88x32xf32, #tpu.memory_space<vmem>>, vector<72x32xf32>
    %c0_270 = arith.constant 0 : index
    %c128_271 = arith.constant 128 : index
    %305 = vector.load %arg12[%c0_270, %c128_271] : memref<648x288xf32, #tpu.memory_space<vmem>>, vector<72x32xf32>
    tpu.vector_store %arg12[%c0_270, %c128_271], %304 {strides = array<i32>} : memref<648x288xf32, #tpu.memory_space<vmem>>, vector<72x32xf32>,
    %c8 = arith.constant 8 : index
    %c0_272 = arith.constant 0 : index
    %306 = vector.load %arg10[%c8, %c0_272] : memref<88x32xf32, #tpu.memory_space<vmem>>, vector<72x32xf32>
    %c0_273 = arith.constant 0 : index
    %c160_274 = arith.constant 160 : index
    %307 = vector.load %arg12[%c0_273, %c160_274] : memref<648x288xf32, #tpu.memory_space<vmem>>, vector<72x32xf32>
    tpu.vector_store %arg12[%c0_273, %c160_274], %306 {strides = array<i32>} : memref<648x288xf32, #tpu.memory_space<vmem>>, vector<72x32xf32>,
    %c12_275 = arith.constant 12 : index
    %c0_276 = arith.constant 0 : index
    %308 = vector.load %arg10[%c12_275, %c0_276] : memref<88x32xf32, #tpu.memory_space<vmem>>, vector<72x32xf32>
    %c0_277 = arith.constant 0 : index
    %c192_278 = arith.constant 192 : index
    %309 = vector.load %arg12[%c0_277, %c192_278] : memref<648x288xf32, #tpu.memory_space<vmem>>, vector<72x32xf32>
    tpu.vector_store %arg12[%c0_277, %c192_278], %308 {strides = array<i32>} : memref<648x288xf32, #tpu.memory_space<vmem>>, vector<72x32xf32>,
    %c13_279 = arith.constant 13 : index
    %c0_280 = arith.constant 0 : index
    %310 = vector.load %arg10[%c13_279, %c0_280] : memref<88x32xf32, #tpu.memory_space<vmem>>, vector<72x32xf32>
    %c0_281 = arith.constant 0 : index
    %c224_282 = arith.constant 224 : index
    %311 = vector.load %arg12[%c0_281, %c224_282] : memref<648x288xf32, #tpu.memory_space<vmem>>, vector<72x32xf32>
    tpu.vector_store %arg12[%c0_281, %c224_282], %310 {strides = array<i32>} : memref<648x288xf32, #tpu.memory_space<vmem>>, vector<72x32xf32>,
    %c14 = arith.constant 14 : index
    %c0_283 = arith.constant 0 : index
    %312 = vector.load %arg10[%c14, %c0_283] : memref<88x32xf32, #tpu.memory_space<vmem>>, vector<72x32xf32>
    %c0_284 = arith.constant 0 : index
    %c256_285 = arith.constant 256 : index
    %313 = vector.load %arg12[%c0_284, %c256_285] : memref<648x288xf32, #tpu.memory_space<vmem>>, vector<72x32xf32>
    tpu.vector_store %arg12[%c0_284, %c256_285], %312 {strides = array<i32>} : memref<648x288xf32, #tpu.memory_space<vmem>>, vector<72x32xf32>,
    %c0_286 = arith.constant 0 : index
    %c0_287 = arith.constant 0 : index
    %314 = vector.load %arg12[%c0_286, %c0_287] : memref<648x288xf32, #tpu.memory_space<vmem>>, vector<72x288xf32>
    %c2_288 = arith.constant 2 : index
    %c0_289 = arith.constant 0 : index
    %c0_290 = arith.constant 0 : index
    %315 = vector.load %arg2[%c2_288, %c0_289, %c0_290] : memref<4x288x32xf32, #tpu.memory_space<vmem>>, vector<1x288x32xf32>
    %316 = vector.shape_cast %315 : vector<1x288x32xf32> to vector<288x32xf32>
    %cst_291 = arith.constant dense<0.000000e+00> : vector<72x32xf32>
    %317 = tpu.matmul %314, %316, %cst_291 {dimension_numbers = #tpu.dot_dimension_numbers<[1], [0], [0], [1], [0, 0, 1, 1], [], []>} : vector<72x288xf32>, vector<288x32xf32>, vector<72x32xf32> -> vector<72x32xf32>
    %c2_292 = arith.constant 2 : index
    %c0_293 = arith.constant 0 : index
    %318 = vector.load %arg5[%c2_292, %c0_293] : memref<4x648xf32, #tpu.memory_space<vmem>>, vector<1x72xf32>
    %cst_294 = arith.constant dense<0.000000e+00> : vector<1x32xf32>
    %319 = tpu.matmul %318, %317, %cst_294 {dimension_numbers = #tpu.dot_dimension_numbers<[1], [0], [0], [1], [0, 0, 1, 1], [], []>} : vector<1x72xf32>, vector<72x32xf32>, vector<1x32xf32> -> vector<1x32xf32>
    %320 = arith.mulf %317, %317 : vector<72x32xf32>
    %cst_295 = arith.constant dense<0.000000e+00> : vector<1x32xf32>
    %321 = tpu.matmul %318, %320, %cst_295 {dimension_numbers = #tpu.dot_dimension_numbers<[1], [0], [0], [1], [0, 0, 1, 1], [], []>} : vector<1x72xf32>, vector<72x32xf32>, vector<1x32xf32> -> vector<1x32xf32>
    %cst_296 = arith.constant 3.200000e+01 : f32
    %322 = vector.broadcast %cst_296 : f32 to vector<1x32xf32>
    %323 = arith.divf %319, %322 : vector<1x32xf32>
    %cst_297 = arith.constant 3.200000e+01 : f32
    %324 = vector.broadcast %cst_297 : f32 to vector<1x32xf32>
    %325 = arith.divf %321, %324 : vector<1x32xf32>
    %326 = arith.mulf %323, %323 : vector<1x32xf32>
    %327 = arith.subf %325, %326 : vector<1x32xf32>
    %c2_298 = arith.constant 2 : index
    %c0_299 = arith.constant 0 : index
    %c0_300 = arith.constant 0 : index
    %328 = vector.load %arg3[%c2_298, %c0_299, %c0_300] : memref<4x1x32xf32, #tpu.memory_space<vmem>>, vector<1x1x32xf32>
    %329 = vector.shape_cast %328 : vector<1x1x32xf32> to vector<1x32xf32>
    %cst_301 = arith.constant 9.99999974E-6 : f32
    %330 = vector.broadcast %cst_301 : f32 to vector<1x32xf32>
    %331 = arith.addf %327, %330 : vector<1x32xf32>
    %332 = math.rsqrt %331 : vector<1x32xf32>
    %333 = arith.mulf %329, %332 : vector<1x32xf32>
    %334 = vector.broadcast %323 : vector<1x32xf32> to vector<72x32xf32>
    %335 = arith.subf %317, %334 : vector<72x32xf32>
    %336 = vector.broadcast %333 : vector<1x32xf32> to vector<72x32xf32>
    %337 = arith.mulf %335, %336 : vector<72x32xf32>
    %c2_302 = arith.constant 2 : index
    %c0_303 = arith.constant 0 : index
    %c0_304 = arith.constant 0 : index
    %338 = vector.load %arg4[%c2_302, %c0_303, %c0_304] : memref<4x1x32xf32, #tpu.memory_space<vmem>>, vector<1x1x32xf32>
    %339 = vector.shape_cast %338 : vector<1x1x32xf32> to vector<1x32xf32>
    %340 = vector.broadcast %339 : vector<1x32xf32> to vector<72x32xf32>
    %341 = arith.addf %337, %340 : vector<72x32xf32>
    %cst_305 = arith.constant 0.000000e+00 : f32
    %342 = vector.broadcast %cst_305 : f32 to vector<72x32xf32>
    %343 = arith.maximumf %341, %342 : vector<72x32xf32>
    %c0_306 = arith.constant 0 : index
    %c0_307 = arith.constant 0 : index
    %344 = vector.load %arg13[%c0_306, %c0_307] : memref<648x32xf32, #tpu.memory_space<vmem>>, vector<72x32xf32>
    tpu.vector_store %arg13[%c0_306, %c0_307], %343 {strides = array<i32>} : memref<648x32xf32, #tpu.memory_space<vmem>>, vector<72x32xf32>,
    %c0_308 = arith.constant 0 : index
    %c0_309 = arith.constant 0 : index
    %345 = tpu.strided_load %arg13[%c0_308, %c0_309] {strides = array<i32: 2, 1>} : memref<648x32xf32, #tpu.memory_space<vmem>>, vector<2x32xf32>
    %c1_310 = arith.constant 1 : index
    %c0_311 = arith.constant 0 : index
    %346 = tpu.strided_load %arg13[%c1_310, %c0_311] {strides = array<i32: 2, 1>} : memref<648x32xf32, #tpu.memory_space<vmem>>, vector<2x32xf32>
    %c6_312 = arith.constant 6 : index
    %c0_313 = arith.constant 0 : index
    %347 = tpu.strided_load %arg13[%c6_312, %c0_313] {strides = array<i32: 2, 1>} : memref<648x32xf32, #tpu.memory_space<vmem>>, vector<2x32xf32>
    %c7_314 = arith.constant 7 : index
    %c0_315 = arith.constant 0 : index
    %348 = tpu.strided_load %arg13[%c7_314, %c0_315] {strides = array<i32: 2, 1>} : memref<648x32xf32, #tpu.memory_space<vmem>>, vector<2x32xf32>
    %349 = arith.maximumf %345, %346 : vector<2x32xf32>
    %350 = arith.maximumf %347, %348 : vector<2x32xf32>
    %351 = arith.maximumf %349, %350 : vector<2x32xf32>
    %c5 = arith.constant 5 : index
    %c0_316 = arith.constant 0 : index
    %352 = vector.load %arg11[%c5, %c0_316] : memref<48x32xf32, #tpu.memory_space<vmem>>, vector<2x32xf32>
    tpu.vector_store %arg11[%c5, %c0_316], %351 {strides = array<i32>} : memref<48x32xf32, #tpu.memory_space<vmem>>, vector<2x32xf32>,
    %c12_317 = arith.constant 12 : index
    %c0_318 = arith.constant 0 : index
    %353 = tpu.strided_load %arg13[%c12_317, %c0_318] {strides = array<i32: 2, 1>} : memref<648x32xf32, #tpu.memory_space<vmem>>, vector<2x32xf32>
    %c13_319 = arith.constant 13 : index
    %c0_320 = arith.constant 0 : index
    %354 = tpu.strided_load %arg13[%c13_319, %c0_320] {strides = array<i32: 2, 1>} : memref<648x32xf32, #tpu.memory_space<vmem>>, vector<2x32xf32>
    %c18_321 = arith.constant 18 : index
    %c0_322 = arith.constant 0 : index
    %355 = tpu.strided_load %arg13[%c18_321, %c0_322] {strides = array<i32: 2, 1>} : memref<648x32xf32, #tpu.memory_space<vmem>>, vector<2x32xf32>
    %c19_323 = arith.constant 19 : index
    %c0_324 = arith.constant 0 : index
    %356 = tpu.strided_load %arg13[%c19_323, %c0_324] {strides = array<i32: 2, 1>} : memref<648x32xf32, #tpu.memory_space<vmem>>, vector<2x32xf32>
    %357 = arith.maximumf %353, %354 : vector<2x32xf32>
    %358 = arith.maximumf %355, %356 : vector<2x32xf32>
    %359 = arith.maximumf %357, %358 : vector<2x32xf32>
    %c9 = arith.constant 9 : index
    %c0_325 = arith.constant 0 : index
    %360 = vector.load %arg11[%c9, %c0_325] : memref<48x32xf32, #tpu.memory_space<vmem>>, vector<2x32xf32>
    tpu.vector_store %arg11[%c9, %c0_325], %359 {strides = array<i32>} : memref<48x32xf32, #tpu.memory_space<vmem>>, vector<2x32xf32>,
    %c36_326 = arith.constant 36 : index
    %c0_327 = arith.constant 0 : index
    %361 = tpu.strided_load %arg13[%c36_326, %c0_327] {strides = array<i32: 2, 1>} : memref<648x32xf32, #tpu.memory_space<vmem>>, vector<2x32xf32>
    %c37_328 = arith.constant 37 : index
    %c0_329 = arith.constant 0 : index
    %362 = tpu.strided_load %arg13[%c37_328, %c0_329] {strides = array<i32: 2, 1>} : memref<648x32xf32, #tpu.memory_space<vmem>>, vector<2x32xf32>
    %c42 = arith.constant 42 : index
    %c0_330 = arith.constant 0 : index
    %363 = tpu.strided_load %arg13[%c42, %c0_330] {strides = array<i32: 2, 1>} : memref<648x32xf32, #tpu.memory_space<vmem>>, vector<2x32xf32>
    %c43_331 = arith.constant 43 : index
    %c0_332 = arith.constant 0 : index
    %364 = tpu.strided_load %arg13[%c43_331, %c0_332] {strides = array<i32: 2, 1>} : memref<648x32xf32, #tpu.memory_space<vmem>>, vector<2x32xf32>
    %365 = arith.maximumf %361, %362 : vector<2x32xf32>
    %366 = arith.maximumf %363, %364 : vector<2x32xf32>
    %367 = arith.maximumf %365, %366 : vector<2x32xf32>
    %c21_333 = arith.constant 21 : index
    %c0_334 = arith.constant 0 : index
    %368 = vector.load %arg11[%c21_333, %c0_334] : memref<48x32xf32, #tpu.memory_space<vmem>>, vector<2x32xf32>
    tpu.vector_store %arg11[%c21_333, %c0_334], %367 {strides = array<i32>} : memref<48x32xf32, #tpu.memory_space<vmem>>, vector<2x32xf32>,
    %c48 = arith.constant 48 : index
    %c0_335 = arith.constant 0 : index
    %369 = tpu.strided_load %arg13[%c48, %c0_335] {strides = array<i32: 2, 1>} : memref<648x32xf32, #tpu.memory_space<vmem>>, vector<2x32xf32>
    %c49_336 = arith.constant 49 : index
    %c0_337 = arith.constant 0 : index
    %370 = tpu.strided_load %arg13[%c49_336, %c0_337] {strides = array<i32: 2, 1>} : memref<648x32xf32, #tpu.memory_space<vmem>>, vector<2x32xf32>
    %c54_338 = arith.constant 54 : index
    %c0_339 = arith.constant 0 : index
    %371 = tpu.strided_load %arg13[%c54_338, %c0_339] {strides = array<i32: 2, 1>} : memref<648x32xf32, #tpu.memory_space<vmem>>, vector<2x32xf32>
    %c55_340 = arith.constant 55 : index
    %c0_341 = arith.constant 0 : index
    %372 = tpu.strided_load %arg13[%c55_340, %c0_341] {strides = array<i32: 2, 1>} : memref<648x32xf32, #tpu.memory_space<vmem>>, vector<2x32xf32>
    %373 = arith.maximumf %369, %370 : vector<2x32xf32>
    %374 = arith.maximumf %371, %372 : vector<2x32xf32>
    %375 = arith.maximumf %373, %374 : vector<2x32xf32>
    %c25_342 = arith.constant 25 : index
    %c0_343 = arith.constant 0 : index
    %376 = vector.load %arg11[%c25_342, %c0_343] : memref<48x32xf32, #tpu.memory_space<vmem>>, vector<2x32xf32>
    tpu.vector_store %arg11[%c25_342, %c0_343], %375 {strides = array<i32>} : memref<48x32xf32, #tpu.memory_space<vmem>>, vector<2x32xf32>,
    %c0_344 = arith.constant 0 : index
    %c0_345 = arith.constant 0 : index
    %377 = vector.load %arg11[%c0_344, %c0_345] : memref<48x32xf32, #tpu.memory_space<vmem>>, vector<32x32xf32>
    %c0_346 = arith.constant 0 : index
    %c0_347 = arith.constant 0 : index
    %378 = vector.load %arg12[%c0_346, %c0_347] : memref<648x288xf32, #tpu.memory_space<vmem>>, vector<32x32xf32>
    tpu.vector_store %arg12[%c0_346, %c0_347], %377 {strides = array<i32>} : memref<648x288xf32, #tpu.memory_space<vmem>>, vector<32x32xf32>,
    %c1_348 = arith.constant 1 : index
    %c0_349 = arith.constant 0 : index
    %379 = vector.load %arg11[%c1_348, %c0_349] : memref<48x32xf32, #tpu.memory_space<vmem>>, vector<32x32xf32>
    %c0_350 = arith.constant 0 : index
    %c32_351 = arith.constant 32 : index
    %380 = vector.load %arg12[%c0_350, %c32_351] : memref<648x288xf32, #tpu.memory_space<vmem>>, vector<32x32xf32>
    tpu.vector_store %arg12[%c0_350, %c32_351], %379 {strides = array<i32>} : memref<648x288xf32, #tpu.memory_space<vmem>>, vector<32x32xf32>,
    %c2_352 = arith.constant 2 : index
    %c0_353 = arith.constant 0 : index
    %381 = vector.load %arg11[%c2_352, %c0_353] : memref<48x32xf32, #tpu.memory_space<vmem>>, vector<32x32xf32>
    %c0_354 = arith.constant 0 : index
    %c64_355 = arith.constant 64 : index
    %382 = vector.load %arg12[%c0_354, %c64_355] : memref<648x288xf32, #tpu.memory_space<vmem>>, vector<32x32xf32>
    tpu.vector_store %arg12[%c0_354, %c64_355], %381 {strides = array<i32>} : memref<648x288xf32, #tpu.memory_space<vmem>>, vector<32x32xf32>,
    %c4 = arith.constant 4 : index
    %c0_356 = arith.constant 0 : index
    %383 = vector.load %arg11[%c4, %c0_356] : memref<48x32xf32, #tpu.memory_space<vmem>>, vector<32x32xf32>
    %c0_357 = arith.constant 0 : index
    %c96_358 = arith.constant 96 : index
    %384 = vector.load %arg12[%c0_357, %c96_358] : memref<648x288xf32, #tpu.memory_space<vmem>>, vector<32x32xf32>
    tpu.vector_store %arg12[%c0_357, %c96_358], %383 {strides = array<i32>} : memref<648x288xf32, #tpu.memory_space<vmem>>, vector<32x32xf32>,
    %c5_359 = arith.constant 5 : index
    %c0_360 = arith.constant 0 : index
    %385 = vector.load %arg11[%c5_359, %c0_360] : memref<48x32xf32, #tpu.memory_space<vmem>>, vector<32x32xf32>
    %c0_361 = arith.constant 0 : index
    %c128_362 = arith.constant 128 : index
    %386 = vector.load %arg12[%c0_361, %c128_362] : memref<648x288xf32, #tpu.memory_space<vmem>>, vector<32x32xf32>
    tpu.vector_store %arg12[%c0_361, %c128_362], %385 {strides = array<i32>} : memref<648x288xf32, #tpu.memory_space<vmem>>, vector<32x32xf32>,
    %c6_363 = arith.constant 6 : index
    %c0_364 = arith.constant 0 : index
    %387 = vector.load %arg11[%c6_363, %c0_364] : memref<48x32xf32, #tpu.memory_space<vmem>>, vector<32x32xf32>
    %c0_365 = arith.constant 0 : index
    %c160_366 = arith.constant 160 : index
    %388 = vector.load %arg12[%c0_365, %c160_366] : memref<648x288xf32, #tpu.memory_space<vmem>>, vector<32x32xf32>
    tpu.vector_store %arg12[%c0_365, %c160_366], %387 {strides = array<i32>} : memref<648x288xf32, #tpu.memory_space<vmem>>, vector<32x32xf32>,
    %c8_367 = arith.constant 8 : index
    %c0_368 = arith.constant 0 : index
    %389 = vector.load %arg11[%c8_367, %c0_368] : memref<48x32xf32, #tpu.memory_space<vmem>>, vector<32x32xf32>
    %c0_369 = arith.constant 0 : index
    %c192_370 = arith.constant 192 : index
    %390 = vector.load %arg12[%c0_369, %c192_370] : memref<648x288xf32, #tpu.memory_space<vmem>>, vector<32x32xf32>
    tpu.vector_store %arg12[%c0_369, %c192_370], %389 {strides = array<i32>} : memref<648x288xf32, #tpu.memory_space<vmem>>, vector<32x32xf32>,
    %c9_371 = arith.constant 9 : index
    %c0_372 = arith.constant 0 : index
    %391 = vector.load %arg11[%c9_371, %c0_372] : memref<48x32xf32, #tpu.memory_space<vmem>>, vector<32x32xf32>
    %c0_373 = arith.constant 0 : index
    %c224_374 = arith.constant 224 : index
    %392 = vector.load %arg12[%c0_373, %c224_374] : memref<648x288xf32, #tpu.memory_space<vmem>>, vector<32x32xf32>
    tpu.vector_store %arg12[%c0_373, %c224_374], %391 {strides = array<i32>} : memref<648x288xf32, #tpu.memory_space<vmem>>, vector<32x32xf32>,
    %c10_375 = arith.constant 10 : index
    %c0_376 = arith.constant 0 : index
    %393 = vector.load %arg11[%c10_375, %c0_376] : memref<48x32xf32, #tpu.memory_space<vmem>>, vector<32x32xf32>
    %c0_377 = arith.constant 0 : index
    %c256_378 = arith.constant 256 : index
    %394 = vector.load %arg12[%c0_377, %c256_378] : memref<648x288xf32, #tpu.memory_space<vmem>>, vector<32x32xf32>
    tpu.vector_store %arg12[%c0_377, %c256_378], %393 {strides = array<i32>} : memref<648x288xf32, #tpu.memory_space<vmem>>, vector<32x32xf32>,
    %c0_379 = arith.constant 0 : index
    %c0_380 = arith.constant 0 : index
    %395 = vector.load %arg12[%c0_379, %c0_380] : memref<648x288xf32, #tpu.memory_space<vmem>>, vector<32x288xf32>
    %c3 = arith.constant 3 : index
    %c0_381 = arith.constant 0 : index
    %c0_382 = arith.constant 0 : index
    %396 = vector.load %arg2[%c3, %c0_381, %c0_382] : memref<4x288x32xf32, #tpu.memory_space<vmem>>, vector<1x288x32xf32>
    %397 = vector.shape_cast %396 : vector<1x288x32xf32> to vector<288x32xf32>
    %cst_383 = arith.constant dense<0.000000e+00> : vector<32x32xf32>
    %398 = tpu.matmul %395, %397, %cst_383 {dimension_numbers = #tpu.dot_dimension_numbers<[1], [0], [0], [1], [0, 0, 1, 1], [], []>} : vector<32x288xf32>, vector<288x32xf32>, vector<32x32xf32> -> vector<32x32xf32>
    %c3_384 = arith.constant 3 : index
    %c0_385 = arith.constant 0 : index
    %399 = vector.load %arg5[%c3_384, %c0_385] : memref<4x648xf32, #tpu.memory_space<vmem>>, vector<1x32xf32>
    %cst_386 = arith.constant dense<0.000000e+00> : vector<1x32xf32>
    %400 = tpu.matmul %399, %398, %cst_386 {dimension_numbers = #tpu.dot_dimension_numbers<[1], [0], [0], [1], [0, 0, 1, 1], [], []>} : vector<1x32xf32>, vector<32x32xf32>, vector<1x32xf32> -> vector<1x32xf32>
    %401 = arith.mulf %398, %398 : vector<32x32xf32>
    %cst_387 = arith.constant dense<0.000000e+00> : vector<1x32xf32>
    %402 = tpu.matmul %399, %401, %cst_387 {dimension_numbers = #tpu.dot_dimension_numbers<[1], [0], [0], [1], [0, 0, 1, 1], [], []>} : vector<1x32xf32>, vector<32x32xf32>, vector<1x32xf32> -> vector<1x32xf32>
    %cst_388 = arith.constant 8.000000e+00 : f32
    %403 = vector.broadcast %cst_388 : f32 to vector<1x32xf32>
    %404 = arith.divf %400, %403 : vector<1x32xf32>
    %cst_389 = arith.constant 8.000000e+00 : f32
    %405 = vector.broadcast %cst_389 : f32 to vector<1x32xf32>
    %406 = arith.divf %402, %405 : vector<1x32xf32>
    %407 = arith.mulf %404, %404 : vector<1x32xf32>
    %408 = arith.subf %406, %407 : vector<1x32xf32>
    %c3_390 = arith.constant 3 : index
    %c0_391 = arith.constant 0 : index
    %c0_392 = arith.constant 0 : index
    %409 = vector.load %arg3[%c3_390, %c0_391, %c0_392] : memref<4x1x32xf32, #tpu.memory_space<vmem>>, vector<1x1x32xf32>
    %410 = vector.shape_cast %409 : vector<1x1x32xf32> to vector<1x32xf32>
    %cst_393 = arith.constant 9.99999974E-6 : f32
    %411 = vector.broadcast %cst_393 : f32 to vector<1x32xf32>
    %412 = arith.addf %408, %411 : vector<1x32xf32>
    %413 = math.rsqrt %412 : vector<1x32xf32>
    %414 = arith.mulf %410, %413 : vector<1x32xf32>
    %415 = vector.broadcast %404 : vector<1x32xf32> to vector<32x32xf32>
    %416 = arith.subf %398, %415 : vector<32x32xf32>
    %417 = vector.broadcast %414 : vector<1x32xf32> to vector<32x32xf32>
    %418 = arith.mulf %416, %417 : vector<32x32xf32>
    %c3_394 = arith.constant 3 : index
    %c0_395 = arith.constant 0 : index
    %c0_396 = arith.constant 0 : index
    %419 = vector.load %arg4[%c3_394, %c0_395, %c0_396] : memref<4x1x32xf32, #tpu.memory_space<vmem>>, vector<1x1x32xf32>
    %420 = vector.shape_cast %419 : vector<1x1x32xf32> to vector<1x32xf32>
    %421 = vector.broadcast %420 : vector<1x32xf32> to vector<32x32xf32>
    %422 = arith.addf %418, %421 : vector<32x32xf32>
    %cst_397 = arith.constant 0.000000e+00 : f32
    %423 = vector.broadcast %cst_397 : f32 to vector<32x32xf32>
    %424 = arith.maximumf %422, %423 : vector<32x32xf32>
    %c0_398 = arith.constant 0 : index
    %c0_399 = arith.constant 0 : index
    %425 = vector.load %arg13[%c0_398, %c0_399] : memref<648x32xf32, #tpu.memory_space<vmem>>, vector<32x32xf32>
    tpu.vector_store %arg13[%c0_398, %c0_399], %424 {strides = array<i32>} : memref<648x32xf32, #tpu.memory_space<vmem>>, vector<32x32xf32>,
    %c0_400 = arith.constant 0 : index
    %c0_401 = arith.constant 0 : index
    %426 = tpu.strided_load %arg13[%c0_400, %c0_401] {strides = array<i32: 2, 1>} : memref<648x32xf32, #tpu.memory_space<vmem>>, vector<1x32xf32>
    %c1_402 = arith.constant 1 : index
    %c0_403 = arith.constant 0 : index
    %427 = tpu.strided_load %arg13[%c1_402, %c0_403] {strides = array<i32: 2, 1>} : memref<648x32xf32, #tpu.memory_space<vmem>>, vector<1x32xf32>
    %c4_404 = arith.constant 4 : index
    %c0_405 = arith.constant 0 : index
    %428 = tpu.strided_load %arg13[%c4_404, %c0_405] {strides = array<i32: 2, 1>} : memref<648x32xf32, #tpu.memory_space<vmem>>, vector<1x32xf32>
    %c5_406 = arith.constant 5 : index
    %c0_407 = arith.constant 0 : index
    %429 = tpu.strided_load %arg13[%c5_406, %c0_407] {strides = array<i32: 2, 1>} : memref<648x32xf32, #tpu.memory_space<vmem>>, vector<1x32xf32>
    %430 = arith.maximumf %426, %427 : vector<1x32xf32>
    %431 = arith.maximumf %428, %429 : vector<1x32xf32>
    %432 = arith.maximumf %430, %431 : vector<1x32xf32>
    %c0_408 = arith.constant 0 : index
    %c0_409 = arith.constant 0 : index
    %433 = vector.load %arg14[%c0_408, %c0_409] : memref<2x32xf32, #tpu.memory_space<vmem>>, vector<1x32xf32>
    tpu.vector_store %arg14[%c0_408, %c0_409], %432 {strides = array<i32>} : memref<2x32xf32, #tpu.memory_space<vmem>>, vector<1x32xf32>,
    %c16 = arith.constant 16 : index
    %c0_410 = arith.constant 0 : index
    %434 = tpu.strided_load %arg13[%c16, %c0_410] {strides = array<i32: 2, 1>} : memref<648x32xf32, #tpu.memory_space<vmem>>, vector<1x32xf32>
    %c17 = arith.constant 17 : index
    %c0_411 = arith.constant 0 : index
    %435 = tpu.strided_load %arg13[%c17, %c0_411] {strides = array<i32: 2, 1>} : memref<648x32xf32, #tpu.memory_space<vmem>>, vector<1x32xf32>
    %c20_412 = arith.constant 20 : index
    %c0_413 = arith.constant 0 : index
    %436 = tpu.strided_load %arg13[%c20_412, %c0_413] {strides = array<i32: 2, 1>} : memref<648x32xf32, #tpu.memory_space<vmem>>, vector<1x32xf32>
    %c21_414 = arith.constant 21 : index
    %c0_415 = arith.constant 0 : index
    %437 = tpu.strided_load %arg13[%c21_414, %c0_415] {strides = array<i32: 2, 1>} : memref<648x32xf32, #tpu.memory_space<vmem>>, vector<1x32xf32>
    %438 = arith.maximumf %434, %435 : vector<1x32xf32>
    %439 = arith.maximumf %436, %437 : vector<1x32xf32>
    %440 = arith.maximumf %438, %439 : vector<1x32xf32>
    %c1_416 = arith.constant 1 : index
    %c0_417 = arith.constant 0 : index
    %441 = vector.load %arg14[%c1_416, %c0_417] : memref<2x32xf32, #tpu.memory_space<vmem>>, vector<1x32xf32>
    tpu.vector_store %arg14[%c1_416, %c0_417], %440 {strides = array<i32>} : memref<2x32xf32, #tpu.memory_space<vmem>>, vector<1x32xf32>,
    %c0_418 = arith.constant 0 : index
    %c0_419 = arith.constant 0 : index
    %442 = vector.load %arg14[%c0_418, %c0_419] : memref<2x32xf32, #tpu.memory_space<vmem>>, vector<2x32xf32>
    %c0_420 = arith.constant 0 : index
    %c0_421 = arith.constant 0 : index
    %443 = vector.load %arg6[%c0_420, %c0_421] : memref<32x8xf32, #tpu.memory_space<vmem>>, vector<32x8xf32>
    %cst_422 = arith.constant dense<0.000000e+00> : vector<2x8xf32>
    %444 = tpu.matmul %442, %443, %cst_422 {dimension_numbers = #tpu.dot_dimension_numbers<[1], [0], [0], [1], [0, 0, 1, 1], [], []>} : vector<2x32xf32>, vector<32x8xf32>, vector<2x8xf32> -> vector<2x8xf32>
    %c0_423 = arith.constant 0 : index
    %c0_424 = arith.constant 0 : index
    %445 = vector.load %arg7[%c0_423, %c0_424] : memref<1x8xf32, #tpu.memory_space<vmem>>, vector<1x8xf32>
    %446 = vector.broadcast %445 : vector<1x8xf32> to vector<2x8xf32>
    %447 = arith.addf %444, %446 : vector<2x8xf32>
    %c0_425 = arith.constant 0 : index
    %c0_426 = arith.constant 0 : index
    %448 = vector.load %arg8[%c0_425, %c0_426] : memref<2x8xf32, #tpu.memory_space<vmem>>, vector<2x8xf32>
    tpu.vector_store %arg8[%c0_425, %c0_426], %447 {strides = array<i32>} : memref<2x8xf32, #tpu.memory_space<vmem>>, vector<2x8xf32>,
    return
  }
  func.func @transform_0(%arg0: i32) -> (i32, i32) {
    %c0_i32 = arith.constant 0 : i32
    %c0_i32_0 = arith.constant 0 : i32
    %c0_i32_1 = arith.constant 0 : i32
    return %c0_i32, %c0_i32_0 : i32, i32
  }
  func.func @transform_1(%arg0: i32) -> (i32, i32, i32) {
    %c0_i32 = arith.constant 0 : i32
    %c0_i32_0 = arith.constant 0 : i32
    %c0_i32_1 = arith.constant 0 : i32
    %c0_i32_2 = arith.constant 0 : i32
    return %c0_i32, %c0_i32_0, %c0_i32_1 : i32, i32, i32
  }
  func.func @transform_2(%arg0: i32) -> (i32, i32, i32) {
    %c0_i32 = arith.constant 0 : i32
    %c0_i32_0 = arith.constant 0 : i32
    %c0_i32_1 = arith.constant 0 : i32
    %c0_i32_2 = arith.constant 0 : i32
    return %c0_i32, %c0_i32_0, %c0_i32_1 : i32, i32, i32
  }
  func.func @transform_3(%arg0: i32) -> (i32, i32, i32) {
    %c0_i32 = arith.constant 0 : i32
    %c0_i32_0 = arith.constant 0 : i32
    %c0_i32_1 = arith.constant 0 : i32
    %c0_i32_2 = arith.constant 0 : i32
    return %c0_i32, %c0_i32_0, %c0_i32_1 : i32, i32, i32
  }
  func.func @transform_4(%arg0: i32) -> (i32, i32) {
    %c0_i32 = arith.constant 0 : i32
    %c0_i32_0 = arith.constant 0 : i32
    %c0_i32_1 = arith.constant 0 : i32
    return %c0_i32, %c0_i32_0 : i32, i32
  }
  func.func @transform_5(%arg0: i32) -> (i32, i32) {
    %c0_i32 = arith.constant 0 : i32
    %c0_i32_0 = arith.constant 0 : i32
    %c0_i32_1 = arith.constant 0 : i32
    return %c0_i32, %c0_i32_0 : i32, i32
  }
  func.func @transform_6(%arg0: i32) -> (i32, i32) {
    %c0_i32 = arith.constant 0 : i32
    %c0_i32_0 = arith.constant 0 : i32
    %c0_i32_1 = arith.constant 0 : i32
    return %c0_i32, %c0_i32_0 : i32, i32
  }
  func.func @transform_7(%arg0: i32) -> (i32, i32) {
    %c0_i32 = arith.constant 0 : i32
    %c0_i32_0 = arith.constant 0 : i32
    %c0_i32_1 = arith.constant 0 : i32
    return %c0_i32, %c0_i32_0 : i32, i32
  }
}

</mosaic_0001>

<llo_original>
// kernel: cnn4_forward.1
$region0: #{cnn4_forward.1}
  #allocation0 [shape = 'u32[]', space=smem, size = 0x4, offset = 0x4, fixed_abs, tag = 'smem constant byte address 0x4 - core index']
  #allocation1 [shape = 'u32[144,128]{1,0:T(1,128)}', space=vmem, size = 0x12000, scoped, tag = 'internal scratch']
  #allocation2 [shape = 'f32[224,32]{1,0:T(8,128)}', space=vmem, size = 0x1c000, scoped, tag = 'scratch operand']
  #allocation3 [shape = 'f32[88,32]{1,0:T(8,128)}', space=vmem, size = 0xb000, scoped, tag = 'scratch operand']
  #allocation4 [shape = 'f32[48,32]{1,0:T(8,128)}', space=vmem, size = 0x6000, scoped, tag = 'scratch operand']
  #allocation5 [shape = 'f32[648,288]{1,0:T(8,128)}', space=vmem, size = 0xf3000, scoped, tag = 'scratch operand']
  #allocation6 [shape = 'f32[648,32]{1,0:T(8,128)}', space=vmem, size = 0x51000, scoped, tag = 'scratch operand']
  #allocation7 [shape = 'f32[2,32]{1,0:T(2,128)}', space=vmem, size = 0x400, scoped, tag = 'scratch operand']
  %s0 = inlined_call_operand.vmem [shape: f32[688,32], index: 0, kind: input, shape index: {}]
  %s1 = inlined_call_operand.vmem [shape: f32[4,288,32], index: 1, kind: input, shape index: {}]
  %s2 = inlined_call_operand.vmem [shape: f32[4,1,32], index: 2, kind: input, shape index: {}]
  %s3 = inlined_call_operand.vmem [shape: f32[4,1,32], index: 3, kind: input, shape index: {}]
  %s4 = inlined_call_operand.vmem [shape: f32[4,648], index: 4, kind: input, shape index: {}]
  %s5 = inlined_call_operand.vmem [shape: f32[32,8], index: 5, kind: input, shape index: {}]
  %s6 = inlined_call_operand.vmem [shape: f32[1,8], index: 6, kind: input, shape index: {}]
  %s7 = inlined_call_operand.hbm [shape: f32[2,8], index: 7, kind: output, shape index: {}]
  %s8 = sld [smem:[#allocation0]]
  $region38: #{cnn4_forward.1} parent=0
    _
  %s10 = ssub.s32 1, %s8
  %s11 = scalar_select 0, %s10, %s8
  $region1: #{cnn4_forward.1} parent=0
    #allocation8 [shape = 'u8[1024]{0}', space=vmem, size = 0x400, scoped, tag = 'output window, operand 0, single buffered']
    #allocation9 [shape = 's32[1]{0}', space=sflag, size = 0x4, scoped, tag = 'scoped memory for cnn4_forward.1']
    %12 = vsyncpa [#allocation9], 0
    // Predicated region
    $region2: #{cnn4_forward.1} parent=1 // pred_check
      _
    $region3: #{cnn4_forward.1} parent=1 // pred_check_branch
      %14 = sbr.rel (0) target = $region5
    $region4: #{cnn4_forward.1} parent=1 // pred_region
      _
    $region5: #{cnn4_forward.1} parent=1 // pred_fallthru
      _
    // Predicated region
    $region6: #{cnn4_forward.1} parent=1 // pred_check
      _
    $region7: #{cnn4_forward.1} parent=1 // pred_check_branch
      %16 = sbr.rel (0) target = $region9
    $region8: #{cnn4_forward.1} parent=1 // pred_region
      _
    $region9: #{cnn4_forward.1} parent=1 // pred_fallthru
      _
    // Predicated region
    $region10: #{cnn4_forward.1} parent=1 // pred_check
      _
    $region11: #{cnn4_forward.1} parent=1 // pred_check_branch
      %18 = sbr.rel (0) target = $region13
    $region12: #{cnn4_forward.1} parent=1 // pred_region
      _
    $region13: #{cnn4_forward.1} parent=1 // pred_fallthru
      _
    // Predicated region
    $region14: #{cnn4_forward.1} parent=1 // pred_check
      _
    $region15: #{cnn4_forward.1} parent=1 // pred_check_branch
      %20 = sbr.rel (0) target = $region17
    $region16: #{cnn4_forward.1} parent=1 // pred_region
      _
    $region17: #{cnn4_forward.1} parent=1 // pred_fallthru
      _
    // Predicated region
    $region18: #{cnn4_forward.1} parent=1 // pred_check
      _
    $region19: #{cnn4_forward.1} parent=1 // pred_check_branch
      %22 = sbr.rel (0) target = $region21
    $region20: #{cnn4_forward.1} parent=1 // pred_region
      _
    $region21: #{cnn4_forward.1} parent=1 // pred_fallthru
      _
    // Predicated region
    $region22: #{cnn4_forward.1} parent=1 // pred_check
      _
    $region23: #{cnn4_forward.1} parent=1 // pred_check_branch
      %24 = sbr.rel (0) target = $region25
    $region24: #{cnn4_forward.1} parent=1 // pred_region
      _
    $region25: #{cnn4_forward.1} parent=1 // pred_fallthru
      _
    // Predicated region
    $region26: #{cnn4_forward.1} parent=1 // pred_check
      _
    $region27: #{cnn4_forward.1} parent=1 // pred_check_branch
      %26 = sbr.rel (0) target = $region29
    $region28: #{cnn4_forward.1} parent=1 // pred_region
      _
    $region29: #{cnn4_forward.1} parent=1 // pred_fallthru
      _
    %vm27 = vcmask 261120
    %28 = vst.msk [vmem:[#allocation2] sm:$0xff] %vm27, 0.0
    %29 = vst.msk [vmem:[#allocation2 + $0x8] sm:$0xff] %vm27, 0.0
    %30 = vst.msk [vmem:[#allocation2 + $0x10] sm:$0xff] %vm27, 0.0
    %31 = vst.msk [vmem:[#allocation2 + $0x18] sm:$0xff] %vm27, 0.0
    %32 = vst.msk [vmem:[#allocation2 + $0x20] sm:$0xff] %vm27, 0.0
    %33 = vst.msk [vmem:[#allocation2 + $0x28] sm:$0xff] %vm27, 0.0
    %34 = vst.msk [vmem:[#allocation2 + $0x30] sm:$0xff] %vm27, 0.0
    %35 = vst.msk [vmem:[#allocation2 + $0x38] sm:$0xff] %vm27, 0.0
    %36 = vst.msk [vmem:[#allocation2 + $0x40] sm:$0xff] %vm27, 0.0
    %37 = vst.msk [vmem:[#allocation2 + $0x48] sm:$0xff] %vm27, 0.0
    %38 = vst.msk [vmem:[#allocation2 + $0x50] sm:$0xff] %vm27, 0.0
    %39 = vst.msk [vmem:[#allocation2 + $0x58] sm:$0xff] %vm27, 0.0
    %40 = vst.msk [vmem:[#allocation2 + $0x60] sm:$0xff] %vm27, 0.0
    %41 = vst.msk [vmem:[#allocation2 + $0x68] sm:$0xff] %vm27, 0.0
    %42 = vst.msk [vmem:[#allocation2 + $0x70] sm:$0xff] %vm27, 0.0
    %43 = vst.msk [vmem:[#allocation2 + $0x78] sm:$0xff] %vm27, 0.0
    %44 = vst.msk [vmem:[#allocation2 + $0x80] sm:$0xff] %vm27, 0.0
    %45 = vst.msk [vmem:[#allocation2 + $0x88] sm:$0xff] %vm27, 0.0
    %46 = vst.msk [vmem:[#allocation2 + $0x90] sm:$0xff] %vm27, 0.0
    %47 = vst.msk [vmem:[#allocation2 + $0x98] sm:$0xff] %vm27, 0.0
    %48 = vst.msk [vmem:[#allocation2 + $0xa0] sm:$0xff] %vm27, 0.0
    %49 = vst.msk [vmem:[#allocation2 + $0xa8] sm:$0xff] %vm27, 0.0
    %50 = vst.msk [vmem:[#allocation2 + $0xb0] sm:$0xff] %vm27, 0.0
    %51 = vst.msk [vmem:[#allocation2 + $0xb8] sm:$0xff] %vm27, 0.0
    %52 = vst.msk [vmem:[#allocation2 + $0xc0] sm:$0xff] %vm27, 0.0
    %53 = vst.msk [vmem:[#allocation2 + $0xc8] sm:$0xff] %vm27, 0.0
    %54 = vst.msk [vmem:[#allocation2 + $0xd0] sm:$0xff] %vm27, 0.0
    %55 = vst.msk [vmem:[#allocation2 + $0xd8] sm:$0xff] %vm27, 0.0
    %56 = vst.msk [vmem:[#allocation3] sm:$0xff] %vm27, 0.0
    %57 = vst.msk [vmem:[#allocation3 + $0x8] sm:$0xff] %vm27, 0.0
    %58 = vst.msk [vmem:[#allocation3 + $0x10] sm:$0xff] %vm27, 0.0
    %59 = vst.msk [vmem:[#allocation3 + $0x18] sm:$0xff] %vm27, 0.0
    %60 = vst.msk [vmem:[#allocation3 + $0x20] sm:$0xff] %vm27, 0.0
    %61 = vst.msk [vmem:[#allocation3 + $0x28] sm:$0xff] %vm27, 0.0
    %62 = vst.msk [vmem:[#allocation3 + $0x30] sm:$0xff] %vm27, 0.0
    %63 = vst.msk [vmem:[#allocation3 + $0x38] sm:$0xff] %vm27, 0.0
    %64 = vst.msk [vmem:[#allocation3 + $0x40] sm:$0xff] %vm27, 0.0
    %65 = vst.msk [vmem:[#allocation3 + $0x48] sm:$0xff] %vm27, 0.0
    %66 = vst.msk [vmem:[#allocation3 + $0x50] sm:$0xff] %vm27, 0.0
    %67 = vst.msk [vmem:[#allocation4] sm:$0xff] %vm27, 0.0
    %68 = vst.msk [vmem:[#allocation4 + $0x8] sm:$0xff] %vm27, 0.0
    %69 = vst.msk [vmem:[#allocation4 + $0x10] sm:$0xff] %vm27, 0.0
    %70 = vst.msk [vmem:[#allocation4 + $0x18] sm:$0xff] %vm27, 0.0
    %71 = vst.msk [vmem:[#allocation4 + $0x20] sm:$0xff] %vm27, 0.0
    %72 = vst.msk [vmem:[#allocation4 + $0x28] sm:$0xff] %vm27, 0.0
    %v73 = vld [vmem:[%s0] sm:$0xff]
    %v74 = vld [vmem:[%s0 + $0x8] sm:$0xff]
    %v75 = vld [vmem:[%s0 + $0x10] sm:$0xff]
    %v76 = vld [vmem:[%s0 + $0x18] sm:$0xff]
    %v77 = vld [vmem:[%s0 + $0x20] sm:$0xff]
    %v78 = vld [vmem:[%s0 + $0x28] sm:$0xff]
    %v79 = vld [vmem:[%s0 + $0x30] sm:$0xff]
    %v80 = vld [vmem:[%s0 + $0x38] sm:$0xff]
    %v81 = vld [vmem:[%s0 + $0x40] sm:$0xff]
    %v82 = vld [vmem:[%s0 + $0x48] sm:$0xff]
    %v83 = vld [vmem:[%s0 + $0x50] sm:$0xff]
    %v84 = vld [vmem:[%s0 + $0x58] sm:$0xff]
    %v85 = vld [vmem:[%s0 + $0x60] sm:$0xff]
    %v86 = vld [vmem:[%s0 + $0x68] sm:$0xff]
    %v87 = vld [vmem:[%s0 + $0x70] sm:$0xff]
    %v88 = vld [vmem:[%s0 + $0x78] sm:$0xff]
    %v89 = vld [vmem:[%s0 + $0x80] sm:$0xff]
    %v90 = vld [vmem:[%s0 + $0x88] sm:$0xff]
    %v91 = vld [vmem:[%s0 + $0x90] sm:$0xff]
    %v92 = vld [vmem:[%s0 + $0x98] sm:$0xff]
    %v93 = vld [vmem:[%s0 + $0xa0] sm:$0xff]
    %v94 = vld [vmem:[%s0 + $0xa8] sm:$0xff]
    %v95 = vld [vmem:[%s0 + $0xb0] sm:$0xff]
    %v96 = vld [vmem:[%s0 + $0xb8] sm:$0xff]
    %v97 = vld [vmem:[%s0 + $0xc0] sm:$0xff]
    %v98 = vld [vmem:[%s0 + $0xc8] sm:$0xff]
    %v99 = vld [vmem:[%s0 + $0xd0] sm:$0xff]
    %v100 = vld [vmem:[%s0 + $0xd8] sm:$0xff]
    %v101 = vld [vmem:[%s0 + $0xe0] sm:$0xff]
    %v102 = vld [vmem:[%s0 + $0xe8] sm:$0xff]
    %v103 = vld [vmem:[%s0 + $0xf0] sm:$0xff]
    %v104 = vld [vmem:[%s0 + $0xf8] sm:$0xff]
    %v105 = vld [vmem:[%s0 + $0x100] sm:$0xff]
    %v106 = vld [vmem:[%s0 + $0x108] sm:$0xff]
    %v107 = vld [vmem:[%s0 + $0x110] sm:$0xff]
    %v108 = vld [vmem:[%s0 + $0x118] sm:$0xff]
    %v109 = vld [vmem:[%s0 + $0x120] sm:$0xff]
    %v110 = vld [vmem:[%s0 + $0x128] sm:$0xff]
    %v111 = vld [vmem:[%s0 + $0x130] sm:$0xff]
    %v112 = vld [vmem:[%s0 + $0x138] sm:$0xff]
    %v113 = vld [vmem:[%s0 + $0x140] sm:$0xff]
    %v114 = vld [vmem:[%s0 + $0x148] sm:$0xff]
    %v115 = vld [vmem:[%s0 + $0x150] sm:$0xff]
    %v116 = vld [vmem:[%s0 + $0x158] sm:$0xff]
    %v117 = vld [vmem:[%s0 + $0x160] sm:$0xff]
    %v118 = vld [vmem:[%s0 + $0x168] sm:$0xff]
    %v119 = vld [vmem:[%s0 + $0x170] sm:$0xff]
    %v120 = vld [vmem:[%s0 + $0x178] sm:$0xff]
    %v121 = vld [vmem:[%s0 + $0x180] sm:$0xff]
    %v122 = vld [vmem:[%s0 + $0x188] sm:$0xff]
    %v123 = vld [vmem:[%s0 + $0x190] sm:$0xff]
    %v124 = vld [vmem:[%s0 + $0x198] sm:$0xff]
    %v125 = vld [vmem:[%s0 + $0x1a0] sm:$0xff]
    %v126 = vld [vmem:[%s0 + $0x1a8] sm:$0xff]
    %v127 = vld [vmem:[%s0 + $0x1b0] sm:$0xff]
    %v128 = vld [vmem:[%s0 + $0x1b8] sm:$0xff]
    %v129 = vld [vmem:[%s0 + $0x1c0] sm:$0xff]
    %v130 = vld [vmem:[%s0 + $0x1c8] sm:$0xff]
    %v131 = vld [vmem:[%s0 + $0x1d0] sm:$0xff]
    %v132 = vld [vmem:[%s0 + $0x1d8] sm:$0xff]
    %v133 = vld [vmem:[%s0 + $0x1e0] sm:$0xff]
    %v134 = vld [vmem:[%s0 + $0x1e8] sm:$0xff]
    %v135 = vld [vmem:[%s0 + $0x1f0] sm:$0xff]
    %v136 = vld [vmem:[%s0 + $0x1f8] sm:$0xff]
    %v137 = vld [vmem:[%s0 + $0x200] sm:$0xff]
    %v138 = vld [vmem:[%s0 + $0x208] sm:$0xff]
    %v139 = vld [vmem:[%s0 + $0x210] sm:$0xff]
    %v140 = vld [vmem:[%s0 + $0x218] sm:$0xff]
    %v141 = vld [vmem:[%s0 + $0x220] sm:$0xff]
    %v142 = vld [vmem:[%s0 + $0x228] sm:$0xff]
    %v143 = vld [vmem:[%s0 + $0x230] sm:$0xff]
    %v144 = vld [vmem:[%s0 + $0x238] sm:$0xff]
    %v145 = vld [vmem:[%s0 + $0x240] sm:$0xff]
    %v146 = vld [vmem:[%s0 + $0x248] sm:$0xff]
    %v147 = vld [vmem:[%s0 + $0x250] sm:$0xff]
    %v148 = vld [vmem:[%s0 + $0x258] sm:$0xff]
    %v149 = vld [vmem:[%s0 + $0x260] sm:$0xff]
    %v150 = vld [vmem:[%s0 + $0x268] sm:$0xff]
    %v151 = vld [vmem:[%s0 + $0x270] sm:$0xff]
    %v152 = vld [vmem:[%s0 + $0x278] sm:$0xff]
    %v153 = vld [vmem:[%s0 + $0x280] sm:$0xff]
    %154 = vst.msk [vmem:[#allocation5] sm:$0xff] %vm27, %v73
    %155 = vst.msk [vmem:[#allocation5 + $0x18] sm:$0xff] %vm27, %v74
    %156 = vst.msk [vmem:[#allocation5 + $0x30] sm:$0xff] %vm27, %v75
    %157 = vst.msk [vmem:[#allocation5 + $0x48] sm:$0xff] %vm27, %v76
    %158 = vst.msk [vmem:[#allocation5 + $0x60] sm:$0xff] %vm27, %v77
    %159 = vst.msk [vmem:[#allocation5 + $0x78] sm:$0xff] %vm27, %v78
    %160 = vst.msk [vmem:[#allocation5 + $0x90] sm:$0xff] %vm27, %v79
    %161 = vst.msk [vmem:[#allocation5 + $0xa8] sm:$0xff] %vm27, %v80
    %162 = vst.msk [vmem:[#allocation5 + $0xc0] sm:$0xff] %vm27, %v81
    %163 = vst.msk [vmem:[#allocation5 + $0xd8] sm:$0xff] %vm27, %v82
    %164 = vst.msk [vmem:[#allocation5 + $0xf0] sm:$0xff] %vm27, %v83
    %165 = vst.msk [vmem:[#allocation5 + $0x108] sm:$0xff] %vm27, %v84
    %166 = vst.msk [vmem:[#allocation5 + $0x120] sm:$0xff] %vm27, %v85
    %167 = vst.msk [vmem:[#allocation5 + $0x138] sm:$0xff] %vm27, %v86
    %168 = vst.msk [vmem:[#allocation5 + $0x150] sm:$0xff] %vm27, %v87
    %169 = vst.msk [vmem:[#allocation5 + $0x168] sm:$0xff] %vm27, %v88
    %170 = vst.msk [vmem:[#allocation5 + $0x180] sm:$0xff] %vm27, %v89
    %171 = vst.msk [vmem:[#allocation5 + $0x198] sm:$0xff] %vm27, %v90
    %172 = vst.msk [vmem:[#allocation5 + $0x1b0] sm:$0xff] %vm27, %v91
    %173 = vst.msk [vmem:[#allocation5 + $0x1c8] sm:$0xff] %vm27, %v92
    %174 = vst.msk [vmem:[#allocation5 + $0x1e0] sm:$0xff] %vm27, %v93
    %175 = vst.msk [vmem:[#allocation5 + $0x1f8] sm:$0xff] %vm27, %v94
    %176 = vst.msk [vmem:[#allocation5 + $0x210] sm:$0xff] %vm27, %v95
    %177 = vst.msk [vmem:[#allocation5 + $0x228] sm:$0xff] %vm27, %v96
    %178 = vst.msk [vmem:[#allocation5 + $0x240] sm:$0xff] %vm27, %v97
    %179 = vst.msk [vmem:[#allocation5 + $0x258] sm:$0xff] %vm27, %v98
    %180 = vst.msk [vmem:[#allocation5 + $0x270] sm:$0xff] %vm27, %v99
    %181 = vst.msk [vmem:[#allocation5 + $0x288] sm:$0xff] %vm27, %v100
    %182 = vst.msk [vmem:[#allocation5 + $0x2a0] sm:$0xff] %vm27, %v101
    %183 = vst.msk [vmem:[#allocation5 + $0x2b8] sm:$0xff] %vm27, %v102
    %184 = vst.msk [vmem:[#allocation5 + $0x2d0] sm:$0xff] %vm27, %v103
    %185 = vst.msk [vmem:[#allocation5 + $0x2e8] sm:$0xff] %vm27, %v104
    %186 = vst.msk [vmem:[#allocation5 + $0x300] sm:$0xff] %vm27, %v105
    %187 = vst.msk [vmem:[#allocation5 + $0x318] sm:$0xff] %vm27, %v106
    %188 = vst.msk [vmem:[#allocation5 + $0x330] sm:$0xff] %vm27, %v107
    %189 = vst.msk [vmem:[#allocation5 + $0x348] sm:$0xff] %vm27, %v108
    %190 = vst.msk [vmem:[#allocation5 + $0x360] sm:$0xff] %vm27, %v109
    %191 = vst.msk [vmem:[#allocation5 + $0x378] sm:$0xff] %vm27, %v110
    %192 = vst.msk [vmem:[#allocation5 + $0x390] sm:$0xff] %vm27, %v111
    %193 = vst.msk [vmem:[#allocation5 + $0x3a8] sm:$0xff] %vm27, %v112
    %194 = vst.msk [vmem:[#allocation5 + $0x3c0] sm:$0xff] %vm27, %v113
    %195 = vst.msk [vmem:[#allocation5 + $0x3d8] sm:$0xff] %vm27, %v114
    %196 = vst.msk [vmem:[#allocation5 + $0x3f0] sm:$0xff] %vm27, %v115
    %197 = vst.msk [vmem:[#allocation5 + $0x408] sm:$0xff] %vm27, %v116
    %198 = vst.msk [vmem:[#allocation5 + $0x420] sm:$0xff] %vm27, %v117
    %199 = vst.msk [vmem:[#allocation5 + $0x438] sm:$0xff] %vm27, %v118
    %200 = vst.msk [vmem:[#allocation5 + $0x450] sm:$0xff] %vm27, %v119
    %201 = vst.msk [vmem:[#allocation5 + $0x468] sm:$0xff] %vm27, %v120
    %202 = vst.msk [vmem:[#allocation5 + $0x480] sm:$0xff] %vm27, %v121
    %203 = vst.msk [vmem:[#allocation5 + $0x498] sm:$0xff] %vm27, %v122
    %204 = vst.msk [vmem:[#allocation5 + $0x4b0] sm:$0xff] %vm27, %v123
    %205 = vst.msk [vmem:[#allocation5 + $0x4c8] sm:$0xff] %vm27, %v124
    %206 = vst.msk [vmem:[#allocation5 + $0x4e0] sm:$0xff] %vm27, %v125
    %207 = vst.msk [vmem:[#allocation5 + $0x4f8] sm:$0xff] %vm27, %v126
    %208 = vst.msk [vmem:[#allocation5 + $0x510] sm:$0xff] %vm27, %v127
    %209 = vst.msk [vmem:[#allocation5 + $0x528] sm:$0xff] %vm27, %v128
    %210 = vst.msk [vmem:[#allocation5 + $0x540] sm:$0xff] %vm27, %v129
    %211 = vst.msk [vmem:[#allocation5 + $0x558] sm:$0xff] %vm27, %v130
    %212 = vst.msk [vmem:[#allocation5 + $0x570] sm:$0xff] %vm27, %v131
    %213 = vst.msk [vmem:[#allocation5 + $0x588] sm:$0xff] %vm27, %v132
    %214 = vst.msk [vmem:[#allocation5 + $0x5a0] sm:$0xff] %vm27, %v133
    %215 = vst.msk [vmem:[#allocation5 + $0x5b8] sm:$0xff] %vm27, %v134
    %216 = vst.msk [vmem:[#allocation5 + $0x5d0] sm:$0xff] %vm27, %v135
    %217 = vst.msk [vmem:[#allocation5 + $0x5e8] sm:$0xff] %vm27, %v136
    %218 = vst.msk [vmem:[#allocation5 + $0x600] sm:$0xff] %vm27, %v137
    %219 = vst.msk [vmem:[#allocation5 + $0x618] sm:$0xff] %vm27, %v138
    %220 = vst.msk [vmem:[#allocation5 + $0x630] sm:$0xff] %vm27, %v139
    %221 = vst.msk [vmem:[#allocation5 + $0x648] sm:$0xff] %vm27, %v140
    %222 = vst.msk [vmem:[#allocation5 + $0x660] sm:$0xff] %vm27, %v141
    %223 = vst.msk [vmem:[#allocation5 + $0x678] sm:$0xff] %vm27, %v142
    %224 = vst.msk [vmem:[#allocation5 + $0x690] sm:$0xff] %vm27, %v143
    %225 = vst.msk [vmem:[#allocation5 + $0x6a8] sm:$0xff] %vm27, %v144
    %226 = vst.msk [vmem:[#allocation5 + $0x6c0] sm:$0xff] %vm27, %v145
    %227 = vst.msk [vmem:[#allocation5 + $0x6d8] sm:$0xff] %vm27, %v146
    %228 = vst.msk [vmem:[#allocation5 + $0x6f0] sm:$0xff] %vm27, %v147
    %229 = vst.msk [vmem:[#allocation5 + $0x708] sm:$0xff] %vm27, %v148
    %230 = vst.msk [vmem:[#allocation5 + $0x720] sm:$0xff] %vm27, %v149
    %231 = vst.msk [vmem:[#allocation5 + $0x738] sm:$0xff] %vm27, %v150
    %232 = vst.msk [vmem:[#allocation5 + $0x750] sm:$0xff] %vm27, %v151
    %233 = vst.msk [vmem:[#allocation5 + $0x768] sm:$0xff] %vm27, %v152
    %234 = vst.msk [vmem:[#allocation5 + $0x780] sm:$0xff] %vm27, %v153
    %v235 = vld [vmem:[%s0 + $0x1] sm:$0xff]
    %v236 = vld [vmem:[%s0 + $0x9] sm:$0xff]
    %v237 = vld [vmem:[%s0 + $0x11] sm:$0xff]
    %v238 = vld [vmem:[%s0 + $0x19] sm:$0xff]
    %v239 = vld [vmem:[%s0 + $0x21] sm:$0xff]
    %v240 = vld [vmem:[%s0 + $0x29] sm:$0xff]
    %v241 = vld [vmem:[%s0 + $0x31] sm:$0xff]
    %v242 = vld [vmem:[%s0 + $0x39] sm:$0xff]
    %v243 = vld [vmem:[%s0 + $0x41] sm:$0xff]
    %v244 = vld [vmem:[%s0 + $0x49] sm:$0xff]
    %v245 = vld [vmem:[%s0 + $0x51] sm:$0xff]
    %v246 = vld [vmem:[%s0 + $0x59] sm:$0xff]
    %v247 = vld [vmem:[%s0 + $0x61] sm:$0xff]
    %v248 = vld [vmem:[%s0 + $0x69] sm:$0xff]
    %v249 = vld [vmem:[%s0 + $0x71] sm:$0xff]
    %v250 = vld [vmem:[%s0 + $0x79] sm:$0xff]
    %v251 = vld [vmem:[%s0 + $0x81] sm:$0xff]
    %v252 = vld [vmem:[%s0 + $0x89] sm:$0xff]
    %v253 = vld [vmem:[%s0 + $0x91] sm:$0xff]
    %v254 = vld [vmem:[%s0 + $0x99] sm:$0xff]
    %v255 = vld [vmem:[%s0 + $0xa1] sm:$0xff]
    %v256 = vld [vmem:[%s0 + $0xa9] sm:$0xff]
    %v257 = vld [vmem:[%s0 + $0xb1] sm:$0xff]
    %v258 = vld [vmem:[%s0 + $0xb9] sm:$0xff]
    %v259 = vld [vmem:[%s0 + $0xc1] sm:$0xff]
    %v260 = vld [vmem:[%s0 + $0xc9] sm:$0xff]
    %v261 = vld [vmem:[%s0 + $0xd1] sm:$0xff]
    %v262 = vld [vmem:[%s0 + $0xd9] sm:$0xff]
    %v263 = vld [vmem:[%s0 + $0xe1] sm:$0xff]
    %v264 = vld [vmem:[%s0 + $0xe9] sm:$0xff]
    %v265 = vld [vmem:[%s0 + $0xf1] sm:$0xff]
    %v266 = vld [vmem:[%s0 + $0xf9] sm:$0xff]
    %v267 = vld [vmem:[%s0 + $0x101] sm:$0xff]
    %v268 = vld [vmem:[%s0 + $0x109] sm:$0xff]
    %v269 = vld [vmem:[%s0 + $0x111] sm:$0xff]
    %v270 = vld [vmem:[%s0 + $0x119] sm:$0xff]
    %v271 = vld [vmem:[%s0 + $0x121] sm:$0xff]
    %v272 = vld [vmem:[%s0 + $0x129] sm:$0xff]
    %v273 = vld [vmem:[%s0 + $0x131] sm:$0xff]
    %v274 = vld [vmem:[%s0 + $0x139] sm:$0xff]
    %v275 = vld [vmem:[%s0 + $0x141] sm:$0xff]
    %v276 = vld [vmem:[%s0 + $0x149] sm:$0xff]
    %v277 = vld [vmem:[%s0 + $0x151] sm:$0xff]
    %v278 = vld [vmem:[%s0 + $0x159] sm:$0xff]
    %v279 = vld [vmem:[%s0 + $0x161] sm:$0xff]
    %v280 = vld [vmem:[%s0 + $0x169] sm:$0xff]
    %v281 = vld [vmem:[%s0 + $0x171] sm:$0xff]
    %v282 = vld [vmem:[%s0 + $0x179] sm:$0xff]
    %v283 = vld [vmem:[%s0 + $0x181] sm:$0xff]
    %v284 = vld [vmem:[%s0 + $0x189] sm:$0xff]
    %v285 = vld [vmem:[%s0 + $0x191] sm:$0xff]
    %v286 = vld [vmem:[%s0 + $0x199] sm:$0xff]
    %v287 = vld [vmem:[%s0 + $0x1a1] sm:$0xff]
    %v288 = vld [vmem:[%s0 + $0x1a9] sm:$0xff]
    %v289 = vld [vmem:[%s0 + $0x1b1] sm:$0xff]
    %v290 = vld [vmem:[%s0 + $0x1b9] sm:$0xff]
    %v291 = vld [vmem:[%s0 + $0x1c1] sm:$0xff]
    %v292 = vld [vmem:[%s0 + $0x1c9] sm:$0xff]
    %v293 = vld [vmem:[%s0 + $0x1d1] sm:$0xff]
    %v294 = vld [vmem:[%s0 + $0x1d9] sm:$0xff]
    %v295 = vld [vmem:[%s0 + $0x1e1] sm:$0xff]
    %v296 = vld [vmem:[%s0 + $0x1e9] sm:$0xff]
    %v297 = vld [vmem:[%s0 + $0x1f1] sm:$0xff]
    %v298 = vld [vmem:[%s0 + $0x1f9] sm:$0xff]
    %v299 = vld [vmem:[%s0 + $0x201] sm:$0xff]
    %v300 = vld [vmem:[%s0 + $0x209] sm:$0xff]
    %v301 = vld [vmem:[%s0 + $0x211] sm:$0xff]
    %v302 = vld [vmem:[%s0 + $0x219] sm:$0xff]
    %v303 = vld [vmem:[%s0 + $0x221] sm:$0xff]
    %v304 = vld [vmem:[%s0 + $0x229] sm:$0xff]
    %v305 = vld [vmem:[%s0 + $0x231] sm:$0xff]
    %v306 = vld [vmem:[%s0 + $0x239] sm:$0xff]
    %v307 = vld [vmem:[%s0 + $0x241] sm:$0xff]
    %v308 = vld [vmem:[%s0 + $0x249] sm:$0xff]
    %v309 = vld [vmem:[%s0 + $0x251] sm:$0xff]
    %v310 = vld [vmem:[%s0 + $0x259] sm:$0xff]
    %v311 = vld [vmem:[%s0 + $0x261] sm:$0xff]
    %v312 = vld [vmem:[%s0 + $0x269] sm:$0xff]
    %v313 = vld [vmem:[%s0 + $0x271] sm:$0xff]
    %v314 = vld [vmem:[%s0 + $0x279] sm:$0xff]
    %v315 = vld [vmem:[%s0 + $0x281] sm:$0xff]
    %397 = vrot.lane.b32.xlu0 %v235, 32
    %v398 = vpop.permute.xlu0 %397
    %399 = vrot.lane.b32.xlu0 %v236, 32
    %v400 = vpop.permute.xlu0 %399
    %401 = vrot.lane.b32.xlu0 %v237, 32
    %v402 = vpop.permute.xlu0 %401
    %403 = vrot.lane.b32.xlu0 %v238, 32
    %v404 = vpop.permute.xlu0 %403
    %405 = vrot.lane.b32.xlu0 %v239, 32
    %v406 = vpop.permute.xlu0 %405
    %407 = vrot.lane.b32.xlu0 %v240, 32
    %v408 = vpop.permute.xlu0 %407
    %409 = vrot.lane.b32.xlu0 %v241, 32
    %v410 = vpop.permute.xlu0 %409
    %411 = vrot.lane.b32.xlu0 %v242, 32
    %v412 = vpop.permute.xlu0 %411
    %413 = vrot.lane.b32.xlu0 %v243, 32
    %v414 = vpop.permute.xlu0 %413
    %415 = vrot.lane.b32.xlu0 %v244, 32
    %v416 = vpop.permute.xlu0 %415
    %417 = vrot.lane.b32.xlu0 %v245, 32
    %v418 = vpop.permute.xlu0 %417
    %419 = vrot.lane.b32.xlu0 %v246, 32
    %v420 = vpop.permute.xlu0 %419
    %421 = vrot.lane.b32.xlu0 %v247, 32
    %v422 = vpop.permute.xlu0 %421
    %423 = vrot.lane.b32.xlu0 %v248, 32
    %v424 = vpop.permute.xlu0 %423
    %425 = vrot.lane.b32.xlu0 %v249, 32
    %v426 = vpop.permute.xlu0 %425
    %427 = vrot.lane.b32.xlu0 %v250, 32
    %v428 = vpop.permute.xlu0 %427
    %429 = vrot.lane.b32.xlu0 %v251, 32
    %v430 = vpop.permute.xlu0 %429
    %431 = vrot.lane.b32.xlu0 %v252, 32
    %v432 = vpop.permute.xlu0 %431
    %433 = vrot.lane.b32.xlu0 %v253, 32
    %v434 = vpop.permute.xlu0 %433
    %435 = vrot.lane.b32.xlu0 %v254, 32
    %v436 = vpop.permute.xlu0 %435
    %437 = vrot.lane.b32.xlu0 %v255, 32
    %v438 = vpop.permute.xlu0 %437
    %439 = vrot.lane.b32.xlu0 %v256, 32
    %v440 = vpop.permute.xlu0 %439
    %441 = vrot.lane.b32.xlu0 %v257, 32
    %v442 = vpop.permute.xlu0 %441
    %443 = vrot.lane.b32.xlu0 %v258, 32
    %v444 = vpop.permute.xlu0 %443
    %445 = vrot.lane.b32.xlu0 %v259, 32
    %v446 = vpop.permute.xlu0 %445
    %447 = vrot.lane.b32.xlu0 %v260, 32
    %v448 = vpop.permute.xlu0 %447
    %449 = vrot.lane.b32.xlu0 %v261, 32
    %v450 = vpop.permute.xlu0 %449
    %451 = vrot.lane.b32.xlu0 %v262, 32
    %v452 = vpop.permute.xlu0 %451
    %453 = vrot.lane.b32.xlu0 %v263, 32
    %v454 = vpop.permute.xlu0 %453
    %455 = vrot.lane.b32.xlu0 %v264, 32
    %v456 = vpop.permute.xlu0 %455
    %457 = vrot.lane.b32.xlu0 %v265, 32
    %v458 = vpop.permute.xlu0 %457
    %459 = vrot.lane.b32.xlu0 %v266, 32
    %v460 = vpop.permute.xlu0 %459
    %461 = vrot.lane.b32.xlu0 %v267, 32
    %v462 = vpop.permute.xlu0 %461
    %463 = vrot.lane.b32.xlu0 %v268, 32
    %v464 = vpop.permute.xlu0 %463
    %465 = vrot.lane.b32.xlu0 %v269, 32
    %v466 = vpop.permute.xlu0 %465
    %467 = vrot.lane.b32.xlu0 %v270, 32
    %v468 = vpop.permute.xlu0 %467
    %469 = vrot.lane.b32.xlu0 %v271, 32
    %v470 = vpop.permute.xlu0 %469
    %471 = vrot.lane.b32.xlu0 %v272, 32
    %v472 = vpop.permute.xlu0 %471
    %473 = vrot.lane.b32.xlu0 %v273, 32
    %v474 = vpop.permute.xlu0 %473
    %475 = vrot.lane.b32.xlu0 %v274, 32
    %v476 = vpop.permute.xlu0 %475
    %477 = vrot.lane.b32.xlu0 %v275, 32
    %v478 = vpop.permute.xlu0 %477
    %479 = vrot.lane.b32.xlu0 %v276, 32
    %v480 = vpop.permute.xlu0 %479
    %481 = vrot.lane.b32.xlu0 %v277, 32
    %v482 = vpop.permute.xlu0 %481
    %483 = vrot.lane.b32.xlu0 %v278, 32
    %v484 = vpop.permute.xlu0 %483
    %485 = vrot.lane.b32.xlu0 %v279, 32
    %v486 = vpop.permute.xlu0 %485
    %487 = vrot.lane.b32.xlu0 %v280, 32
    %v488 = vpop.permute.xlu0 %487
    %489 = vrot.lane.b32.xlu0 %v281, 32
    %v490 = vpop.permute.xlu0 %489
    %491 = vrot.lane.b32.xlu0 %v282, 32
    %v492 = vpop.permute.xlu0 %491
    %493 = vrot.lane.b32.xlu0 %v283, 32
    %v494 = vpop.permute.xlu0 %493
    %495 = vrot.lane.b32.xlu0 %v284, 32
    %v496 = vpop.permute.xlu0 %495
    %497 = vrot.lane.b32.xlu0 %v285, 32
    %v498 = vpop.permute.xlu0 %497
    %499 = vrot.lane.b32.xlu0 %v286, 32
    %v500 = vpop.permute.xlu0 %499
    %501 = vrot.lane.b32.xlu0 %v287, 32
    %v502 = vpop.permute.xlu0 %501
    %503 = vrot.lane.b32.xlu0 %v288, 32
    %v504 = vpop.permute.xlu0 %503
    %505 = vrot.lane.b32.xlu0 %v289, 32
    %v506 = vpop.permute.xlu0 %505
    %507 = vrot.lane.b32.xlu0 %v290, 32
    %v508 = vpop.permute.xlu0 %507
    %509 = vrot.lane.b32.xlu0 %v291, 32
    %v510 = vpop.permute.xlu0 %509
    %511 = vrot.lane.b32.xlu0 %v292, 32
    %v512 = vpop.permute.xlu0 %511
    %513 = vrot.lane.b32.xlu0 %v293, 32
    %v514 = vpop.permute.xlu0 %513
    %515 = vrot.lane.b32.xlu0 %v294, 32
    %v516 = vpop.permute.xlu0 %515
    %517 = vrot.lane.b32.xlu0 %v295, 32
    %v518 = vpop.permute.xlu0 %517
    %519 = vrot.lane.b32.xlu0 %v296, 32
    %v520 = vpop.permute.xlu0 %519
    %521 = vrot.lane.b32.xlu0 %v297, 32
    %v522 = vpop.permute.xlu0 %521
    %523 = vrot.lane.b32.xlu0 %v298, 32
    %v524 = vpop.permute.xlu0 %523
    %525 = vrot.lane.b32.xlu0 %v299, 32
    %v526 = vpop.permute.xlu0 %525
    %527 = vrot.lane.b32.xlu0 %v300, 32
    %v528 = vpop.permute.xlu0 %527
    %529 = vrot.lane.b32.xlu0 %v301, 32
    %v530 = vpop.permute.xlu0 %529
    %531 = vrot.lane.b32.xlu0 %v302, 32
    %v532 = vpop.permute.xlu0 %531
    %533 = vrot.lane.b32.xlu0 %v303, 32
    %v534 = vpop.permute.xlu0 %533
    %535 = vrot.lane.b32.xlu0 %v304, 32
    %v536 = vpop.permute.xlu0 %535
    %537 = vrot.lane.b32.xlu0 %v305, 32
    %v538 = vpop.permute.xlu0 %537
    %539 = vrot.lane.b32.xlu0 %v306, 32
    %v540 = vpop.permute.xlu0 %539
    %541 = vrot.lane.b32.xlu0 %v307, 32
    %v542 = vpop.permute.xlu0 %541
    %543 = vrot.lane.b32.xlu0 %v308, 32
    %v544 = vpop.permute.xlu0 %543
    %545 = vrot.lane.b32.xlu0 %v309, 32
    %v546 = vpop.permute.xlu0 %545
    %547 = vrot.lane.b32.xlu0 %v310, 32
    %v548 = vpop.permute.xlu0 %547
    %549 = vrot.lane.b32.xlu0 %v311, 32
    %v550 = vpop.permute.xlu0 %549
    %551 = vrot.lane.b32.xlu0 %v312, 32
    %v552 = vpop.permute.xlu0 %551
    %553 = vrot.lane.b32.xlu0 %v313, 32
    %v554 = vpop.permute.xlu0 %553
    %555 = vrot.lane.b32.xlu0 %v314, 32
    %v556 = vpop.permute.xlu0 %555
    %557 = vrot.lane.b32.xlu0 %v315, 32
    %v558 = vpop.permute.xlu0 %557
    %vm640 = vcmask 523520
    %641 = vst.msk [vmem:[#allocation5] sm:$0xff] %vm640, %v398
    %642 = vst.msk [vmem:[#allocation5 + $0x18] sm:$0xff] %vm640, %v400
    %643 = vst.msk [vmem:[#allocation5 + $0x30] sm:$0xff] %vm640, %v402
    %644 = vst.msk [vmem:[#allocation5 + $0x48] sm:$0xff] %vm640, %v404
    %645 = vst.msk [vmem:[#allocation5 + $0x60] sm:$0xff] %vm640, %v406
    %646 = vst.msk [vmem:[#allocation5 + $0x78] sm:$0xff] %vm640, %v408
    %647 = vst.msk [vmem:[#allocation5 + $0x90] sm:$0xff] %vm640, %v410
    %648 = vst.msk [vmem:[#allocation5 + $0xa8] sm:$0xff] %vm640, %v412
    %649 = vst.msk [vmem:[#allocation5 + $0xc0] sm:$0xff] %vm640, %v414
    %650 = vst.msk [vmem:[#allocation5 + $0xd8] sm:$0xff] %vm640, %v416
    %651 = vst.msk [vmem:[#allocation5 + $0xf0] sm:$0xff] %vm640, %v418
    %652 = vst.msk [vmem:[#allocation5 + $0x108] sm:$0xff] %vm640, %v420
    %653 = vst.msk [vmem:[#allocation5 + $0x120] sm:$0xff] %vm640, %v422
    %654 = vst.msk [vmem:[#allocation5 + $0x138] sm:$0xff] %vm640, %v424
    %655 = vst.msk [vmem:[#allocation5 + $0x150] sm:$0xff] %vm640, %v426
    %656 = vst.msk [vmem:[#allocation5 + $0x168] sm:$0xff] %vm640, %v428
    %657 = vst.msk [vmem:[#allocation5 + $0x180] sm:$0xff] %vm640, %v430
    %658 = vst.msk [vmem:[#allocation5 + $0x198] sm:$0xff] %vm640, %v432
    %659 = vst.msk [vmem:[#allocation5 + $0x1b0] sm:$0xff] %vm640, %v434
    %660 = vst.msk [vmem:[#allocation5 + $0x1c8] sm:$0xff] %vm640, %v436
    %661 = vst.msk [vmem:[#allocation5 + $0x1e0] sm:$0xff] %vm640, %v438
    %662 = vst.msk [vmem:[#allocation5 + $0x1f8] sm:$0xff] %vm640, %v440
    %663 = vst.msk [vmem:[#allocation5 + $0x210] sm:$0xff] %vm640, %v442
    %664 = vst.msk [vmem:[#allocation5 + $0x228] sm:$0xff] %vm640, %v444
    %665 = vst.msk [vmem:[#allocation5 + $0x240] sm:$0xff] %vm640, %v446
    %666 = vst.msk [vmem:[#allocation5 + $0x258] sm:$0xff] %vm640, %v448
    %667 = vst.msk [vmem:[#allocation5 + $0x270] sm:$0xff] %vm640, %v450
    %668 = vst.msk [vmem:[#allocation5 + $0x288] sm:$0xff] %vm640, %v452
    %669 = vst.msk [vmem:[#allocation5 + $0x2a0] sm:$0xff] %vm640, %v454
    %670 = vst.msk [vmem:[#allocation5 + $0x2b8] sm:$0xff] %vm640, %v456
    %671 = vst.msk [vmem:[#allocation5 + $0x2d0] sm:$0xff] %vm640, %v458
    %672 = vst.msk [vmem:[#allocation5 + $0x2e8] sm:$0xff] %vm640, %v460
    %673 = vst.msk [vmem:[#allocation5 + $0x300] sm:$0xff] %vm640, %v462
    %674 = vst.msk [vmem:[#allocation5 + $0x318] sm:$0xff] %vm640, %v464
    %675 = vst.msk [vmem:[#allocation5 + $0x330] sm:$0xff] %vm640, %v466
    %676 = vst.msk [vmem:[#allocation5 + $0x348] sm:$0xff] %vm640, %v468
    %677 = vst.msk [vmem:[#allocation5 + $0x360] sm:$0xff] %vm640, %v470
    %678 = vst.msk [vmem:[#allocation5 + $0x378] sm:$0xff] %vm640, %v472
    %679 = vst.msk [vmem:[#allocation5 + $0x390] sm:$0xff] %vm640, %v474
    %680 = vst.msk [vmem:[#allocation5 + $0x3a8] sm:$0xff] %vm640, %v476
    %681 = vst.msk [vmem:[#allocation5 + $0x3c0] sm:$0xff] %vm640, %v478
    %682 = vst.msk [vmem:[#allocation5 + $0x3d8] sm:$0xff] %vm640, %v480
    %683 = vst.msk [vmem:[#allocation5 + $0x3f0] sm:$0xff] %vm640, %v482
    %684 = vst.msk [vmem:[#allocation5 + $0x408] sm:$0xff] %vm640, %v484
    %685 = vst.msk [vmem:[#allocation5 + $0x420] sm:$0xff] %vm640, %v486
    %686 = vst.msk [vmem:[#allocation5 + $0x438] sm:$0xff] %vm640, %v488
    %687 = vst.msk [vmem:[#allocation5 + $0x450] sm:$0xff] %vm640, %v490
    %688 = vst.msk [vmem:[#allocation5 + $0x468] sm:$0xff] %vm640, %v492
    %689 = vst.msk [vmem:[#allocation5 + $0x480] sm:$0xff] %vm640, %v494
    %690 = vst.msk [vmem:[#allocation5 + $0x498] sm:$0xff] %vm640, %v496
    %691 = vst.msk [vmem:[#allocation5 + $0x4b0] sm:$0xff] %vm640, %v498
    %692 = vst.msk [vmem:[#allocation5 + $0x4c8] sm:$0xff] %vm640, %v500
    %693 = vst.msk [vmem:[#allocation5 + $0x4e0] sm:$0xff] %vm640, %v502
    %694 = vst.msk [vmem:[#allocation5 + $0x4f8] sm:$0xff] %vm640, %v504
    %695 = vst.msk [vmem:[#allocation5 + $0x510] sm:$0xff] %vm640, %v506
    %696 = vst.msk [vmem:[#allocation5 + $0x528] sm:$0xff] %vm640, %v508
    %697 = vst.msk [vmem:[#allocation5 + $0x540] sm:$0xff] %vm640, %v510
    %698 = vst.msk [vmem:[#allocation5 + $0x558] sm:$0xff] %vm640, %v512
    %699 = vst.msk [vmem:[#allocation5 + $0x570] sm:$0xff] %vm640, %v514
    %700 = vst.msk [vmem:[#allocation5 + $0x588] sm:$0xff] %vm640, %v516
    %701 = vst.msk [vmem:[#allocation5 + $0x5a0] sm:$0xff] %vm640, %v518
    %702 = vst.msk [vmem:[#allocation5 + $0x5b8] sm:$0xff] %vm640, %v520
    %703 = vst.msk [vmem:[#allocation5 + $0x5d0] sm:$0xff] %vm640, %v522
    %704 = vst.msk [vmem:[#allocation5 + $0x5e8] sm:$0xff] %vm640, %v524
    %705 = vst.msk [vmem:[#allocation5 + $0x600] sm:$0xff] %vm640, %v526
    %706 = vst.msk [vmem:[#allocation5 + $0x618] sm:$0xff] %vm640, %v528
    %707 = vst.msk [vmem:[#allocation5 + $0x630] sm:$0xff] %vm640, %v530
    %708 = vst.msk [vmem:[#allocation5 + $0x648] sm:$0xff] %vm640, %v532
    %709 = vst.msk [vmem:[#allocation5 + $0x660] sm:$0xff] %vm640, %v534
    %710 = vst.msk [vmem:[#allocation5 + $0x678] sm:$0xff] %vm640, %v536
    %711 = vst.msk [vmem:[#allocation5 + $0x690] sm:$0xff] %vm640, %v538
    %712 = vst.msk [vmem:[#allocation5 + $0x6a8] sm:$0xff] %vm640, %v540
    %713 = vst.msk [vmem:[#allocation5 + $0x6c0] sm:$0xff] %vm640, %v542
    %714 = vst.msk [vmem:[#allocation5 + $0x6d8] sm:$0xff] %vm640, %v544
    %715 = vst.msk [vmem:[#allocation5 + $0x6f0] sm:$0xff] %vm640, %v546
    %716 = vst.msk [vmem:[#allocation5 + $0x708] sm:$0xff] %vm640, %v548
    %717 = vst.msk [vmem:[#allocation5 + $0x720] sm:$0xff] %vm640, %v550
    %718 = vst.msk [vmem:[#allocation5 + $0x738] sm:$0xff] %vm640, %v552
    %719 = vst.msk [vmem:[#allocation5 + $0x750] sm:$0xff] %vm640, %v554
    %720 = vst.msk [vmem:[#allocation5 + $0x768] sm:$0xff] %vm640, %v556
    %721 = vst.msk [vmem:[#allocation5 + $0x780] sm:$0xff] %vm640, %v558
    %v722 = vld [vmem:[%s0 + $0x2] sm:$0xff]
    %v723 = vld [vmem:[%s0 + $0xa] sm:$0xff]
    %v724 = vld [vmem:[%s0 + $0x12] sm:$0xff]
    %v725 = vld [vmem:[%s0 + $0x1a] sm:$0xff]
    %v726 = vld [vmem:[%s0 + $0x22] sm:$0xff]
    %v727 = vld [vmem:[%s0 + $0x2a] sm:$0xff]
    %v728 = vld [vmem:[%s0 + $0x32] sm:$0xff]
    %v729 = vld [vmem:[%s0 + $0x3a] sm:$0xff]
    %v730 = vld [vmem:[%s0 + $0x42] sm:$0xff]
    %v731 = vld [vmem:[%s0 + $0x4a] sm:$0xff]
    %v732 = vld [vmem:[%s0 + $0x52] sm:$0xff]
    %v733 = vld [vmem:[%s0 + $0x5a] sm:$0xff]
    %v734 = vld [vmem:[%s0 + $0x62] sm:$0xff]
    %v735 = vld [vmem:[%s0 + $0x6a] sm:$0xff]
    %v736 = vld [vmem:[%s0 + $0x72] sm:$0xff]
    %v737 = vld [vmem:[%s0 + $0x7a] sm:$0xff]
    %v738 = vld [vmem:[%s0 + $0x82] sm:$0xff]
    %v739 = vld [vmem:[%s0 + $0x8a] sm:$0xff]
    %v740 = vld [vmem:[%s0 + $0x92] sm:$0xff]
    %v741 = vld [vmem:[%s0 + $0x9a] sm:$0xff]
    %v742 = vld [vmem:[%s0 + $0xa2] sm:$0xff]
    %v743 = vld [vmem:[%s0 + $0xaa] sm:$0xff]
    %v744 = vld [vmem:[%s0 + $0xb2] sm:$0xff]
    %v745 = vld [vmem:[%s0 + $0xba] sm:$0xff]
    %v746 = vld [vmem:[%s0 + $0xc2] sm:$0xff]
    %v747 = vld [vmem:[%s0 + $0xca] sm:$0xff]
    %v748 = vld [vmem:[%s0 + $0xd2] sm:$0xff]
    %v749 = vld [vmem:[%s0 + $0xda] sm:$0xff]
    %v750 = vld [vmem:[%s0 + $0xe2] sm:$0xff]
    %v751 = vld [vmem:[%s0 + $0xea] sm:$0xff]
    %v752 = vld [vmem:[%s0 + $0xf2] sm:$0xff]
    %v753 = vld [vmem:[%s0 + $0xfa] sm:$0xff]
    %v754 = vld [vmem:[%s0 + $0x102] sm:$0xff]
    %v755 = vld [vmem:[%s0 + $0x10a] sm:$0xff]
    %v756 = vld [vmem:[%s0 + $0x112] sm:$0xff]
    %v757 = vld [vmem:[%s0 + $0x11a] sm:$0xff]
    %v758 = vld [vmem:[%s0 + $0x122] sm:$0xff]
    %v759 = vld [vmem:[%s0 + $0x12a] sm:$0xff]
    %v760 = vld [vmem:[%s0 + $0x132] sm:$0xff]
    %v761 = vld [vmem:[%s0 + $0x13a] sm:$0xff]
    %v762 = vld [vmem:[%s0 + $0x142] sm:$0xff]
    %v763 = vld [vmem:[%s0 + $0x14a] sm:$0xff]
    %v764 = vld [vmem:[%s0 + $0x152] sm:$0xff]
    %v765 = vld [vmem:[%s0 + $0x15a] sm:$0xff]
    %v766 = vld [vmem:[%s0 + $0x162] sm:$0xff]
    %v767 = vld [vmem:[%s0 + $0x16a] sm:$0xff]
    %v768 = vld [vmem:[%s0 + $0x172] sm:$0xff]
    %v769 = vld [vmem:[%s0 + $0x17a] sm:$0xff]
    %v770 = vld [vmem:[%s0 + $0x182] sm:$0xff]
    %v771 = vld [vmem:[%s0 + $0x18a] sm:$0xff]
    %v772 = vld [vmem:[%s0 + $0x192] sm:$0xff]
    %v773 = vld [vmem:[%s0 + $0x19a] sm:$0xff]
    %v774 = vld [vmem:[%s0 + $0x1a2] sm:$0xff]
    %v775 = vld [vmem:[%s0 + $0x1aa] sm:$0xff]
    %v776 = vld [vmem:[%s0 + $0x1b2] sm:$0xff]
    %v777 = vld [vmem:[%s0 + $0x1ba] sm:$0xff]
    %v778 = vld [vmem:[%s0 + $0x1c2] sm:$0xff]
    %v779 = vld [vmem:[%s0 + $0x1ca] sm:$0xff]
    %v780 = vld [vmem:[%s0 + $0x1d2] sm:$0xff]
    %v781 = vld [vmem:[%s0 + $0x1da] sm:$0xff]
    %v782 = vld [vmem:[%s0 + $0x1e2] sm:$0xff]
    %v783 = vld [vmem:[%s0 + $0x1ea] sm:$0xff]
    %v784 = vld [vmem:[%s0 + $0x1f2] sm:$0xff]
    %v785 = vld [vmem:[%s0 + $0x1fa] sm:$0xff]
    %v786 = vld [vmem:[%s0 + $0x202] sm:$0xff]
    %v787 = vld [vmem:[%s0 + $0x20a] sm:$0xff]
    %v788 = vld [vmem:[%s0 + $0x212] sm:$0xff]
    %v789 = vld [vmem:[%s0 + $0x21a] sm:$0xff]
    %v790 = vld [vmem:[%s0 + $0x222] sm:$0xff]
    %v791 = vld [vmem:[%s0 + $0x22a] sm:$0xff]
    %v792 = vld [vmem:[%s0 + $0x232] sm:$0xff]
    %v793 = vld [vmem:[%s0 + $0x23a] sm:$0xff]
    %v794 = vld [vmem:[%s0 + $0x242] sm:$0xff]
    %v795 = vld [vmem:[%s0 + $0x24a] sm:$0xff]
    %v796 = vld [vmem:[%s0 + $0x252] sm:$0xff]
    %v797 = vld [vmem:[%s0 + $0x25a] sm:$0xff]
    %v798 = vld [vmem:[%s0 + $0x262] sm:$0xff]
    %v799 = vld [vmem:[%s0 + $0x26a] sm:$0xff]
    %v800 = vld [vmem:[%s0 + $0x272] sm:$0xff]
    %v801 = vld [vmem:[%s0 + $0x27a] sm:$0xff]
    %v802 = vld [vmem:[%s0 + $0x282] sm:$0xff]
    %884 = vrot.lane.b32.xlu0 %v722, 64
    %v885 = vpop.permute.xlu0 %884
    %886 = vrot.lane.b32.xlu0 %v723, 64
    %v887 = vpop.permute.xlu0 %886
    %888 = vrot.lane.b32.xlu0 %v724, 64
    %v889 = vpop.permute.xlu0 %888
    %890 = vrot.lane.b32.xlu0 %v725, 64
    %v891 = vpop.permute.xlu0 %890
    %892 = vrot.lane.b32.xlu0 %v726, 64
    %v893 = vpop.permute.xlu0 %892
    %894 = vrot.lane.b32.xlu0 %v727, 64
    %v895 = vpop.permute.xlu0 %894
    %896 = vrot.lane.b32.xlu0 %v728, 64
    %v897 = vpop.permute.xlu0 %896
    %898 = vrot.lane.b32.xlu0 %v729, 64
    %v899 = vpop.permute.xlu0 %898
    %900 = vrot.lane.b32.xlu0 %v730, 64
    %v901 = vpop.permute.xlu0 %900
    %902 = vrot.lane.b32.xlu0 %v731, 64
    %v903 = vpop.permute.xlu0 %902
    %904 = vrot.lane.b32.xlu0 %v732, 64
    %v905 = vpop.permute.xlu0 %904
    %906 = vrot.lane.b32.xlu0 %v733, 64
    %v907 = vpop.permute.xlu0 %906
    %908 = vrot.lane.b32.xlu0 %v734, 64
    %v909 = vpop.permute.xlu0 %908
    %910 = vrot.lane.b32.xlu0 %v735, 64
    %v911 = vpop.permute.xlu0 %910
    %912 = vrot.lane.b32.xlu0 %v736, 64
    %v913 = vpop.permute.xlu0 %912
    %914 = vrot.lane.b32.xlu0 %v737, 64
    %v915 = vpop.permute.xlu0 %914
    %916 = vrot.lane.b32.xlu0 %v738, 64
    %v917 = vpop.permute.xlu0 %916
    %918 = vrot.lane.b32.xlu0 %v739, 64
    %v919 = vpop.permute.xlu0 %918
    %920 = vrot.lane.b32.xlu0 %v740, 64
    %v921 = vpop.permute.xlu0 %920
    %922 = vrot.lane.b32.xlu0 %v741, 64
    %v923 = vpop.permute.xlu0 %922
    %924 = vrot.lane.b32.xlu0 %v742, 64
    %v925 = vpop.permute.xlu0 %924
    %926 = vrot.lane.b32.xlu0 %v743, 64
    %v927 = vpop.permute.xlu0 %926
    %928 = vrot.lane.b32.xlu0 %v744, 64
    %v929 = vpop.permute.xlu0 %928
    %930 = vrot.lane.b32.xlu0 %v745, 64
    %v931 = vpop.permute.xlu0 %930
    %932 = vrot.lane.b32.xlu0 %v746, 64
    %v933 = vpop.permute.xlu0 %932
    %934 = vrot.lane.b32.xlu0 %v747, 64
    %v935 = vpop.permute.xlu0 %934
    %936 = vrot.lane.b32.xlu0 %v748, 64
    %v937 = vpop.permute.xlu0 %936
    %938 = vrot.lane.b32.xlu0 %v749, 64
    %v939 = vpop.permute.xlu0 %938
    %940 = vrot.lane.b32.xlu0 %v750, 64
    %v941 = vpop.permute.xlu0 %940
    %942 = vrot.lane.b32.xlu0 %v751, 64
    %v943 = vpop.permute.xlu0 %942
    %944 = vrot.lane.b32.xlu0 %v752, 64
    %v945 = vpop.permute.xlu0 %944
    %946 = vrot.lane.b32.xlu0 %v753, 64
    %v947 = vpop.permute.xlu0 %946
    %948 = vrot.lane.b32.xlu0 %v754, 64
    %v949 = vpop.permute.xlu0 %948
    %950 = vrot.lane.b32.xlu0 %v755, 64
    %v951 = vpop.permute.xlu0 %950
    %952 = vrot.lane.b32.xlu0 %v756, 64
    %v953 = vpop.permute.xlu0 %952
    %954 = vrot.lane.b32.xlu0 %v757, 64
    %v955 = vpop.permute.xlu0 %954
    %956 = vrot.lane.b32.xlu0 %v758, 64
    %v957 = vpop.permute.xlu0 %956
    %958 = vrot.lane.b32.xlu0 %v759, 64
    %v959 = vpop.permute.xlu0 %958
    %960 = vrot.lane.b32.xlu0 %v760, 64
    %v961 = vpop.permute.xlu0 %960
    %962 = vrot.lane.b32.xlu0 %v761, 64
    %v963 = vpop.permute.xlu0 %962
    %964 = vrot.lane.b32.xlu0 %v762, 64
    %v965 = vpop.permute.xlu0 %964
    %966 = vrot.lane.b32.xlu0 %v763, 64
    %v967 = vpop.permute.xlu0 %966
    %968 = vrot.lane.b32.xlu0 %v764, 64
    %v969 = vpop.permute.xlu0 %968
    %970 = vrot.lane.b32.xlu0 %v765, 64
    %v971 = vpop.permute.xlu0 %970
    %972 = vrot.lane.b32.xlu0 %v766, 64
    %v973 = vpop.permute.xlu0 %972
    %974 = vrot.lane.b32.xlu0 %v767, 64
    %v975 = vpop.permute.xlu0 %974
    %976 = vrot.lane.b32.xlu0 %v768, 64
    %v977 = vpop.permute.xlu0 %976
    %978 = vrot.lane.b32.xlu0 %v769, 64
    %v979 = vpop.permute.xlu0 %978
    %980 = vrot.lane.b32.xlu0 %v770, 64
    %v981 = vpop.permute.xlu0 %980
    %982 = vrot.lane.b32.xlu0 %v771, 64
    %v983 = vpop.permute.xlu0 %982
    %984 = vrot.lane.b32.xlu0 %v772, 64
    %v985 = vpop.permute.xlu0 %984
    %986 = vrot.lane.b32.xlu0 %v773, 64
    %v987 = vpop.permute.xlu0 %986
    %988 = vrot.lane.b32.xlu0 %v774, 64
    %v989 = vpop.permute.xlu0 %988
    %990 = vrot.lane.b32.xlu0 %v775, 64
    %v991 = vpop.permute.xlu0 %990
    %992 = vrot.lane.b32.xlu0 %v776, 64
    %v993 = vpop.permute.xlu0 %992
    %994 = vrot.lane.b32.xlu0 %v777, 64
    %v995 = vpop.permute.xlu0 %994
    %996 = vrot.lane.b32.xlu0 %v778, 64
    %v997 = vpop.permute.xlu0 %996
    %998 = vrot.lane.b32.xlu0 %v779, 64
    %v999 = vpop.permute.xlu0 %998
    %1000 = vrot.lane.b32.xlu0 %v780, 64
    %v1001 = vpop.permute.xlu0 %1000
    %1002 = vrot.lane.b32.xlu0 %v781, 64
    %v1003 = vpop.permute.xlu0 %1002
    %1004 = vrot.lane.b32.xlu0 %v782, 64
    %v1005 = vpop.permute.xlu0 %1004
    %1006 = vrot.lane.b32.xlu0 %v783, 64
    %v1007 = vpop.permute.xlu0 %1006
    %1008 = vrot.lane.b32.xlu0 %v784, 64
    %v1009 = vpop.permute.xlu0 %1008
    %1010 = vrot.lane.b32.xlu0 %v785, 64
    %v1011 = vpop.permute.xlu0 %1010
    %1012 = vrot.lane.b32.xlu0 %v786, 64
    %v1013 = vpop.permute.xlu0 %1012
    %1014 = vrot.lane.b32.xlu0 %v787, 64
    %v1015 = vpop.permute.xlu0 %1014
    %1016 = vrot.lane.b32.xlu0 %v788, 64
    %v1017 = vpop.permute.xlu0 %1016
    %1018 = vrot.lane.b32.xlu0 %v789, 64
    %v1019 = vpop.permute.xlu0 %1018
    %1020 = vrot.lane.b32.xlu0 %v790, 64
    %v1021 = vpop.permute.xlu0 %1020
    %1022 = vrot.lane.b32.xlu0 %v791, 64
    %v1023 = vpop.permute.xlu0 %1022
    %1024 = vrot.lane.b32.xlu0 %v792, 64
    %v1025 = vpop.permute.xlu0 %1024
    %1026 = vrot.lane.b32.xlu0 %v793, 64
    %v1027 = vpop.permute.xlu0 %1026
    %1028 = vrot.lane.b32.xlu0 %v794, 64
    %v1029 = vpop.permute.xlu0 %1028
    %1030 = vrot.lane.b32.xlu0 %v795, 64
    %v1031 = vpop.permute.xlu0 %1030
    %1032 = vrot.lane.b32.xlu0 %v796, 64
    %v1033 = vpop.permute.xlu0 %1032
    %1034 = vrot.lane.b32.xlu0 %v797, 64
    %v1035 = vpop.permute.xlu0 %1034
    %1036 = vrot.lane.b32.xlu0 %v798, 64
    %v1037 = vpop.permute.xlu0 %1036
    %1038 = vrot.lane.b32.xlu0 %v799, 64
    %v1039 = vpop.permute.xlu0 %1038
    %1040 = vrot.lane.b32.xlu0 %v800, 64
    %v1041 = vpop.permute.xlu0 %1040
    %1042 = vrot.lane.b32.xlu0 %v801, 64
    %v1043 = vpop.permute.xlu0 %1042
    %1044 = vrot.lane.b32.xlu0 %v802, 64
    %v1045 = vpop.permute.xlu0 %1044
    %vm1127 = vcmask 785920
    %1128 = vst.msk [vmem:[#allocation5] sm:$0xff] %vm1127, %v885
    %1129 = vst.msk [vmem:[#allocation5 + $0x18] sm:$0xff] %vm1127, %v887
    %1130 = vst.msk [vmem:[#allocation5 + $0x30] sm:$0xff] %vm1127, %v889
    %1131 = vst.msk [vmem:[#allocation5 + $0x48] sm:$0xff] %vm1127, %v891
    %1132 = vst.msk [vmem:[#allocation5 + $0x60] sm:$0xff] %vm1127, %v893
    %1133 = vst.msk [vmem:[#allocation5 + $0x78] sm:$0xff] %vm1127, %v895
    %1134 = vst.msk [vmem:[#allocation5 + $0x90] sm:$0xff] %vm1127, %v897
    %1135 = vst.msk [vmem:[#allocation5 + $0xa8] sm:$0xff] %vm1127, %v899
    %1136 = vst.msk [vmem:[#allocation5 + $0xc0] sm:$0xff] %vm1127, %v901
    %1137 = vst.msk [vmem:[#allocation5 + $0xd8] sm:$0xff] %vm1127, %v903
    %1138 = vst.msk [vmem:[#allocation5 + $0xf0] sm:$0xff] %vm1127, %v905
    %1139 = vst.msk [vmem:[#allocation5 + $0x108] sm:$0xff] %vm1127, %v907
    %1140 = vst.msk [vmem:[#allocation5 + $0x120] sm:$0xff] %vm1127, %v909
    %1141 = vst.msk [vmem:[#allocation5 + $0x138] sm:$0xff] %vm1127, %v911
    %1142 = vst.msk [vmem:[#allocation5 + $0x150] sm:$0xff] %vm1127, %v913
    %1143 = vst.msk [vmem:[#allocation5 + $0x168] sm:$0xff] %vm1127, %v915
    %1144 = vst.msk [vmem:[#allocation5 + $0x180] sm:$0xff] %vm1127, %v917
    %1145 = vst.msk [vmem:[#allocation5 + $0x198] sm:$0xff] %vm1127, %v919
    %1146 = vst.msk [vmem:[#allocation5 + $0x1b0] sm:$0xff] %vm1127, %v921
    %1147 = vst.msk [vmem:[#allocation5 + $0x1c8] sm:$0xff] %vm1127, %v923
    %1148 = vst.msk [vmem:[#allocation5 + $0x1e0] sm:$0xff] %vm1127, %v925
    %1149 = vst.msk [vmem:[#allocation5 + $0x1f8] sm:$0xff] %vm1127, %v927
    %1150 = vst.msk [vmem:[#allocation5 + $0x210] sm:$0xff] %vm1127, %v929
    %1151 = vst.msk [vmem:[#allocation5 + $0x228] sm:$0xff] %vm1127, %v931
    %1152 = vst.msk [vmem:[#allocation5 + $0x240] sm:$0xff] %vm1127, %v933
    %1153 = vst.msk [vmem:[#allocation5 + $0x258] sm:$0xff] %vm1127, %v935
    %1154 = vst.msk [vmem:[#allocation5 + $0x270] sm:$0xff] %vm1127, %v937
    %1155 = vst.msk [vmem:[#allocation5 + $0x288] sm:$0xff] %vm1127, %v939
    %1156 = vst.msk [vmem:[#allocation5 + $0x2a0] sm:$0xff] %vm1127, %v941
    %1157 = vst.msk [vmem:[#allocation5 + $0x2b8] sm:$0xff] %vm1127, %v943
    %1158 = vst.msk [vmem:[#allocation5 + $0x2d0] sm:$0xff] %vm1127, %v945
    %1159 = vst.msk [vmem:[#allocation5 + $0x2e8] sm:$0xff] %vm1127, %v947
    %1160 = vst.msk [vmem:[#allocation5 + $0x300] sm:$0xff] %vm1127, %v949
    %1161 = vst.msk [vmem:[#allocation5 + $0x318] sm:$0xff] %vm1127, %v951
    %1162 = vst.msk [vmem:[#allocation5 + $0x330] sm:$0xff] %vm1127, %v953
    %1163 = vst.msk [vmem:[#allocation5 + $0x348] sm:$0xff] %vm1127, %v955
    %1164 = vst.msk [vmem:[#allocation5 + $0x360] sm:$0xff] %vm1127, %v957
    %1165 = vst.msk [vmem:[#allocation5 + $0x378] sm:$0xff] %vm1127, %v959
    %1166 = vst.msk [vmem:[#allocation5 + $0x390] sm:$0xff] %vm1127, %v961
    %1167 = vst.msk [vmem:[#allocation5 + $0x3a8] sm:$0xff] %vm1127, %v963
    %1168 = vst.msk [vmem:[#allocation5 + $0x3c0] sm:$0xff] %vm1127, %v965
    %1169 = vst.msk [vmem:[#allocation5 + $0x3d8] sm:$0xff] %vm1127, %v967
    %1170 = vst.msk [vmem:[#allocation5 + $0x3f0] sm:$0xff] %vm1127, %v969
    %1171 = vst.msk [vmem:[#allocation5 + $0x408] sm:$0xff] %vm1127, %v971
    %1172 = vst.msk [vmem:[#allocation5 + $0x420] sm:$0xff] %vm1127, %v973
    %1173 = vst.msk [vmem:[#allocation5 + $0x438] sm:$0xff] %vm1127, %v975
    %1174 = vst.msk [vmem:[#allocation5 + $0x450] sm:$0xff] %vm1127, %v977
    %1175 = vst.msk [vmem:[#allocation5 + $0x468] sm:$0xff] %vm1127, %v979
    %1176 = vst.msk [vmem:[#allocation5 + $0x480] sm:$0xff] %vm1127, %v981
    %1177 = vst.msk [vmem:[#allocation5 + $0x498] sm:$0xff] %vm1127, %v983
    %1178 = vst.msk [vmem:[#allocation5 + $0x4b0] sm:$0xff] %vm1127, %v985
    %1179 = vst.msk [vmem:[#allocation5 + $0x4c8] sm:$0xff] %vm1127, %v987
    %1180 = vst.msk [vmem:[#allocation5 + $0x4e0] sm:$0xff] %vm1127, %v989
    %1181 = vst.msk [vmem:[#allocation5 + $0x4f8] sm:$0xff] %vm1127, %v991
    %1182 = vst.msk [vmem:[#allocation5 + $0x510] sm:$0xff] %vm1127, %v993
    %1183 = vst.msk [vmem:[#allocation5 + $0x528] sm:$0xff] %vm1127, %v995
    %1184 = vst.msk [vmem:[#allocation5 + $0x540] sm:$0xff] %vm1127, %v997
    %1185 = vst.msk [vmem:[#allocation5 + $0x558] sm:$0xff] %vm1127, %v999
    %1186 = vst.msk [vmem:[#allocation5 + $0x570] sm:$0xff] %vm1127, %v1001
    %1187 = vst.msk [vmem:[#allocation5 + $0x588] sm:$0xff] %vm1127, %v1003
    %1188 = vst.msk [vmem:[#allocation5 + $0x5a0] sm:$0xff] %vm1127, %v1005
    %1189 = vst.msk [vmem:[#allocation5 + $0x5b8] sm:$0xff] %vm1127, %v1007
    %1190 = vst.msk [vmem:[#allocation5 + $0x5d0] sm:$0xff] %vm1127, %v1009
    %1191 = vst.msk [vmem:[#allocation5 + $0x5e8] sm:$0xff] %vm1127, %v1011
    %1192 = vst.msk [vmem:[#allocation5 + $0x600] sm:$0xff] %vm1127, %v1013
    %1193 = vst.msk [vmem:[#allocation5 + $0x618] sm:$0xff] %vm1127, %v1015
    %1194 = vst.msk [vmem:[#allocation5 + $0x630] sm:$0xff] %vm1127, %v1017
    %1195 = vst.msk [vmem:[#allocation5 + $0x648] sm:$0xff] %vm1127, %v1019
    %1196 = vst.msk [vmem:[#allocation5 + $0x660] sm:$0xff] %vm1127, %v1021
    %1197 = vst.msk [vmem:[#allocation5 + $0x678] sm:$0xff] %vm1127, %v1023
    %1198 = vst.msk [vmem:[#allocation5 + $0x690] sm:$0xff] %vm1127, %v1025
    %1199 = vst.msk [vmem:[#allocation5 + $0x6a8] sm:$0xff] %vm1127, %v1027
    %1200 = vst.msk [vmem:[#allocation5 + $0x6c0] sm:$0xff] %vm1127, %v1029
    %1201 = vst.msk [vmem:[#allocation5 + $0x6d8] sm:$0xff] %vm1127, %v1031
    %1202 = vst.msk [vmem:[#allocation5 + $0x6f0] sm:$0xff] %vm1127, %v1033
    %1203 = vst.msk [vmem:[#allocation5 + $0x708] sm:$0xff] %vm1127, %v1035
    %1204 = vst.msk [vmem:[#allocation5 + $0x720] sm:$0xff] %vm1127, %v1037
    %1205 = vst.msk [vmem:[#allocation5 + $0x738] sm:$0xff] %vm1127, %v1039
    %1206 = vst.msk [vmem:[#allocation5 + $0x750] sm:$0xff] %vm1127, %v1041
    %1207 = vst.msk [vmem:[#allocation5 + $0x768] sm:$0xff] %vm1127, %v1043
    %1208 = vst.msk [vmem:[#allocation5 + $0x780] sm:$0xff] %vm1127, %v1045
    %v1209 = vld [vmem:[%s0 + $0x12] sm:$0xff]
    %v1210 = vld [vmem:[%s0 + $0x1a] sm:$0xff]
    %v1211 = vld [vmem:[%s0 + $0x22] sm:$0xff]
    %v1212 = vld [vmem:[%s0 + $0x2a] sm:$0xff]
    %v1213 = vld [vmem:[%s0 + $0x32] sm:$0xff]
    %v1214 = vld [vmem:[%s0 + $0x3a] sm:$0xff]
    %v1215 = vld [vmem:[%s0 + $0x42] sm:$0xff]
    %v1216 = vld [vmem:[%s0 + $0x4a] sm:$0xff]
    %v1217 = vld [vmem:[%s0 + $0x52] sm:$0xff]
    %v1218 = vld [vmem:[%s0 + $0x5a] sm:$0xff]
    %v1219 = vld [vmem:[%s0 + $0x62] sm:$0xff]
    %v1220 = vld [vmem:[%s0 + $0x6a] sm:$0xff]
    %v1221 = vld [vmem:[%s0 + $0x72] sm:$0xff]
    %v1222 = vld [vmem:[%s0 + $0x7a] sm:$0xff]
    %v1223 = vld [vmem:[%s0 + $0x82] sm:$0xff]
    %v1224 = vld [vmem:[%s0 + $0x8a] sm:$0xff]
    %v1225 = vld [vmem:[%s0 + $0x92] sm:$0xff]
    %v1226 = vld [vmem:[%s0 + $0x9a] sm:$0xff]
    %v1227 = vld [vmem:[%s0 + $0xa2] sm:$0xff]
    %v1228 = vld [vmem:[%s0 + $0xaa] sm:$0xff]
    %v1229 = vld [vmem:[%s0 + $0xb2] sm:$0xff]
    %v1230 = vld [vmem:[%s0 + $0xba] sm:$0xff]
    %v1231 = vld [vmem:[%s0 + $0xc2] sm:$0xff]
    %v1232 = vld [vmem:[%s0 + $0xca] sm:$0xff]
    %v1233 = vld [vmem:[%s0 + $0xd2] sm:$0xff]
    %v1234 = vld [vmem:[%s0 + $0xda] sm:$0xff]
    %v1235 = vld [vmem:[%s0 + $0xe2] sm:$0xff]
    %v1236 = vld [vmem:[%s0 + $0xea] sm:$0xff]
    %v1237 = vld [vmem:[%s0 + $0xf2] sm:$0xff]
    %v1238 = vld [vmem:[%s0 + $0xfa] sm:$0xff]
    %v1239 = vld [vmem:[%s0 + $0x102] sm:$0xff]
    %v1240 = vld [vmem:[%s0 + $0x10a] sm:$0xff]
    %v1241 = vld [vmem:[%s0 + $0x112] sm:$0xff]
    %v1242 = vld [vmem:[%s0 + $0x11a] sm:$0xff]
    %v1243 = vld [vmem:[%s0 + $0x122] sm:$0xff]
    %v1244 = vld [vmem:[%s0 + $0x12a] sm:$0xff]
    %v1245 = vld [vmem:[%s0 + $0x132] sm:$0xff]
    %v1246 = vld [vmem:[%s0 + $0x13a] sm:$0xff]
    %v1247 = vld [vmem:[%s0 + $0x142] sm:$0xff]
    %v1248 = vld [vmem:[%s0 + $0x14a] sm:$0xff]
    %v1249 = vld [vmem:[%s0 + $0x152] sm:$0xff]
    %v1250 = vld [vmem:[%s0 + $0x15a] sm:$0xff]
    %v1251 = vld [vmem:[%s0 + $0x162] sm:$0xff]
    %v1252 = vld [vmem:[%s0 + $0x16a] sm:$0xff]
    %v1253 = vld [vmem:[%s0 + $0x172] sm:$0xff]
    %v1254 = vld [vmem:[%s0 + $0x17a] sm:$0xff]
    %v1255 = vld [vmem:[%s0 + $0x182] sm:$0xff]
    %v1256 = vld [vmem:[%s0 + $0x18a] sm:$0xff]
    %v1257 = vld [vmem:[%s0 + $0x192] sm:$0xff]
    %v1258 = vld [vmem:[%s0 + $0x19a] sm:$0xff]
    %v1259 = vld [vmem:[%s0 + $0x1a2] sm:$0xff]
    %v1260 = vld [vmem:[%s0 + $0x1aa] sm:$0xff]
    %v1261 = vld [vmem:[%s0 + $0x1b2] sm:$0xff]
    %v1262 = vld [vmem:[%s0 + $0x1ba] sm:$0xff]
    %v1263 = vld [vmem:[%s0 + $0x1c2] sm:$0xff]
    %v1264 = vld [vmem:[%s0 + $0x1ca] sm:$0xff]
    %v1265 = vld [vmem:[%s0 + $0x1d2] sm:$0xff]
    %v1266 = vld [vmem:[%s0 + $0x1da] sm:$0xff]
    %v1267 = vld [vmem:[%s0 + $0x1e2] sm:$0xff]
    %v1268 = vld [vmem:[%s0 + $0x1ea] sm:$0xff]
    %v1269 = vld [vmem:[%s0 + $0x1f2] sm:$0xff]
    %v1270 = vld [vmem:[%s0 + $0x1fa] sm:$0xff]
    %v1271 = vld [vmem:[%s0 + $0x202] sm:$0xff]
    %v1272 = vld [vmem:[%s0 + $0x20a] sm:$0xff]
    %v1273 = vld [vmem:[%s0 + $0x212] sm:$0xff]
    %v1274 = vld [vmem:[%s0 + $0x21a] sm:$0xff]
    %v1275 = vld [vmem:[%s0 + $0x222] sm:$0xff]
    %v1276 = vld [vmem:[%s0 + $0x22a] sm:$0xff]
    %v1277 = vld [vmem:[%s0 + $0x232] sm:$0xff]
    %v1278 = vld [vmem:[%s0 + $0x23a] sm:$0xff]
    %v1279 = vld [vmem:[%s0 + $0x242] sm:$0xff]
    %v1280 = vld [vmem:[%s0 + $0x24a] sm:$0xff]
    %v1281 = vld [vmem:[%s0 + $0x252] sm:$0xff]
    %v1282 = vld [vmem:[%s0 + $0x25a] sm:$0xff]
    %v1283 = vld [vmem:[%s0 + $0x262] sm:$0xff]
    %v1284 = vld [vmem:[%s0 + $0x26a] sm:$0xff]
    %v1285 = vld [vmem:[%s0 + $0x272] sm:$0xff]
    %v1286 = vld [vmem:[%s0 + $0x27a] sm:$0xff]
    %v1287 = vld [vmem:[%s0 + $0x282] sm:$0xff]
    %v1288 = vld [vmem:[%s0 + $0x28a] sm:$0xff]
    %v1289 = vld [vmem:[%s0 + $0x292] sm:$0xff]
    %1371 = vrot.lane.b32.xlu0 %v1209, 96
    %v1372 = vpop.permute.xlu0 %1371
    %1373 = vrot.lane.b32.xlu0 %v1210, 96
    %v1374 = vpop.permute.xlu0 %1373
    %1375 = vrot.lane.b32.xlu0 %v1211, 96
    %v1376 = vpop.permute.xlu0 %1375
    %1377 = vrot.lane.b32.xlu0 %v1212, 96
    %v1378 = vpop.permute.xlu0 %1377
    %1379 = vrot.lane.b32.xlu0 %v1213, 96
    %v1380 = vpop.permute.xlu0 %1379
    %1381 = vrot.lane.b32.xlu0 %v1214, 96
    %v1382 = vpop.permute.xlu0 %1381
    %1383 = vrot.lane.b32.xlu0 %v1215, 96
    %v1384 = vpop.permute.xlu0 %1383
    %1385 = vrot.lane.b32.xlu0 %v1216, 96
    %v1386 = vpop.permute.xlu0 %1385
    %1387 = vrot.lane.b32.xlu0 %v1217, 96
    %v1388 = vpop.permute.xlu0 %1387
    %1389 = vrot.lane.b32.xlu0 %v1218, 96
    %v1390 = vpop.permute.xlu0 %1389
    %1391 = vrot.lane.b32.xlu0 %v1219, 96
    %v1392 = vpop.permute.xlu0 %1391
    %1393 = vrot.lane.b32.xlu0 %v1220, 96
    %v1394 = vpop.permute.xlu0 %1393
    %1395 = vrot.lane.b32.xlu0 %v1221, 96
    %v1396 = vpop.permute.xlu0 %1395
    %1397 = vrot.lane.b32.xlu0 %v1222, 96
    %v1398 = vpop.permute.xlu0 %1397
    %1399 = vrot.lane.b32.xlu0 %v1223, 96
    %v1400 = vpop.permute.xlu0 %1399
    %1401 = vrot.lane.b32.xlu0 %v1224, 96
    %v1402 = vpop.permute.xlu0 %1401
    %1403 = vrot.lane.b32.xlu0 %v1225, 96
    %v1404 = vpop.permute.xlu0 %1403
    %1405 = vrot.lane.b32.xlu0 %v1226, 96
    %v1406 = vpop.permute.xlu0 %1405
    %1407 = vrot.lane.b32.xlu0 %v1227, 96
    %v1408 = vpop.permute.xlu0 %1407
    %1409 = vrot.lane.b32.xlu0 %v1228, 96
    %v1410 = vpop.permute.xlu0 %1409
    %1411 = vrot.lane.b32.xlu0 %v1229, 96
    %v1412 = vpop.permute.xlu0 %1411
    %1413 = vrot.lane.b32.xlu0 %v1230, 96
    %v1414 = vpop.permute.xlu0 %1413
    %1415 = vrot.lane.b32.xlu0 %v1231, 96
    %v1416 = vpop.permute.xlu0 %1415
    %1417 = vrot.lane.b32.xlu0 %v1232, 96
    %v1418 = vpop.permute.xlu0 %1417
    %1419 = vrot.lane.b32.xlu0 %v1233, 96
    %v1420 = vpop.permute.xlu0 %1419
    %1421 = vrot.lane.b32.xlu0 %v1234, 96
    %v1422 = vpop.permute.xlu0 %1421
    %1423 = vrot.lane.b32.xlu0 %v1235, 96
    %v1424 = vpop.permute.xlu0 %1423
    %1425 = vrot.lane.b32.xlu0 %v1236, 96
    %v1426 = vpop.permute.xlu0 %1425
    %1427 = vrot.lane.b32.xlu0 %v1237, 96
    %v1428 = vpop.permute.xlu0 %1427
    %1429 = vrot.lane.b32.xlu0 %v1238, 96
    %v1430 = vpop.permute.xlu0 %1429
    %1431 = vrot.lane.b32.xlu0 %v1239, 96
    %v1432 = vpop.permute.xlu0 %1431
    %1433 = vrot.lane.b32.xlu0 %v1240, 96
    %v1434 = vpop.permute.xlu0 %1433
    %1435 = vrot.lane.b32.xlu0 %v1241, 96
    %v1436 = vpop.permute.xlu0 %1435
    %1437 = vrot.lane.b32.xlu0 %v1242, 96
    %v1438 = vpop.permute.xlu0 %1437
    %1439 = vrot.lane.b32.xlu0 %v1243, 96
    %v1440 = vpop.permute.xlu0 %1439
    %1441 = vrot.lane.b32.xlu0 %v1244, 96
    %v1442 = vpop.permute.xlu0 %1441
    %1443 = vrot.lane.b32.xlu0 %v1245, 96
    %v1444 = vpop.permute.xlu0 %1443
    %1445 = vrot.lane.b32.xlu0 %v1246, 96
    %v1446 = vpop.permute.xlu0 %1445
    %1447 = vrot.lane.b32.xlu0 %v1247, 96
    %v1448 = vpop.permute.xlu0 %1447
    %1449 = vrot.lane.b32.xlu0 %v1248, 96
    %v1450 = vpop.permute.xlu0 %1449
    %1451 = vrot.lane.b32.xlu0 %v1249, 96
    %v1452 = vpop.permute.xlu0 %1451
    %1453 = vrot.lane.b32.xlu0 %v1250, 96
    %v1454 = vpop.permute.xlu0 %1453
    %1455 = vrot.lane.b32.xlu0 %v1251, 96
    %v1456 = vpop.permute.xlu0 %1455
    %1457 = vrot.lane.b32.xlu0 %v1252, 96
    %v1458 = vpop.permute.xlu0 %1457
    %1459 = vrot.lane.b32.xlu0 %v1253, 96
    %v1460 = vpop.permute.xlu0 %1459
    %1461 = vrot.lane.b32.xlu0 %v1254, 96
    %v1462 = vpop.permute.xlu0 %1461
    %1463 = vrot.lane.b32.xlu0 %v1255, 96
    %v1464 = vpop.permute.xlu0 %1463
    %1465 = vrot.lane.b32.xlu0 %v1256, 96
    %v1466 = vpop.permute.xlu0 %1465
    %1467 = vrot.lane.b32.xlu0 %v1257, 96
    %v1468 = vpop.permute.xlu0 %1467
    %1469 = vrot.lane.b32.xlu0 %v1258, 96
    %v1470 = vpop.permute.xlu0 %1469
    %1471 = vrot.lane.b32.xlu0 %v1259, 96
    %v1472 = vpop.permute.xlu0 %1471
    %1473 = vrot.lane.b32.xlu0 %v1260, 96
    %v1474 = vpop.permute.xlu0 %1473
    %1475 = vrot.lane.b32.xlu0 %v1261, 96
    %v1476 = vpop.permute.xlu0 %1475
    %1477 = vrot.lane.b32.xlu0 %v1262, 96
    %v1478 = vpop.permute.xlu0 %1477
    %1479 = vrot.lane.b32.xlu0 %v1263, 96
    %v1480 = vpop.permute.xlu0 %1479
    %1481 = vrot.lane.b32.xlu0 %v1264, 96
    %v1482 = vpop.permute.xlu0 %1481
    %1483 = vrot.lane.b32.xlu0 %v1265, 96
    %v1484 = vpop.permute.xlu0 %1483
    %1485 = vrot.lane.b32.xlu0 %v1266, 96
    %v1486 = vpop.permute.xlu0 %1485
    %1487 = vrot.lane.b32.xlu0 %v1267, 96
    %v1488 = vpop.permute.xlu0 %1487
    %1489 = vrot.lane.b32.xlu0 %v1268, 96
    %v1490 = vpop.permute.xlu0 %1489
    %1491 = vrot.lane.b32.xlu0 %v1269, 96
    %v1492 = vpop.permute.xlu0 %1491
    %1493 = vrot.lane.b32.xlu0 %v1270, 96
    %v1494 = vpop.permute.xlu0 %1493
    %1495 = vrot.lane.b32.xlu0 %v1271, 96
    %v1496 = vpop.permute.xlu0 %1495
    %1497 = vrot.lane.b32.xlu0 %v1272, 96
    %v1498 = vpop.permute.xlu0 %1497
    %1499 = vrot.lane.b32.xlu0 %v1273, 96
    %v1500 = vpop.permute.xlu0 %1499
    %1501 = vrot.lane.b32.xlu0 %v1274, 96
    %v1502 = vpop.permute.xlu0 %1501
    %1503 = vrot.lane.b32.xlu0 %v1275, 96
    %v1504 = vpop.permute.xlu0 %1503
    %1505 = vrot.lane.b32.xlu0 %v1276, 96
    %v1506 = vpop.permute.xlu0 %1505
    %1507 = vrot.lane.b32.xlu0 %v1277, 96
    %v1508 = vpop.permute.xlu0 %1507
    %1509 = vrot.lane.b32.xlu0 %v1278, 96
    %v1510 = vpop.permute.xlu0 %1509
    %1511 = vrot.lane.b32.xlu0 %v1279, 96
    %v1512 = vpop.permute.xlu0 %1511
    %1513 = vrot.lane.b32.xlu0 %v1280, 96
    %v1514 = vpop.permute.xlu0 %1513
    %1515 = vrot.lane.b32.xlu0 %v1281, 96
    %v1516 = vpop.permute.xlu0 %1515
    %1517 = vrot.lane.b32.xlu0 %v1282, 96
    %v1518 = vpop.permute.xlu0 %1517
    %1519 = vrot.lane.b32.xlu0 %v1283, 96
    %v1520 = vpop.permute.xlu0 %1519
    %1521 = vrot.lane.b32.xlu0 %v1284, 96
    %v1522 = vpop.permute.xlu0 %1521
    %1523 = vrot.lane.b32.xlu0 %v1285, 96
    %v1524 = vpop.permute.xlu0 %1523
    %1525 = vrot.lane.b32.xlu0 %v1286, 96
    %v1526 = vpop.permute.xlu0 %1525
    %1527 = vrot.lane.b32.xlu0 %v1287, 96
    %v1528 = vpop.permute.xlu0 %1527
    %1529 = vrot.lane.b32.xlu0 %v1288, 96
    %v1530 = vpop.permute.xlu0 %1529
    %1531 = vrot.lane.b32.xlu0 %v1289, 96
    %v1532 = vpop.permute.xlu0 %1531
    %vm1614 = vcmask 1048320
    %1615 = vst.msk [vmem:[#allocation5] sm:$0xff] %vm1614, %v1372
    %1616 = vst.msk [vmem:[#allocation5 + $0x18] sm:$0xff] %vm1614, %v1374
    %1617 = vst.msk [vmem:[#allocation5 + $0x30] sm:$0xff] %vm1614, %v1376
    %1618 = vst.msk [vmem:[#allocation5 + $0x48] sm:$0xff] %vm1614, %v1378
    %1619 = vst.msk [vmem:[#allocation5 + $0x60] sm:$0xff] %vm1614, %v1380
    %1620 = vst.msk [vmem:[#allocation5 + $0x78] sm:$0xff] %vm1614, %v1382
    %1621 = vst.msk [vmem:[#allocation5 + $0x90] sm:$0xff] %vm1614, %v1384
    %1622 = vst.msk [vmem:[#allocation5 + $0xa8] sm:$0xff] %vm1614, %v1386
    %1623 = vst.msk [vmem:[#allocation5 + $0xc0] sm:$0xff] %vm1614, %v1388
    %1624 = vst.msk [vmem:[#allocation5 + $0xd8] sm:$0xff] %vm1614, %v1390
    %1625 = vst.msk [vmem:[#allocation5 + $0xf0] sm:$0xff] %vm1614, %v1392
    %1626 = vst.msk [vmem:[#allocation5 + $0x108] sm:$0xff] %vm1614, %v1394
    %1627 = vst.msk [vmem:[#allocation5 + $0x120] sm:$0xff] %vm1614, %v1396
    %1628 = vst.msk [vmem:[#allocation5 + $0x138] sm:$0xff] %vm1614, %v1398
    %1629 = vst.msk [vmem:[#allocation5 + $0x150] sm:$0xff] %vm1614, %v1400
    %1630 = vst.msk [vmem:[#allocation5 + $0x168] sm:$0xff] %vm1614, %v1402
    %1631 = vst.msk [vmem:[#allocation5 + $0x180] sm:$0xff] %vm1614, %v1404
    %1632 = vst.msk [vmem:[#allocation5 + $0x198] sm:$0xff] %vm1614, %v1406
    %1633 = vst.msk [vmem:[#allocation5 + $0x1b0] sm:$0xff] %vm1614, %v1408
    %1634 = vst.msk [vmem:[#allocation5 + $0x1c8] sm:$0xff] %vm1614, %v1410
    %1635 = vst.msk [vmem:[#allocation5 + $0x1e0] sm:$0xff] %vm1614, %v1412
    %1636 = vst.msk [vmem:[#allocation5 + $0x1f8] sm:$0xff] %vm1614, %v1414
    %1637 = vst.msk [vmem:[#allocation5 + $0x210] sm:$0xff] %vm1614, %v1416
    %1638 = vst.msk [vmem:[#allocation5 + $0x228] sm:$0xff] %vm1614, %v1418
    %1639 = vst.msk [vmem:[#allocation5 + $0x240] sm:$0xff] %vm1614, %v1420
    %1640 = vst.msk [vmem:[#allocation5 + $0x258] sm:$0xff] %vm1614, %v1422
    %1641 = vst.msk [vmem:[#allocation5 + $0x270] sm:$0xff] %vm1614, %v1424
    %1642 = vst.msk [vmem:[#allocation5 + $0x288] sm:$0xff] %vm1614, %v1426
    %1643 = vst.msk [vmem:[#allocation5 + $0x2a0] sm:$0xff] %vm1614, %v1428
    %1644 = vst.msk [vmem:[#allocation5 + $0x2b8] sm:$0xff] %vm1614, %v1430
    %1645 = vst.msk [vmem:[#allocation5 + $0x2d0] sm:$0xff] %vm1614, %v1432
    %1646 = vst.msk [vmem:[#allocation5 + $0x2e8] sm:$0xff] %vm1614, %v1434
    %1647 = vst.msk [vmem:[#allocation5 + $0x300] sm:$0xff] %vm1614, %v1436
    %1648 = vst.msk [vmem:[#allocation5 + $0x318] sm:$0xff] %vm1614, %v1438
    %1649 = vst.msk [vmem:[#allocation5 + $0x330] sm:$0xff] %vm1614, %v1440
    %1650 = vst.msk [vmem:[#allocation5 + $0x348] sm:$0xff] %vm1614, %v1442
    %1651 = vst.msk [vmem:[#allocation5 + $0x360] sm:$0xff] %vm1614, %v1444
    %1652 = vst.msk [vmem:[#allocation5 + $0x378] sm:$0xff] %vm1614, %v1446
    %1653 = vst.msk [vmem:[#allocation5 + $0x390] sm:$0xff] %vm1614, %v1448
    %1654 = vst.msk [vmem:[#allocation5 + $0x3a8] sm:$0xff] %vm1614, %v1450
    %1655 = vst.msk [vmem:[#allocation5 + $0x3c0] sm:$0xff] %vm1614, %v1452
    %1656 = vst.msk [vmem:[#allocation5 + $0x3d8] sm:$0xff] %vm1614, %v1454
    %1657 = vst.msk [vmem:[#allocation5 + $0x3f0] sm:$0xff] %vm1614, %v1456
    %1658 = vst.msk [vmem:[#allocation5 + $0x408] sm:$0xff] %vm1614, %v1458
    %1659 = vst.msk [vmem:[#allocation5 + $0x420] sm:$0xff] %vm1614, %v1460
    %1660 = vst.msk [vmem:[#allocation5 + $0x438] sm:$0xff] %vm1614, %v1462
    %1661 = vst.msk [vmem:[#allocation5 + $0x450] sm:$0xff] %vm1614, %v1464
    %1662 = vst.msk [vmem:[#allocation5 + $0x468] sm:$0xff] %vm1614, %v1466
    %1663 = vst.msk [vmem:[#allocation5 + $0x480] sm:$0xff] %vm1614, %v1468
    %1664 = vst.msk [vmem:[#allocation5 + $0x498] sm:$0xff] %vm1614, %v1470
    %1665 = vst.msk [vmem:[#allocation5 + $0x4b0] sm:$0xff] %vm1614, %v1472
    %1666 = vst.msk [vmem:[#allocation5 + $0x4c8] sm:$0xff] %vm1614, %v1474
    %1667 = vst.msk [vmem:[#allocation5 + $0x4e0] sm:$0xff] %vm1614, %v1476
    %1668 = vst.msk [vmem:[#allocation5 + $0x4f8] sm:$0xff] %vm1614, %v1478
    %1669 = vst.msk [vmem:[#allocation5 + $0x510] sm:$0xff] %vm1614, %v1480
    %1670 = vst.msk [vmem:[#allocation5 + $0x528] sm:$0xff] %vm1614, %v1482
    %1671 = vst.msk [vmem:[#allocation5 + $0x540] sm:$0xff] %vm1614, %v1484
    %1672 = vst.msk [vmem:[#allocation5 + $0x558] sm:$0xff] %vm1614, %v1486
    %1673 = vst.msk [vmem:[#allocation5 + $0x570] sm:$0xff] %vm1614, %v1488
    %1674 = vst.msk [vmem:[#allocation5 + $0x588] sm:$0xff] %vm1614, %v1490
    %1675 = vst.msk [vmem:[#allocation5 + $0x5a0] sm:$0xff] %vm1614, %v1492
    %1676 = vst.msk [vmem:[#allocation5 + $0x5b8] sm:$0xff] %vm1614, %v1494
    %1677 = vst.msk [vmem:[#allocation5 + $0x5d0] sm:$0xff] %vm1614, %v1496
    %1678 = vst.msk [vmem:[#allocation5 + $0x5e8] sm:$0xff] %vm1614, %v1498
    %1679 = vst.msk [vmem:[#allocation5 + $0x600] sm:$0xff] %vm1614, %v1500
    %1680 = vst.msk [vmem:[#allocation5 + $0x618] sm:$0xff] %vm1614, %v1502
    %1681 = vst.msk [vmem:[#allocation5 + $0x630] sm:$0xff] %vm1614, %v1504
    %1682 = vst.msk [vmem:[#allocation5 + $0x648] sm:$0xff] %vm1614, %v1506
    %1683 = vst.msk [vmem:[#allocation5 + $0x660] sm:$0xff] %vm1614, %v1508
    %1684 = vst.msk [vmem:[#allocation5 + $0x678] sm:$0xff] %vm1614, %v1510
    %1685 = vst.msk [vmem:[#allocation5 + $0x690] sm:$0xff] %vm1614, %v1512
    %1686 = vst.msk [vmem:[#allocation5 + $0x6a8] sm:$0xff] %vm1614, %v1514
    %1687 = vst.msk [vmem:[#allocation5 + $0x6c0] sm:$0xff] %vm1614, %v1516
    %1688 = vst.msk [vmem:[#allocation5 + $0x6d8] sm:$0xff] %vm1614, %v1518
    %1689 = vst.msk [vmem:[#allocation5 + $0x6f0] sm:$0xff] %vm1614, %v1520
    %1690 = vst.msk [vmem:[#allocation5 + $0x708] sm:$0xff] %vm1614, %v1522
    %1691 = vst.msk [vmem:[#allocation5 + $0x720] sm:$0xff] %vm1614, %v1524
    %1692 = vst.msk [vmem:[#allocation5 + $0x738] sm:$0xff] %vm1614, %v1526
    %1693 = vst.msk [vmem:[#allocation5 + $0x750] sm:$0xff] %vm1614, %v1528
    %1694 = vst.msk [vmem:[#allocation5 + $0x768] sm:$0xff] %vm1614, %v1530
    %1695 = vst.msk [vmem:[#allocation5 + $0x780] sm:$0xff] %vm1614, %v1532
    %v1696 = vld [vmem:[%s0 + $0x13] sm:$0xff]
    %v1697 = vld [vmem:[%s0 + $0x1b] sm:$0xff]
    %v1698 = vld [vmem:[%s0 + $0x23] sm:$0xff]
    %v1699 = vld [vmem:[%s0 + $0x2b] sm:$0xff]
    %v1700 = vld [vmem:[%s0 + $0x33] sm:$0xff]
    %v1701 = vld [vmem:[%s0 + $0x3b] sm:$0xff]
    %v1702 = vld [vmem:[%s0 + $0x43] sm:$0xff]
    %v1703 = vld [vmem:[%s0 + $0x4b] sm:$0xff]
    %v1704 = vld [vmem:[%s0 + $0x53] sm:$0xff]
    %v1705 = vld [vmem:[%s0 + $0x5b] sm:$0xff]
    %v1706 = vld [vmem:[%s0 + $0x63] sm:$0xff]
    %v1707 = vld [vmem:[%s0 + $0x6b] sm:$0xff]
    %v1708 = vld [vmem:[%s0 + $0x73] sm:$0xff]
    %v1709 = vld [vmem:[%s0 + $0x7b] sm:$0xff]
    %v1710 = vld [vmem:[%s0 + $0x83] sm:$0xff]
    %v1711 = vld [vmem:[%s0 + $0x8b] sm:$0xff]
    %v1712 = vld [vmem:[%s0 + $0x93] sm:$0xff]
    %v1713 = vld [vmem:[%s0 + $0x9b] sm:$0xff]
    %v1714 = vld [vmem:[%s0 + $0xa3] sm:$0xff]
    %v1715 = vld [vmem:[%s0 + $0xab] sm:$0xff]
    %v1716 = vld [vmem:[%s0 + $0xb3] sm:$0xff]
    %v1717 = vld [vmem:[%s0 + $0xbb] sm:$0xff]
    %v1718 = vld [vmem:[%s0 + $0xc3] sm:$0xff]
    %v1719 = vld [vmem:[%s0 + $0xcb] sm:$0xff]
    %v1720 = vld [vmem:[%s0 + $0xd3] sm:$0xff]
    %v1721 = vld [vmem:[%s0 + $0xdb] sm:$0xff]
    %v1722 = vld [vmem:[%s0 + $0xe3] sm:$0xff]
    %v1723 = vld [vmem:[%s0 + $0xeb] sm:$0xff]
    %v1724 = vld [vmem:[%s0 + $0xf3] sm:$0xff]
    %v1725 = vld [vmem:[%s0 + $0xfb] sm:$0xff]
    %v1726 = vld [vmem:[%s0 + $0x103] sm:$0xff]
    %v1727 = vld [vmem:[%s0 + $0x10b] sm:$0xff]
    %v1728 = vld [vmem:[%s0 + $0x113] sm:$0xff]
    %v1729 = vld [vmem:[%s0 + $0x11b] sm:$0xff]
    %v1730 = vld [vmem:[%s0 + $0x123] sm:$0xff]
    %v1731 = vld [vmem:[%s0 + $0x12b] sm:$0xff]
    %v1732 = vld [vmem:[%s0 + $0x133] sm:$0xff]
    %v1733 = vld [vmem:[%s0 + $0x13b] sm:$0xff]
    %v1734 = vld [vmem:[%s0 + $0x143] sm:$0xff]
    %v1735 = vld [vmem:[%s0 + $0x14b] sm:$0xff]
    %v1736 = vld [vmem:[%s0 + $0x153] sm:$0xff]
    %v1737 = vld [vmem:[%s0 + $0x15b] sm:$0xff]
    %v1738 = vld [vmem:[%s0 + $0x163] sm:$0xff]
    %v1739 = vld [vmem:[%s0 + $0x16b] sm:$0xff]
    %v1740 = vld [vmem:[%s0 + $0x173] sm:$0xff]
    %v1741 = vld [vmem:[%s0 + $0x17b] sm:$0xff]
    %v1742 = vld [vmem:[%s0 + $0x183] sm:$0xff]
    %v1743 = vld [vmem:[%s0 + $0x18b] sm:$0xff]
    %v1744 = vld [vmem:[%s0 + $0x193] sm:$0xff]
    %v1745 = vld [vmem:[%s0 + $0x19b] sm:$0xff]
    %v1746 = vld [vmem:[%s0 + $0x1a3] sm:$0xff]
    %v1747 = vld [vmem:[%s0 + $0x1ab] sm:$0xff]
    %v1748 = vld [vmem:[%s0 + $0x1b3] sm:$0xff]
    %v1749 = vld [vmem:[%s0 + $0x1bb] sm:$0xff]
    %v1750 = vld [vmem:[%s0 + $0x1c3] sm:$0xff]
    %v1751 = vld [vmem:[%s0 + $0x1cb] sm:$0xff]
    %v1752 = vld [vmem:[%s0 + $0x1d3] sm:$0xff]
    %v1753 = vld [vmem:[%s0 + $0x1db] sm:$0xff]
    %v1754 = vld [vmem:[%s0 + $0x1e3] sm:$0xff]
    %v1755 = vld [vmem:[%s0 + $0x1eb] sm:$0xff]
    %v1756 = vld [vmem:[%s0 + $0x1f3] sm:$0xff]
    %v1757 = vld [vmem:[%s0 + $0x1fb] sm:$0xff]
    %v1758 = vld [vmem:[%s0 + $0x203] sm:$0xff]
    %v1759 = vld [vmem:[%s0 + $0x20b] sm:$0xff]
    %v1760 = vld [vmem:[%s0 + $0x213] sm:$0xff]
    %v1761 = vld [vmem:[%s0 + $0x21b] sm:$0xff]
    %v1762 = vld [vmem:[%s0 + $0x223] sm:$0xff]
    %v1763 = vld [vmem:[%s0 + $0x22b] sm:$0xff]
    %v1764 = vld [vmem:[%s0 + $0x233] sm:$0xff]
    %v1765 = vld [vmem:[%s0 + $0x23b] sm:$0xff]
    %v1766 = vld [vmem:[%s0 + $0x243] sm:$0xff]
    %v1767 = vld [vmem:[%s0 + $0x24b] sm:$0xff]
    %v1768 = vld [vmem:[%s0 + $0x253] sm:$0xff]
    %v1769 = vld [vmem:[%s0 + $0x25b] sm:$0xff]
    %v1770 = vld [vmem:[%s0 + $0x263] sm:$0xff]
    %v1771 = vld [vmem:[%s0 + $0x26b] sm:$0xff]
    %v1772 = vld [vmem:[%s0 + $0x273] sm:$0xff]
    %v1773 = vld [vmem:[%s0 + $0x27b] sm:$0xff]
    %v1774 = vld [vmem:[%s0 + $0x283] sm:$0xff]
    %v1775 = vld [vmem:[%s0 + $0x28b] sm:$0xff]
    %v1776 = vld [vmem:[%s0 + $0x293] sm:$0xff]
    %1777 = vst.msk [vmem:[#allocation5 + $0x8] sm:$0xff] %vm27, %v1696
    %1778 = vst.msk [vmem:[#allocation5 + $0x20] sm:$0xff] %vm27, %v1697
    %1779 = vst.msk [vmem:[#allocation5 + $0x38] sm:$0xff] %vm27, %v1698
    %1780 = vst.msk [vmem:[#allocation5 + $0x50] sm:$0xff] %vm27, %v1699
    %1781 = vst.msk [vmem:[#allocation5 + $0x68] sm:$0xff] %vm27, %v1700
    %1782 = vst.msk [vmem:[#allocation5 + $0x80] sm:$0xff] %vm27, %v1701
    %1783 = vst.msk [vmem:[#allocation5 + $0x98] sm:$0xff] %vm27, %v1702
    %1784 = vst.msk [vmem:[#allocation5 + $0xb0] sm:$0xff] %vm27, %v1703
    %1785 = vst.msk [vmem:[#allocation5 + $0xc8] sm:$0xff] %vm27, %v1704
    %1786 = vst.msk [vmem:[#allocation5 + $0xe0] sm:$0xff] %vm27, %v1705
    %1787 = vst.msk [vmem:[#allocation5 + $0xf8] sm:$0xff] %vm27, %v1706
    %1788 = vst.msk [vmem:[#allocation5 + $0x110] sm:$0xff] %vm27, %v1707
    %1789 = vst.msk [vmem:[#allocation5 + $0x128] sm:$0xff] %vm27, %v1708
    %1790 = vst.msk [vmem:[#allocation5 + $0x140] sm:$0xff] %vm27, %v1709
    %1791 = vst.msk [vmem:[#allocation5 + $0x158] sm:$0xff] %vm27, %v1710
    %1792 = vst.msk [vmem:[#allocation5 + $0x170] sm:$0xff] %vm27, %v1711
    %1793 = vst.msk [vmem:[#allocation5 + $0x188] sm:$0xff] %vm27, %v1712
    %1794 = vst.msk [vmem:[#allocation5 + $0x1a0] sm:$0xff] %vm27, %v1713
    %1795 = vst.msk [vmem:[#allocation5 + $0x1b8] sm:$0xff] %vm27, %v1714
    %1796 = vst.msk [vmem:[#allocation5 + $0x1d0] sm:$0xff] %vm27, %v1715
    %1797 = vst.msk [vmem:[#allocation5 + $0x1e8] sm:$0xff] %vm27, %v1716
    %1798 = vst.msk [vmem:[#allocation5 + $0x200] sm:$0xff] %vm27, %v1717
    %1799 = vst.msk [vmem:[#allocation5 + $0x218] sm:$0xff] %vm27, %v1718
    %1800 = vst.msk [vmem:[#allocation5 + $0x230] sm:$0xff] %vm27, %v1719
    %1801 = vst.msk [vmem:[#allocation5 + $0x248] sm:$0xff] %vm27, %v1720
    %1802 = vst.msk [vmem:[#allocation5 + $0x260] sm:$0xff] %vm27, %v1721
    %1803 = vst.msk [vmem:[#allocation5 + $0x278] sm:$0xff] %vm27, %v1722
    %1804 = vst.msk [vmem:[#allocation5 + $0x290] sm:$0xff] %vm27, %v1723
    %1805 = vst.msk [vmem:[#allocation5 + $0x2a8] sm:$0xff] %vm27, %v1724
    %1806 = vst.msk [vmem:[#allocation5 + $0x2c0] sm:$0xff] %vm27, %v1725
    %1807 = vst.msk [vmem:[#allocation5 + $0x2d8] sm:$0xff] %vm27, %v1726
    %1808 = vst.msk [vmem:[#allocation5 + $0x2f0] sm:$0xff] %vm27, %v1727
    %1809 = vst.msk [vmem:[#allocation5 + $0x308] sm:$0xff] %vm27, %v1728
    %1810 = vst.msk [vmem:[#allocation5 + $0x320] sm:$0xff] %vm27, %v1729
    %1811 = vst.msk [vmem:[#allocation5 + $0x338] sm:$0xff] %vm27, %v1730
    %1812 = vst.msk [vmem:[#allocation5 + $0x350] sm:$0xff] %vm27, %v1731
    %1813 = vst.msk [vmem:[#allocation5 + $0x368] sm:$0xff] %vm27, %v1732
    %1814 = vst.msk [vmem:[#allocation5 + $0x380] sm:$0xff] %vm27, %v1733
    %1815 = vst.msk [vmem:[#allocation5 + $0x398] sm:$0xff] %vm27, %v1734
    %1816 = vst.msk [vmem:[#allocation5 + $0x3b0] sm:$0xff] %vm27, %v1735
    %1817 = vst.msk [vmem:[#allocation5 + $0x3c8] sm:$0xff] %vm27, %v1736
    %1818 = vst.msk [vmem:[#allocation5 + $0x3e0] sm:$0xff] %vm27, %v1737
    %1819 = vst.msk [vmem:[#allocation5 + $0x3f8] sm:$0xff] %vm27, %v1738
    %1820 = vst.msk [vmem:[#allocation5 + $0x410] sm:$0xff] %vm27, %v1739
    %1821 = vst.msk [vmem:[#allocation5 + $0x428] sm:$0xff] %vm27, %v1740
    %1822 = vst.msk [vmem:[#allocation5 + $0x440] sm:$0xff] %vm27, %v1741
    %1823 = vst.msk [vmem:[#allocation5 + $0x458] sm:$0xff] %vm27, %v1742
    %1824 = vst.msk [vmem:[#allocation5 + $0x470] sm:$0xff] %vm27, %v1743
    %1825 = vst.msk [vmem:[#allocation5 + $0x488] sm:$0xff] %vm27, %v1744
    %1826 = vst.msk [vmem:[#allocation5 + $0x4a0] sm:$0xff] %vm27, %v1745
    %1827 = vst.msk [vmem:[#allocation5 + $0x4b8] sm:$0xff] %vm27, %v1746
    %1828 = vst.msk [vmem:[#allocation5 + $0x4d0] sm:$0xff] %vm27, %v1747
    %1829 = vst.msk [vmem:[#allocation5 + $0x4e8] sm:$0xff] %vm27, %v1748
    %1830 = vst.msk [vmem:[#allocation5 + $0x500] sm:$0xff] %vm27, %v1749
    %1831 = vst.msk [vmem:[#allocation5 + $0x518] sm:$0xff] %vm27, %v1750
    %1832 = vst.msk [vmem:[#allocation5 + $0x530] sm:$0xff] %vm27, %v1751
    %1833 = vst.msk [vmem:[#allocation5 + $0x548] sm:$0xff] %vm27, %v1752
    %1834 = vst.msk [vmem:[#allocation5 + $0x560] sm:$0xff] %vm27, %v1753
    %1835 = vst.msk [vmem:[#allocation5 + $0x578] sm:$0xff] %vm27, %v1754
    %1836 = vst.msk [vmem:[#allocation5 + $0x590] sm:$0xff] %vm27, %v1755
    %1837 = vst.msk [vmem:[#allocation5 + $0x5a8] sm:$0xff] %vm27, %v1756
    %1838 = vst.msk [vmem:[#allocation5 + $0x5c0] sm:$0xff] %vm27, %v1757
    %1839 = vst.msk [vmem:[#allocation5 + $0x5d8] sm:$0xff] %vm27, %v1758
    %1840 = vst.msk [vmem:[#allocation5 + $0x5f0] sm:$0xff] %vm27, %v1759
    %1841 = vst.msk [vmem:[#allocation5 + $0x608] sm:$0xff] %vm27, %v1760
    %1842 = vst.msk [vmem:[#allocation5 + $0x620] sm:$0xff] %vm27, %v1761
    %1843 = vst.msk [vmem:[#allocation5 + $0x638] sm:$0xff] %vm27, %v1762
    %1844 = vst.msk [vmem:[#allocation5 + $0x650] sm:$0xff] %vm27, %v1763
    %1845 = vst.msk [vmem:[#allocation5 + $0x668] sm:$0xff] %vm27, %v1764
    %1846 = vst.msk [vmem:[#allocation5 + $0x680] sm:$0xff] %vm27, %v1765
    %1847 = vst.msk [vmem:[#allocation5 + $0x698] sm:$0xff] %vm27, %v1766
    %1848 = vst.msk [vmem:[#allocation5 + $0x6b0] sm:$0xff] %vm27, %v1767
    %1849 = vst.msk [vmem:[#allocation5 + $0x6c8] sm:$0xff] %vm27, %v1768
    %1850 = vst.msk [vmem:[#allocation5 + $0x6e0] sm:$0xff] %vm27, %v1769
    %1851 = vst.msk [vmem:[#allocation5 + $0x6f8] sm:$0xff] %vm27, %v1770
    %1852 = vst.msk [vmem:[#allocation5 + $0x710] sm:$0xff] %vm27, %v1771
    %1853 = vst.msk [vmem:[#allocation5 + $0x728] sm:$0xff] %vm27, %v1772
    %1854 = vst.msk [vmem:[#allocation5 + $0x740] sm:$0xff] %vm27, %v1773
    %1855 = vst.msk [vmem:[#allocation5 + $0x758] sm:$0xff] %vm27, %v1774
    %1856 = vst.msk [vmem:[#allocation5 + $0x770] sm:$0xff] %vm27, %v1775
    %1857 = vst.msk [vmem:[#allocation5 + $0x788] sm:$0xff] %vm27, %v1776
    %v1858 = vld [vmem:[%s0 + $0x14] sm:$0xff]
    %v1859 = vld [vmem:[%s0 + $0x1c] sm:$0xff]
    %v1860 = vld [vmem:[%s0 + $0x24] sm:$0xff]
    %v1861 = vld [vmem:[%s0 + $0x2c] sm:$0xff]
    %v1862 = vld [vmem:[%s0 + $0x34] sm:$0xff]
    %v1863 = vld [vmem:[%s0 + $0x3c] sm:$0xff]
    %v1864 = vld [vmem:[%s0 + $0x44] sm:$0xff]
    %v1865 = vld [vmem:[%s0 + $0x4c] sm:$0xff]
    %v1866 = vld [vmem:[%s0 + $0x54] sm:$0xff]
    %v1867 = vld [vmem:[%s0 + $0x5c] sm:$0xff]
    %v1868 = vld [vmem:[%s0 + $0x64] sm:$0xff]
    %v1869 = vld [vmem:[%s0 + $0x6c] sm:$0xff]
    %v1870 = vld [vmem:[%s0 + $0x74] sm:$0xff]
    %v1871 = vld [vmem:[%s0 + $0x7c] sm:$0xff]
    %v1872 = vld [vmem:[%s0 + $0x84] sm:$0xff]
    %v1873 = vld [vmem:[%s0 + $0x8c] sm:$0xff]
    %v1874 = vld [vmem:[%s0 + $0x94] sm:$0xff]
    %v1875 = vld [vmem:[%s0 + $0x9c] sm:$0xff]
    %v1876 = vld [vmem:[%s0 + $0xa4] sm:$0xff]
    %v1877 = vld [vmem:[%s0 + $0xac] sm:$0xff]
    %v1878 = vld [vmem:[%s0 + $0xb4] sm:$0xff]
    %v1879 = vld [vmem:[%s0 + $0xbc] sm:$0xff]
    %v1880 = vld [vmem:[%s0 + $0xc4] sm:$0xff]
    %v1881 = vld [vmem:[%s0 + $0xcc] sm:$0xff]
    %v1882 = vld [vmem:[%s0 + $0xd4] sm:$0xff]
    %v1883 = vld [vmem:[%s0 + $0xdc] sm:$0xff]
    %v1884 = vld [vmem:[%s0 + $0xe4] sm:$0xff]
    %v1885 = vld [vmem:[%s0 + $0xec] sm:$0xff]
    %v1886 = vld [vmem:[%s0 + $0xf4] sm:$0xff]
    %v1887 = vld [vmem:[%s0 + $0xfc] sm:$0xff]
    %v1888 = vld [vmem:[%s0 + $0x104] sm:$0xff]
    %v1889 = vld [vmem:[%s0 + $0x10c] sm:$0xff]
    %v1890 = vld [vmem:[%s0 + $0x114] sm:$0xff]
    %v1891 = vld [vmem:[%s0 + $0x11c] sm:$0xff]
    %v1892 = vld [vmem:[%s0 + $0x124] sm:$0xff]
    %v1893 = vld [vmem:[%s0 + $0x12c] sm:$0xff]
    %v1894 = vld [vmem:[%s0 + $0x134] sm:$0xff]
    %v1895 = vld [vmem:[%s0 + $0x13c] sm:$0xff]
    %v1896 = vld [vmem:[%s0 + $0x144] sm:$0xff]
    %v1897 = vld [vmem:[%s0 + $0x14c] sm:$0xff]
    %v1898 = vld [vmem:[%s0 + $0x154] sm:$0xff]
    %v1899 = vld [vmem:[%s0 + $0x15c] sm:$0xff]
    %v1900 = vld [vmem:[%s0 + $0x164] sm:$0xff]
    %v1901 = vld [vmem:[%s0 + $0x16c] sm:$0xff]
    %v1902 = vld [vmem:[%s0 + $0x174] sm:$0xff]
    %v1903 = vld [vmem:[%s0 + $0x17c] sm:$0xff]
    %v1904 = vld [vmem:[%s0 + $0x184] sm:$0xff]
    %v1905 = vld [vmem:[%s0 + $0x18c] sm:$0xff]
    %v1906 = vld [vmem:[%s0 + $0x194] sm:$0xff]
    %v1907 = vld [vmem:[%s0 + $0x19c] sm:$0xff]
    %v1908 = vld [vmem:[%s0 + $0x1a4] sm:$0xff]
    %v1909 = vld [vmem:[%s0 + $0x1ac] sm:$0xff]
    %v1910 = vld [vmem:[%s0 + $0x1b4] sm:$0xff]
    %v1911 = vld [vmem:[%s0 + $0x1bc] sm:$0xff]
    %v1912 = vld [vmem:[%s0 + $0x1c4] sm:$0xff]
    %v1913 = vld [vmem:[%s0 + $0x1cc] sm:$0xff]
    %v1914 = vld [vmem:[%s0 + $0x1d4] sm:$0xff]
    %v1915 = vld [vmem:[%s0 + $0x1dc] sm:$0xff]
    %v1916 = vld [vmem:[%s0 + $0x1e4] sm:$0xff]
    %v1917 = vld [vmem:[%s0 + $0x1ec] sm:$0xff]
    %v1918 = vld [vmem:[%s0 + $0x1f4] sm:$0xff]
    %v1919 = vld [vmem:[%s0 + $0x1fc] sm:$0xff]
    %v1920 = vld [vmem:[%s0 + $0x204] sm:$0xff]
    %v1921 = vld [vmem:[%s0 + $0x20c] sm:$0xff]
    %v1922 = vld [vmem:[%s0 + $0x214] sm:$0xff]
    %v1923 = vld [vmem:[%s0 + $0x21c] sm:$0xff]
    %v1924 = vld [vmem:[%s0 + $0x224] sm:$0xff]
    %v1925 = vld [vmem:[%s0 + $0x22c] sm:$0xff]
    %v1926 = vld [vmem:[%s0 + $0x234] sm:$0xff]
    %v1927 = vld [vmem:[%s0 + $0x23c] sm:$0xff]
    %v1928 = vld [vmem:[%s0 + $0x244] sm:$0xff]
    %v1929 = vld [vmem:[%s0 + $0x24c] sm:$0xff]
    %v1930 = vld [vmem:[%s0 + $0x254] sm:$0xff]
    %v1931 = vld [vmem:[%s0 + $0x25c] sm:$0xff]
    %v1932 = vld [vmem:[%s0 + $0x264] sm:$0xff]
    %v1933 = vld [vmem:[%s0 + $0x26c] sm:$0xff]
    %v1934 = vld [vmem:[%s0 + $0x274] sm:$0xff]
    %v1935 = vld [vmem:[%s0 + $0x27c] sm:$0xff]
    %v1936 = vld [vmem:[%s0 + $0x284] sm:$0xff]
    %v1937 = vld [vmem:[%s0 + $0x28c] sm:$0xff]
    %v1938 = vld [vmem:[%s0 + $0x294] sm:$0xff]
    %2020 = vrot.lane.b32.xlu0 %v1858, 32
    %v2021 = vpop.permute.xlu0 %2020
    %2022 = vrot.lane.b32.xlu0 %v1859, 32
    %v2023 = vpop.permute.xlu0 %2022
    %2024 = vrot.lane.b32.xlu0 %v1860, 32
    %v2025 = vpop.permute.xlu0 %2024
    %2026 = vrot.lane.b32.xlu0 %v1861, 32
    %v2027 = vpop.permute.xlu0 %2026
    %2028 = vrot.lane.b32.xlu0 %v1862, 32
    %v2029 = vpop.permute.xlu0 %2028
    %2030 = vrot.lane.b32.xlu0 %v1863, 32
    %v2031 = vpop.permute.xlu0 %2030
    %2032 = vrot.lane.b32.xlu0 %v1864, 32
    %v2033 = vpop.permute.xlu0 %2032
    %2034 = vrot.lane.b32.xlu0 %v1865, 32
    %v2035 = vpop.permute.xlu0 %2034
    %2036 = vrot.lane.b32.xlu0 %v1866, 32
    %v2037 = vpop.permute.xlu0 %2036
    %2038 = vrot.lane.b32.xlu0 %v1867, 32
    %v2039 = vpop.permute.xlu0 %2038
    %2040 = vrot.lane.b32.xlu0 %v1868, 32
    %v2041 = vpop.permute.xlu0 %2040
    %2042 = vrot.lane.b32.xlu0 %v1869, 32
    %v2043 = vpop.permute.xlu0 %2042
    %2044 = vrot.lane.b32.xlu0 %v1870, 32
    %v2045 = vpop.permute.xlu0 %2044
    %2046 = vrot.lane.b32.xlu0 %v1871, 32
    %v2047 = vpop.permute.xlu0 %2046
    %2048 = vrot.lane.b32.xlu0 %v1872, 32
    %v2049 = vpop.permute.xlu0 %2048
    %2050 = vrot.lane.b32.xlu0 %v1873, 32
    %v2051 = vpop.permute.xlu0 %2050
    %2052 = vrot.lane.b32.xlu0 %v1874, 32
    %v2053 = vpop.permute.xlu0 %2052
    %2054 = vrot.lane.b32.xlu0 %v1875, 32
    %v2055 = vpop.permute.xlu0 %2054
    %2056 = vrot.lane.b32.xlu0 %v1876, 32
    %v2057 = vpop.permute.xlu0 %2056
    %2058 = vrot.lane.b32.xlu0 %v1877, 32
    %v2059 = vpop.permute.xlu0 %2058
    %2060 = vrot.lane.b32.xlu0 %v1878, 32
    %v2061 = vpop.permute.xlu0 %2060
    %2062 = vrot.lane.b32.xlu0 %v1879, 32
    %v2063 = vpop.permute.xlu0 %2062
    %2064 = vrot.lane.b32.xlu0 %v1880, 32
    %v2065 = vpop.permute.xlu0 %2064
    %2066 = vrot.lane.b32.xlu0 %v1881, 32
    %v2067 = vpop.permute.xlu0 %2066
    %2068 = vrot.lane.b32.xlu0 %v1882, 32
    %v2069 = vpop.permute.xlu0 %2068
    %2070 = vrot.lane.b32.xlu0 %v1883, 32
    %v2071 = vpop.permute.xlu0 %2070
    %2072 = vrot.lane.b32.xlu0 %v1884, 32
    %v2073 = vpop.permute.xlu0 %2072
    %2074 = vrot.lane.b32.xlu0 %v1885, 32
    %v2075 = vpop.permute.xlu0 %2074
    %2076 = vrot.lane.b32.xlu0 %v1886, 32
    %v2077 = vpop.permute.xlu0 %2076
    %2078 = vrot.lane.b32.xlu0 %v1887, 32
    %v2079 = vpop.permute.xlu0 %2078
    %2080 = vrot.lane.b32.xlu0 %v1888, 32
    %v2081 = vpop.permute.xlu0 %2080
    %2082 = vrot.lane.b32.xlu0 %v1889, 32
    %v2083 = vpop.permute.xlu0 %2082
    %2084 = vrot.lane.b32.xlu0 %v1890, 32
    %v2085 = vpop.permute.xlu0 %2084
    %2086 = vrot.lane.b32.xlu0 %v1891, 32
    %v2087 = vpop.permute.xlu0 %2086
    %2088 = vrot.lane.b32.xlu0 %v1892, 32
    %v2089 = vpop.permute.xlu0 %2088
    %2090 = vrot.lane.b32.xlu0 %v1893, 32
    %v2091 = vpop.permute.xlu0 %2090
    %2092 = vrot.lane.b32.xlu0 %v1894, 32
    %v2093 = vpop.permute.xlu0 %2092
    %2094 = vrot.lane.b32.xlu0 %v1895, 32
    %v2095 = vpop.permute.xlu0 %2094
    %2096 = vrot.lane.b32.xlu0 %v1896, 32
    %v2097 = vpop.permute.xlu0 %2096
    %2098 = vrot.lane.b32.xlu0 %v1897, 32
    %v2099 = vpop.permute.xlu0 %2098
    %2100 = vrot.lane.b32.xlu0 %v1898, 32
    %v2101 = vpop.permute.xlu0 %2100
    %2102 = vrot.lane.b32.xlu0 %v1899, 32
    %v2103 = vpop.permute.xlu0 %2102
    %2104 = vrot.lane.b32.xlu0 %v1900, 32
    %v2105 = vpop.permute.xlu0 %2104
    %2106 = vrot.lane.b32.xlu0 %v1901, 32
    %v2107 = vpop.permute.xlu0 %2106
    %2108 = vrot.lane.b32.xlu0 %v1902, 32
    %v2109 = vpop.permute.xlu0 %2108
    %2110 = vrot.lane.b32.xlu0 %v1903, 32
    %v2111 = vpop.permute.xlu0 %2110
    %2112 = vrot.lane.b32.xlu0 %v1904, 32
    %v2113 = vpop.permute.xlu0 %2112
    %2114 = vrot.lane.b32.xlu0 %v1905, 32
    %v2115 = vpop.permute.xlu0 %2114
    %2116 = vrot.lane.b32.xlu0 %v1906, 32
    %v2117 = vpop.permute.xlu0 %2116
    %2118 = vrot.lane.b32.xlu0 %v1907, 32
    %v2119 = vpop.permute.xlu0 %2118
    %2120 = vrot.lane.b32.xlu0 %v1908, 32
    %v2121 = vpop.permute.xlu0 %2120
    %2122 = vrot.lane.b32.xlu0 %v1909, 32
    %v2123 = vpop.permute.xlu0 %2122
    %2124 = vrot.lane.b32.xlu0 %v1910, 32
    %v2125 = vpop.permute.xlu0 %2124
    %2126 = vrot.lane.b32.xlu0 %v1911, 32
    %v2127 = vpop.permute.xlu0 %2126
    %2128 = vrot.lane.b32.xlu0 %v1912, 32
    %v2129 = vpop.permute.xlu0 %2128
    %2130 = vrot.lane.b32.xlu0 %v1913, 32
    %v2131 = vpop.permute.xlu0 %2130
    %2132 = vrot.lane.b32.xlu0 %v1914, 32
    %v2133 = vpop.permute.xlu0 %2132
    %2134 = vrot.lane.b32.xlu0 %v1915, 32
    %v2135 = vpop.permute.xlu0 %2134
    %2136 = vrot.lane.b32.xlu0 %v1916, 32
    %v2137 = vpop.permute.xlu0 %2136
    %2138 = vrot.lane.b32.xlu0 %v1917, 32
    %v2139 = vpop.permute.xlu0 %2138
    %2140 = vrot.lane.b32.xlu0 %v1918, 32
    %v2141 = vpop.permute.xlu0 %2140
    %2142 = vrot.lane.b32.xlu0 %v1919, 32
    %v2143 = vpop.permute.xlu0 %2142
    %2144 = vrot.lane.b32.xlu0 %v1920, 32
    %v2145 = vpop.permute.xlu0 %2144
    %2146 = vrot.lane.b32.xlu0 %v1921, 32
    %v2147 = vpop.permute.xlu0 %2146
    %2148 = vrot.lane.b32.xlu0 %v1922, 32
    %v2149 = vpop.permute.xlu0 %2148
    %2150 = vrot.lane.b32.xlu0 %v1923, 32
    %v2151 = vpop.permute.xlu0 %2150
    %2152 = vrot.lane.b32.xlu0 %v1924, 32
    %v2153 = vpop.permute.xlu0 %2152
    %2154 = vrot.lane.b32.xlu0 %v1925, 32
    %v2155 = vpop.permute.xlu0 %2154
    %2156 = vrot.lane.b32.xlu0 %v1926, 32
    %v2157 = vpop.permute.xlu0 %2156
    %2158 = vrot.lane.b32.xlu0 %v1927, 32
    %v2159 = vpop.permute.xlu0 %2158
    %2160 = vrot.lane.b32.xlu0 %v1928, 32
    %v2161 = vpop.permute.xlu0 %2160
    %2162 = vrot.lane.b32.xlu0 %v1929, 32
    %v2163 = vpop.permute.xlu0 %2162
    %2164 = vrot.lane.b32.xlu0 %v1930, 32
    %v2165 = vpop.permute.xlu0 %2164
    %2166 = vrot.lane.b32.xlu0 %v1931, 32
    %v2167 = vpop.permute.xlu0 %2166
    %2168 = vrot.lane.b32.xlu0 %v1932, 32
    %v2169 = vpop.permute.xlu0 %2168
    %2170 = vrot.lane.b32.xlu0 %v1933, 32
    %v2171 = vpop.permute.xlu0 %2170
    %2172 = vrot.lane.b32.xlu0 %v1934, 32
    %v2173 = vpop.permute.xlu0 %2172
    %2174 = vrot.lane.b32.xlu0 %v1935, 32
    %v2175 = vpop.permute.xlu0 %2174
    %2176 = vrot.lane.b32.xlu0 %v1936, 32
    %v2177 = vpop.permute.xlu0 %2176
    %2178 = vrot.lane.b32.xlu0 %v1937, 32
    %v2179 = vpop.permute.xlu0 %2178
    %2180 = vrot.lane.b32.xlu0 %v1938, 32
    %v2181 = vpop.permute.xlu0 %2180
    %2263 = vst.msk [vmem:[#allocation5 + $0x8] sm:$0xff] %vm640, %v2021
    %2264 = vst.msk [vmem:[#allocation5 + $0x20] sm:$0xff] %vm640, %v2023
    %2265 = vst.msk [vmem:[#allocation5 + $0x38] sm:$0xff] %vm640, %v2025
    %2266 = vst.msk [vmem:[#allocation5 + $0x50] sm:$0xff] %vm640, %v2027
    %2267 = vst.msk [vmem:[#allocation5 + $0x68] sm:$0xff] %vm640, %v2029
    %2268 = vst.msk [vmem:[#allocation5 + $0x80] sm:$0xff] %vm640, %v2031
    %2269 = vst.msk [vmem:[#allocation5 + $0x98] sm:$0xff] %vm640, %v2033
    %2270 = vst.msk [vmem:[#allocation5 + $0xb0] sm:$0xff] %vm640, %v2035
    %2271 = vst.msk [vmem:[#allocation5 + $0xc8] sm:$0xff] %vm640, %v2037
    %2272 = vst.msk [vmem:[#allocation5 + $0xe0] sm:$0xff] %vm640, %v2039
    %2273 = vst.msk [vmem:[#allocation5 + $0xf8] sm:$0xff] %vm640, %v2041
    %2274 = vst.msk [vmem:[#allocation5 + $0x110] sm:$0xff] %vm640, %v2043
    %2275 = vst.msk [vmem:[#allocation5 + $0x128] sm:$0xff] %vm640, %v2045
    %2276 = vst.msk [vmem:[#allocation5 + $0x140] sm:$0xff] %vm640, %v2047
    %2277 = vst.msk [vmem:[#allocation5 + $0x158] sm:$0xff] %vm640, %v2049
    %2278 = vst.msk [vmem:[#allocation5 + $0x170] sm:$0xff] %vm640, %v2051
    %2279 = vst.msk [vmem:[#allocation5 + $0x188] sm:$0xff] %vm640, %v2053
    %2280 = vst.msk [vmem:[#allocation5 + $0x1a0] sm:$0xff] %vm640, %v2055
    %2281 = vst.msk [vmem:[#allocation5 + $0x1b8] sm:$0xff] %vm640, %v2057
    %2282 = vst.msk [vmem:[#allocation5 + $0x1d0] sm:$0xff] %vm640, %v2059
    %2283 = vst.msk [vmem:[#allocation5 + $0x1e8] sm:$0xff] %vm640, %v2061
    %2284 = vst.msk [vmem:[#allocation5 + $0x200] sm:$0xff] %vm640, %v2063
    %2285 = vst.msk [vmem:[#allocation5 + $0x218] sm:$0xff] %vm640, %v2065
    %2286 = vst.msk [vmem:[#allocation5 + $0x230] sm:$0xff] %vm640, %v2067
    %2287 = vst.msk [vmem:[#allocation5 + $0x248] sm:$0xff] %vm640, %v2069
    %2288 = vst.msk [vmem:[#allocation5 + $0x260] sm:$0xff] %vm640, %v2071
    %2289 = vst.msk [vmem:[#allocation5 + $0x278] sm:$0xff] %vm640, %v2073
    %2290 = vst.msk [vmem:[#allocation5 + $0x290] sm:$0xff] %vm640, %v2075
    %2291 = vst.msk [vmem:[#allocation5 + $0x2a8] sm:$0xff] %vm640, %v2077
    %2292 = vst.msk [vmem:[#allocation5 + $0x2c0] sm:$0xff] %vm640, %v2079
    %2293 = vst.msk [vmem:[#allocation5 + $0x2d8] sm:$0xff] %vm640, %v2081
    %2294 = vst.msk [vmem:[#allocation5 + $0x2f0] sm:$0xff] %vm640, %v2083
    %2295 = vst.msk [vmem:[#allocation5 + $0x308] sm:$0xff] %vm640, %v2085
    %2296 = vst.msk [vmem:[#allocation5 + $0x320] sm:$0xff] %vm640, %v2087
    %2297 = vst.msk [vmem:[#allocation5 + $0x338] sm:$0xff] %vm640, %v2089
    %2298 = vst.msk [vmem:[#allocation5 + $0x350] sm:$0xff] %vm640, %v2091
    %2299 = vst.msk [vmem:[#allocation5 + $0x368] sm:$0xff] %vm640, %v2093
    %2300 = vst.msk [vmem:[#allocation5 + $0x380] sm:$0xff] %vm640, %v2095
    %2301 = vst.msk [vmem:[#allocation5 + $0x398] sm:$0xff] %vm640, %v2097
    %2302 = vst.msk [vmem:[#allocation5 + $0x3b0] sm:$0xff] %vm640, %v2099
    %2303 = vst.msk [vmem:[#allocation5 + $0x3c8] sm:$0xff] %vm640, %v2101
    %2304 = vst.msk [vmem:[#allocation5 + $0x3e0] sm:$0xff] %vm640, %v2103
    %2305 = vst.msk [vmem:[#allocation5 + $0x3f8] sm:$0xff] %vm640, %v2105
    %2306 = vst.msk [vmem:[#allocation5 + $0x410] sm:$0xff] %vm640, %v2107
    %2307 = vst.msk [vmem:[#allocation5 + $0x428] sm:$0xff] %vm640, %v2109
    %2308 = vst.msk [vmem:[#allocation5 + $0x440] sm:$0xff] %vm640, %v2111
    %2309 = vst.msk [vmem:[#allocation5 + $0x458] sm:$0xff] %vm640, %v2113
    %2310 = vst.msk [vmem:[#allocation5 + $0x470] sm:$0xff] %vm640, %v2115
    %2311 = vst.msk [vmem:[#allocation5 + $0x488] sm:$0xff] %vm640, %v2117
    %2312 = vst.msk [vmem:[#allocation5 + $0x4a0] sm:$0xff] %vm640, %v2119
    %2313 = vst.msk [vmem:[#allocation5 + $0x4b8] sm:$0xff] %vm640, %v2121
    %2314 = vst.msk [vmem:[#allocation5 + $0x4d0] sm:$0xff] %vm640, %v2123
    %2315 = vst.msk [vmem:[#allocation5 + $0x4e8] sm:$0xff] %vm640, %v2125
    %2316 = vst.msk [vmem:[#allocation5 + $0x500] sm:$0xff] %vm640, %v2127
    %2317 = vst.msk [vmem:[#allocation5 + $0x518] sm:$0xff] %vm640, %v2129
    %2318 = vst.msk [vmem:[#allocation5 + $0x530] sm:$0xff] %vm640, %v2131
    %2319 = vst.msk [vmem:[#allocation5 + $0x548] sm:$0xff] %vm640, %v2133
    %2320 = vst.msk [vmem:[#allocation5 + $0x560] sm:$0xff] %vm640, %v2135
    %2321 = vst.msk [vmem:[#allocation5 + $0x578] sm:$0xff] %vm640, %v2137
    %2322 = vst.msk [vmem:[#allocation5 + $0x590] sm:$0xff] %vm640, %v2139
    %2323 = vst.msk [vmem:[#allocation5 + $0x5a8] sm:$0xff] %vm640, %v2141
    %2324 = vst.msk [vmem:[#allocation5 + $0x5c0] sm:$0xff] %vm640, %v2143
    %2325 = vst.msk [vmem:[#allocation5 + $0x5d8] sm:$0xff] %vm640, %v2145
    %2326 = vst.msk [vmem:[#allocation5 + $0x5f0] sm:$0xff] %vm640, %v2147
    %2327 = vst.msk [vmem:[#allocation5 + $0x608] sm:$0xff] %vm640, %v2149
    %2328 = vst.msk [vmem:[#allocation5 + $0x620] sm:$0xff] %vm640, %v2151
    %2329 = vst.msk [vmem:[#allocation5 + $0x638] sm:$0xff] %vm640, %v2153
    %2330 = vst.msk [vmem:[#allocation5 + $0x650] sm:$0xff] %vm640, %v2155
    %2331 = vst.msk [vmem:[#allocation5 + $0x668] sm:$0xff] %vm640, %v2157
    %2332 = vst.msk [vmem:[#allocation5 + $0x680] sm:$0xff] %vm640, %v2159
    %2333 = vst.msk [vmem:[#allocation5 + $0x698] sm:$0xff] %vm640, %v2161
    %2334 = vst.msk [vmem:[#allocation5 + $0x6b0] sm:$0xff] %vm640, %v2163
    %2335 = vst.msk [vmem:[#allocation5 + $0x6c8] sm:$0xff] %vm640, %v2165
    %2336 = vst.msk [vmem:[#allocation5 + $0x6e0] sm:$0xff] %vm640, %v2167
    %2337 = vst.msk [vmem:[#allocation5 + $0x6f8] sm:$0xff] %vm640, %v2169
    %2338 = vst.msk [vmem:[#allocation5 + $0x710] sm:$0xff] %vm640, %v2171
    %2339 = vst.msk [vmem:[#allocation5 + $0x728] sm:$0xff] %vm640, %v2173
    %2340 = vst.msk [vmem:[#allocation5 + $0x740] sm:$0xff] %vm640, %v2175
    %2341 = vst.msk [vmem:[#allocation5 + $0x758] sm:$0xff] %vm640, %v2177
    %2342 = vst.msk [vmem:[#allocation5 + $0x770] sm:$0xff] %vm640, %v2179
    %2343 = vst.msk [vmem:[#allocation5 + $0x788] sm:$0xff] %vm640, %v2181
    %v2344 = vld [vmem:[%s0 + $0x24] sm:$0xff]
    %v2345 = vld [vmem:[%s0 + $0x2c] sm:$0xff]
    %v2346 = vld [vmem:[%s0 + $0x34] sm:$0xff]
    %v2347 = vld [vmem:[%s0 + $0x3c] sm:$0xff]
    %v2348 = vld [vmem:[%s0 + $0x44] sm:$0xff]
    %v2349 = vld [vmem:[%s0 + $0x4c] sm:$0xff]
    %v2350 = vld [vmem:[%s0 + $0x54] sm:$0xff]
    %v2351 = vld [vmem:[%s0 + $0x5c] sm:$0xff]
    %v2352 = vld [vmem:[%s0 + $0x64] sm:$0xff]
    %v2353 = vld [vmem:[%s0 + $0x6c] sm:$0xff]
    %v2354 = vld [vmem:[%s0 + $0x74] sm:$0xff]
    %v2355 = vld [vmem:[%s0 + $0x7c] sm:$0xff]
    %v2356 = vld [vmem:[%s0 + $0x84] sm:$0xff]
    %v2357 = vld [vmem:[%s0 + $0x8c] sm:$0xff]
    %v2358 = vld [vmem:[%s0 + $0x94] sm:$0xff]
    %v2359 = vld [vmem:[%s0 + $0x9c] sm:$0xff]
    %v2360 = vld [vmem:[%s0 + $0xa4] sm:$0xff]
    %v2361 = vld [vmem:[%s0 + $0xac] sm:$0xff]
    %v2362 = vld [vmem:[%s0 + $0xb4] sm:$0xff]
    %v2363 = vld [vmem:[%s0 + $0xbc] sm:$0xff]
    %v2364 = vld [vmem:[%s0 + $0xc4] sm:$0xff]
    %v2365 = vld [vmem:[%s0 + $0xcc] sm:$0xff]
    %v2366 = vld [vmem:[%s0 + $0xd4] sm:$0xff]
    %v2367 = vld [vmem:[%s0 + $0xdc] sm:$0xff]
    %v2368 = vld [vmem:[%s0 + $0xe4] sm:$0xff]
    %v2369 = vld [vmem:[%s0 + $0xec] sm:$0xff]
    %v2370 = vld [vmem:[%s0 + $0xf4] sm:$0xff]
    %v2371 = vld [vmem:[%s0 + $0xfc] sm:$0xff]
    %v2372 = vld [vmem:[%s0 + $0x104] sm:$0xff]
    %v2373 = vld [vmem:[%s0 + $0x10c] sm:$0xff]
    %v2374 = vld [vmem:[%s0 + $0x114] sm:$0xff]
    %v2375 = vld [vmem:[%s0 + $0x11c] sm:$0xff]
    %v2376 = vld [vmem:[%s0 + $0x124] sm:$0xff]
    %v2377 = vld [vmem:[%s0 + $0x12c] sm:$0xff]
    %v2378 = vld [vmem:[%s0 + $0x134] sm:$0xff]
    %v2379 = vld [vmem:[%s0 + $0x13c] sm:$0xff]
    %v2380 = vld [vmem:[%s0 + $0x144] sm:$0xff]
    %v2381 = vld [vmem:[%s0 + $0x14c] sm:$0xff]
    %v2382 = vld [vmem:[%s0 + $0x154] sm:$0xff]
    %v2383 = vld [vmem:[%s0 + $0x15c] sm:$0xff]
    %v2384 = vld [vmem:[%s0 + $0x164] sm:$0xff]
    %v2385 = vld [vmem:[%s0 + $0x16c] sm:$0xff]
    %v2386 = vld [vmem:[%s0 + $0x174] sm:$0xff]
    %v2387 = vld [vmem:[%s0 + $0x17c] sm:$0xff]
    %v2388 = vld [vmem:[%s0 + $0x184] sm:$0xff]
    %v2389 = vld [vmem:[%s0 + $0x18c] sm:$0xff]
    %v2390 = vld [vmem:[%s0 + $0x194] sm:$0xff]
    %v2391 = vld [vmem:[%s0 + $0x19c] sm:$0xff]
    %v2392 = vld [vmem:[%s0 + $0x1a4] sm:$0xff]
    %v2393 = vld [vmem:[%s0 + $0x1ac] sm:$0xff]
    %v2394 = vld [vmem:[%s0 + $0x1b4] sm:$0xff]
    %v2395 = vld [vmem:[%s0 + $0x1bc] sm:$0xff]
    %v2396 = vld [vmem:[%s0 + $0x1c4] sm:$0xff]
    %v2397 = vld [vmem:[%s0 + $0x1cc] sm:$0xff]
    %v2398 = vld [vmem:[%s0 + $0x1d4] sm:$0xff]
    %v2399 = vld [vmem:[%s0 + $0x1dc] sm:$0xff]
    %v2400 = vld [vmem:[%s0 + $0x1e4] sm:$0xff]
    %v2401 = vld [vmem:[%s0 + $0x1ec] sm:$0xff]
    %v2402 = vld [vmem:[%s0 + $0x1f4] sm:$0xff]
    %v2403 = vld [vmem:[%s0 + $0x1fc] sm:$0xff]
    %v2404 = vld [vmem:[%s0 + $0x204] sm:$0xff]
    %v2405 = vld [vmem:[%s0 + $0x20c] sm:$0xff]
    %v2406 = vld [vmem:[%s0 + $0x214] sm:$0xff]
    %v2407 = vld [vmem:[%s0 + $0x21c] sm:$0xff]
    %v2408 = vld [vmem:[%s0 + $0x224] sm:$0xff]
    %v2409 = vld [vmem:[%s0 + $0x22c] sm:$0xff]
    %v2410 = vld [vmem:[%s0 + $0x234] sm:$0xff]
    %v2411 = vld [vmem:[%s0 + $0x23c] sm:$0xff]
    %v2412 = vld [vmem:[%s0 + $0x244] sm:$0xff]
    %v2413 = vld [vmem:[%s0 + $0x24c] sm:$0xff]
    %v2414 = vld [vmem:[%s0 + $0x254] sm:$0xff]
    %v2415 = vld [vmem:[%s0 + $0x25c] sm:$0xff]
    %v2416 = vld [vmem:[%s0 + $0x264] sm:$0xff]
    %v2417 = vld [vmem:[%s0 + $0x26c] sm:$0xff]
    %v2418 = vld [vmem:[%s0 + $0x274] sm:$0xff]
    %v2419 = vld [vmem:[%s0 + $0x27c] sm:$0xff]
    %v2420 = vld [vmem:[%s0 + $0x284] sm:$0xff]
    %v2421 = vld [vmem:[%s0 + $0x28c] sm:$0xff]
    %v2422 = vld [vmem:[%s0 + $0x294] sm:$0xff]
    %v2423 = vld [vmem:[%s0 + $0x29c] sm:$0xff]
    %v2424 = vld [vmem:[%s0 + $0x2a4] sm:$0xff]
    %2506 = vrot.lane.b32.xlu0 %v2344, 64
    %v2507 = vpop.permute.xlu0 %2506
    %2508 = vrot.lane.b32.xlu0 %v2345, 64
    %v2509 = vpop.permute.xlu0 %2508
    %2510 = vrot.lane.b32.xlu0 %v2346, 64
    %v2511 = vpop.permute.xlu0 %2510
    %2512 = vrot.lane.b32.xlu0 %v2347, 64
    %v2513 = vpop.permute.xlu0 %2512
    %2514 = vrot.lane.b32.xlu0 %v2348, 64
    %v2515 = vpop.permute.xlu0 %2514
    %2516 = vrot.lane.b32.xlu0 %v2349, 64
    %v2517 = vpop.permute.xlu0 %2516
    %2518 = vrot.lane.b32.xlu0 %v2350, 64
    %v2519 = vpop.permute.xlu0 %2518
    %2520 = vrot.lane.b32.xlu0 %v2351, 64
    %v2521 = vpop.permute.xlu0 %2520
    %2522 = vrot.lane.b32.xlu0 %v2352, 64
    %v2523 = vpop.permute.xlu0 %2522
    %2524 = vrot.lane.b32.xlu0 %v2353, 64
    %v2525 = vpop.permute.xlu0 %2524
    %2526 = vrot.lane.b32.xlu0 %v2354, 64
    %v2527 = vpop.permute.xlu0 %2526
    %2528 = vrot.lane.b32.xlu0 %v2355, 64
    %v2529 = vpop.permute.xlu0 %2528
    %2530 = vrot.lane.b32.xlu0 %v2356, 64
    %v2531 = vpop.permute.xlu0 %2530
    %2532 = vrot.lane.b32.xlu0 %v2357, 64
    %v2533 = vpop.permute.xlu0 %2532
    %2534 = vrot.lane.b32.xlu0 %v2358, 64
    %v2535 = vpop.permute.xlu0 %2534
    %2536 = vrot.lane.b32.xlu0 %v2359, 64
    %v2537 = vpop.permute.xlu0 %2536
    %2538 = vrot.lane.b32.xlu0 %v2360, 64
    %v2539 = vpop.permute.xlu0 %2538
    %2540 = vrot.lane.b32.xlu0 %v2361, 64
    %v2541 = vpop.permute.xlu0 %2540
    %2542 = vrot.lane.b32.xlu0 %v2362, 64
    %v2543 = vpop.permute.xlu0 %2542
    %2544 = vrot.lane.b32.xlu0 %v2363, 64
    %v2545 = vpop.permute.xlu0 %2544
    %2546 = vrot.lane.b32.xlu0 %v2364, 64
    %v2547 = vpop.permute.xlu0 %2546
    %2548 = vrot.lane.b32.xlu0 %v2365, 64
    %v2549 = vpop.permute.xlu0 %2548
    %2550 = vrot.lane.b32.xlu0 %v2366, 64
    %v2551 = vpop.permute.xlu0 %2550
    %2552 = vrot.lane.b32.xlu0 %v2367, 64
    %v2553 = vpop.permute.xlu0 %2552
    %2554 = vrot.lane.b32.xlu0 %v2368, 64
    %v2555 = vpop.permute.xlu0 %2554
    %2556 = vrot.lane.b32.xlu0 %v2369, 64
    %v2557 = vpop.permute.xlu0 %2556
    %2558 = vrot.lane.b32.xlu0 %v2370, 64
    %v2559 = vpop.permute.xlu0 %2558
    %2560 = vrot.lane.b32.xlu0 %v2371, 64
    %v2561 = vpop.permute.xlu0 %2560
    %2562 = vrot.lane.b32.xlu0 %v2372, 64
    %v2563 = vpop.permute.xlu0 %2562
    %2564 = vrot.lane.b32.xlu0 %v2373, 64
    %v2565 = vpop.permute.xlu0 %2564
    %2566 = vrot.lane.b32.xlu0 %v2374, 64
    %v2567 = vpop.permute.xlu0 %2566
    %2568 = vrot.lane.b32.xlu0 %v2375, 64
    %v2569 = vpop.permute.xlu0 %2568
    %2570 = vrot.lane.b32.xlu0 %v2376, 64
    %v2571 = vpop.permute.xlu0 %2570
    %2572 = vrot.lane.b32.xlu0 %v2377, 64
    %v2573 = vpop.permute.xlu0 %2572
    %2574 = vrot.lane.b32.xlu0 %v2378, 64
    %v2575 = vpop.permute.xlu0 %2574
    %2576 = vrot.lane.b32.xlu0 %v2379, 64
    %v2577 = vpop.permute.xlu0 %2576
    %2578 = vrot.lane.b32.xlu0 %v2380, 64
    %v2579 = vpop.permute.xlu0 %2578
    %2580 = vrot.lane.b32.xlu0 %v2381, 64
    %v2581 = vpop.permute.xlu0 %2580
    %2582 = vrot.lane.b32.xlu0 %v2382, 64
    %v2583 = vpop.permute.xlu0 %2582
    %2584 = vrot.lane.b32.xlu0 %v2383, 64
    %v2585 = vpop.permute.xlu0 %2584
    %2586 = vrot.lane.b32.xlu0 %v2384, 64
    %v2587 = vpop.permute.xlu0 %2586
    %2588 = vrot.lane.b32.xlu0 %v2385, 64
    %v2589 = vpop.permute.xlu0 %2588
    %2590 = vrot.lane.b32.xlu0 %v2386, 64
    %v2591 = vpop.permute.xlu0 %2590
    %2592 = vrot.lane.b32.xlu0 %v2387, 64
    %v2593 = vpop.permute.xlu0 %2592
    %2594 = vrot.lane.b32.xlu0 %v2388, 64
    %v2595 = vpop.permute.xlu0 %2594
    %2596 = vrot.lane.b32.xlu0 %v2389, 64
    %v2597 = vpop.permute.xlu0 %2596
    %2598 = vrot.lane.b32.xlu0 %v2390, 64
    %v2599 = vpop.permute.xlu0 %2598
    %2600 = vrot.lane.b32.xlu0 %v2391, 64
    %v2601 = vpop.permute.xlu0 %2600
    %2602 = vrot.lane.b32.xlu0 %v2392, 64
    %v2603 = vpop.permute.xlu0 %2602
    %2604 = vrot.lane.b32.xlu0 %v2393, 64
    %v2605 = vpop.permute.xlu0 %2604
    %2606 = vrot.lane.b32.xlu0 %v2394, 64
    %v2607 = vpop.permute.xlu0 %2606
    %2608 = vrot.lane.b32.xlu0 %v2395, 64
    %v2609 = vpop.permute.xlu0 %2608
    %2610 = vrot.lane.b32.xlu0 %v2396, 64
    %v2611 = vpop.permute.xlu0 %2610
    %2612 = vrot.lane.b32.xlu0 %v2397, 64
    %v2613 = vpop.permute.xlu0 %2612
    %2614 = vrot.lane.b32.xlu0 %v2398, 64
    %v2615 = vpop.permute.xlu0 %2614
    %2616 = vrot.lane.b32.xlu0 %v2399, 64
    %v2617 = vpop.permute.xlu0 %2616
    %2618 = vrot.lane.b32.xlu0 %v2400, 64
    %v2619 = vpop.permute.xlu0 %2618
    %2620 = vrot.lane.b32.xlu0 %v2401, 64
    %v2621 = vpop.permute.xlu0 %2620
    %2622 = vrot.lane.b32.xlu0 %v2402, 64
    %v2623 = vpop.permute.xlu0 %2622
    %2624 = vrot.lane.b32.xlu0 %v2403, 64
    %v2625 = vpop.permute.xlu0 %2624
    %2626 = vrot.lane.b32.xlu0 %v2404, 64
    %v2627 = vpop.permute.xlu0 %2626
    %2628 = vrot.lane.b32.xlu0 %v2405, 64
    %v2629 = vpop.permute.xlu0 %2628
    %2630 = vrot.lane.b32.xlu0 %v2406, 64
    %v2631 = vpop.permute.xlu0 %2630
    %2632 = vrot.lane.b32.xlu0 %v2407, 64
    %v2633 = vpop.permute.xlu0 %2632
    %2634 = vrot.lane.b32.xlu0 %v2408, 64
    %v2635 = vpop.permute.xlu0 %2634
    %2636 = vrot.lane.b32.xlu0 %v2409, 64
    %v2637 = vpop.permute.xlu0 %2636
    %2638 = vrot.lane.b32.xlu0 %v2410, 64
    %v2639 = vpop.permute.xlu0 %2638
    %2640 = vrot.lane.b32.xlu0 %v2411, 64
    %v2641 = vpop.permute.xlu0 %2640
    %2642 = vrot.lane.b32.xlu0 %v2412, 64
    %v2643 = vpop.permute.xlu0 %2642
    %2644 = vrot.lane.b32.xlu0 %v2413, 64
    %v2645 = vpop.permute.xlu0 %2644
    %2646 = vrot.lane.b32.xlu0 %v2414, 64
    %v2647 = vpop.permute.xlu0 %2646
    %2648 = vrot.lane.b32.xlu0 %v2415, 64
    %v2649 = vpop.permute.xlu0 %2648
    %2650 = vrot.lane.b32.xlu0 %v2416, 64
    %v2651 = vpop.permute.xlu0 %2650
    %2652 = vrot.lane.b32.xlu0 %v2417, 64
    %v2653 = vpop.permute.xlu0 %2652
    %2654 = vrot.lane.b32.xlu0 %v2418, 64
    %v2655 = vpop.permute.xlu0 %2654
    %2656 = vrot.lane.b32.xlu0 %v2419, 64
    %v2657 = vpop.permute.xlu0 %2656
    %2658 = vrot.lane.b32.xlu0 %v2420, 64
    %v2659 = vpop.permute.xlu0 %2658
    %2660 = vrot.lane.b32.xlu0 %v2421, 64
    %v2661 = vpop.permute.xlu0 %2660
    %2662 = vrot.lane.b32.xlu0 %v2422, 64
    %v2663 = vpop.permute.xlu0 %2662
    %2664 = vrot.lane.b32.xlu0 %v2423, 64
    %v2665 = vpop.permute.xlu0 %2664
    %2666 = vrot.lane.b32.xlu0 %v2424, 64
    %v2667 = vpop.permute.xlu0 %2666
    %2749 = vst.msk [vmem:[#allocation5 + $0x8] sm:$0xff] %vm1127, %v2507
    %2750 = vst.msk [vmem:[#allocation5 + $0x20] sm:$0xff] %vm1127, %v2509
    %2751 = vst.msk [vmem:[#allocation5 + $0x38] sm:$0xff] %vm1127, %v2511
    %2752 = vst.msk [vmem:[#allocation5 + $0x50] sm:$0xff] %vm1127, %v2513
    %2753 = vst.msk [vmem:[#allocation5 + $0x68] sm:$0xff] %vm1127, %v2515
    %2754 = vst.msk [vmem:[#allocation5 + $0x80] sm:$0xff] %vm1127, %v2517
    %2755 = vst.msk [vmem:[#allocation5 + $0x98] sm:$0xff] %vm1127, %v2519
    %2756 = vst.msk [vmem:[#allocation5 + $0xb0] sm:$0xff] %vm1127, %v2521
    %2757 = vst.msk [vmem:[#allocation5 + $0xc8] sm:$0xff] %vm1127, %v2523
    %2758 = vst.msk [vmem:[#allocation5 + $0xe0] sm:$0xff] %vm1127, %v2525
    %2759 = vst.msk [vmem:[#allocation5 + $0xf8] sm:$0xff] %vm1127, %v2527
    %2760 = vst.msk [vmem:[#allocation5 + $0x110] sm:$0xff] %vm1127, %v2529
    %2761 = vst.msk [vmem:[#allocation5 + $0x128] sm:$0xff] %vm1127, %v2531
    %2762 = vst.msk [vmem:[#allocation5 + $0x140] sm:$0xff] %vm1127, %v2533
    %2763 = vst.msk [vmem:[#allocation5 + $0x158] sm:$0xff] %vm1127, %v2535
    %2764 = vst.msk [vmem:[#allocation5 + $0x170] sm:$0xff] %vm1127, %v2537
    %2765 = vst.msk [vmem:[#allocation5 + $0x188] sm:$0xff] %vm1127, %v2539
    %2766 = vst.msk [vmem:[#allocation5 + $0x1a0] sm:$0xff] %vm1127, %v2541
    %2767 = vst.msk [vmem:[#allocation5 + $0x1b8] sm:$0xff] %vm1127, %v2543
    %2768 = vst.msk [vmem:[#allocation5 + $0x1d0] sm:$0xff] %vm1127, %v2545
    %2769 = vst.msk [vmem:[#allocation5 + $0x1e8] sm:$0xff] %vm1127, %v2547
    %2770 = vst.msk [vmem:[#allocation5 + $0x200] sm:$0xff] %vm1127, %v2549
    %2771 = vst.msk [vmem:[#allocation5 + $0x218] sm:$0xff] %vm1127, %v2551
    %2772 = vst.msk [vmem:[#allocation5 + $0x230] sm:$0xff] %vm1127, %v2553
    %2773 = vst.msk [vmem:[#allocation5 + $0x248] sm:$0xff] %vm1127, %v2555
    %2774 = vst.msk [vmem:[#allocation5 + $0x260] sm:$0xff] %vm1127, %v2557
    %2775 = vst.msk [vmem:[#allocation5 + $0x278] sm:$0xff] %vm1127, %v2559
    %2776 = vst.msk [vmem:[#allocation5 + $0x290] sm:$0xff] %vm1127, %v2561
    %2777 = vst.msk [vmem:[#allocation5 + $0x2a8] sm:$0xff] %vm1127, %v2563
    %2778 = vst.msk [vmem:[#allocation5 + $0x2c0] sm:$0xff] %vm1127, %v2565
    %2779 = vst.msk [vmem:[#allocation5 + $0x2d8] sm:$0xff] %vm1127, %v2567
    %2780 = vst.msk [vmem:[#allocation5 + $0x2f0] sm:$0xff] %vm1127, %v2569
    %2781 = vst.msk [vmem:[#allocation5 + $0x308] sm:$0xff] %vm1127, %v2571
    %2782 = vst.msk [vmem:[#allocation5 + $0x320] sm:$0xff] %vm1127, %v2573
    %2783 = vst.msk [vmem:[#allocation5 + $0x338] sm:$0xff] %vm1127, %v2575
    %2784 = vst.msk [vmem:[#allocation5 + $0x350] sm:$0xff] %vm1127, %v2577
    %2785 = vst.msk [vmem:[#allocation5 + $0x368] sm:$0xff] %vm1127, %v2579
    %2786 = vst.msk [vmem:[#allocation5 + $0x380] sm:$0xff] %vm1127, %v2581
    %2787 = vst.msk [vmem:[#allocation5 + $0x398] sm:$0xff] %vm1127, %v2583
    %2788 = vst.msk [vmem:[#allocation5 + $0x3b0] sm:$0xff] %vm1127, %v2585
    %2789 = vst.msk [vmem:[#allocation5 + $0x3c8] sm:$0xff] %vm1127, %v2587
    %2790 = vst.msk [vmem:[#allocation5 + $0x3e0] sm:$0xff] %vm1127, %v2589
    %2791 = vst.msk [vmem:[#allocation5 + $0x3f8] sm:$0xff] %vm1127, %v2591
    %2792 = vst.msk [vmem:[#allocation5 + $0x410] sm:$0xff] %vm1127, %v2593
    %2793 = vst.msk [vmem:[#allocation5 + $0x428] sm:$0xff] %vm1127, %v2595
    %2794 = vst.msk [vmem:[#allocation5 + $0x440] sm:$0xff] %vm1127, %v2597
    %2795 = vst.msk [vmem:[#allocation5 + $0x458] sm:$0xff] %vm1127, %v2599
    %2796 = vst.msk [vmem:[#allocation5 + $0x470] sm:$0xff] %vm1127, %v2601
    %2797 = vst.msk [vmem:[#allocation5 + $0x488] sm:$0xff] %vm1127, %v2603
    %2798 = vst.msk [vmem:[#allocation5 + $0x4a0] sm:$0xff] %vm1127, %v2605
    %2799 = vst.msk [vmem:[#allocation5 + $0x4b8] sm:$0xff] %vm1127, %v2607
    %2800 = vst.msk [vmem:[#allocation5 + $0x4d0] sm:$0xff] %vm1127, %v2609
    %2801 = vst.msk [vmem:[#allocation5 + $0x4e8] sm:$0xff] %vm1127, %v2611
    %2802 = vst.msk [vmem:[#allocation5 + $0x500] sm:$0xff] %vm1127, %v2613
    %2803 = vst.msk [vmem:[#allocation5 + $0x518] sm:$0xff] %vm1127, %v2615
    %2804 = vst.msk [vmem:[#allocation5 + $0x530] sm:$0xff] %vm1127, %v2617
    %2805 = vst.msk [vmem:[#allocation5 + $0x548] sm:$0xff] %vm1127, %v2619
    %2806 = vst.msk [vmem:[#allocation5 + $0x560] sm:$0xff] %vm1127, %v2621
    %2807 = vst.msk [vmem:[#allocation5 + $0x578] sm:$0xff] %vm1127, %v2623
    %2808 = vst.msk [vmem:[#allocation5 + $0x590] sm:$0xff] %vm1127, %v2625
    %2809 = vst.msk [vmem:[#allocation5 + $0x5a8] sm:$0xff] %vm1127, %v2627
    %2810 = vst.msk [vmem:[#allocation5 + $0x5c0] sm:$0xff] %vm1127, %v2629
    %2811 = vst.msk [vmem:[#allocation5 + $0x5d8] sm:$0xff] %vm1127, %v2631
    %2812 = vst.msk [vmem:[#allocation5 + $0x5f0] sm:$0xff] %vm1127, %v2633
    %2813 = vst.msk [vmem:[#allocation5 + $0x608] sm:$0xff] %vm1127, %v2635
    %2814 = vst.msk [vmem:[#allocation5 + $0x620] sm:$0xff] %vm1127, %v2637
    %2815 = vst.msk [vmem:[#allocation5 + $0x638] sm:$0xff] %vm1127, %v2639
    %2816 = vst.msk [vmem:[#allocation5 + $0x650] sm:$0xff] %vm1127, %v2641
    %2817 = vst.msk [vmem:[#allocation5 + $0x668] sm:$0xff] %vm1127, %v2643
    %2818 = vst.msk [vmem:[#allocation5 + $0x680] sm:$0xff] %vm1127, %v2645
    %2819 = vst.msk [vmem:[#allocation5 + $0x698] sm:$0xff] %vm1127, %v2647
    %2820 = vst.msk [vmem:[#allocation5 + $0x6b0] sm:$0xff] %vm1127, %v2649
    %2821 = vst.msk [vmem:[#allocation5 + $0x6c8] sm:$0xff] %vm1127, %v2651
    %2822 = vst.msk [vmem:[#allocation5 + $0x6e0] sm:$0xff] %vm1127, %v2653
    %2823 = vst.msk [vmem:[#allocation5 + $0x6f8] sm:$0xff] %vm1127, %v2655
    %2824 = vst.msk [vmem:[#allocation5 + $0x710] sm:$0xff] %vm1127, %v2657
    %2825 = vst.msk [vmem:[#allocation5 + $0x728] sm:$0xff] %vm1127, %v2659
    %2826 = vst.msk [vmem:[#allocation5 + $0x740] sm:$0xff] %vm1127, %v2661
    %2827 = vst.msk [vmem:[#allocation5 + $0x758] sm:$0xff] %vm1127, %v2663
    %2828 = vst.msk [vmem:[#allocation5 + $0x770] sm:$0xff] %vm1127, %v2665
    %2829 = vst.msk [vmem:[#allocation5 + $0x788] sm:$0xff] %vm1127, %v2667
    %v2830 = vld [vmem:[%s0 + $0x25] sm:$0xff]
    %v2831 = vld [vmem:[%s0 + $0x2d] sm:$0xff]
    %v2832 = vld [vmem:[%s0 + $0x35] sm:$0xff]
    %v2833 = vld [vmem:[%s0 + $0x3d] sm:$0xff]
    %v2834 = vld [vmem:[%s0 + $0x45] sm:$0xff]
    %v2835 = vld [vmem:[%s0 + $0x4d] sm:$0xff]
    %v2836 = vld [vmem:[%s0 + $0x55] sm:$0xff]
    %v2837 = vld [vmem:[%s0 + $0x5d] sm:$0xff]
    %v2838 = vld [vmem:[%s0 + $0x65] sm:$0xff]
    %v2839 = vld [vmem:[%s0 + $0x6d] sm:$0xff]
    %v2840 = vld [vmem:[%s0 + $0x75] sm:$0xff]
    %v2841 = vld [vmem:[%s0 + $0x7d] sm:$0xff]
    %v2842 = vld [vmem:[%s0 + $0x85] sm:$0xff]
    %v2843 = vld [vmem:[%s0 + $0x8d] sm:$0xff]
    %v2844 = vld [vmem:[%s0 + $0x95] sm:$0xff]
    %v2845 = vld [vmem:[%s0 + $0x9d] sm:$0xff]
    %v2846 = vld [vmem:[%s0 + $0xa5] sm:$0xff]
    %v2847 = vld [vmem:[%s0 + $0xad] sm:$0xff]
    %v2848 = vld [vmem:[%s0 + $0xb5] sm:$0xff]
    %v2849 = vld [vmem:[%s0 + $0xbd] sm:$0xff]
    %v2850 = vld [vmem:[%s0 + $0xc5] sm:$0xff]
    %v2851 = vld [vmem:[%s0 + $0xcd] sm:$0xff]
    %v2852 = vld [vmem:[%s0 + $0xd5] sm:$0xff]
    %v2853 = vld [vmem:[%s0 + $0xdd] sm:$0xff]
    %v2854 = vld [vmem:[%s0 + $0xe5] sm:$0xff]
    %v2855 = vld [vmem:[%s0 + $0xed] sm:$0xff]
    %v2856 = vld [vmem:[%s0 + $0xf5] sm:$0xff]
    %v2857 = vld [vmem:[%s0 + $0xfd] sm:$0xff]
    %v2858 = vld [vmem:[%s0 + $0x105] sm:$0xff]
    %v2859 = vld [vmem:[%s0 + $0x10d] sm:$0xff]
    %v2860 = vld [vmem:[%s0 + $0x115] sm:$0xff]
    %v2861 = vld [vmem:[%s0 + $0x11d] sm:$0xff]
    %v2862 = vld [vmem:[%s0 + $0x125] sm:$0xff]
    %v2863 = vld [vmem:[%s0 + $0x12d] sm:$0xff]
    %v2864 = vld [vmem:[%s0 + $0x135] sm:$0xff]
    %v2865 = vld [vmem:[%s0 + $0x13d] sm:$0xff]
    %v2866 = vld [vmem:[%s0 + $0x145] sm:$0xff]
    %v2867 = vld [vmem:[%s0 + $0x14d] sm:$0xff]
    %v2868 = vld [vmem:[%s0 + $0x155] sm:$0xff]
    %v2869 = vld [vmem:[%s0 + $0x15d] sm:$0xff]
    %v2870 = vld [vmem:[%s0 + $0x165] sm:$0xff]
    %v2871 = vld [vmem:[%s0 + $0x16d] sm:$0xff]
    %v2872 = vld [vmem:[%s0 + $0x175] sm:$0xff]
    %v2873 = vld [vmem:[%s0 + $0x17d] sm:$0xff]
    %v2874 = vld [vmem:[%s0 + $0x185] sm:$0xff]
    %v2875 = vld [vmem:[%s0 + $0x18d] sm:$0xff]
    %v2876 = vld [vmem:[%s0 + $0x195] sm:$0xff]
    %v2877 = vld [vmem:[%s0 + $0x19d] sm:$0xff]
    %v2878 = vld [vmem:[%s0 + $0x1a5] sm:$0xff]
    %v2879 = vld [vmem:[%s0 + $0x1ad] sm:$0xff]
    %v2880 = vld [vmem:[%s0 + $0x1b5] sm:$0xff]
    %v2881 = vld [vmem:[%s0 + $0x1bd] sm:$0xff]
    %v2882 = vld [vmem:[%s0 + $0x1c5] sm:$0xff]
    %v2883 = vld [vmem:[%s0 + $0x1cd] sm:$0xff]
    %v2884 = vld [vmem:[%s0 + $0x1d5] sm:$0xff]
    %v2885 = vld [vmem:[%s0 + $0x1dd] sm:$0xff]
    %v2886 = vld [vmem:[%s0 + $0x1e5] sm:$0xff]
    %v2887 = vld [vmem:[%s0 + $0x1ed] sm:$0xff]
    %v2888 = vld [vmem:[%s0 + $0x1f5] sm:$0xff]
    %v2889 = vld [vmem:[%s0 + $0x1fd] sm:$0xff]
    %v2890 = vld [vmem:[%s0 + $0x205] sm:$0xff]
    %v2891 = vld [vmem:[%s0 + $0x20d] sm:$0xff]
    %v2892 = vld [vmem:[%s0 + $0x215] sm:$0xff]
    %v2893 = vld [vmem:[%s0 + $0x21d] sm:$0xff]
    %v2894 = vld [vmem:[%s0 + $0x225] sm:$0xff]
    %v2895 = vld [vmem:[%s0 + $0x22d] sm:$0xff]
    %v2896 = vld [vmem:[%s0 + $0x235] sm:$0xff]
    %v2897 = vld [vmem:[%s0 + $0x23d] sm:$0xff]
    %v2898 = vld [vmem:[%s0 + $0x245] sm:$0xff]
    %v2899 = vld [vmem:[%s0 + $0x24d] sm:$0xff]
    %v2900 = vld [vmem:[%s0 + $0x255] sm:$0xff]
    %v2901 = vld [vmem:[%s0 + $0x25d] sm:$0xff]
    %v2902 = vld [vmem:[%s0 + $0x265] sm:$0xff]
    %v2903 = vld [vmem:[%s0 + $0x26d] sm:$0xff]
    %v2904 = vld [vmem:[%s0 + $0x275] sm:$0xff]
    %v2905 = vld [vmem:[%s0 + $0x27d] sm:$0xff]
    %v2906 = vld [vmem:[%s0 + $0x285] sm:$0xff]
    %v2907 = vld [vmem:[%s0 + $0x28d] sm:$0xff]
    %v2908 = vld [vmem:[%s0 + $0x295] sm:$0xff]
    %v2909 = vld [vmem:[%s0 + $0x29d] sm:$0xff]
    %v2910 = vld [vmem:[%s0 + $0x2a5] sm:$0xff]
    %2992 = vrot.lane.b32.xlu0 %v2830, 96
    %v2993 = vpop.permute.xlu0 %2992
    %2994 = vrot.lane.b32.xlu0 %v2831, 96
    %v2995 = vpop.permute.xlu0 %2994
    %2996 = vrot.lane.b32.xlu0 %v2832, 96
    %v2997 = vpop.permute.xlu0 %2996
    %2998 = vrot.lane.b32.xlu0 %v2833, 96
    %v2999 = vpop.permute.xlu0 %2998
    %3000 = vrot.lane.b32.xlu0 %v2834, 96
    %v3001 = vpop.permute.xlu0 %3000
    %3002 = vrot.lane.b32.xlu0 %v2835, 96
    %v3003 = vpop.permute.xlu0 %3002
    %3004 = vrot.lane.b32.xlu0 %v2836, 96
    %v3005 = vpop.permute.xlu0 %3004
    %3006 = vrot.lane.b32.xlu0 %v2837, 96
    %v3007 = vpop.permute.xlu0 %3006
    %3008 = vrot.lane.b32.xlu0 %v2838, 96
    %v3009 = vpop.permute.xlu0 %3008
    %3010 = vrot.lane.b32.xlu0 %v2839, 96
    %v3011 = vpop.permute.xlu0 %3010
    %3012 = vrot.lane.b32.xlu0 %v2840, 96
    %v3013 = vpop.permute.xlu0 %3012
    %3014 = vrot.lane.b32.xlu0 %v2841, 96
    %v3015 = vpop.permute.xlu0 %3014
    %3016 = vrot.lane.b32.xlu0 %v2842, 96
    %v3017 = vpop.permute.xlu0 %3016
    %3018 = vrot.lane.b32.xlu0 %v2843, 96
    %v3019 = vpop.permute.xlu0 %3018
    %3020 = vrot.lane.b32.xlu0 %v2844, 96
    %v3021 = vpop.permute.xlu0 %3020
    %3022 = vrot.lane.b32.xlu0 %v2845, 96
    %v3023 = vpop.permute.xlu0 %3022
    %3024 = vrot.lane.b32.xlu0 %v2846, 96
    %v3025 = vpop.permute.xlu0 %3024
    %3026 = vrot.lane.b32.xlu0 %v2847, 96
    %v3027 = vpop.permute.xlu0 %3026
    %3028 = vrot.lane.b32.xlu0 %v2848, 96
    %v3029 = vpop.permute.xlu0 %3028
    %3030 = vrot.lane.b32.xlu0 %v2849, 96
    %v3031 = vpop.permute.xlu0 %3030
    %3032 = vrot.lane.b32.xlu0 %v2850, 96
    %v3033 = vpop.permute.xlu0 %3032
    %3034 = vrot.lane.b32.xlu0 %v2851, 96
    %v3035 = vpop.permute.xlu0 %3034
    %3036 = vrot.lane.b32.xlu0 %v2852, 96
    %v3037 = vpop.permute.xlu0 %3036
    %3038 = vrot.lane.b32.xlu0 %v2853, 96
    %v3039 = vpop.permute.xlu0 %3038
    %3040 = vrot.lane.b32.xlu0 %v2854, 96
    %v3041 = vpop.permute.xlu0 %3040
    %3042 = vrot.lane.b32.xlu0 %v2855, 96
    %v3043 = vpop.permute.xlu0 %3042
    %3044 = vrot.lane.b32.xlu0 %v2856, 96
    %v3045 = vpop.permute.xlu0 %3044
    %3046 = vrot.lane.b32.xlu0 %v2857, 96
    %v3047 = vpop.permute.xlu0 %3046
    %3048 = vrot.lane.b32.xlu0 %v2858, 96
    %v3049 = vpop.permute.xlu0 %3048
    %3050 = vrot.lane.b32.xlu0 %v2859, 96
    %v3051 = vpop.permute.xlu0 %3050
    %3052 = vrot.lane.b32.xlu0 %v2860, 96
    %v3053 = vpop.permute.xlu0 %3052
    %3054 = vrot.lane.b32.xlu0 %v2861, 96
    %v3055 = vpop.permute.xlu0 %3054
    %3056 = vrot.lane.b32.xlu0 %v2862, 96
    %v3057 = vpop.permute.xlu0 %3056
    %3058 = vrot.lane.b32.xlu0 %v2863, 96
    %v3059 = vpop.permute.xlu0 %3058
    %3060 = vrot.lane.b32.xlu0 %v2864, 96
    %v3061 = vpop.permute.xlu0 %3060
    %3062 = vrot.lane.b32.xlu0 %v2865, 96
    %v3063 = vpop.permute.xlu0 %3062
    %3064 = vrot.lane.b32.xlu0 %v2866, 96
    %v3065 = vpop.permute.xlu0 %3064
    %3066 = vrot.lane.b32.xlu0 %v2867, 96
    %v3067 = vpop.permute.xlu0 %3066
    %3068 = vrot.lane.b32.xlu0 %v2868, 96
    %v3069 = vpop.permute.xlu0 %3068
    %3070 = vrot.lane.b32.xlu0 %v2869, 96
    %v3071 = vpop.permute.xlu0 %3070
    %3072 = vrot.lane.b32.xlu0 %v2870, 96
    %v3073 = vpop.permute.xlu0 %3072
    %3074 = vrot.lane.b32.xlu0 %v2871, 96
    %v3075 = vpop.permute.xlu0 %3074
    %3076 = vrot.lane.b32.xlu0 %v2872, 96
    %v3077 = vpop.permute.xlu0 %3076
    %3078 = vrot.lane.b32.xlu0 %v2873, 96
    %v3079 = vpop.permute.xlu0 %3078
    %3080 = vrot.lane.b32.xlu0 %v2874, 96
    %v3081 = vpop.permute.xlu0 %3080
    %3082 = vrot.lane.b32.xlu0 %v2875, 96
    %v3083 = vpop.permute.xlu0 %3082
    %3084 = vrot.lane.b32.xlu0 %v2876, 96
    %v3085 = vpop.permute.xlu0 %3084
    %3086 = vrot.lane.b32.xlu0 %v2877, 96
    %v3087 = vpop.permute.xlu0 %3086
    %3088 = vrot.lane.b32.xlu0 %v2878, 96
    %v3089 = vpop.permute.xlu0 %3088
    %3090 = vrot.lane.b32.xlu0 %v2879, 96
    %v3091 = vpop.permute.xlu0 %3090
    %3092 = vrot.lane.b32.xlu0 %v2880, 96
    %v3093 = vpop.permute.xlu0 %3092
    %3094 = vrot.lane.b32.xlu0 %v2881, 96
    %v3095 = vpop.permute.xlu0 %3094
    %3096 = vrot.lane.b32.xlu0 %v2882, 96
    %v3097 = vpop.permute.xlu0 %3096
    %3098 = vrot.lane.b32.xlu0 %v2883, 96
    %v3099 = vpop.permute.xlu0 %3098
    %3100 = vrot.lane.b32.xlu0 %v2884, 96
    %v3101 = vpop.permute.xlu0 %3100
    %3102 = vrot.lane.b32.xlu0 %v2885, 96
    %v3103 = vpop.permute.xlu0 %3102
    %3104 = vrot.lane.b32.xlu0 %v2886, 96
    %v3105 = vpop.permute.xlu0 %3104
    %3106 = vrot.lane.b32.xlu0 %v2887, 96
    %v3107 = vpop.permute.xlu0 %3106
    %3108 = vrot.lane.b32.xlu0 %v2888, 96
    %v3109 = vpop.permute.xlu0 %3108
    %3110 = vrot.lane.b32.xlu0 %v2889, 96
    %v3111 = vpop.permute.xlu0 %3110
    %3112 = vrot.lane.b32.xlu0 %v2890, 96
    %v3113 = vpop.permute.xlu0 %3112
    %3114 = vrot.lane.b32.xlu0 %v2891, 96
    %v3115 = vpop.permute.xlu0 %3114
    %3116 = vrot.lane.b32.xlu0 %v2892, 96
    %v3117 = vpop.permute.xlu0 %3116
    %3118 = vrot.lane.b32.xlu0 %v2893, 96
    %v3119 = vpop.permute.xlu0 %3118
    %3120 = vrot.lane.b32.xlu0 %v2894, 96
    %v3121 = vpop.permute.xlu0 %3120
    %3122 = vrot.lane.b32.xlu0 %v2895, 96
    %v3123 = vpop.permute.xlu0 %3122
    %3124 = vrot.lane.b32.xlu0 %v2896, 96
    %v3125 = vpop.permute.xlu0 %3124
    %3126 = vrot.lane.b32.xlu0 %v2897, 96
    %v3127 = vpop.permute.xlu0 %3126
    %3128 = vrot.lane.b32.xlu0 %v2898, 96
    %v3129 = vpop.permute.xlu0 %3128
    %3130 = vrot.lane.b32.xlu0 %v2899, 96
    %v3131 = vpop.permute.xlu0 %3130
    %3132 = vrot.lane.b32.xlu0 %v2900, 96
    %v3133 = vpop.permute.xlu0 %3132
    %3134 = vrot.lane.b32.xlu0 %v2901, 96
    %v3135 = vpop.permute.xlu0 %3134
    %3136 = vrot.lane.b32.xlu0 %v2902, 96
    %v3137 = vpop.permute.xlu0 %3136
    %3138 = vrot.lane.b32.xlu0 %v2903, 96
    %v3139 = vpop.permute.xlu0 %3138
    %3140 = vrot.lane.b32.xlu0 %v2904, 96
    %v3141 = vpop.permute.xlu0 %3140
    %3142 = vrot.lane.b32.xlu0 %v2905, 96
    %v3143 = vpop.permute.xlu0 %3142
    %3144 = vrot.lane.b32.xlu0 %v2906, 96
    %v3145 = vpop.permute.xlu0 %3144
    %3146 = vrot.lane.b32.xlu0 %v2907, 96
    %v3147 = vpop.permute.xlu0 %3146
    %3148 = vrot.lane.b32.xlu0 %v2908, 96
    %v3149 = vpop.permute.xlu0 %3148
    %3150 = vrot.lane.b32.xlu0 %v2909, 96
    %v3151 = vpop.permute.xlu0 %3150
    %3152 = vrot.lane.b32.xlu0 %v2910, 96
    %v3153 = vpop.permute.xlu0 %3152
    %3235 = vst.msk [vmem:[#allocation5 + $0x8] sm:$0xff] %vm1614, %v2993
    %3236 = vst.msk [vmem:[#allocation5 + $0x20] sm:$0xff] %vm1614, %v2995
    %3237 = vst.msk [vmem:[#allocation5 + $0x38] sm:$0xff] %vm1614, %v2997
    %3238 = vst.msk [vmem:[#allocation5 + $0x50] sm:$0xff] %vm1614, %v2999
    %3239 = vst.msk [vmem:[#allocation5 + $0x68] sm:$0xff] %vm1614, %v3001
    %3240 = vst.msk [vmem:[#allocation5 + $0x80] sm:$0xff] %vm1614, %v3003
    %3241 = vst.msk [vmem:[#allocation5 + $0x98] sm:$0xff] %vm1614, %v3005
    %3242 = vst.msk [vmem:[#allocation5 + $0xb0] sm:$0xff] %vm1614, %v3007
    %3243 = vst.msk [vmem:[#allocation5 + $0xc8] sm:$0xff] %vm1614, %v3009
    %3244 = vst.msk [vmem:[#allocation5 + $0xe0] sm:$0xff] %vm1614, %v3011
    %3245 = vst.msk [vmem:[#allocation5 + $0xf8] sm:$0xff] %vm1614, %v3013
    %3246 = vst.msk [vmem:[#allocation5 + $0x110] sm:$0xff] %vm1614, %v3015
    %3247 = vst.msk [vmem:[#allocation5 + $0x128] sm:$0xff] %vm1614, %v3017
    %3248 = vst.msk [vmem:[#allocation5 + $0x140] sm:$0xff] %vm1614, %v3019
    %3249 = vst.msk [vmem:[#allocation5 + $0x158] sm:$0xff] %vm1614, %v3021
    %3250 = vst.msk [vmem:[#allocation5 + $0x170] sm:$0xff] %vm1614, %v3023
    %3251 = vst.msk [vmem:[#allocation5 + $0x188] sm:$0xff] %vm1614, %v3025
    %3252 = vst.msk [vmem:[#allocation5 + $0x1a0] sm:$0xff] %vm1614, %v3027
    %3253 = vst.msk [vmem:[#allocation5 + $0x1b8] sm:$0xff] %vm1614, %v3029
    %3254 = vst.msk [vmem:[#allocation5 + $0x1d0] sm:$0xff] %vm1614, %v3031
    %3255 = vst.msk [vmem:[#allocation5 + $0x1e8] sm:$0xff] %vm1614, %v3033
    %3256 = vst.msk [vmem:[#allocation5 + $0x200] sm:$0xff] %vm1614, %v3035
    %3257 = vst.msk [vmem:[#allocation5 + $0x218] sm:$0xff] %vm1614, %v3037
    %3258 = vst.msk [vmem:[#allocation5 + $0x230] sm:$0xff] %vm1614, %v3039
    %3259 = vst.msk [vmem:[#allocation5 + $0x248] sm:$0xff] %vm1614, %v3041
    %3260 = vst.msk [vmem:[#allocation5 + $0x260] sm:$0xff] %vm1614, %v3043
    %3261 = vst.msk [vmem:[#allocation5 + $0x278] sm:$0xff] %vm1614, %v3045
    %3262 = vst.msk [vmem:[#allocation5 + $0x290] sm:$0xff] %vm1614, %v3047
    %3263 = vst.msk [vmem:[#allocation5 + $0x2a8] sm:$0xff] %vm1614, %v3049
    %3264 = vst.msk [vmem:[#allocation5 + $0x2c0] sm:$0xff] %vm1614, %v3051
    %3265 = vst.msk [vmem:[#allocation5 + $0x2d8] sm:$0xff] %vm1614, %v3053
    %3266 = vst.msk [vmem:[#allocation5 + $0x2f0] sm:$0xff] %vm1614, %v3055
    %3267 = vst.msk [vmem:[#allocation5 + $0x308] sm:$0xff] %vm1614, %v3057
    %3268 = vst.msk [vmem:[#allocation5 + $0x320] sm:$0xff] %vm1614, %v3059
    %3269 = vst.msk [vmem:[#allocation5 + $0x338] sm:$0xff] %vm1614, %v3061
    %3270 = vst.msk [vmem:[#allocation5 + $0x350] sm:$0xff] %vm1614, %v3063
    %3271 = vst.msk [vmem:[#allocation5 + $0x368] sm:$0xff] %vm1614, %v3065
    %3272 = vst.msk [vmem:[#allocation5 + $0x380] sm:$0xff] %vm1614, %v3067
    %3273 = vst.msk [vmem:[#allocation5 + $0x398] sm:$0xff] %vm1614, %v3069
    %3274 = vst.msk [vmem:[#allocation5 + $0x3b0] sm:$0xff] %vm1614, %v3071
    %3275 = vst.msk [vmem:[#allocation5 + $0x3c8] sm:$0xff] %vm1614, %v3073
    %3276 = vst.msk [vmem:[#allocation5 + $0x3e0] sm:$0xff] %vm1614, %v3075
    %3277 = vst.msk [vmem:[#allocation5 + $0x3f8] sm:$0xff] %vm1614, %v3077
    %3278 = vst.msk [vmem:[#allocation5 + $0x410] sm:$0xff] %vm1614, %v3079
    %3279 = vst.msk [vmem:[#allocation5 + $0x428] sm:$0xff] %vm1614, %v3081
    %3280 = vst.msk [vmem:[#allocation5 + $0x440] sm:$0xff] %vm1614, %v3083
    %3281 = vst.msk [vmem:[#allocation5 + $0x458] sm:$0xff] %vm1614, %v3085
    %3282 = vst.msk [vmem:[#allocation5 + $0x470] sm:$0xff] %vm1614, %v3087
    %3283 = vst.msk [vmem:[#allocation5 + $0x488] sm:$0xff] %vm1614, %v3089
    %3284 = vst.msk [vmem:[#allocation5 + $0x4a0] sm:$0xff] %vm1614, %v3091
    %3285 = vst.msk [vmem:[#allocation5 + $0x4b8] sm:$0xff] %vm1614, %v3093
    %3286 = vst.msk [vmem:[#allocation5 + $0x4d0] sm:$0xff] %vm1614, %v3095
    %3287 = vst.msk [vmem:[#allocation5 + $0x4e8] sm:$0xff] %vm1614, %v3097
    %3288 = vst.msk [vmem:[#allocation5 + $0x500] sm:$0xff] %vm1614, %v3099
    %3289 = vst.msk [vmem:[#allocation5 + $0x518] sm:$0xff] %vm1614, %v3101
    %3290 = vst.msk [vmem:[#allocation5 + $0x530] sm:$0xff] %vm1614, %v3103
    %3291 = vst.msk [vmem:[#allocation5 + $0x548] sm:$0xff] %vm1614, %v3105
    %3292 = vst.msk [vmem:[#allocation5 + $0x560] sm:$0xff] %vm1614, %v3107
    %3293 = vst.msk [vmem:[#allocation5 + $0x578] sm:$0xff] %vm1614, %v3109
    %3294 = vst.msk [vmem:[#allocation5 + $0x590] sm:$0xff] %vm1614, %v3111
    %3295 = vst.msk [vmem:[#allocation5 + $0x5a8] sm:$0xff] %vm1614, %v3113
    %3296 = vst.msk [vmem:[#allocation5 + $0x5c0] sm:$0xff] %vm1614, %v3115
    %3297 = vst.msk [vmem:[#allocation5 + $0x5d8] sm:$0xff] %vm1614, %v3117
    %3298 = vst.msk [vmem:[#allocation5 + $0x5f0] sm:$0xff] %vm1614, %v3119
    %3299 = vst.msk [vmem:[#allocation5 + $0x608] sm:$0xff] %vm1614, %v3121
    %3300 = vst.msk [vmem:[#allocation5 + $0x620] sm:$0xff] %vm1614, %v3123
    %3301 = vst.msk [vmem:[#allocation5 + $0x638] sm:$0xff] %vm1614, %v3125
    %3302 = vst.msk [vmem:[#allocation5 + $0x650] sm:$0xff] %vm1614, %v3127
    %3303 = vst.msk [vmem:[#allocation5 + $0x668] sm:$0xff] %vm1614, %v3129
    %3304 = vst.msk [vmem:[#allocation5 + $0x680] sm:$0xff] %vm1614, %v3131
    %3305 = vst.msk [vmem:[#allocation5 + $0x698] sm:$0xff] %vm1614, %v3133
    %3306 = vst.msk [vmem:[#allocation5 + $0x6b0] sm:$0xff] %vm1614, %v3135
    %3307 = vst.msk [vmem:[#allocation5 + $0x6c8] sm:$0xff] %vm1614, %v3137
    %3308 = vst.msk [vmem:[#allocation5 + $0x6e0] sm:$0xff] %vm1614, %v3139
    %3309 = vst.msk [vmem:[#allocation5 + $0x6f8] sm:$0xff] %vm1614, %v3141
    %3310 = vst.msk [vmem:[#allocation5 + $0x710] sm:$0xff] %vm1614, %v3143
    %3311 = vst.msk [vmem:[#allocation5 + $0x728] sm:$0xff] %vm1614, %v3145
    %3312 = vst.msk [vmem:[#allocation5 + $0x740] sm:$0xff] %vm1614, %v3147
    %3313 = vst.msk [vmem:[#allocation5 + $0x758] sm:$0xff] %vm1614, %v3149
    %3314 = vst.msk [vmem:[#allocation5 + $0x770] sm:$0xff] %vm1614, %v3151
    %3315 = vst.msk [vmem:[#allocation5 + $0x788] sm:$0xff] %vm1614, %v3153
    %v3316 = vld [vmem:[%s0 + $0x26] sm:$0xff]
    %v3317 = vld [vmem:[%s0 + $0x2e] sm:$0xff]
    %v3318 = vld [vmem:[%s0 + $0x36] sm:$0xff]
    %v3319 = vld [vmem:[%s0 + $0x3e] sm:$0xff]
    %v3320 = vld [vmem:[%s0 + $0x46] sm:$0xff]
    %v3321 = vld [vmem:[%s0 + $0x4e] sm:$0xff]
    %v3322 = vld [vmem:[%s0 + $0x56] sm:$0xff]
    %v3323 = vld [vmem:[%s0 + $0x5e] sm:$0xff]
    %v3324 = vld [vmem:[%s0 + $0x66] sm:$0xff]
    %v3325 = vld [vmem:[%s0 + $0x6e] sm:$0xff]
    %v3326 = vld [vmem:[%s0 + $0x76] sm:$0xff]
    %v3327 = vld [vmem:[%s0 + $0x7e] sm:$0xff]
    %v3328 = vld [vmem:[%s0 + $0x86] sm:$0xff]
    %v3329 = vld [vmem:[%s0 + $0x8e] sm:$0xff]
    %v3330 = vld [vmem:[%s0 + $0x96] sm:$0xff]
    %v3331 = vld [vmem:[%s0 + $0x9e] sm:$0xff]
    %v3332 = vld [vmem:[%s0 + $0xa6] sm:$0xff]
    %v3333 = vld [vmem:[%s0 + $0xae] sm:$0xff]
    %v3334 = vld [vmem:[%s0 + $0xb6] sm:$0xff]
    %v3335 = vld [vmem:[%s0 + $0xbe] sm:$0xff]
    %v3336 = vld [vmem:[%s0 + $0xc6] sm:$0xff]
    %v3337 = vld [vmem:[%s0 + $0xce] sm:$0xff]
    %v3338 = vld [vmem:[%s0 + $0xd6] sm:$0xff]
    %v3339 = vld [vmem:[%s0 + $0xde] sm:$0xff]
    %v3340 = vld [vmem:[%s0 + $0xe6] sm:$0xff]
    %v3341 = vld [vmem:[%s0 + $0xee] sm:$0xff]
    %v3342 = vld [vmem:[%s0 + $0xf6] sm:$0xff]
    %v3343 = vld [vmem:[%s0 + $0xfe] sm:$0xff]
    %v3344 = vld [vmem:[%s0 + $0x106] sm:$0xff]
    %v3345 = vld [vmem:[%s0 + $0x10e] sm:$0xff]
    %v3346 = vld [vmem:[%s0 + $0x116] sm:$0xff]
    %v3347 = vld [vmem:[%s0 + $0x11e] sm:$0xff]
    %v3348 = vld [vmem:[%s0 + $0x126] sm:$0xff]
    %v3349 = vld [vmem:[%s0 + $0x12e] sm:$0xff]
    %v3350 = vld [vmem:[%s0 + $0x136] sm:$0xff]
    %v3351 = vld [vmem:[%s0 + $0x13e] sm:$0xff]
    %v3352 = vld [vmem:[%s0 + $0x146] sm:$0xff]
    %v3353 = vld [vmem:[%s0 + $0x14e] sm:$0xff]
    %v3354 = vld [vmem:[%s0 + $0x156] sm:$0xff]
    %v3355 = vld [vmem:[%s0 + $0x15e] sm:$0xff]
    %v3356 = vld [vmem:[%s0 + $0x166] sm:$0xff]
    %v3357 = vld [vmem:[%s0 + $0x16e] sm:$0xff]
    %v3358 = vld [vmem:[%s0 + $0x176] sm:$0xff]
    %v3359 = vld [vmem:[%s0 + $0x17e] sm:$0xff]
    %v3360 = vld [vmem:[%s0 + $0x186] sm:$0xff]
    %v3361 = vld [vmem:[%s0 + $0x18e] sm:$0xff]
    %v3362 = vld [vmem:[%s0 + $0x196] sm:$0xff]
    %v3363 = vld [vmem:[%s0 + $0x19e] sm:$0xff]
    %v3364 = vld [vmem:[%s0 + $0x1a6] sm:$0xff]
    %v3365 = vld [vmem:[%s0 + $0x1ae] sm:$0xff]
    %v3366 = vld [vmem:[%s0 + $0x1b6] sm:$0xff]
    %v3367 = vld [vmem:[%s0 + $0x1be] sm:$0xff]
    %v3368 = vld [vmem:[%s0 + $0x1c6] sm:$0xff]
    %v3369 = vld [vmem:[%s0 + $0x1ce] sm:$0xff]
    %v3370 = vld [vmem:[%s0 + $0x1d6] sm:$0xff]
    %v3371 = vld [vmem:[%s0 + $0x1de] sm:$0xff]
    %v3372 = vld [vmem:[%s0 + $0x1e6] sm:$0xff]
    %v3373 = vld [vmem:[%s0 + $0x1ee] sm:$0xff]
    %v3374 = vld [vmem:[%s0 + $0x1f6] sm:$0xff]
    %v3375 = vld [vmem:[%s0 + $0x1fe] sm:$0xff]
    %v3376 = vld [vmem:[%s0 + $0x206] sm:$0xff]
    %v3377 = vld [vmem:[%s0 + $0x20e] sm:$0xff]
    %v3378 = vld [vmem:[%s0 + $0x216] sm:$0xff]
    %v3379 = vld [vmem:[%s0 + $0x21e] sm:$0xff]
    %v3380 = vld [vmem:[%s0 + $0x226] sm:$0xff]
    %v3381 = vld [vmem:[%s0 + $0x22e] sm:$0xff]
    %v3382 = vld [vmem:[%s0 + $0x236] sm:$0xff]
    %v3383 = vld [vmem:[%s0 + $0x23e] sm:$0xff]
    %v3384 = vld [vmem:[%s0 + $0x246] sm:$0xff]
    %v3385 = vld [vmem:[%s0 + $0x24e] sm:$0xff]
    %v3386 = vld [vmem:[%s0 + $0x256] sm:$0xff]
    %v3387 = vld [vmem:[%s0 + $0x25e] sm:$0xff]
    %v3388 = vld [vmem:[%s0 + $0x266] sm:$0xff]
    %v3389 = vld [vmem:[%s0 + $0x26e] sm:$0xff]
    %v3390 = vld [vmem:[%s0 + $0x276] sm:$0xff]
    %v3391 = vld [vmem:[%s0 + $0x27e] sm:$0xff]
    %v3392 = vld [vmem:[%s0 + $0x286] sm:$0xff]
    %v3393 = vld [vmem:[%s0 + $0x28e] sm:$0xff]
    %v3394 = vld [vmem:[%s0 + $0x296] sm:$0xff]
    %v3395 = vld [vmem:[%s0 + $0x29e] sm:$0xff]
    %v3396 = vld [vmem:[%s0 + $0x2a6] sm:$0xff]
    %3397 = vst.msk [vmem:[#allocation5 + $0x10] sm:$0xff] %vm27, %v3316
    %3398 = vst.msk [vmem:[#allocation5 + $0x28] sm:$0xff] %vm27, %v3317
    %3399 = vst.msk [vmem:[#allocation5 + $0x40] sm:$0xff] %vm27, %v3318
    %3400 = vst.msk [vmem:[#allocation5 + $0x58] sm:$0xff] %vm27, %v3319
    %3401 = vst.msk [vmem:[#allocation5 + $0x70] sm:$0xff] %vm27, %v3320
    %3402 = vst.msk [vmem:[#allocation5 + $0x88] sm:$0xff] %vm27, %v3321
    %3403 = vst.msk [vmem:[#allocation5 + $0xa0] sm:$0xff] %vm27, %v3322
    %3404 = vst.msk [vmem:[#allocation5 + $0xb8] sm:$0xff] %vm27, %v3323
    %3405 = vst.msk [vmem:[#allocation5 + $0xd0] sm:$0xff] %vm27, %v3324
    %3406 = vst.msk [vmem:[#allocation5 + $0xe8] sm:$0xff] %vm27, %v3325
    %3407 = vst.msk [vmem:[#allocation5 + $0x100] sm:$0xff] %vm27, %v3326
    %3408 = vst.msk [vmem:[#allocation5 + $0x118] sm:$0xff] %vm27, %v3327
    %3409 = vst.msk [vmem:[#allocation5 + $0x130] sm:$0xff] %vm27, %v3328
    %3410 = vst.msk [vmem:[#allocation5 + $0x148] sm:$0xff] %vm27, %v3329
    %3411 = vst.msk [vmem:[#allocation5 + $0x160] sm:$0xff] %vm27, %v3330
    %3412 = vst.msk [vmem:[#allocation5 + $0x178] sm:$0xff] %vm27, %v3331
    %3413 = vst.msk [vmem:[#allocation5 + $0x190] sm:$0xff] %vm27, %v3332
    %3414 = vst.msk [vmem:[#allocation5 + $0x1a8] sm:$0xff] %vm27, %v3333
    %3415 = vst.msk [vmem:[#allocation5 + $0x1c0] sm:$0xff] %vm27, %v3334
    %3416 = vst.msk [vmem:[#allocation5 + $0x1d8] sm:$0xff] %vm27, %v3335
    %3417 = vst.msk [vmem:[#allocation5 + $0x1f0] sm:$0xff] %vm27, %v3336
    %3418 = vst.msk [vmem:[#allocation5 + $0x208] sm:$0xff] %vm27, %v3337
    %3419 = vst.msk [vmem:[#allocation5 + $0x220] sm:$0xff] %vm27, %v3338
    %3420 = vst.msk [vmem:[#allocation5 + $0x238] sm:$0xff] %vm27, %v3339
    %3421 = vst.msk [vmem:[#allocation5 + $0x250] sm:$0xff] %vm27, %v3340
    %3422 = vst.msk [vmem:[#allocation5 + $0x268] sm:$0xff] %vm27, %v3341
    %3423 = vst.msk [vmem:[#allocation5 + $0x280] sm:$0xff] %vm27, %v3342
    %3424 = vst.msk [vmem:[#allocation5 + $0x298] sm:$0xff] %vm27, %v3343
    %3425 = vst.msk [vmem:[#allocation5 + $0x2b0] sm:$0xff] %vm27, %v3344
    %3426 = vst.msk [vmem:[#allocation5 + $0x2c8] sm:$0xff] %vm27, %v3345
    %3427 = vst.msk [vmem:[#allocation5 + $0x2e0] sm:$0xff] %vm27, %v3346
    %3428 = vst.msk [vmem:[#allocation5 + $0x2f8] sm:$0xff] %vm27, %v3347
    %3429 = vst.msk [vmem:[#allocation5 + $0x310] sm:$0xff] %vm27, %v3348
    %3430 = vst.msk [vmem:[#allocation5 + $0x328] sm:$0xff] %vm27, %v3349
    %3431 = vst.msk [vmem:[#allocation5 + $0x340] sm:$0xff] %vm27, %v3350
    %3432 = vst.msk [vmem:[#allocation5 + $0x358] sm:$0xff] %vm27, %v3351
    %3433 = vst.msk [vmem:[#allocation5 + $0x370] sm:$0xff] %vm27, %v3352
    %3434 = vst.msk [vmem:[#allocation5 + $0x388] sm:$0xff] %vm27, %v3353
    %3435 = vst.msk [vmem:[#allocation5 + $0x3a0] sm:$0xff] %vm27, %v3354
    %3436 = vst.msk [vmem:[#allocation5 + $0x3b8] sm:$0xff] %vm27, %v3355
    %3437 = vst.msk [vmem:[#allocation5 + $0x3d0] sm:$0xff] %vm27, %v3356
    %3438 = vst.msk [vmem:[#allocation5 + $0x3e8] sm:$0xff] %vm27, %v3357
    %3439 = vst.msk [vmem:[#allocation5 + $0x400] sm:$0xff] %vm27, %v3358
    %3440 = vst.msk [vmem:[#allocation5 + $0x418] sm:$0xff] %vm27, %v3359
    %3441 = vst.msk [vmem:[#allocation5 + $0x430] sm:$0xff] %vm27, %v3360
    %3442 = vst.msk [vmem:[#allocation5 + $0x448] sm:$0xff] %vm27, %v3361
    %3443 = vst.msk [vmem:[#allocation5 + $0x460] sm:$0xff] %vm27, %v3362
    %3444 = vst.msk [vmem:[#allocation5 + $0x478] sm:$0xff] %vm27, %v3363
    %3445 = vst.msk [vmem:[#allocation5 + $0x490] sm:$0xff] %vm27, %v3364
    %3446 = vst.msk [vmem:[#allocation5 + $0x4a8] sm:$0xff] %vm27, %v3365
    %3447 = vst.msk [vmem:[#allocation5 + $0x4c0] sm:$0xff] %vm27, %v3366
    %3448 = vst.msk [vmem:[#allocation5 + $0x4d8] sm:$0xff] %vm27, %v3367
    %3449 = vst.msk [vmem:[#allocation5 + $0x4f0] sm:$0xff] %vm27, %v3368
    %3450 = vst.msk [vmem:[#allocation5 + $0x508] sm:$0xff] %vm27, %v3369
    %3451 = vst.msk [vmem:[#allocation5 + $0x520] sm:$0xff] %vm27, %v3370
    %3452 = vst.msk [vmem:[#allocation5 + $0x538] sm:$0xff] %vm27, %v3371
    %3453 = vst.msk [vmem:[#allocation5 + $0x550] sm:$0xff] %vm27, %v3372
    %3454 = vst.msk [vmem:[#allocation5 + $0x568] sm:$0xff] %vm27, %v3373
    %3455 = vst.msk [vmem:[#allocation5 + $0x580] sm:$0xff] %vm27, %v3374
    %3456 = vst.msk [vmem:[#allocation5 + $0x598] sm:$0xff] %vm27, %v3375
    %3457 = vst.msk [vmem:[#allocation5 + $0x5b0] sm:$0xff] %vm27, %v3376
    %3458 = vst.msk [vmem:[#allocation5 + $0x5c8] sm:$0xff] %vm27, %v3377
    %3459 = vst.msk [vmem:[#allocation5 + $0x5e0] sm:$0xff] %vm27, %v3378
    %3460 = vst.msk [vmem:[#allocation5 + $0x5f8] sm:$0xff] %vm27, %v3379
    %3461 = vst.msk [vmem:[#allocation5 + $0x610] sm:$0xff] %vm27, %v3380
    %3462 = vst.msk [vmem:[#allocation5 + $0x628] sm:$0xff] %vm27, %v3381
    %3463 = vst.msk [vmem:[#allocation5 + $0x640] sm:$0xff] %vm27, %v3382
    %3464 = vst.msk [vmem:[#allocation5 + $0x658] sm:$0xff] %vm27, %v3383
    %3465 = vst.msk [vmem:[#allocation5 + $0x670] sm:$0xff] %vm27, %v3384
    %3466 = vst.msk [vmem:[#allocation5 + $0x688] sm:$0xff] %vm27, %v3385
    %3467 = vst.msk [vmem:[#allocation5 + $0x6a0] sm:$0xff] %vm27, %v3386
    %3468 = vst.msk [vmem:[#allocation5 + $0x6b8] sm:$0xff] %vm27, %v3387
    %3469 = vst.msk [vmem:[#allocation5 + $0x6d0] sm:$0xff] %vm27, %v3388
    %3470 = vst.msk [vmem:[#allocation5 + $0x6e8] sm:$0xff] %vm27, %v3389
    %3471 = vst.msk [vmem:[#allocation5 + $0x700] sm:$0xff] %vm27, %v3390
    %3472 = vst.msk [vmem:[#allocation5 + $0x718] sm:$0xff] %vm27, %v3391
    %3473 = vst.msk [vmem:[#allocation5 + $0x730] sm:$0xff] %vm27, %v3392
    %3474 = vst.msk [vmem:[#allocation5 + $0x748] sm:$0xff] %vm27, %v3393
    %3475 = vst.msk [vmem:[#allocation5 + $0x760] sm:$0xff] %vm27, %v3394
    %3476 = vst.msk [vmem:[#allocation5 + $0x778] sm:$0xff] %vm27, %v3395
    %3477 = vst.msk [vmem:[#allocation5 + $0x790] sm:$0xff] %vm27, %v3396
    %v3478 = vld [vmem:[#allocation5] sm:$0xff]
    %v3479 = vld [vmem:[#allocation5 + $0x8] sm:$0xff]
    %v3480 = vld [vmem:[#allocation5 + $0x10] sm:$0xff]
    %v3481 = vld [vmem:[#allocation5 + $0x18] sm:$0xff]
    %v3482 = vld [vmem:[#allocation5 + $0x20] sm:$0xff]
    %v3483 = vld [vmem:[#allocation5 + $0x28] sm:$0xff]
    %v3484 = vld [vmem:[#allocation5 + $0x30] sm:$0xff]
    %v3485 = vld [vmem:[#allocation5 + $0x38] sm:$0xff]
    %v3486 = vld [vmem:[#allocation5 + $0x40] sm:$0xff]
    %v3487 = vld [vmem:[#allocation5 + $0x48] sm:$0xff]
    %v3488 = vld [vmem:[#allocation5 + $0x50] sm:$0xff]
    %v3489 = vld [vmem:[#allocation5 + $0x58] sm:$0xff]
    %v3490 = vld [vmem:[#allocation5 + $0x60] sm:$0xff]
    %v3491 = vld [vmem:[#allocation5 + $0x68] sm:$0xff]
    %v3492 = vld [vmem:[#allocation5 + $0x70] sm:$0xff]
    %v3493 = vld [vmem:[#allocation5 + $0x78] sm:$0xff]
    %v3494 = vld [vmem:[#allocation5 + $0x80] sm:$0xff]
    %v3495 = vld [vmem:[#allocation5 + $0x88] sm:$0xff]
    %v3496 = vld [vmem:[#allocation5 + $0x90] sm:$0xff]
    %v3497 = vld [vmem:[#allocation5 + $0x98] sm:$0xff]
    %v3498 = vld [vmem:[#allocation5 + $0xa0] sm:$0xff]
    %v3499 = vld [vmem:[#allocation5 + $0xa8] sm:$0xff]
    %v3500 = vld [vmem:[#allocation5 + $0xb0] sm:$0xff]
    %v3501 = vld [vmem:[#allocation5 + $0xb8] sm:$0xff]
    %v3502 = vld [vmem:[#allocation5 + $0xc0] sm:$0xff]
    %v3503 = vld [vmem:[#allocation5 + $0xc8] sm:$0xff]
    %v3504 = vld [vmem:[#allocation5 + $0xd0] sm:$0xff]
    %v3505 = vld [vmem:[#allocation5 + $0xd8] sm:$0xff]
    %v3506 = vld [vmem:[#allocation5 + $0xe0] sm:$0xff]
    %v3507 = vld [vmem:[#allocation5 + $0xe8] sm:$0xff]
    %v3508 = vld [vmem:[#allocation5 + $0xf0] sm:$0xff]
    %v3509 = vld [vmem:[#allocation5 + $0xf8] sm:$0xff]
    %v3510 = vld [vmem:[#allocation5 + $0x100] sm:$0xff]
    %v3511 = vld [vmem:[#allocation5 + $0x108] sm:$0xff]
    %v3512 = vld [vmem:[#allocation5 + $0x110] sm:$0xff]
    %v3513 = vld [vmem:[#allocation5 + $0x118] sm:$0xff]
    %v3514 = vld [vmem:[#allocation5 + $0x120] sm:$0xff]
    %v3515 = vld [vmem:[#allocation5 + $0x128] sm:$0xff]
    %v3516 = vld [vmem:[#allocation5 + $0x130] sm:$0xff]
    %v3517 = vld [vmem:[#allocation5 + $0x138] sm:$0xff]
    %v3518 = vld [vmem:[#allocation5 + $0x140] sm:$0xff]
    %v3519 = vld [vmem:[#allocation5 + $0x148] sm:$0xff]
    %v3520 = vld [vmem:[#allocation5 + $0x150] sm:$0xff]
    %v3521 = vld [vmem:[#allocation5 + $0x158] sm:$0xff]
    %v3522 = vld [vmem:[#allocation5 + $0x160] sm:$0xff]
    %v3523 = vld [vmem:[#allocation5 + $0x168] sm:$0xff]
    %v3524 = vld [vmem:[#allocation5 + $0x170] sm:$0xff]
    %v3525 = vld [vmem:[#allocation5 + $0x178] sm:$0xff]
    %v3526 = vld [vmem:[#allocation5 + $0x180] sm:$0xff]
    %v3527 = vld [vmem:[#allocation5 + $0x188] sm:$0xff]
    %v3528 = vld [vmem:[#allocation5 + $0x190] sm:$0xff]
    %v3529 = vld [vmem:[#allocation5 + $0x198] sm:$0xff]
    %v3530 = vld [vmem:[#allocation5 + $0x1a0] sm:$0xff]
    %v3531 = vld [vmem:[#allocation5 + $0x1a8] sm:$0xff]
    %v3532 = vld [vmem:[#allocation5 + $0x1b0] sm:$0xff]
    %v3533 = vld [vmem:[#allocation5 + $0x1b8] sm:$0xff]
    %v3534 = vld [vmem:[#allocation5 + $0x1c0] sm:$0xff]
    %v3535 = vld [vmem:[#allocation5 + $0x1c8] sm:$0xff]
    %v3536 = vld [vmem:[#allocation5 + $0x1d0] sm:$0xff]
    %v3537 = vld [vmem:[#allocation5 + $0x1d8] sm:$0xff]
    %v3538 = vld [vmem:[#allocation5 + $0x1e0] sm:$0xff]
    %v3539 = vld [vmem:[#allocation5 + $0x1e8] sm:$0xff]
    %v3540 = vld [vmem:[#allocation5 + $0x1f0] sm:$0xff]
    %v3541 = vld [vmem:[#allocation5 + $0x1f8] sm:$0xff]
    %v3542 = vld [vmem:[#allocation5 + $0x200] sm:$0xff]
    %v3543 = vld [vmem:[#allocation5 + $0x208] sm:$0xff]
    %v3544 = vld [vmem:[#allocation5 + $0x210] sm:$0xff]
    %v3545 = vld [vmem:[#allocation5 + $0x218] sm:$0xff]
    %v3546 = vld [vmem:[#allocation5 + $0x220] sm:$0xff]
    %v3547 = vld [vmem:[#allocation5 + $0x228] sm:$0xff]
    %v3548 = vld [vmem:[#allocation5 + $0x230] sm:$0xff]
    %v3549 = vld [vmem:[#allocation5 + $0x238] sm:$0xff]
    %v3550 = vld [vmem:[#allocation5 + $0x240] sm:$0xff]
    %v3551 = vld [vmem:[#allocation5 + $0x248] sm:$0xff]
    %v3552 = vld [vmem:[#allocation5 + $0x250] sm:$0xff]
    %v3553 = vld [vmem:[#allocation5 + $0x258] sm:$0xff]
    %v3554 = vld [vmem:[#allocation5 + $0x260] sm:$0xff]
    %v3555 = vld [vmem:[#allocation5 + $0x268] sm:$0xff]
    %v3556 = vld [vmem:[#allocation5 + $0x270] sm:$0xff]
    %v3557 = vld [vmem:[#allocation5 + $0x278] sm:$0xff]
    %v3558 = vld [vmem:[#allocation5 + $0x280] sm:$0xff]
    %v3559 = vld [vmem:[#allocation5 + $0x288] sm:$0xff]
    %v3560 = vld [vmem:[#allocation5 + $0x290] sm:$0xff]
    %v3561 = vld [vmem:[#allocation5 + $0x298] sm:$0xff]
    %v3562 = vld [vmem:[#allocation5 + $0x2a0] sm:$0xff]
    %v3563 = vld [vmem:[#allocation5 + $0x2a8] sm:$0xff]
    %v3564 = vld [vmem:[#allocation5 + $0x2b0] sm:$0xff]
    %v3565 = vld [vmem:[#allocation5 + $0x2b8] sm:$0xff]
    %v3566 = vld [vmem:[#allocation5 + $0x2c0] sm:$0xff]
    %v3567 = vld [vmem:[#allocation5 + $0x2c8] sm:$0xff]
    %v3568 = vld [vmem:[#allocation5 + $0x2d0] sm:$0xff]
    %v3569 = vld [vmem:[#allocation5 + $0x2d8] sm:$0xff]
    %v3570 = vld [vmem:[#allocation5 + $0x2e0] sm:$0xff]
    %v3571 = vld [vmem:[#allocation5 + $0x2e8] sm:$0xff]
    %v3572 = vld [vmem:[#allocation5 + $0x2f0] sm:$0xff]
    %v3573 = vld [vmem:[#allocation5 + $0x2f8] sm:$0xff]
    %v3574 = vld [vmem:[#allocation5 + $0x300] sm:$0xff]
    %v3575 = vld [vmem:[#allocation5 + $0x308] sm:$0xff]
    %v3576 = vld [vmem:[#allocation5 + $0x310] sm:$0xff]
    %v3577 = vld [vmem:[#allocation5 + $0x318] sm:$0xff]
    %v3578 = vld [vmem:[#allocation5 + $0x320] sm:$0xff]
    %v3579 = vld [vmem:[#allocation5 + $0x328] sm:$0xff]
    %v3580 = vld [vmem:[#allocation5 + $0x330] sm:$0xff]
    %v3581 = vld [vmem:[#allocation5 + $0x338] sm:$0xff]
    %v3582 = vld [vmem:[#allocation5 + $0x340] sm:$0xff]
    %v3583 = vld [vmem:[#allocation5 + $0x348] sm:$0xff]
    %v3584 = vld [vmem:[#allocation5 + $0x350] sm:$0xff]
    %v3585 = vld [vmem:[#allocation5 + $0x358] sm:$0xff]
    %v3586 = vld [vmem:[#allocation5 + $0x360] sm:$0xff]
    %v3587 = vld [vmem:[#allocation5 + $0x368] sm:$0xff]
    %v3588 = vld [vmem:[#allocation5 + $0x370] sm:$0xff]
    %v3589 = vld [vmem:[#allocation5 + $0x378] sm:$0xff]
    %v3590 = vld [vmem:[#allocation5 + $0x380] sm:$0xff]
    %v3591 = vld [vmem:[#allocation5 + $0x388] sm:$0xff]
    %v3592 = vld [vmem:[#allocation5 + $0x390] sm:$0xff]
    %v3593 = vld [vmem:[#allocation5 + $0x398] sm:$0xff]
    %v3594 = vld [vmem:[#allocation5 + $0x3a0] sm:$0xff]
    %v3595 = vld [vmem:[#allocation5 + $0x3a8] sm:$0xff]
    %v3596 = vld [vmem:[#allocation5 + $0x3b0] sm:$0xff]
    %v3597 = vld [vmem:[#allocation5 + $0x3b8] sm:$0xff]
    %v3598 = vld [vmem:[#allocation5 + $0x3c0] sm:$0xff]
    %v3599 = vld [vmem:[#allocation5 + $0x3c8] sm:$0xff]
    %v3600 = vld [vmem:[#allocation5 + $0x3d0] sm:$0xff]
    %v3601 = vld [vmem:[#allocation5 + $0x3d8] sm:$0xff]
    %v3602 = vld [vmem:[#allocation5 + $0x3e0] sm:$0xff]
    %v3603 = vld [vmem:[#allocation5 + $0x3e8] sm:$0xff]
    %v3604 = vld [vmem:[#allocation5 + $0x3f0] sm:$0xff]
    %v3605 = vld [vmem:[#allocation5 + $0x3f8] sm:$0xff]
    %v3606 = vld [vmem:[#allocation5 + $0x400] sm:$0xff]
    %v3607 = vld [vmem:[#allocation5 + $0x408] sm:$0xff]
    %v3608 = vld [vmem:[#allocation5 + $0x410] sm:$0xff]
    %v3609 = vld [vmem:[#allocation5 + $0x418] sm:$0xff]
    %v3610 = vld [vmem:[#allocation5 + $0x420] sm:$0xff]
    %v3611 = vld [vmem:[#allocation5 + $0x428] sm:$0xff]
    %v3612 = vld [vmem:[#allocation5 + $0x430] sm:$0xff]
    %v3613 = vld [vmem:[#allocation5 + $0x438] sm:$0xff]
    %v3614 = vld [vmem:[#allocation5 + $0x440] sm:$0xff]
    %v3615 = vld [vmem:[#allocation5 + $0x448] sm:$0xff]
    %v3616 = vld [vmem:[#allocation5 + $0x450] sm:$0xff]
    %v3617 = vld [vmem:[#allocation5 + $0x458] sm:$0xff]
    %v3618 = vld [vmem:[#allocation5 + $0x460] sm:$0xff]
    %v3619 = vld [vmem:[#allocation5 + $0x468] sm:$0xff]
    %v3620 = vld [vmem:[#allocation5 + $0x470] sm:$0xff]
    %v3621 = vld [vmem:[#allocation5 + $0x478] sm:$0xff]
    %v3622 = vld [vmem:[#allocation5 + $0x480] sm:$0xff]
    %v3623 = vld [vmem:[#allocation5 + $0x488] sm:$0xff]
    %v3624 = vld [vmem:[#allocation5 + $0x490] sm:$0xff]
    %v3625 = vld [vmem:[#allocation5 + $0x498] sm:$0xff]
    %v3626 = vld [vmem:[#allocation5 + $0x4a0] sm:$0xff]
    %v3627 = vld [vmem:[#allocation5 + $0x4a8] sm:$0xff]
    %v3628 = vld [vmem:[#allocation5 + $0x4b0] sm:$0xff]
    %v3629 = vld [vmem:[#allocation5 + $0x4b8] sm:$0xff]
    %v3630 = vld [vmem:[#allocation5 + $0x4c0] sm:$0xff]
    %v3631 = vld [vmem:[#allocation5 + $0x4c8] sm:$0xff]
    %v3632 = vld [vmem:[#allocation5 + $0x4d0] sm:$0xff]
    %v3633 = vld [vmem:[#allocation5 + $0x4d8] sm:$0xff]
    %v3634 = vld [vmem:[#allocation5 + $0x4e0] sm:$0xff]
    %v3635 = vld [vmem:[#allocation5 + $0x4e8] sm:$0xff]
    %v3636 = vld [vmem:[#allocation5 + $0x4f0] sm:$0xff]
    %v3637 = vld [vmem:[#allocation5 + $0x4f8] sm:$0xff]
    %v3638 = vld [vmem:[#allocation5 + $0x500] sm:$0xff]
    %v3639 = vld [vmem:[#allocation5 + $0x508] sm:$0xff]
    %v3640 = vld [vmem:[#allocation5 + $0x510] sm:$0xff]
    %v3641 = vld [vmem:[#allocation5 + $0x518] sm:$0xff]
    %v3642 = vld [vmem:[#allocation5 + $0x520] sm:$0xff]
    %v3643 = vld [vmem:[#allocation5 + $0x528] sm:$0xff]
    %v3644 = vld [vmem:[#allocation5 + $0x530] sm:$0xff]
    %v3645 = vld [vmem:[#allocation5 + $0x538] sm:$0xff]
    %v3646 = vld [vmem:[#allocation5 + $0x540] sm:$0xff]
    %v3647 = vld [vmem:[#allocation5 + $0x548] sm:$0xff]
    %v3648 = vld [vmem:[#allocation5 + $0x550] sm:$0xff]
    %v3649 = vld [vmem:[#allocation5 + $0x558] sm:$0xff]
    %v3650 = vld [vmem:[#allocation5 + $0x560] sm:$0xff]
    %v3651 = vld [vmem:[#allocation5 + $0x568] sm:$0xff]
    %v3652 = vld [vmem:[#allocation5 + $0x570] sm:$0xff]
    %v3653 = vld [vmem:[#allocation5 + $0x578] sm:$0xff]
    %v3654 = vld [vmem:[#allocation5 + $0x580] sm:$0xff]
    %v3655 = vld [vmem:[#allocation5 + $0x588] sm:$0xff]
    %v3656 = vld [vmem:[#allocation5 + $0x590] sm:$0xff]
    %v3657 = vld [vmem:[#allocation5 + $0x598] sm:$0xff]
    %v3658 = vld [vmem:[#allocation5 + $0x5a0] sm:$0xff]
    %v3659 = vld [vmem:[#allocation5 + $0x5a8] sm:$0xff]
    %v3660 = vld [vmem:[#allocation5 + $0x5b0] sm:$0xff]
    %v3661 = vld [vmem:[#allocation5 + $0x5b8] sm:$0xff]
    %v3662 = vld [vmem:[#allocation5 + $0x5c0] sm:$0xff]
    %v3663 = vld [vmem:[#allocation5 + $0x5c8] sm:$0xff]
    %v3664 = vld [vmem:[#allocation5 + $0x5d0] sm:$0xff]
    %v3665 = vld [vmem:[#allocation5 + $0x5d8] sm:$0xff]
    %v3666 = vld [vmem:[#allocation5 + $0x5e0] sm:$0xff]
    %v3667 = vld [vmem:[#allocation5 + $0x5e8] sm:$0xff]
    %v3668 = vld [vmem:[#allocation5 + $0x5f0] sm:$0xff]
    %v3669 = vld [vmem:[#allocation5 + $0x5f8] sm:$0xff]
    %v3670 = vld [vmem:[#allocation5 + $0x600] sm:$0xff]
    %v3671 = vld [vmem:[#allocation5 + $0x608] sm:$0xff]
    %v3672 = vld [vmem:[#allocation5 + $0x610] sm:$0xff]
    %v3673 = vld [vmem:[#allocation5 + $0x618] sm:$0xff]
    %v3674 = vld [vmem:[#allocation5 + $0x620] sm:$0xff]
    %v3675 = vld [vmem:[#allocation5 + $0x628] sm:$0xff]
    %v3676 = vld [vmem:[#allocation5 + $0x630] sm:$0xff]
    %v3677 = vld [vmem:[#allocation5 + $0x638] sm:$0xff]
    %v3678 = vld [vmem:[#allocation5 + $0x640] sm:$0xff]
    %v3679 = vld [vmem:[#allocation5 + $0x648] sm:$0xff]
    %v3680 = vld [vmem:[#allocation5 + $0x650] sm:$0xff]
    %v3681 = vld [vmem:[#allocation5 + $0x658] sm:$0xff]
    %v3682 = vld [vmem:[#allocation5 + $0x660] sm:$0xff]
    %v3683 = vld [vmem:[#allocation5 + $0x668] sm:$0xff]
    %v3684 = vld [vmem:[#allocation5 + $0x670] sm:$0xff]
    %v3685 = vld [vmem:[#allocation5 + $0x678] sm:$0xff]
    %v3686 = vld [vmem:[#allocation5 + $0x680] sm:$0xff]
    %v3687 = vld [vmem:[#allocation5 + $0x688] sm:$0xff]
    %v3688 = vld [vmem:[#allocation5 + $0x690] sm:$0xff]
    %v3689 = vld [vmem:[#allocation5 + $0x698] sm:$0xff]
    %v3690 = vld [vmem:[#allocation5 + $0x6a0] sm:$0xff]
    %v3691 = vld [vmem:[#allocation5 + $0x6a8] sm:$0xff]
    %v3692 = vld [vmem:[#allocation5 + $0x6b0] sm:$0xff]
    %v3693 = vld [vmem:[#allocation5 + $0x6b8] sm:$0xff]
    %v3694 = vld [vmem:[#allocation5 + $0x6c0] sm:$0xff]
    %v3695 = vld [vmem:[#allocation5 + $0x6c8] sm:$0xff]
    %v3696 = vld [vmem:[#allocation5 + $0x6d0] sm:$0xff]
    %v3697 = vld [vmem:[#allocation5 + $0x6d8] sm:$0xff]
    %v3698 = vld [vmem:[#allocation5 + $0x6e0] sm:$0xff]
    %v3699 = vld [vmem:[#allocation5 + $0x6e8] sm:$0xff]
    %v3700 = vld [vmem:[#allocation5 + $0x6f0] sm:$0xff]
    %v3701 = vld [vmem:[#allocation5 + $0x6f8] sm:$0xff]
    %v3702 = vld [vmem:[#allocation5 + $0x700] sm:$0xff]
    %v3703 = vld [vmem:[#allocation5 + $0x708] sm:$0xff]
    %v3704 = vld [vmem:[#allocation5 + $0x710] sm:$0xff]
    %v3705 = vld [vmem:[#allocation5 + $0x718] sm:$0xff]
    %v3706 = vld [vmem:[#allocation5 + $0x720] sm:$0xff]
    %v3707 = vld [vmem:[#allocation5 + $0x728] sm:$0xff]
    %v3708 = vld [vmem:[#allocation5 + $0x730] sm:$0xff]
    %v3709 = vld [vmem:[#allocation5 + $0x738] sm:$0xff]
    %v3710 = vld [vmem:[#allocation5 + $0x740] sm:$0xff]
    %v3711 = vld [vmem:[#allocation5 + $0x748] sm:$0xff]
    %v3712 = vld [vmem:[#allocation5 + $0x750] sm:$0xff]
    %v3713 = vld [vmem:[#allocation5 + $0x758] sm:$0xff]
    %v3714 = vld [vmem:[#allocation5 + $0x760] sm:$0xff]
    %v3715 = vld [vmem:[#allocation5 + $0x768] sm:$0xff]
    %v3716 = vld [vmem:[#allocation5 + $0x770] sm:$0xff]
    %v3717 = vld [vmem:[#allocation5 + $0x778] sm:$0xff]
    %v3718 = vld [vmem:[#allocation5 + $0x780] sm:$0xff]
    %v3719 = vld [vmem:[#allocation5 + $0x788] sm:$0xff]
    %v3720 = vld [vmem:[#allocation5 + $0x790] sm:$0xff]
    %v3721 = vld [vmem:[%s1] sm:$0xff]
    %v3722 = vld [vmem:[%s1 + $0x8] sm:$0xff]
    %v3723 = vld [vmem:[%s1 + $0x10] sm:$0xff]
    %v3724 = vld [vmem:[%s1 + $0x18] sm:$0xff]
    %v3725 = vld [vmem:[%s1 + $0x20] sm:$0xff]
    %v3726 = vld [vmem:[%s1 + $0x28] sm:$0xff]
    %v3727 = vld [vmem:[%s1 + $0x30] sm:$0xff]
    %v3728 = vld [vmem:[%s1 + $0x38] sm:$0xff]
    %v3729 = vld [vmem:[%s1 + $0x40] sm:$0xff]
    %v3730 = vld [vmem:[%s1 + $0x48] sm:$0xff]
    %v3731 = vld [vmem:[%s1 + $0x50] sm:$0xff]
    %v3732 = vld [vmem:[%s1 + $0x58] sm:$0xff]
    %v3733 = vld [vmem:[%s1 + $0x60] sm:$0xff]
    %v3734 = vld [vmem:[%s1 + $0x68] sm:$0xff]
    %v3735 = vld [vmem:[%s1 + $0x70] sm:$0xff]
    %v3736 = vld [vmem:[%s1 + $0x78] sm:$0xff]
    %v3737 = vld [vmem:[%s1 + $0x80] sm:$0xff]
    %v3738 = vld [vmem:[%s1 + $0x88] sm:$0xff]
    %v3739 = vld [vmem:[%s1 + $0x90] sm:$0xff]
    %v3740 = vld [vmem:[%s1 + $0x98] sm:$0xff]
    %v3741 = vld [vmem:[%s1 + $0xa0] sm:$0xff]
    %v3742 = vld [vmem:[%s1 + $0xa8] sm:$0xff]
    %v3743 = vld [vmem:[%s1 + $0xb0] sm:$0xff]
    %v3744 = vld [vmem:[%s1 + $0xb8] sm:$0xff]
    %v3745 = vld [vmem:[%s1 + $0xc0] sm:$0xff]
    %v3746 = vld [vmem:[%s1 + $0xc8] sm:$0xff]
    %v3747 = vld [vmem:[%s1 + $0xd0] sm:$0xff]
    %v3748 = vld [vmem:[%s1 + $0xd8] sm:$0xff]
    %v3749 = vld [vmem:[%s1 + $0xe0] sm:$0xff]
    %v3750 = vld [vmem:[%s1 + $0xe8] sm:$0xff]
    %v3751 = vld [vmem:[%s1 + $0xf0] sm:$0xff]
    %v3752 = vld [vmem:[%s1 + $0xf8] sm:$0xff]
    %v3753 = vld [vmem:[%s1 + $0x100] sm:$0xff]
    %v3754 = vld [vmem:[%s1 + $0x108] sm:$0xff]
    %v3755 = vld [vmem:[%s1 + $0x110] sm:$0xff]
    %v3756 = vld [vmem:[%s1 + $0x118] sm:$0xff]
    %v3758 = vsel %vm27, %v3480, 0
    %v3761 = vsel %vm27, %v3483, 0
    %v3764 = vsel %vm27, %v3486, 0
    %v3767 = vsel %vm27, %v3489, 0
    %v3770 = vsel %vm27, %v3492, 0
    %v3773 = vsel %vm27, %v3495, 0
    %v3776 = vsel %vm27, %v3498, 0
    %v3779 = vsel %vm27, %v3501, 0
    %v3782 = vsel %vm27, %v3504, 0
    %v3785 = vsel %vm27, %v3507, 0
    %v3788 = vsel %vm27, %v3510, 0
    %v3791 = vsel %vm27, %v3513, 0
    %v3794 = vsel %vm27, %v3516, 0
    %v3797 = vsel %vm27, %v3519, 0
    %v3800 = vsel %vm27, %v3522, 0
    %v3803 = vsel %vm27, %v3525, 0
    %v3806 = vsel %vm27, %v3528, 0
    %v3809 = vsel %vm27, %v3531, 0
    %v3812 = vsel %vm27, %v3534, 0
    %v3815 = vsel %vm27, %v3537, 0
    %v3818 = vsel %vm27, %v3540, 0
    %v3821 = vsel %vm27, %v3543, 0
    %v3824 = vsel %vm27, %v3546, 0
    %v3827 = vsel %vm27, %v3549, 0
    %v3830 = vsel %vm27, %v3552, 0
    %v3833 = vsel %vm27, %v3555, 0
    %v3836 = vsel %vm27, %v3558, 0
    %v3839 = vsel %vm27, %v3561, 0
    %v3842 = vsel %vm27, %v3564, 0
    %v3845 = vsel %vm27, %v3567, 0
    %v3848 = vsel %vm27, %v3570, 0
    %v3851 = vsel %vm27, %v3573, 0
    %v3854 = vsel %vm27, %v3576, 0
    %v3857 = vsel %vm27, %v3579, 0
    %v3860 = vsel %vm27, %v3582, 0
    %v3863 = vsel %vm27, %v3585, 0
    %v3866 = vsel %vm27, %v3588, 0
    %v3869 = vsel %vm27, %v3591, 0
    %v3872 = vsel %vm27, %v3594, 0
    %v3875 = vsel %vm27, %v3597, 0
    %v3878 = vsel %vm27, %v3600, 0
    %v3881 = vsel %vm27, %v3603, 0
    %v3884 = vsel %vm27, %v3606, 0
    %v3887 = vsel %vm27, %v3609, 0
    %v3890 = vsel %vm27, %v3612, 0
    %v3893 = vsel %vm27, %v3615, 0
    %v3896 = vsel %vm27, %v3618, 0
    %v3899 = vsel %vm27, %v3621, 0
    %v3902 = vsel %vm27, %v3624, 0
    %v3905 = vsel %vm27, %v3627, 0
    %v3908 = vsel %vm27, %v3630, 0
    %v3911 = vsel %vm27, %v3633, 0
    %v3914 = vsel %vm27, %v3636, 0
    %v3917 = vsel %vm27, %v3639, 0
    %v3920 = vsel %vm27, %v3642, 0
    %v3923 = vsel %vm27, %v3645, 0
    %v3926 = vsel %vm27, %v3648, 0
    %v3929 = vsel %vm27, %v3651, 0
    %v3932 = vsel %vm27, %v3654, 0
    %v3935 = vsel %vm27, %v3657, 0
    %v3938 = vsel %vm27, %v3660, 0
    %v3941 = vsel %vm27, %v3663, 0
    %v3944 = vsel %vm27, %v3666, 0
    %v3947 = vsel %vm27, %v3669, 0
    %v3950 = vsel %vm27, %v3672, 0
    %v3953 = vsel %vm27, %v3675, 0
    %v3956 = vsel %vm27, %v3678, 0
    %v3959 = vsel %vm27, %v3681, 0
    %v3962 = vsel %vm27, %v3684, 0
    %v3965 = vsel %vm27, %v3687, 0
    %v3968 = vsel %vm27, %v3690, 0
    %v3971 = vsel %vm27, %v3693, 0
    %v3974 = vsel %vm27, %v3696, 0
    %v3977 = vsel %vm27, %v3699, 0
    %v3980 = vsel %vm27, %v3702, 0
    %v3983 = vsel %vm27, %v3705, 0
    %v3986 = vsel %vm27, %v3708, 0
    %v3989 = vsel %vm27, %v3711, 0
    %v3992 = vsel %vm27, %v3714, 0
    %v3995 = vsel %vm27, %v3717, 0
    %v3998 = vsel %vm27, %v3720, 0
    %4000 = vmatprep.subr.mxu0 0.0
    %4001 = vmatpush1.msra.mxu0 %v3736
    %4002 = vmatprep.subr.mxu0 0.0
    %4003 = vmatpush1.msra.mxu0 %v3735
    %4004 = vmatprep.subr.mxu0 0.0
    %4005 = vmatpush1.msra.mxu0 %v3734
    %4006 = vmatprep.subr.mxu0 0.0
    %4007 = vmatpush1.msra.mxu0 %v3733
    %4008 = vmatprep.subr.mxu0 0.0
    %4009 = vmatpush1.msra.mxu0 %v3732
    %4010 = vmatprep.subr.mxu0 0.0
    %4011 = vmatpush1.msra.mxu0 %v3731
    %4012 = vmatprep.subr.mxu0 0.0
    %4013 = vmatpush1.msra.mxu0 %v3730
    %4014 = vmatprep.subr.mxu0 0.0
    %4015 = vmatpush1.msra.mxu0 %v3729
    %4016 = vmatprep.subr.mxu0 0.0
    %4017 = vmatpush1.msra.mxu0 %v3728
    %4018 = vmatprep.subr.mxu0 0.0
    %4019 = vmatpush1.msra.mxu0 %v3727
    %4020 = vmatprep.subr.mxu0 0.0
    %4021 = vmatpush1.msra.mxu0 %v3726
    %4022 = vmatprep.subr.mxu0 0.0
    %4023 = vmatpush1.msra.mxu0 %v3725
    %4024 = vmatprep.subr.mxu0 0.0
    %4025 = vmatpush1.msra.mxu0 %v3724
    %4026 = vmatprep.subr.mxu0 0.0
    %4027 = vmatpush1.msra.mxu0 %v3723
    %4028 = vmatprep.subr.mxu0 0.0
    %4029 = vmatpush1.msra.mxu0 %v3722
    %4030 = vmatprep.subr.mxu0 0.0
    %4031 = vmatpush1.msra.mxu0 %v3721
    %4032 = vmatprep.subr.mxu0 0.0
    %4033 = vmatpush2.msra.mxu0 %v3752
    %4034 = vmatprep.subr.mxu0 0.0
    %4035 = vmatpush2.msra.mxu0 %v3751
    %4036 = vmatprep.subr.mxu0 0.0
    %4037 = vmatpush2.msra.mxu0 %v3750
    %4038 = vmatprep.subr.mxu0 0.0
    %4039 = vmatpush2.msra.mxu0 %v3749
    %4040 = vmatprep.subr.mxu0 0.0
    %4041 = vmatpush2.msra.mxu0 %v3748
    %4042 = vmatprep.subr.mxu0 0.0
    %4043 = vmatpush2.msra.mxu0 %v3747
    %4044 = vmatprep.subr.mxu0 0.0
    %4045 = vmatpush2.msra.mxu0 %v3746
    %4046 = vmatprep.subr.mxu0 0.0
    %4047 = vmatpush2.msra.mxu0 %v3745
    %4048 = vmatprep.subr.mxu0 0.0
    %4049 = vmatpush2.msra.mxu0 %v3744
    %4050 = vmatprep.subr.mxu0 0.0
    %4051 = vmatpush2.msra.mxu0 %v3743
    %4052 = vmatprep.subr.mxu0 0.0
    %4053 = vmatpush2.msra.mxu0 %v3742
    %4054 = vmatprep.subr.mxu0 0.0
    %4055 = vmatpush2.msra.mxu0 %v3741
    %4056 = vmatprep.subr.mxu0 0.0
    %4057 = vmatpush2.msra.mxu0 %v3740
    %4058 = vmatprep.subr.mxu0 0.0
    %4059 = vmatpush2.msra.mxu0 %v3739
    %4060 = vmatprep.subr.mxu0 0.0
    %4061 = vmatpush2.msra.mxu0 %v3738
    %4062 = vmatprep.subr.mxu0 0.0
    %4063 = vmatpush2.msra.mxu0 %v3737
    %4064 = vmatprep.mubr.f32.mxu0 %v3479
    %4065 = vmatmul.mubr.f32.gmra.mxu0 %v3478
    %v4066 = vpop.f32.mrf.mxu0
    %v4067 = vadd.f32 0.0, %v4066
    %v4068 = vpop.f32.mrf.mxu0
    %4069 = vmatprep.mubr.f32.mxu0 %v3482
    %4070 = vmatmul.mubr.f32.gmra.mxu0 %v3481
    %v4071 = vpop.f32.mrf.mxu0
    %v4072 = vadd.f32 0.0, %v4071
    %v4073 = vpop.f32.mrf.mxu0
    %4074 = vmatprep.mubr.f32.mxu0 %v3485
    %4075 = vmatmul.mubr.f32.gmra.mxu0 %v3484
    %v4076 = vpop.f32.mrf.mxu0
    %v4077 = vadd.f32 0.0, %v4076
    %v4078 = vpop.f32.mrf.mxu0
    %4079 = vmatprep.mubr.f32.mxu0 %v3488
    %4080 = vmatmul.mubr.f32.gmra.mxu0 %v3487
    %v4081 = vpop.f32.mrf.mxu0
    %v4082 = vadd.f32 0.0, %v4081
    %v4083 = vpop.f32.mrf.mxu0
    %4084 = vmatprep.mubr.f32.mxu0 %v3491
    %4085 = vmatmul.mubr.f32.gmra.mxu0 %v3490
    %v4086 = vpop.f32.mrf.mxu0
    %v4087 = vadd.f32 0.0, %v4086
    %v4088 = vpop.f32.mrf.mxu0
    %4089 = vmatprep.mubr.f32.mxu0 %v3494
    %4090 = vmatmul.mubr.f32.gmra.mxu0 %v3493
    %v4091 = vpop.f32.mrf.mxu0
    %v4092 = vadd.f32 0.0, %v4091
    %v4093 = vpop.f32.mrf.mxu0
    %4094 = vmatprep.mubr.f32.mxu0 %v3497
    %4095 = vmatmul.mubr.f32.gmra.mxu0 %v3496
    %v4096 = vpop.f32.mrf.mxu0
    %v4097 = vadd.f32 0.0, %v4096
    %v4098 = vpop.f32.mrf.mxu0
    %4099 = vmatprep.mubr.f32.mxu0 %v3500
    %4100 = vmatmul.mubr.f32.gmra.mxu0 %v3499
    %v4101 = vpop.f32.mrf.mxu0
    %v4102 = vadd.f32 0.0, %v4101
    %v4103 = vpop.f32.mrf.mxu0
    %4104 = vmatprep.mubr.f32.mxu0 %v3503
    %4105 = vmatmul.mubr.f32.gmra.mxu0 %v3502
    %v4106 = vpop.f32.mrf.mxu0
    %v4107 = vadd.f32 0.0, %v4106
    %v4108 = vpop.f32.mrf.mxu0
    %4109 = vmatprep.mubr.f32.mxu0 %v3506
    %4110 = vmatmul.mubr.f32.gmra.mxu0 %v3505
    %v4111 = vpop.f32.mrf.mxu0
    %v4112 = vadd.f32 0.0, %v4111
    %v4113 = vpop.f32.mrf.mxu0
    %4114 = vmatprep.mubr.f32.mxu0 %v3509
    %4115 = vmatmul.mubr.f32.gmra.mxu0 %v3508
    %v4116 = vpop.f32.mrf.mxu0
    %v4117 = vadd.f32 0.0, %v4116
    %v4118 = vpop.f32.mrf.mxu0
    %4119 = vmatprep.mubr.f32.mxu0 %v3512
    %4120 = vmatmul.mubr.f32.gmra.mxu0 %v3511
    %v4121 = vpop.f32.mrf.mxu0
    %v4122 = vadd.f32 0.0, %v4121
    %v4123 = vpop.f32.mrf.mxu0
    %4124 = vmatprep.mubr.f32.mxu0 %v3515
    %4125 = vmatmul.mubr.f32.gmra.mxu0 %v3514
    %v4126 = vpop.f32.mrf.mxu0
    %v4127 = vadd.f32 0.0, %v4126
    %v4128 = vpop.f32.mrf.mxu0
    %4129 = vmatprep.mubr.f32.mxu0 %v3518
    %4130 = vmatmul.mubr.f32.gmra.mxu0 %v3517
    %v4131 = vpop.f32.mrf.mxu0
    %v4132 = vadd.f32 0.0, %v4131
    %v4133 = vpop.f32.mrf.mxu0
    %4134 = vmatprep.mubr.f32.mxu0 %v3521
    %4135 = vmatmul.mubr.f32.gmra.mxu0 %v3520
    %v4136 = vpop.f32.mrf.mxu0
    %v4137 = vadd.f32 0.0, %v4136
    %v4138 = vpop.f32.mrf.mxu0
    %4139 = vmatprep.mubr.f32.mxu0 %v3524
    %4140 = vmatmul.mubr.f32.gmra.mxu0 %v3523
    %v4141 = vpop.f32.mrf.mxu0
    %v4142 = vadd.f32 0.0, %v4141
    %v4143 = vpop.f32.mrf.mxu0
    %4144 = vmatprep.mubr.f32.mxu0 %v3527
    %4145 = vmatmul.mubr.f32.gmra.mxu0 %v3526
    %v4146 = vpop.f32.mrf.mxu0
    %v4147 = vadd.f32 0.0, %v4146
    %v4148 = vpop.f32.mrf.mxu0
    %4149 = vmatprep.mubr.f32.mxu0 %v3530
    %4150 = vmatmul.mubr.f32.gmra.mxu0 %v3529
    %v4151 = vpop.f32.mrf.mxu0
    %v4152 = vadd.f32 0.0, %v4151
    %v4153 = vpop.f32.mrf.mxu0
    %4154 = vmatprep.mubr.f32.mxu0 %v3533
    %4155 = vmatmul.mubr.f32.gmra.mxu0 %v3532
    %v4156 = vpop.f32.mrf.mxu0
    %v4157 = vadd.f32 0.0, %v4156
    %v4158 = vpop.f32.mrf.mxu0
    %4159 = vmatprep.mubr.f32.mxu0 %v3536
    %4160 = vmatmul.mubr.f32.gmra.mxu0 %v3535
    %v4161 = vpop.f32.mrf.mxu0
    %v4162 = vadd.f32 0.0, %v4161
    %v4163 = vpop.f32.mrf.mxu0
    %4164 = vmatprep.mubr.f32.mxu0 %v3539
    %4165 = vmatmul.mubr.f32.gmra.mxu0 %v3538
    %v4166 = vpop.f32.mrf.mxu0
    %v4167 = vadd.f32 0.0, %v4166
    %v4168 = vpop.f32.mrf.mxu0
    %4169 = vmatprep.mubr.f32.mxu0 %v3542
    %4170 = vmatmul.mubr.f32.gmra.mxu0 %v3541
    %v4171 = vpop.f32.mrf.mxu0
    %v4172 = vadd.f32 0.0, %v4171
    %v4173 = vpop.f32.mrf.mxu0
    %4174 = vmatprep.mubr.f32.mxu0 %v3545
    %4175 = vmatmul.mubr.f32.gmra.mxu0 %v3544
    %v4176 = vpop.f32.mrf.mxu0
    %v4177 = vadd.f32 0.0, %v4176
    %v4178 = vpop.f32.mrf.mxu0
    %4179 = vmatprep.mubr.f32.mxu0 %v3548
    %4180 = vmatmul.mubr.f32.gmra.mxu0 %v3547
    %v4181 = vpop.f32.mrf.mxu0
    %v4182 = vadd.f32 0.0, %v4181
    %v4183 = vpop.f32.mrf.mxu0
    %4184 = vmatprep.mubr.f32.mxu0 %v3551
    %4185 = vmatmul.mubr.f32.gmra.mxu0 %v3550
    %v4186 = vpop.f32.mrf.mxu0
    %v4187 = vadd.f32 0.0, %v4186
    %v4188 = vpop.f32.mrf.mxu0
    %4189 = vmatprep.mubr.f32.mxu0 %v3554
    %4190 = vmatmul.mubr.f32.gmra.mxu0 %v3553
    %v4191 = vpop.f32.mrf.mxu0
    %v4192 = vadd.f32 0.0, %v4191
    %v4193 = vpop.f32.mrf.mxu0
    %4194 = vmatprep.mubr.f32.mxu0 %v3557
    %4195 = vmatmul.mubr.f32.gmra.mxu0 %v3556
    %v4196 = vpop.f32.mrf.mxu0
    %v4197 = vadd.f32 0.0, %v4196
    %v4198 = vpop.f32.mrf.mxu0
    %4199 = vmatprep.mubr.f32.mxu0 %v3560
    %4200 = vmatmul.mubr.f32.gmra.mxu0 %v3559
    %v4201 = vpop.f32.mrf.mxu0
    %v4202 = vadd.f32 0.0, %v4201
    %v4203 = vpop.f32.mrf.mxu0
    %4204 = vmatprep.mubr.f32.mxu0 %v3563
    %4205 = vmatmul.mubr.f32.gmra.mxu0 %v3562
    %v4206 = vpop.f32.mrf.mxu0
    %v4207 = vadd.f32 0.0, %v4206
    %v4208 = vpop.f32.mrf.mxu0
    %4209 = vmatprep.mubr.f32.mxu0 %v3566
    %4210 = vmatmul.mubr.f32.gmra.mxu0 %v3565
    %v4211 = vpop.f32.mrf.mxu0
    %v4212 = vadd.f32 0.0, %v4211
    %v4213 = vpop.f32.mrf.mxu0
    %4214 = vmatprep.mubr.f32.mxu0 %v3569
    %4215 = vmatmul.mubr.f32.gmra.mxu0 %v3568
    %v4216 = vpop.f32.mrf.mxu0
    %v4217 = vadd.f32 0.0, %v4216
    %v4218 = vpop.f32.mrf.mxu0
    %4219 = vmatprep.mubr.f32.mxu0 %v3572
    %4220 = vmatmul.mubr.f32.gmra.mxu0 %v3571
    %v4221 = vpop.f32.mrf.mxu0
    %v4222 = vadd.f32 0.0, %v4221
    %v4223 = vpop.f32.mrf.mxu0
    %4224 = vmatprep.mubr.f32.mxu0 %v3575
    %4225 = vmatmul.mubr.f32.gmra.mxu0 %v3574
    %v4226 = vpop.f32.mrf.mxu0
    %v4227 = vadd.f32 0.0, %v4226
    %v4228 = vpop.f32.mrf.mxu0
    %4229 = vmatprep.mubr.f32.mxu0 %v3578
    %4230 = vmatmul.mubr.f32.gmra.mxu0 %v3577
    %v4231 = vpop.f32.mrf.mxu0
    %v4232 = vadd.f32 0.0, %v4231
    %v4233 = vpop.f32.mrf.mxu0
    %4234 = vmatprep.mubr.f32.mxu0 %v3581
    %4235 = vmatmul.mubr.f32.gmra.mxu0 %v3580
    %v4236 = vpop.f32.mrf.mxu0
    %v4237 = vadd.f32 0.0, %v4236
    %v4238 = vpop.f32.mrf.mxu0
    %4239 = vmatprep.mubr.f32.mxu0 %v3584
    %4240 = vmatmul.mubr.f32.gmra.mxu0 %v3583
    %v4241 = vpop.f32.mrf.mxu0
    %v4242 = vadd.f32 0.0, %v4241
    %v4243 = vpop.f32.mrf.mxu0
    %4244 = vmatprep.mubr.f32.mxu0 %v3587
    %4245 = vmatmul.mubr.f32.gmra.mxu0 %v3586
    %v4246 = vpop.f32.mrf.mxu0
    %v4247 = vadd.f32 0.0, %v4246
    %v4248 = vpop.f32.mrf.mxu0
    %4249 = vmatprep.mubr.f32.mxu0 %v3590
    %4250 = vmatmul.mubr.f32.gmra.mxu0 %v3589
    %v4251 = vpop.f32.mrf.mxu0
    %v4252 = vadd.f32 0.0, %v4251
    %v4253 = vpop.f32.mrf.mxu0
    %4254 = vmatprep.mubr.f32.mxu0 %v3593
    %4255 = vmatmul.mubr.f32.gmra.mxu0 %v3592
    %v4256 = vpop.f32.mrf.mxu0
    %v4257 = vadd.f32 0.0, %v4256
    %v4258 = vpop.f32.mrf.mxu0
    %4259 = vmatprep.mubr.f32.mxu0 %v3596
    %4260 = vmatmul.mubr.f32.gmra.mxu0 %v3595
    %v4261 = vpop.f32.mrf.mxu0
    %v4262 = vadd.f32 0.0, %v4261
    %v4263 = vpop.f32.mrf.mxu0
    %4264 = vmatprep.mubr.f32.mxu0 %v3599
    %4265 = vmatmul.mubr.f32.gmra.mxu0 %v3598
    %v4266 = vpop.f32.mrf.mxu0
    %v4267 = vadd.f32 0.0, %v4266
    %v4268 = vpop.f32.mrf.mxu0
    %4269 = vmatprep.mubr.f32.mxu0 %v3602
    %4270 = vmatmul.mubr.f32.gmra.mxu0 %v3601
    %v4271 = vpop.f32.mrf.mxu0
    %v4272 = vadd.f32 0.0, %v4271
    %v4273 = vpop.f32.mrf.mxu0
    %4274 = vmatprep.mubr.f32.mxu0 %v3605
    %4275 = vmatmul.mubr.f32.gmra.mxu0 %v3604
    %v4276 = vpop.f32.mrf.mxu0
    %v4277 = vadd.f32 0.0, %v4276
    %v4278 = vpop.f32.mrf.mxu0
    %4279 = vmatprep.mubr.f32.mxu0 %v3608
    %4280 = vmatmul.mubr.f32.gmra.mxu0 %v3607
    %v4281 = vpop.f32.mrf.mxu0
    %v4282 = vadd.f32 0.0, %v4281
    %v4283 = vpop.f32.mrf.mxu0
    %4284 = vmatprep.mubr.f32.mxu0 %v3611
    %4285 = vmatmul.mubr.f32.gmra.mxu0 %v3610
    %v4286 = vpop.f32.mrf.mxu0
    %v4287 = vadd.f32 0.0, %v4286
    %v4288 = vpop.f32.mrf.mxu0
    %4289 = vmatprep.mubr.f32.mxu0 %v3614
    %4290 = vmatmul.mubr.f32.gmra.mxu0 %v3613
    %v4291 = vpop.f32.mrf.mxu0
    %v4292 = vadd.f32 0.0, %v4291
    %v4293 = vpop.f32.mrf.mxu0
    %4294 = vmatprep.mubr.f32.mxu0 %v3617
    %4295 = vmatmul.mubr.f32.gmra.mxu0 %v3616
    %v4296 = vpop.f32.mrf.mxu0
    %v4297 = vadd.f32 0.0, %v4296
    %v4298 = vpop.f32.mrf.mxu0
    %4299 = vmatprep.mubr.f32.mxu0 %v3620
    %4300 = vmatmul.mubr.f32.gmra.mxu0 %v3619
    %v4301 = vpop.f32.mrf.mxu0
    %v4302 = vadd.f32 0.0, %v4301
    %v4303 = vpop.f32.mrf.mxu0
    %4304 = vmatprep.mubr.f32.mxu0 %v3623
    %4305 = vmatmul.mubr.f32.gmra.mxu0 %v3622
    %v4306 = vpop.f32.mrf.mxu0
    %v4307 = vadd.f32 0.0, %v4306
    %v4308 = vpop.f32.mrf.mxu0
    %4309 = vmatprep.mubr.f32.mxu0 %v3626
    %4310 = vmatmul.mubr.f32.gmra.mxu0 %v3625
    %v4311 = vpop.f32.mrf.mxu0
    %v4312 = vadd.f32 0.0, %v4311
    %v4313 = vpop.f32.mrf.mxu0
    %4314 = vmatprep.mubr.f32.mxu0 %v3629
    %4315 = vmatmul.mubr.f32.gmra.mxu0 %v3628
    %v4316 = vpop.f32.mrf.mxu0
    %v4317 = vadd.f32 0.0, %v4316
    %v4318 = vpop.f32.mrf.mxu0
    %4319 = vmatprep.mubr.f32.mxu0 %v3632
    %4320 = vmatmul.mubr.f32.gmra.mxu0 %v3631
    %v4321 = vpop.f32.mrf.mxu0
    %v4322 = vadd.f32 0.0, %v4321
    %v4323 = vpop.f32.mrf.mxu0
    %4324 = vmatprep.mubr.f32.mxu0 %v3635
    %4325 = vmatmul.mubr.f32.gmra.mxu0 %v3634
    %v4326 = vpop.f32.mrf.mxu0
    %v4327 = vadd.f32 0.0, %v4326
    %v4328 = vpop.f32.mrf.mxu0
    %4329 = vmatprep.mubr.f32.mxu0 %v3638
    %4330 = vmatmul.mubr.f32.gmra.mxu0 %v3637
    %v4331 = vpop.f32.mrf.mxu0
    %v4332 = vadd.f32 0.0, %v4331
    %v4333 = vpop.f32.mrf.mxu0
    %4334 = vmatprep.mubr.f32.mxu0 %v3641
    %4335 = vmatmul.mubr.f32.gmra.mxu0 %v3640
    %v4336 = vpop.f32.mrf.mxu0
    %v4337 = vadd.f32 0.0, %v4336
    %v4338 = vpop.f32.mrf.mxu0
    %4339 = vmatprep.mubr.f32.mxu0 %v3644
    %4340 = vmatmul.mubr.f32.gmra.mxu0 %v3643
    %v4341 = vpop.f32.mrf.mxu0
    %v4342 = vadd.f32 0.0, %v4341
    %v4343 = vpop.f32.mrf.mxu0
    %4344 = vmatprep.mubr.f32.mxu0 %v3647
    %4345 = vmatmul.mubr.f32.gmra.mxu0 %v3646
    %v4346 = vpop.f32.mrf.mxu0
    %v4347 = vadd.f32 0.0, %v4346
    %v4348 = vpop.f32.mrf.mxu0
    %4349 = vmatprep.mubr.f32.mxu0 %v3650
    %4350 = vmatmul.mubr.f32.gmra.mxu0 %v3649
    %v4351 = vpop.f32.mrf.mxu0
    %v4352 = vadd.f32 0.0, %v4351
    %v4353 = vpop.f32.mrf.mxu0
    %4354 = vmatprep.mubr.f32.mxu0 %v3653
    %4355 = vmatmul.mubr.f32.gmra.mxu0 %v3652
    %v4356 = vpop.f32.mrf.mxu0
    %v4357 = vadd.f32 0.0, %v4356
    %v4358 = vpop.f32.mrf.mxu0
    %4359 = vmatprep.mubr.f32.mxu0 %v3656
    %4360 = vmatmul.mubr.f32.gmra.mxu0 %v3655
    %v4361 = vpop.f32.mrf.mxu0
    %v4362 = vadd.f32 0.0, %v4361
    %v4363 = vpop.f32.mrf.mxu0
    %4364 = vmatprep.mubr.f32.mxu0 %v3659
    %4365 = vmatmul.mubr.f32.gmra.mxu0 %v3658
    %v4366 = vpop.f32.mrf.mxu0
    %v4367 = vadd.f32 0.0, %v4366
    %v4368 = vpop.f32.mrf.mxu0
    %4369 = vmatprep.mubr.f32.mxu0 %v3662
    %4370 = vmatmul.mubr.f32.gmra.mxu0 %v3661
    %v4371 = vpop.f32.mrf.mxu0
    %v4372 = vadd.f32 0.0, %v4371
    %v4373 = vpop.f32.mrf.mxu0
    %4374 = vmatprep.mubr.f32.mxu0 %v3665
    %4375 = vmatmul.mubr.f32.gmra.mxu0 %v3664
    %v4376 = vpop.f32.mrf.mxu0
    %v4377 = vadd.f32 0.0, %v4376
    %v4378 = vpop.f32.mrf.mxu0
    %4379 = vmatprep.mubr.f32.mxu0 %v3668
    %4380 = vmatmul.mubr.f32.gmra.mxu0 %v3667
    %v4381 = vpop.f32.mrf.mxu0
    %v4382 = vadd.f32 0.0, %v4381
    %v4383 = vpop.f32.mrf.mxu0
    %4384 = vmatprep.mubr.f32.mxu0 %v3671
    %4385 = vmatmul.mubr.f32.gmra.mxu0 %v3670
    %v4386 = vpop.f32.mrf.mxu0
    %v4387 = vadd.f32 0.0, %v4386
    %v4388 = vpop.f32.mrf.mxu0
    %4389 = vmatprep.mubr.f32.mxu0 %v3674
    %4390 = vmatmul.mubr.f32.gmra.mxu0 %v3673
    %v4391 = vpop.f32.mrf.mxu0
    %v4392 = vadd.f32 0.0, %v4391
    %v4393 = vpop.f32.mrf.mxu0
    %4394 = vmatprep.mubr.f32.mxu0 %v3677
    %4395 = vmatmul.mubr.f32.gmra.mxu0 %v3676
    %v4396 = vpop.f32.mrf.mxu0
    %v4397 = vadd.f32 0.0, %v4396
    %v4398 = vpop.f32.mrf.mxu0
    %4399 = vmatprep.mubr.f32.mxu0 %v3680
    %4400 = vmatmul.mubr.f32.gmra.mxu0 %v3679
    %v4401 = vpop.f32.mrf.mxu0
    %v4402 = vadd.f32 0.0, %v4401
    %v4403 = vpop.f32.mrf.mxu0
    %4404 = vmatprep.mubr.f32.mxu0 %v3683
    %4405 = vmatmul.mubr.f32.gmra.mxu0 %v3682
    %v4406 = vpop.f32.mrf.mxu0
    %v4407 = vadd.f32 0.0, %v4406
    %v4408 = vpop.f32.mrf.mxu0
    %4409 = vmatprep.mubr.f32.mxu0 %v3686
    %4410 = vmatmul.mubr.f32.gmra.mxu0 %v3685
    %v4411 = vpop.f32.mrf.mxu0
    %v4412 = vadd.f32 0.0, %v4411
    %v4413 = vpop.f32.mrf.mxu0
    %4414 = vmatprep.mubr.f32.mxu0 %v3689
    %4415 = vmatmul.mubr.f32.gmra.mxu0 %v3688
    %v4416 = vpop.f32.mrf.mxu0
    %v4417 = vadd.f32 0.0, %v4416
    %v4418 = vpop.f32.mrf.mxu0
    %4419 = vmatprep.mubr.f32.mxu0 %v3692
    %4420 = vmatmul.mubr.f32.gmra.mxu0 %v3691
    %v4421 = vpop.f32.mrf.mxu0
    %v4422 = vadd.f32 0.0, %v4421
    %v4423 = vpop.f32.mrf.mxu0
    %4424 = vmatprep.mubr.f32.mxu0 %v3695
    %4425 = vmatmul.mubr.f32.gmra.mxu0 %v3694
    %v4426 = vpop.f32.mrf.mxu0
    %v4427 = vadd.f32 0.0, %v4426
    %v4428 = vpop.f32.mrf.mxu0
    %4429 = vmatprep.mubr.f32.mxu0 %v3698
    %4430 = vmatmul.mubr.f32.gmra.mxu0 %v3697
    %v4431 = vpop.f32.mrf.mxu0
    %v4432 = vadd.f32 0.0, %v4431
    %v4433 = vpop.f32.mrf.mxu0
    %4434 = vmatprep.mubr.f32.mxu0 %v3701
    %4435 = vmatmul.mubr.f32.gmra.mxu0 %v3700
    %v4436 = vpop.f32.mrf.mxu0
    %v4437 = vadd.f32 0.0, %v4436
    %v4438 = vpop.f32.mrf.mxu0
    %4439 = vmatprep.mubr.f32.mxu0 %v3704
    %4440 = vmatmul.mubr.f32.gmra.mxu0 %v3703
    %v4441 = vpop.f32.mrf.mxu0
    %v4442 = vadd.f32 0.0, %v4441
    %v4443 = vpop.f32.mrf.mxu0
    %4444 = vmatprep.mubr.f32.mxu0 %v3707
    %4445 = vmatmul.mubr.f32.gmra.mxu0 %v3706
    %v4446 = vpop.f32.mrf.mxu0
    %v4447 = vadd.f32 0.0, %v4446
    %v4448 = vpop.f32.mrf.mxu0
    %4449 = vmatprep.mubr.f32.mxu0 %v3710
    %4450 = vmatmul.mubr.f32.gmra.mxu0 %v3709
    %v4451 = vpop.f32.mrf.mxu0
    %v4452 = vadd.f32 0.0, %v4451
    %v4453 = vpop.f32.mrf.mxu0
    %4454 = vmatprep.mubr.f32.mxu0 %v3713
    %4455 = vmatmul.mubr.f32.gmra.mxu0 %v3712
    %v4456 = vpop.f32.mrf.mxu0
    %v4457 = vadd.f32 0.0, %v4456
    %v4458 = vpop.f32.mrf.mxu0
    %4459 = vmatprep.mubr.f32.mxu0 %v3716
    %4460 = vmatmul.mubr.f32.gmra.mxu0 %v3715
    %v4461 = vpop.f32.mrf.mxu0
    %v4462 = vadd.f32 0.0, %v4461
    %v4463 = vpop.f32.mrf.mxu0
    %4464 = vmatprep.mubr.f32.mxu0 %v3719
    %4465 = vmatmul.mubr.f32.gmra.mxu0 %v3718
    %v4466 = vpop.f32.mrf.mxu0
    %v4467 = vadd.f32 0.0, %v4466
    %v4468 = vpop.f32.mrf.mxu0
    %4469 = vdwg.mxu0
    %4470 = vmatprep.subr.mxu0 0.0
    %4471 = vmatpush1.msra.mxu0 0.0
    %4472 = vmatprep.subr.mxu0 0.0
    %4473 = vmatpush1.msra.mxu0 0.0
    %4474 = vmatprep.subr.mxu0 0.0
    %4475 = vmatpush1.msra.mxu0 0.0
    %4476 = vmatprep.subr.mxu0 0.0
    %4477 = vmatpush1.msra.mxu0 0.0
    %4478 = vmatprep.subr.mxu0 0.0
    %4479 = vmatpush1.msra.mxu0 0.0
    %4480 = vmatprep.subr.mxu0 0.0
    %4481 = vmatpush1.msra.mxu0 0.0
    %4482 = vmatprep.subr.mxu0 0.0
    %4483 = vmatpush1.msra.mxu0 0.0
    %4484 = vmatprep.subr.mxu0 0.0
    %4485 = vmatpush1.msra.mxu0 0.0
    %4486 = vmatprep.subr.mxu0 0.0
    %4487 = vmatpush1.msra.mxu0 0.0
    %4488 = vmatprep.subr.mxu0 0.0
    %4489 = vmatpush1.msra.mxu0 0.0
    %4490 = vmatprep.subr.mxu0 0.0
    %4491 = vmatpush1.msra.mxu0 0.0
    %4492 = vmatprep.subr.mxu0 0.0
    %4493 = vmatpush1.msra.mxu0 0.0
    %4494 = vmatprep.subr.mxu0 0.0
    %4495 = vmatpush1.msra.mxu0 %v3756
    %4496 = vmatprep.subr.mxu0 0.0
    %4497 = vmatpush1.msra.mxu0 %v3755
    %4498 = vmatprep.subr.mxu0 0.0
    %4499 = vmatpush1.msra.mxu0 %v3754
    %4500 = vmatprep.subr.mxu0 0.0
    %4501 = vmatpush1.msra.mxu0 %v3753
    %4502 = vmatprep.subr.mxu0 0.0
    %4503 = vmatpush2.msra.mxu0 0.0
    %4504 = vmatprep.subr.mxu0 0.0
    %4505 = vmatpush2.msra.mxu0 0.0
    %4506 = vmatprep.subr.mxu0 0.0
    %4507 = vmatpush2.msra.mxu0 0.0
    %4508 = vmatprep.subr.mxu0 0.0
    %4509 = vmatpush2.msra.mxu0 0.0
    %4510 = vmatprep.subr.mxu0 0.0
    %4511 = vmatpush2.msra.mxu0 0.0
    %4512 = vmatprep.subr.mxu0 0.0
    %4513 = vmatpush2.msra.mxu0 0.0
    %4514 = vmatprep.subr.mxu0 0.0
    %4515 = vmatpush2.msra.mxu0 0.0
    %4516 = vmatprep.subr.mxu0 0.0
    %4517 = vmatpush2.msra.mxu0 0.0
    %4518 = vmatprep.subr.mxu0 0.0
    %4519 = vmatpush2.msra.mxu0 0.0
    %4520 = vmatprep.subr.mxu0 0.0
    %4521 = vmatpush2.msra.mxu0 0.0
    %4522 = vmatprep.subr.mxu0 0.0
    %4523 = vmatpush2.msra.mxu0 0.0
    %4524 = vmatprep.subr.mxu0 0.0
    %4525 = vmatpush2.msra.mxu0 0.0
    %4526 = vmatprep.subr.mxu0 0.0
    %4527 = vmatpush2.msra.mxu0 0.0
    %4528 = vmatprep.subr.mxu0 0.0
    %4529 = vmatpush2.msra.mxu0 0.0
    %4530 = vmatprep.subr.mxu0 0.0
    %4531 = vmatpush2.msra.mxu0 0.0
    %4532 = vmatprep.subr.mxu0 0.0
    %4533 = vmatpush2.msra.mxu0 0.0
    %4534 = vmatprep.mubr.f32.mxu0 0.0
    %4535 = vmatmul.mubr.f32.gmra.mxu0 %v3758
    %v4536 = vpop.f32.mrf.mxu0
    %v4537 = vadd.f32 %v4067, %v4536
    %v4538 = vpop.f32.mrf.mxu0
    %4539 = vmatprep.mubr.f32.mxu0 0.0
    %4540 = vmatmul.mubr.f32.gmra.mxu0 %v3761
    %v4541 = vpop.f32.mrf.mxu0
    %v4542 = vadd.f32 %v4072, %v4541
    %v4543 = vpop.f32.mrf.mxu0
    %4544 = vmatprep.mubr.f32.mxu0 0.0
    %4545 = vmatmul.mubr.f32.gmra.mxu0 %v3764
    %v4546 = vpop.f32.mrf.mxu0
    %v4547 = vadd.f32 %v4077, %v4546
    %v4548 = vpop.f32.mrf.mxu0
    %4549 = vmatprep.mubr.f32.mxu0 0.0
    %4550 = vmatmul.mubr.f32.gmra.mxu0 %v3767
    %v4551 = vpop.f32.mrf.mxu0
    %v4552 = vadd.f32 %v4082, %v4551
    %v4553 = vpop.f32.mrf.mxu0
    %4554 = vmatprep.mubr.f32.mxu0 0.0
    %4555 = vmatmul.mubr.f32.gmra.mxu0 %v3770
    %v4556 = vpop.f32.mrf.mxu0
    %v4557 = vadd.f32 %v4087, %v4556
    %v4558 = vpop.f32.mrf.mxu0
    %4559 = vmatprep.mubr.f32.mxu0 0.0
    %4560 = vmatmul.mubr.f32.gmra.mxu0 %v3773
    %v4561 = vpop.f32.mrf.mxu0
    %v4562 = vadd.f32 %v4092, %v4561
    %v4563 = vpop.f32.mrf.mxu0
    %4564 = vmatprep.mubr.f32.mxu0 0.0
    %4565 = vmatmul.mubr.f32.gmra.mxu0 %v3776
    %v4566 = vpop.f32.mrf.mxu0
    %v4567 = vadd.f32 %v4097, %v4566
    %v4568 = vpop.f32.mrf.mxu0
    %4569 = vmatprep.mubr.f32.mxu0 0.0
    %4570 = vmatmul.mubr.f32.gmra.mxu0 %v3779
    %v4571 = vpop.f32.mrf.mxu0
    %v4572 = vadd.f32 %v4102, %v4571
    %v4573 = vpop.f32.mrf.mxu0
    %4574 = vmatprep.mubr.f32.mxu0 0.0
    %4575 = vmatmul.mubr.f32.gmra.mxu0 %v3782
    %v4576 = vpop.f32.mrf.mxu0
    %v4577 = vadd.f32 %v4107, %v4576
    %v4578 = vpop.f32.mrf.mxu0
    %4579 = vmatprep.mubr.f32.mxu0 0.0
    %4580 = vmatmul.mubr.f32.gmra.mxu0 %v3785
    %v4581 = vpop.f32.mrf.mxu0
    %v4582 = vadd.f32 %v4112, %v4581
    %v4583 = vpop.f32.mrf.mxu0
    %4584 = vmatprep.mubr.f32.mxu0 0.0
    %4585 = vmatmul.mubr.f32.gmra.mxu0 %v3788
    %v4586 = vpop.f32.mrf.mxu0
    %v4587 = vadd.f32 %v4117, %v4586
    %v4588 = vpop.f32.mrf.mxu0
    %4589 = vmatprep.mubr.f32.mxu0 0.0
    %4590 = vmatmul.mubr.f32.gmra.mxu0 %v3791
    %v4591 = vpop.f32.mrf.mxu0
    %v4592 = vadd.f32 %v4122, %v4591
    %v4593 = vpop.f32.mrf.mxu0
    %4594 = vmatprep.mubr.f32.mxu0 0.0
    %4595 = vmatmul.mubr.f32.gmra.mxu0 %v3794
    %v4596 = vpop.f32.mrf.mxu0
    %v4597 = vadd.f32 %v4127, %v4596
    %v4598 = vpop.f32.mrf.mxu0
    %4599 = vmatprep.mubr.f32.mxu0 0.0
    %4600 = vmatmul.mubr.f32.gmra.mxu0 %v3797
    %v4601 = vpop.f32.mrf.mxu0
    %v4602 = vadd.f32 %v4132, %v4601
    %v4603 = vpop.f32.mrf.mxu0
    %4604 = vmatprep.mubr.f32.mxu0 0.0
    %4605 = vmatmul.mubr.f32.gmra.mxu0 %v3800
    %v4606 = vpop.f32.mrf.mxu0
    %v4607 = vadd.f32 %v4137, %v4606
    %v4608 = vpop.f32.mrf.mxu0
    %4609 = vmatprep.mubr.f32.mxu0 0.0
    %4610 = vmatmul.mubr.f32.gmra.mxu0 %v3803
    %v4611 = vpop.f32.mrf.mxu0
    %v4612 = vadd.f32 %v4142, %v4611
    %v4613 = vpop.f32.mrf.mxu0
    %4614 = vmatprep.mubr.f32.mxu0 0.0
    %4615 = vmatmul.mubr.f32.gmra.mxu0 %v3806
    %v4616 = vpop.f32.mrf.mxu0
    %v4617 = vadd.f32 %v4147, %v4616
    %v4618 = vpop.f32.mrf.mxu0
    %4619 = vmatprep.mubr.f32.mxu0 0.0
    %4620 = vmatmul.mubr.f32.gmra.mxu0 %v3809
    %v4621 = vpop.f32.mrf.mxu0
    %v4622 = vadd.f32 %v4152, %v4621
    %v4623 = vpop.f32.mrf.mxu0
    %4624 = vmatprep.mubr.f32.mxu0 0.0
    %4625 = vmatmul.mubr.f32.gmra.mxu0 %v3812
    %v4626 = vpop.f32.mrf.mxu0
    %v4627 = vadd.f32 %v4157, %v4626
    %v4628 = vpop.f32.mrf.mxu0
    %4629 = vmatprep.mubr.f32.mxu0 0.0
    %4630 = vmatmul.mubr.f32.gmra.mxu0 %v3815
    %v4631 = vpop.f32.mrf.mxu0
    %v4632 = vadd.f32 %v4162, %v4631
    %v4633 = vpop.f32.mrf.mxu0
    %4634 = vmatprep.mubr.f32.mxu0 0.0
    %4635 = vmatmul.mubr.f32.gmra.mxu0 %v3818
    %v4636 = vpop.f32.mrf.mxu0
    %v4637 = vadd.f32 %v4167, %v4636
    %v4638 = vpop.f32.mrf.mxu0
    %4639 = vmatprep.mubr.f32.mxu0 0.0
    %4640 = vmatmul.mubr.f32.gmra.mxu0 %v3821
    %v4641 = vpop.f32.mrf.mxu0
    %v4642 = vadd.f32 %v4172, %v4641
    %v4643 = vpop.f32.mrf.mxu0
    %4644 = vmatprep.mubr.f32.mxu0 0.0
    %4645 = vmatmul.mubr.f32.gmra.mxu0 %v3824
    %v4646 = vpop.f32.mrf.mxu0
    %v4647 = vadd.f32 %v4177, %v4646
    %v4648 = vpop.f32.mrf.mxu0
    %4649 = vmatprep.mubr.f32.mxu0 0.0
    %4650 = vmatmul.mubr.f32.gmra.mxu0 %v3827
    %v4651 = vpop.f32.mrf.mxu0
    %v4652 = vadd.f32 %v4182, %v4651
    %v4653 = vpop.f32.mrf.mxu0
    %4654 = vmatprep.mubr.f32.mxu0 0.0
    %4655 = vmatmul.mubr.f32.gmra.mxu0 %v3830
    %v4656 = vpop.f32.mrf.mxu0
    %v4657 = vadd.f32 %v4187, %v4656
    %v4658 = vpop.f32.mrf.mxu0
    %4659 = vmatprep.mubr.f32.mxu0 0.0
    %4660 = vmatmul.mubr.f32.gmra.mxu0 %v3833
    %v4661 = vpop.f32.mrf.mxu0
    %v4662 = vadd.f32 %v4192, %v4661
    %v4663 = vpop.f32.mrf.mxu0
    %4664 = vmatprep.mubr.f32.mxu0 0.0
    %4665 = vmatmul.mubr.f32.gmra.mxu0 %v3836
    %v4666 = vpop.f32.mrf.mxu0
    %v4667 = vadd.f32 %v4197, %v4666
    %v4668 = vpop.f32.mrf.mxu0
    %4669 = vmatprep.mubr.f32.mxu0 0.0
    %4670 = vmatmul.mubr.f32.gmra.mxu0 %v3839
    %v4671 = vpop.f32.mrf.mxu0
    %v4672 = vadd.f32 %v4202, %v4671
    %v4673 = vpop.f32.mrf.mxu0
    %4674 = vmatprep.mubr.f32.mxu0 0.0
    %4675 = vmatmul.mubr.f32.gmra.mxu0 %v3842
    %v4676 = vpop.f32.mrf.mxu0
    %v4677 = vadd.f32 %v4207, %v4676
    %v4678 = vpop.f32.mrf.mxu0
    %4679 = vmatprep.mubr.f32.mxu0 0.0
    %4680 = vmatmul.mubr.f32.gmra.mxu0 %v3845
    %v4681 = vpop.f32.mrf.mxu0
    %v4682 = vadd.f32 %v4212, %v4681
    %v4683 = vpop.f32.mrf.mxu0
    %4684 = vmatprep.mubr.f32.mxu0 0.0
    %4685 = vmatmul.mubr.f32.gmra.mxu0 %v3848
    %v4686 = vpop.f32.mrf.mxu0
    %v4687 = vadd.f32 %v4217, %v4686
    %v4688 = vpop.f32.mrf.mxu0
    %4689 = vmatprep.mubr.f32.mxu0 0.0
    %4690 = vmatmul.mubr.f32.gmra.mxu0 %v3851
    %v4691 = vpop.f32.mrf.mxu0
    %v4692 = vadd.f32 %v4222, %v4691
    %v4693 = vpop.f32.mrf.mxu0
    %4694 = vmatprep.mubr.f32.mxu0 0.0
    %4695 = vmatmul.mubr.f32.gmra.mxu0 %v3854
    %v4696 = vpop.f32.mrf.mxu0
    %v4697 = vadd.f32 %v4227, %v4696
    %v4698 = vpop.f32.mrf.mxu0
    %4699 = vmatprep.mubr.f32.mxu0 0.0
    %4700 = vmatmul.mubr.f32.gmra.mxu0 %v3857
    %v4701 = vpop.f32.mrf.mxu0
    %v4702 = vadd.f32 %v4232, %v4701
    %v4703 = vpop.f32.mrf.mxu0
    %4704 = vmatprep.mubr.f32.mxu0 0.0
    %4705 = vmatmul.mubr.f32.gmra.mxu0 %v3860
    %v4706 = vpop.f32.mrf.mxu0
    %v4707 = vadd.f32 %v4237, %v4706
    %v4708 = vpop.f32.mrf.mxu0
    %4709 = vmatprep.mubr.f32.mxu0 0.0
    %4710 = vmatmul.mubr.f32.gmra.mxu0 %v3863
    %v4711 = vpop.f32.mrf.mxu0
    %v4712 = vadd.f32 %v4242, %v4711
    %v4713 = vpop.f32.mrf.mxu0
    %4714 = vmatprep.mubr.f32.mxu0 0.0
    %4715 = vmatmul.mubr.f32.gmra.mxu0 %v3866
    %v4716 = vpop.f32.mrf.mxu0
    %v4717 = vadd.f32 %v4247, %v4716
    %v4718 = vpop.f32.mrf.mxu0
    %4719 = vmatprep.mubr.f32.mxu0 0.0
    %4720 = vmatmul.mubr.f32.gmra.mxu0 %v3869
    %v4721 = vpop.f32.mrf.mxu0
    %v4722 = vadd.f32 %v4252, %v4721
    %v4723 = vpop.f32.mrf.mxu0
    %4724 = vmatprep.mubr.f32.mxu0 0.0
    %4725 = vmatmul.mubr.f32.gmra.mxu0 %v3872
    %v4726 = vpop.f32.mrf.mxu0
    %v4727 = vadd.f32 %v4257, %v4726
    %v4728 = vpop.f32.mrf.mxu0
    %4729 = vmatprep.mubr.f32.mxu0 0.0
    %4730 = vmatmul.mubr.f32.gmra.mxu0 %v3875
    %v4731 = vpop.f32.mrf.mxu0
    %v4732 = vadd.f32 %v4262, %v4731
    %v4733 = vpop.f32.mrf.mxu0
    %4734 = vmatprep.mubr.f32.mxu0 0.0
    %4735 = vmatmul.mubr.f32.gmra.mxu0 %v3878
    %v4736 = vpop.f32.mrf.mxu0
    %v4737 = vadd.f32 %v4267, %v4736
    %v4738 = vpop.f32.mrf.mxu0
    %4739 = vmatprep.mubr.f32.mxu0 0.0
    %4740 = vmatmul.mubr.f32.gmra.mxu0 %v3881
    %v4741 = vpop.f32.mrf.mxu0
    %v4742 = vadd.f32 %v4272, %v4741
    %v4743 = vpop.f32.mrf.mxu0
    %4744 = vmatprep.mubr.f32.mxu0 0.0
    %4745 = vmatmul.mubr.f32.gmra.mxu0 %v3884
    %v4746 = vpop.f32.mrf.mxu0
    %v4747 = vadd.f32 %v4277, %v4746
    %v4748 = vpop.f32.mrf.mxu0
    %4749 = vmatprep.mubr.f32.mxu0 0.0
    %4750 = vmatmul.mubr.f32.gmra.mxu0 %v3887
    %v4751 = vpop.f32.mrf.mxu0
    %v4752 = vadd.f32 %v4282, %v4751
    %v4753 = vpop.f32.mrf.mxu0
    %4754 = vmatprep.mubr.f32.mxu0 0.0
    %4755 = vmatmul.mubr.f32.gmra.mxu0 %v3890
    %v4756 = vpop.f32.mrf.mxu0
    %v4757 = vadd.f32 %v4287, %v4756
    %v4758 = vpop.f32.mrf.mxu0
    %4759 = vmatprep.mubr.f32.mxu0 0.0
    %4760 = vmatmul.mubr.f32.gmra.mxu0 %v3893
    %v4761 = vpop.f32.mrf.mxu0
    %v4762 = vadd.f32 %v4292, %v4761
    %v4763 = vpop.f32.mrf.mxu0
    %4764 = vmatprep.mubr.f32.mxu0 0.0
    %4765 = vmatmul.mubr.f32.gmra.mxu0 %v3896
    %v4766 = vpop.f32.mrf.mxu0
    %v4767 = vadd.f32 %v4297, %v4766
    %v4768 = vpop.f32.mrf.mxu0
    %4769 = vmatprep.mubr.f32.mxu0 0.0
    %4770 = vmatmul.mubr.f32.gmra.mxu0 %v3899
    %v4771 = vpop.f32.mrf.mxu0
    %v4772 = vadd.f32 %v4302, %v4771
    %v4773 = vpop.f32.mrf.mxu0
    %4774 = vmatprep.mubr.f32.mxu0 0.0
    %4775 = vmatmul.mubr.f32.gmra.mxu0 %v3902
    %v4776 = vpop.f32.mrf.mxu0
    %v4777 = vadd.f32 %v4307, %v4776
    %v4778 = vpop.f32.mrf.mxu0
    %4779 = vmatprep.mubr.f32.mxu0 0.0
    %4780 = vmatmul.mubr.f32.gmra.mxu0 %v3905
    %v4781 = vpop.f32.mrf.mxu0
    %v4782 = vadd.f32 %v4312, %v4781
    %v4783 = vpop.f32.mrf.mxu0
    %4784 = vmatprep.mubr.f32.mxu0 0.0
    %4785 = vmatmul.mubr.f32.gmra.mxu0 %v3908
    %v4786 = vpop.f32.mrf.mxu0
    %v4787 = vadd.f32 %v4317, %v4786
    %v4788 = vpop.f32.mrf.mxu0
    %4789 = vmatprep.mubr.f32.mxu0 0.0
    %4790 = vmatmul.mubr.f32.gmra.mxu0 %v3911
    %v4791 = vpop.f32.mrf.mxu0
    %v4792 = vadd.f32 %v4322, %v4791
    %v4793 = vpop.f32.mrf.mxu0
    %4794 = vmatprep.mubr.f32.mxu0 0.0
    %4795 = vmatmul.mubr.f32.gmra.mxu0 %v3914
    %v4796 = vpop.f32.mrf.mxu0
    %v4797 = vadd.f32 %v4327, %v4796
    %v4798 = vpop.f32.mrf.mxu0
    %4799 = vmatprep.mubr.f32.mxu0 0.0
    %4800 = vmatmul.mubr.f32.gmra.mxu0 %v3917
    %v4801 = vpop.f32.mrf.mxu0
    %v4802 = vadd.f32 %v4332, %v4801
    %v4803 = vpop.f32.mrf.mxu0
    %4804 = vmatprep.mubr.f32.mxu0 0.0
    %4805 = vmatmul.mubr.f32.gmra.mxu0 %v3920
    %v4806 = vpop.f32.mrf.mxu0
    %v4807 = vadd.f32 %v4337, %v4806
    %v4808 = vpop.f32.mrf.mxu0
    %4809 = vmatprep.mubr.f32.mxu0 0.0
    %4810 = vmatmul.mubr.f32.gmra.mxu0 %v3923
    %v4811 = vpop.f32.mrf.mxu0
    %v4812 = vadd.f32 %v4342, %v4811
    %v4813 = vpop.f32.mrf.mxu0
    %4814 = vmatprep.mubr.f32.mxu0 0.0
    %4815 = vmatmul.mubr.f32.gmra.mxu0 %v3926
    %v4816 = vpop.f32.mrf.mxu0
    %v4817 = vadd.f32 %v4347, %v4816
    %v4818 = vpop.f32.mrf.mxu0
    %4819 = vmatprep.mubr.f32.mxu0 0.0
    %4820 = vmatmul.mubr.f32.gmra.mxu0 %v3929
    %v4821 = vpop.f32.mrf.mxu0
    %v4822 = vadd.f32 %v4352, %v4821
    %v4823 = vpop.f32.mrf.mxu0
    %4824 = vmatprep.mubr.f32.mxu0 0.0
    %4825 = vmatmul.mubr.f32.gmra.mxu0 %v3932
    %v4826 = vpop.f32.mrf.mxu0
    %v4827 = vadd.f32 %v4357, %v4826
    %v4828 = vpop.f32.mrf.mxu0
    %4829 = vmatprep.mubr.f32.mxu0 0.0
    %4830 = vmatmul.mubr.f32.gmra.mxu0 %v3935
    %v4831 = vpop.f32.mrf.mxu0
    %v4832 = vadd.f32 %v4362, %v4831
    %v4833 = vpop.f32.mrf.mxu0
    %4834 = vmatprep.mubr.f32.mxu0 0.0
    %4835 = vmatmul.mubr.f32.gmra.mxu0 %v3938
    %v4836 = vpop.f32.mrf.mxu0
    %v4837 = vadd.f32 %v4367, %v4836
    %v4838 = vpop.f32.mrf.mxu0
    %4839 = vmatprep.mubr.f32.mxu0 0.0
    %4840 = vmatmul.mubr.f32.gmra.mxu0 %v3941
    %v4841 = vpop.f32.mrf.mxu0
    %v4842 = vadd.f32 %v4372, %v4841
    %v4843 = vpop.f32.mrf.mxu0
    %4844 = vmatprep.mubr.f32.mxu0 0.0
    %4845 = vmatmul.mubr.f32.gmra.mxu0 %v3944
    %v4846 = vpop.f32.mrf.mxu0
    %v4847 = vadd.f32 %v4377, %v4846
    %v4848 = vpop.f32.mrf.mxu0
    %4849 = vmatprep.mubr.f32.mxu0 0.0
    %4850 = vmatmul.mubr.f32.gmra.mxu0 %v3947
    %v4851 = vpop.f32.mrf.mxu0
    %v4852 = vadd.f32 %v4382, %v4851
    %v4853 = vpop.f32.mrf.mxu0
    %4854 = vmatprep.mubr.f32.mxu0 0.0
    %4855 = vmatmul.mubr.f32.gmra.mxu0 %v3950
    %v4856 = vpop.f32.mrf.mxu0
    %v4857 = vadd.f32 %v4387, %v4856
    %v4858 = vpop.f32.mrf.mxu0
    %4859 = vmatprep.mubr.f32.mxu0 0.0
    %4860 = vmatmul.mubr.f32.gmra.mxu0 %v3953
    %v4861 = vpop.f32.mrf.mxu0
    %v4862 = vadd.f32 %v4392, %v4861
    %v4863 = vpop.f32.mrf.mxu0
    %4864 = vmatprep.mubr.f32.mxu0 0.0
    %4865 = vmatmul.mubr.f32.gmra.mxu0 %v3956
    %v4866 = vpop.f32.mrf.mxu0
    %v4867 = vadd.f32 %v4397, %v4866
    %v4868 = vpop.f32.mrf.mxu0
    %4869 = vmatprep.mubr.f32.mxu0 0.0
    %4870 = vmatmul.mubr.f32.gmra.mxu0 %v3959
    %v4871 = vpop.f32.mrf.mxu0
    %v4872 = vadd.f32 %v4402, %v4871
    %v4873 = vpop.f32.mrf.mxu0
    %4874 = vmatprep.mubr.f32.mxu0 0.0
    %4875 = vmatmul.mubr.f32.gmra.mxu0 %v3962
    %v4876 = vpop.f32.mrf.mxu0
    %v4877 = vadd.f32 %v4407, %v4876
    %v4878 = vpop.f32.mrf.mxu0
    %4879 = vmatprep.mubr.f32.mxu0 0.0
    %4880 = vmatmul.mubr.f32.gmra.mxu0 %v3965
    %v4881 = vpop.f32.mrf.mxu0
    %v4882 = vadd.f32 %v4412, %v4881
    %v4883 = vpop.f32.mrf.mxu0
    %4884 = vmatprep.mubr.f32.mxu0 0.0
    %4885 = vmatmul.mubr.f32.gmra.mxu0 %v3968
    %v4886 = vpop.f32.mrf.mxu0
    %v4887 = vadd.f32 %v4417, %v4886
    %v4888 = vpop.f32.mrf.mxu0
    %4889 = vmatprep.mubr.f32.mxu0 0.0
    %4890 = vmatmul.mubr.f32.gmra.mxu0 %v3971
    %v4891 = vpop.f32.mrf.mxu0
    %v4892 = vadd.f32 %v4422, %v4891
    %v4893 = vpop.f32.mrf.mxu0
    %4894 = vmatprep.mubr.f32.mxu0 0.0
    %4895 = vmatmul.mubr.f32.gmra.mxu0 %v3974
    %v4896 = vpop.f32.mrf.mxu0
    %v4897 = vadd.f32 %v4427, %v4896
    %v4898 = vpop.f32.mrf.mxu0
    %4899 = vmatprep.mubr.f32.mxu0 0.0
    %4900 = vmatmul.mubr.f32.gmra.mxu0 %v3977
    %v4901 = vpop.f32.mrf.mxu0
    %v4902 = vadd.f32 %v4432, %v4901
    %v4903 = vpop.f32.mrf.mxu0
    %4904 = vmatprep.mubr.f32.mxu0 0.0
    %4905 = vmatmul.mubr.f32.gmra.mxu0 %v3980
    %v4906 = vpop.f32.mrf.mxu0
    %v4907 = vadd.f32 %v4437, %v4906
    %v4908 = vpop.f32.mrf.mxu0
    %4909 = vmatprep.mubr.f32.mxu0 0.0
    %4910 = vmatmul.mubr.f32.gmra.mxu0 %v3983
    %v4911 = vpop.f32.mrf.mxu0
    %v4912 = vadd.f32 %v4442, %v4911
    %v4913 = vpop.f32.mrf.mxu0
    %4914 = vmatprep.mubr.f32.mxu0 0.0
    %4915 = vmatmul.mubr.f32.gmra.mxu0 %v3986
    %v4916 = vpop.f32.mrf.mxu0
    %v4917 = vadd.f32 %v4447, %v4916
    %v4918 = vpop.f32.mrf.mxu0
    %4919 = vmatprep.mubr.f32.mxu0 0.0
    %4920 = vmatmul.mubr.f32.gmra.mxu0 %v3989
    %v4921 = vpop.f32.mrf.mxu0
    %v4922 = vadd.f32 %v4452, %v4921
    %v4923 = vpop.f32.mrf.mxu0
    %4924 = vmatprep.mubr.f32.mxu0 0.0
    %4925 = vmatmul.mubr.f32.gmra.mxu0 %v3992
    %v4926 = vpop.f32.mrf.mxu0
    %v4927 = vadd.f32 %v4457, %v4926
    %v4928 = vpop.f32.mrf.mxu0
    %4929 = vmatprep.mubr.f32.mxu0 0.0
    %4930 = vmatmul.mubr.f32.gmra.mxu0 %v3995
    %v4931 = vpop.f32.mrf.mxu0
    %v4932 = vadd.f32 %v4462, %v4931
    %v4933 = vpop.f32.mrf.mxu0
    %4934 = vmatprep.mubr.f32.mxu0 0.0
    %4935 = vmatmul.mubr.f32.gmra.mxu0 %v3998
    %v4936 = vpop.f32.mrf.mxu0
    %v4937 = vadd.f32 %v4467, %v4936
    %v4938 = vpop.f32.mrf.mxu0
    %4939 = vdwg.mxu0
    %v4940 = vld [vmem:[%s4] ss:$4 sm:$0x3f]
    %v4942 = vlaneseq
    %v4943 = vshrl.u32 %v4942, 7
    %v4944 = vsub.s32 0, %v4943
    %v4945 = vrot.slane %v4940, %v4944
    %v4946 = vlaneseq
    %v4947 = vshrl.u32 %v4946, 7
    %v4948 = vsub.s32 1, %v4947
    %v4949 = vrot.slane %v4940, %v4948
    %v4950 = vlaneseq
    %v4951 = vshrl.u32 %v4950, 7
    %v4952 = vsub.s32 2, %v4951
    %v4953 = vrot.slane %v4940, %v4952
    %v4954 = vlaneseq
    %v4955 = vshrl.u32 %v4954, 7
    %v4956 = vsub.s32 3, %v4955
    %v4957 = vrot.slane %v4940, %v4956
    %v4958 = vlaneseq
    %v4959 = vshrl.u32 %v4958, 7
    %v4960 = vsub.s32 4, %v4959
    %v4961 = vrot.slane %v4940, %v4960
    %v4962 = vlaneseq
    %v4963 = vshrl.u32 %v4962, 7
    %v4964 = vsub.s32 5, %v4963
    %v4965 = vrot.slane %v4940, %v4964
    %vm4971 = vcmask 64512
    %v4972 = vsel %vm4971, %v4965, 0
    %4974 = vmatprep.subr.mxu0 0.0
    %4975 = vmatpush1.msra.mxu0 %v4612
    %4976 = vmatprep.subr.mxu0 0.0
    %4977 = vmatpush1.msra.mxu0 %v4607
    %4978 = vmatprep.subr.mxu0 0.0
    %4979 = vmatpush1.msra.mxu0 %v4602
    %4980 = vmatprep.subr.mxu0 0.0
    %4981 = vmatpush1.msra.mxu0 %v4597
    %4982 = vmatprep.subr.mxu0 0.0
    %4983 = vmatpush1.msra.mxu0 %v4592
    %4984 = vmatprep.subr.mxu0 0.0
    %4985 = vmatpush1.msra.mxu0 %v4587
    %4986 = vmatprep.subr.mxu0 0.0
    %4987 = vmatpush1.msra.mxu0 %v4582
    %4988 = vmatprep.subr.mxu0 0.0
    %4989 = vmatpush1.msra.mxu0 %v4577
    %4990 = vmatprep.subr.mxu0 0.0
    %4991 = vmatpush1.msra.mxu0 %v4572
    %4992 = vmatprep.subr.mxu0 0.0
    %4993 = vmatpush1.msra.mxu0 %v4567
    %4994 = vmatprep.subr.mxu0 0.0
    %4995 = vmatpush1.msra.mxu0 %v4562
    %4996 = vmatprep.subr.mxu0 0.0
    %4997 = vmatpush1.msra.mxu0 %v4557
    %4998 = vmatprep.subr.mxu0 0.0
    %4999 = vmatpush1.msra.mxu0 %v4552
    %5000 = vmatprep.subr.mxu0 0.0
    %5001 = vmatpush1.msra.mxu0 %v4547
    %5002 = vmatprep.subr.mxu0 0.0
    %5003 = vmatpush1.msra.mxu0 %v4542
    %5004 = vmatprep.subr.mxu0 0.0
    %5005 = vmatpush1.msra.mxu0 %v4537
    %5006 = vmatprep.subr.mxu0 0.0
    %5007 = vmatpush2.msra.mxu0 %v4692
    %5008 = vmatprep.subr.mxu0 0.0
    %5009 = vmatpush2.msra.mxu0 %v4687
    %5010 = vmatprep.subr.mxu0 0.0
    %5011 = vmatpush2.msra.mxu0 %v4682
    %5012 = vmatprep.subr.mxu0 0.0
    %5013 = vmatpush2.msra.mxu0 %v4677
    %5014 = vmatprep.subr.mxu0 0.0
    %5015 = vmatpush2.msra.mxu0 %v4672
    %5016 = vmatprep.subr.mxu0 0.0
    %5017 = vmatpush2.msra.mxu0 %v4667
    %5018 = vmatprep.subr.mxu0 0.0
    %5019 = vmatpush2.msra.mxu0 %v4662
    %5020 = vmatprep.subr.mxu0 0.0
    %5021 = vmatpush2.msra.mxu0 %v4657
    %5022 = vmatprep.subr.mxu0 0.0
    %5023 = vmatpush2.msra.mxu0 %v4652
    %5024 = vmatprep.subr.mxu0 0.0
    %5025 = vmatpush2.msra.mxu0 %v4647
    %5026 = vmatprep.subr.mxu0 0.0
    %5027 = vmatpush2.msra.mxu0 %v4642
    %5028 = vmatprep.subr.mxu0 0.0
    %5029 = vmatpush2.msra.mxu0 %v4637
    %5030 = vmatprep.subr.mxu0 0.0
    %5031 = vmatpush2.msra.mxu0 %v4632
    %5032 = vmatprep.subr.mxu0 0.0
    %5033 = vmatpush2.msra.mxu0 %v4627
    %5034 = vmatprep.subr.mxu0 0.0
    %5035 = vmatpush2.msra.mxu0 %v4622
    %5036 = vmatprep.subr.mxu0 0.0
    %5037 = vmatpush2.msra.mxu0 %v4617
    %5038 = vmatprep.mubr.f32.mxu0 %v4949
    %5039 = vmatmul.mubr.f32.gmra.mxu0 %v4945
    %v5040 = vpop.f32.mrf.mxu0
    %v5041 = vadd.f32 0.0, %v5040
    %v5042 = vpop.f32.mrf.mxu0
    %5043 = vdwg.mxu0
    %5044 = vmatprep.subr.mxu0 0.0
    %5045 = vmatpush1.msra.mxu0 %v4772
    %5046 = vmatprep.subr.mxu0 0.0
    %5047 = vmatpush1.msra.mxu0 %v4767
    %5048 = vmatprep.subr.mxu0 0.0
    %5049 = vmatpush1.msra.mxu0 %v4762
    %5050 = vmatprep.subr.mxu0 0.0
    %5051 = vmatpush1.msra.mxu0 %v4757
    %5052 = vmatprep.subr.mxu0 0.0
    %5053 = vmatpush1.msra.mxu0 %v4752
    %5054 = vmatprep.subr.mxu0 0.0
    %5055 = vmatpush1.msra.mxu0 %v4747
    %5056 = vmatprep.subr.mxu0 0.0
    %5057 = vmatpush1.msra.mxu0 %v4742
    %5058 = vmatprep.subr.mxu0 0.0
    %5059 = vmatpush1.msra.mxu0 %v4737
    %5060 = vmatprep.subr.mxu0 0.0
    %5061 = vmatpush1.msra.mxu0 %v4732
    %5062 = vmatprep.subr.mxu0 0.0
    %5063 = vmatpush1.msra.mxu0 %v4727
    %5064 = vmatprep.subr.mxu0 0.0
    %5065 = vmatpush1.msra.mxu0 %v4722
    %5066 = vmatprep.subr.mxu0 0.0
    %5067 = vmatpush1.msra.mxu0 %v4717
    %5068 = vmatprep.subr.mxu0 0.0
    %5069 = vmatpush1.msra.mxu0 %v4712
    %5070 = vmatprep.subr.mxu0 0.0
    %5071 = vmatpush1.msra.mxu0 %v4707
    %5072 = vmatprep.subr.mxu0 0.0
    %5073 = vmatpush1.msra.mxu0 %v4702
    %5074 = vmatprep.subr.mxu0 0.0
    %5075 = vmatpush1.msra.mxu0 %v4697
    %5076 = vmatprep.subr.mxu0 0.0
    %5077 = vmatpush2.msra.mxu0 %v4852
    %5078 = vmatprep.subr.mxu0 0.0
    %5079 = vmatpush2.msra.mxu0 %v4847
    %5080 = vmatprep.subr.mxu0 0.0
    %5081 = vmatpush2.msra.mxu0 %v4842
    %5082 = vmatprep.subr.mxu0 0.0
    %5083 = vmatpush2.msra.mxu0 %v4837
    %5084 = vmatprep.subr.mxu0 0.0
    %5085 = vmatpush2.msra.mxu0 %v4832
    %5086 = vmatprep.subr.mxu0 0.0
    %5087 = vmatpush2.msra.mxu0 %v4827
    %5088 = vmatprep.subr.mxu0 0.0
    %5089 = vmatpush2.msra.mxu0 %v4822
    %5090 = vmatprep.subr.mxu0 0.0
    %5091 = vmatpush2.msra.mxu0 %v4817
    %5092 = vmatprep.subr.mxu0 0.0
    %5093 = vmatpush2.msra.mxu0 %v4812
    %5094 = vmatprep.subr.mxu0 0.0
    %5095 = vmatpush2.msra.mxu0 %v4807
    %5096 = vmatprep.subr.mxu0 0.0
    %5097 = vmatpush2.msra.mxu0 %v4802
    %5098 = vmatprep.subr.mxu0 0.0
    %5099 = vmatpush2.msra.mxu0 %v4797
    %5100 = vmatprep.subr.mxu0 0.0
    %5101 = vmatpush2.msra.mxu0 %v4792
    %5102 = vmatprep.subr.mxu0 0.0
    %5103 = vmatpush2.msra.mxu0 %v4787
    %5104 = vmatprep.subr.mxu0 0.0
    %5105 = vmatpush2.msra.mxu0 %v4782
    %5106 = vmatprep.subr.mxu0 0.0
    %5107 = vmatpush2.msra.mxu0 %v4777
    %5108 = vmatprep.mubr.f32.mxu0 %v4957
    %5109 = vmatmul.mubr.f32.gmra.mxu0 %v4953
    %v5110 = vpop.f32.mrf.mxu0
    %v5111 = vadd.f32 %v5041, %v5110
    %v5112 = vpop.f32.mrf.mxu0
    %5113 = vdwg.mxu0
    %5114 = vmatprep.subr.mxu0 0.0
    %5115 = vmatpush1.msra.mxu0 %v4932
    %5116 = vmatprep.subr.mxu0 0.0
    %5117 = vmatpush1.msra.mxu0 %v4927
    %5118 = vmatprep.subr.mxu0 0.0
    %5119 = vmatpush1.msra.mxu0 %v4922
    %5120 = vmatprep.subr.mxu0 0.0
    %5121 = vmatpush1.msra.mxu0 %v4917
    %5122 = vmatprep.subr.mxu0 0.0
    %5123 = vmatpush1.msra.mxu0 %v4912
    %5124 = vmatprep.subr.mxu0 0.0
    %5125 = vmatpush1.msra.mxu0 %v4907
    %5126 = vmatprep.subr.mxu0 0.0
    %5127 = vmatpush1.msra.mxu0 %v4902
    %5128 = vmatprep.subr.mxu0 0.0
    %5129 = vmatpush1.msra.mxu0 %v4897
    %5130 = vmatprep.subr.mxu0 0.0
    %5131 = vmatpush1.msra.mxu0 %v4892
    %5132 = vmatprep.subr.mxu0 0.0
    %5133 = vmatpush1.msra.mxu0 %v4887
    %5134 = vmatprep.subr.mxu0 0.0
    %5135 = vmatpush1.msra.mxu0 %v4882
    %5136 = vmatprep.subr.mxu0 0.0
    %5137 = vmatpush1.msra.mxu0 %v4877
    %5138 = vmatprep.subr.mxu0 0.0
    %5139 = vmatpush1.msra.mxu0 %v4872
    %5140 = vmatprep.subr.mxu0 0.0
    %5141 = vmatpush1.msra.mxu0 %v4867
    %5142 = vmatprep.subr.mxu0 0.0
    %5143 = vmatpush1.msra.mxu0 %v4862
    %5144 = vmatprep.subr.mxu0 0.0
    %5145 = vmatpush1.msra.mxu0 %v4857
    %5146 = vmatprep.subr.mxu0 0.0
    %5147 = vmatpush2.msra.mxu0 0.0
    %5148 = vmatprep.subr.mxu0 0.0
    %5149 = vmatpush2.msra.mxu0 0.0
    %5150 = vmatprep.subr.mxu0 0.0
    %5151 = vmatpush2.msra.mxu0 0.0
    %5152 = vmatprep.subr.mxu0 0.0
    %5153 = vmatpush2.msra.mxu0 0.0
    %5154 = vmatprep.subr.mxu0 0.0
    %5155 = vmatpush2.msra.mxu0 0.0
    %5156 = vmatprep.subr.mxu0 0.0
    %5157 = vmatpush2.msra.mxu0 0.0
    %5158 = vmatprep.subr.mxu0 0.0
    %5159 = vmatpush2.msra.mxu0 0.0
    %5160 = vmatprep.subr.mxu0 0.0
    %5161 = vmatpush2.msra.mxu0 0.0
    %5162 = vmatprep.subr.mxu0 0.0
    %5163 = vmatpush2.msra.mxu0 0.0
    %5164 = vmatprep.subr.mxu0 0.0
    %5165 = vmatpush2.msra.mxu0 0.0
    %5166 = vmatprep.subr.mxu0 0.0
    %5167 = vmatpush2.msra.mxu0 0.0
    %5168 = vmatprep.subr.mxu0 0.0
    %5169 = vmatpush2.msra.mxu0 0.0
    %5170 = vmatprep.subr.mxu0 0.0
    %5171 = vmatpush2.msra.mxu0 0.0
    %5172 = vmatprep.subr.mxu0 0.0
    %5173 = vmatpush2.msra.mxu0 0.0
    %5174 = vmatprep.subr.mxu0 0.0
    %5175 = vmatpush2.msra.mxu0 0.0
    %5176 = vmatprep.subr.mxu0 0.0
    %5177 = vmatpush2.msra.mxu0 %v4937
    %5178 = vmatprep.mubr.f32.mxu0 %v4972
    %5179 = vmatmul.mubr.f32.gmra.mxu0 %v4961
    %v5180 = vpop.f32.mrf.mxu0
    %v5181 = vadd.f32 %v5111, %v5180
    %v5182 = vpop.f32.mrf.mxu0
    %5183 = vdwg.mxu0
    %v5184 = vmul.f32 %v4537, %v4537
    %v5185 = vmul.f32 %v4542, %v4542
    %v5186 = vmul.f32 %v4547, %v4547
    %v5187 = vmul.f32 %v4552, %v4552
    %v5188 = vmul.f32 %v4557, %v4557
    %v5189 = vmul.f32 %v4562, %v4562
    %v5190 = vmul.f32 %v4567, %v4567
    %v5191 = vmul.f32 %v4572, %v4572
    %v5192 = vmul.f32 %v4577, %v4577
    %v5193 = vmul.f32 %v4582, %v4582
    %v5194 = vmul.f32 %v4587, %v4587
    %v5195 = vmul.f32 %v4592, %v4592
    %v5196 = vmul.f32 %v4597, %v4597
    %v5197 = vmul.f32 %v4602, %v4602
    %v5198 = vmul.f32 %v4607, %v4607
    %v5199 = vmul.f32 %v4612, %v4612
    %v5200 = vmul.f32 %v4617, %v4617
    %v5201 = vmul.f32 %v4622, %v4622
    %v5202 = vmul.f32 %v4627, %v4627
    %v5203 = vmul.f32 %v4632, %v4632
    %v5204 = vmul.f32 %v4637, %v4637
    %v5205 = vmul.f32 %v4642, %v4642
    %v5206 = vmul.f32 %v4647, %v4647
    %v5207 = vmul.f32 %v4652, %v4652
    %v5208 = vmul.f32 %v4657, %v4657
    %v5209 = vmul.f32 %v4662, %v4662
    %v5210 = vmul.f32 %v4667, %v4667
    %v5211 = vmul.f32 %v4672, %v4672
    %v5212 = vmul.f32 %v4677, %v4677
    %v5213 = vmul.f32 %v4682, %v4682
    %v5214 = vmul.f32 %v4687, %v4687
    %v5215 = vmul.f32 %v4692, %v4692
    %v5216 = vmul.f32 %v4697, %v4697
    %v5217 = vmul.f32 %v4702, %v4702
    %v5218 = vmul.f32 %v4707, %v4707
    %v5219 = vmul.f32 %v4712, %v4712
    %v5220 = vmul.f32 %v4717, %v4717
    %v5221 = vmul.f32 %v4722, %v4722
    %v5222 = vmul.f32 %v4727, %v4727
    %v5223 = vmul.f32 %v4732, %v4732
    %v5224 = vmul.f32 %v4737, %v4737
    %v5225 = vmul.f32 %v4742, %v4742
    %v5226 = vmul.f32 %v4747, %v4747
    %v5227 = vmul.f32 %v4752, %v4752
    %v5228 = vmul.f32 %v4757, %v4757
    %v5229 = vmul.f32 %v4762, %v4762
    %v5230 = vmul.f32 %v4767, %v4767
    %v5231 = vmul.f32 %v4772, %v4772
    %v5232 = vmul.f32 %v4777, %v4777
    %v5233 = vmul.f32 %v4782, %v4782
    %v5234 = vmul.f32 %v4787, %v4787
    %v5235 = vmul.f32 %v4792, %v4792
    %v5236 = vmul.f32 %v4797, %v4797
    %v5237 = vmul.f32 %v4802, %v4802
    %v5238 = vmul.f32 %v4807, %v4807
    %v5239 = vmul.f32 %v4812, %v4812
    %v5240 = vmul.f32 %v4817, %v4817
    %v5241 = vmul.f32 %v4822, %v4822
    %v5242 = vmul.f32 %v4827, %v4827
    %v5243 = vmul.f32 %v4832, %v4832
    %v5244 = vmul.f32 %v4837, %v4837
    %v5245 = vmul.f32 %v4842, %v4842
    %v5246 = vmul.f32 %v4847, %v4847
    %v5247 = vmul.f32 %v4852, %v4852
    %v5248 = vmul.f32 %v4857, %v4857
    %v5249 = vmul.f32 %v4862, %v4862
    %v5250 = vmul.f32 %v4867, %v4867
    %v5251 = vmul.f32 %v4872, %v4872
    %v5252 = vmul.f32 %v4877, %v4877
    %v5253 = vmul.f32 %v4882, %v4882
    %v5254 = vmul.f32 %v4887, %v4887
    %v5255 = vmul.f32 %v4892, %v4892
    %v5256 = vmul.f32 %v4897, %v4897
    %v5257 = vmul.f32 %v4902, %v4902
    %v5258 = vmul.f32 %v4907, %v4907
    %v5259 = vmul.f32 %v4912, %v4912
    %v5260 = vmul.f32 %v4917, %v4917
    %v5261 = vmul.f32 %v4922, %v4922
    %v5262 = vmul.f32 %v4927, %v4927
    %v5263 = vmul.f32 %v4932, %v4932
    %v5264 = vmul.f32 %v4937, %v4937
    %5265 = vmatprep.subr.mxu0 0.0
    %5266 = vmatpush1.msra.mxu0 %v5199
    %5267 = vmatprep.subr.mxu0 0.0
    %5268 = vmatpush1.msra.mxu0 %v5198
    %5269 = vmatprep.subr.mxu0 0.0
    %5270 = vmatpush1.msra.mxu0 %v5197
    %5271 = vmatprep.subr.mxu0 0.0
    %5272 = vmatpush1.msra.mxu0 %v5196
    %5273 = vmatprep.subr.mxu0 0.0
    %5274 = vmatpush1.msra.mxu0 %v5195
    %5275 = vmatprep.subr.mxu0 0.0
    %5276 = vmatpush1.msra.mxu0 %v5194
    %5277 = vmatprep.subr.mxu0 0.0
    %5278 = vmatpush1.msra.mxu0 %v5193
    %5279 = vmatprep.subr.mxu0 0.0
    %5280 = vmatpush1.msra.mxu0 %v5192
    %5281 = vmatprep.subr.mxu0 0.0
    %5282 = vmatpush1.msra.mxu0 %v5191
    %5283 = vmatprep.subr.mxu0 0.0
    %5284 = vmatpush1.msra.mxu0 %v5190
    %5285 = vmatprep.subr.mxu0 0.0
    %5286 = vmatpush1.msra.mxu0 %v5189
    %5287 = vmatprep.subr.mxu0 0.0
    %5288 = vmatpush1.msra.mxu0 %v5188
    %5289 = vmatprep.subr.mxu0 0.0
    %5290 = vmatpush1.msra.mxu0 %v5187
    %5291 = vmatprep.subr.mxu0 0.0
    %5292 = vmatpush1.msra.mxu0 %v5186
    %5293 = vmatprep.subr.mxu0 0.0
    %5294 = vmatpush1.msra.mxu0 %v5185
    %5295 = vmatprep.subr.mxu0 0.0
    %5296 = vmatpush1.msra.mxu0 %v5184
    %5297 = vmatprep.subr.mxu0 0.0
    %5298 = vmatpush2.msra.mxu0 %v5215
    %5299 = vmatprep.subr.mxu0 0.0
    %5300 = vmatpush2.msra.mxu0 %v5214
    %5301 = vmatprep.subr.mxu0 0.0
    %5302 = vmatpush2.msra.mxu0 %v5213
    %5303 = vmatprep.subr.mxu0 0.0
    %5304 = vmatpush2.msra.mxu0 %v5212
    %5305 = vmatprep.subr.mxu0 0.0
    %5306 = vmatpush2.msra.mxu0 %v5211
    %5307 = vmatprep.subr.mxu0 0.0
    %5308 = vmatpush2.msra.mxu0 %v5210
    %5309 = vmatprep.subr.mxu0 0.0
    %5310 = vmatpush2.msra.mxu0 %v5209
    %5311 = vmatprep.subr.mxu0 0.0
    %5312 = vmatpush2.msra.mxu0 %v5208
    %5313 = vmatprep.subr.mxu0 0.0
    %5314 = vmatpush2.msra.mxu0 %v5207
    %5315 = vmatprep.subr.mxu0 0.0
    %5316 = vmatpush2.msra.mxu0 %v5206
    %5317 = vmatprep.subr.mxu0 0.0
    %5318 = vmatpush2.msra.mxu0 %v5205
    %5319 = vmatprep.subr.mxu0 0.0
    %5320 = vmatpush2.msra.mxu0 %v5204
    %5321 = vmatprep.subr.mxu0 0.0
    %5322 = vmatpush2.msra.mxu0 %v5203
    %5323 = vmatprep.subr.mxu0 0.0
    %5324 = vmatpush2.msra.mxu0 %v5202
    %5325 = vmatprep.subr.mxu0 0.0
    %5326 = vmatpush2.msra.mxu0 %v5201
    %5327 = vmatprep.subr.mxu0 0.0
    %5328 = vmatpush2.msra.mxu0 %v5200
    %5329 = vmatprep.mubr.f32.mxu0 %v4949
    %5330 = vmatmul.mubr.f32.gmra.mxu0 %v4945
    %v5331 = vpop.f32.mrf.mxu0
    %v5332 = vadd.f32 0.0, %v5331
    %v5333 = vpop.f32.mrf.mxu0
    %5334 = vdwg.mxu0
    %5335 = vmatprep.subr.mxu0 0.0
    %5336 = vmatpush1.msra.mxu0 %v5231
    %5337 = vmatprep.subr.mxu0 0.0
    %5338 = vmatpush1.msra.mxu0 %v5230
    %5339 = vmatprep.subr.mxu0 0.0
    %5340 = vmatpush1.msra.mxu0 %v5229
    %5341 = vmatprep.subr.mxu0 0.0
    %5342 = vmatpush1.msra.mxu0 %v5228
    %5343 = vmatprep.subr.mxu0 0.0
    %5344 = vmatpush1.msra.mxu0 %v5227
    %5345 = vmatprep.subr.mxu0 0.0
    %5346 = vmatpush1.msra.mxu0 %v5226
    %5347 = vmatprep.subr.mxu0 0.0
    %5348 = vmatpush1.msra.mxu0 %v5225
    %5349 = vmatprep.subr.mxu0 0.0
    %5350 = vmatpush1.msra.mxu0 %v5224
    %5351 = vmatprep.subr.mxu0 0.0
    %5352 = vmatpush1.msra.mxu0 %v5223
    %5353 = vmatprep.subr.mxu0 0.0
    %5354 = vmatpush1.msra.mxu0 %v5222
    %5355 = vmatprep.subr.mxu0 0.0
    %5356 = vmatpush1.msra.mxu0 %v5221
    %5357 = vmatprep.subr.mxu0 0.0
    %5358 = vmatpush1.msra.mxu0 %v5220
    %5359 = vmatprep.subr.mxu0 0.0
    %5360 = vmatpush1.msra.mxu0 %v5219
    %5361 = vmatprep.subr.mxu0 0.0
    %5362 = vmatpush1.msra.mxu0 %v5218
    %5363 = vmatprep.subr.mxu0 0.0
    %5364 = vmatpush1.msra.mxu0 %v5217
    %5365 = vmatprep.subr.mxu0 0.0
    %5366 = vmatpush1.msra.mxu0 %v5216
    %5367 = vmatprep.subr.mxu0 0.0
    %5368 = vmatpush2.msra.mxu0 %v5247
    %5369 = vmatprep.subr.mxu0 0.0
    %5370 = vmatpush2.msra.mxu0 %v5246
    %5371 = vmatprep.subr.mxu0 0.0
    %5372 = vmatpush2.msra.mxu0 %v5245
    %5373 = vmatprep.subr.mxu0 0.0
    %5374 = vmatpush2.msra.mxu0 %v5244
    %5375 = vmatprep.subr.mxu0 0.0
    %5376 = vmatpush2.msra.mxu0 %v5243
    %5377 = vmatprep.subr.mxu0 0.0
    %5378 = vmatpush2.msra.mxu0 %v5242
    %5379 = vmatprep.subr.mxu0 0.0
    %5380 = vmatpush2.msra.mxu0 %v5241
    %5381 = vmatprep.subr.mxu0 0.0
    %5382 = vmatpush2.msra.mxu0 %v5240
    %5383 = vmatprep.subr.mxu0 0.0
    %5384 = vmatpush2.msra.mxu0 %v5239
    %5385 = vmatprep.subr.mxu0 0.0
    %5386 = vmatpush2.msra.mxu0 %v5238
    %5387 = vmatprep.subr.mxu0 0.0
    %5388 = vmatpush2.msra.mxu0 %v5237
    %5389 = vmatprep.subr.mxu0 0.0
    %5390 = vmatpush2.msra.mxu0 %v5236
    %5391 = vmatprep.subr.mxu0 0.0
    %5392 = vmatpush2.msra.mxu0 %v5235
    %5393 = vmatprep.subr.mxu0 0.0
    %5394 = vmatpush2.msra.mxu0 %v5234
    %5395 = vmatprep.subr.mxu0 0.0
    %5396 = vmatpush2.msra.mxu0 %v5233
    %5397 = vmatprep.subr.mxu0 0.0
    %5398 = vmatpush2.msra.mxu0 %v5232
    %5399 = vmatprep.mubr.f32.mxu0 %v4957
    %5400 = vmatmul.mubr.f32.gmra.mxu0 %v4953
    %v5401 = vpop.f32.mrf.mxu0
    %v5402 = vadd.f32 %v5332, %v5401
    %v5403 = vpop.f32.mrf.mxu0
    %5404 = vdwg.mxu0
    %5405 = vmatprep.subr.mxu0 0.0
    %5406 = vmatpush1.msra.mxu0 %v5263
    %5407 = vmatprep.subr.mxu0 0.0
    %5408 = vmatpush1.msra.mxu0 %v5262
    %5409 = vmatprep.subr.mxu0 0.0
    %5410 = vmatpush1.msra.mxu0 %v5261
    %5411 = vmatprep.subr.mxu0 0.0
    %5412 = vmatpush1.msra.mxu0 %v5260
    %5413 = vmatprep.subr.mxu0 0.0
    %5414 = vmatpush1.msra.mxu0 %v5259
    %5415 = vmatprep.subr.mxu0 0.0
    %5416 = vmatpush1.msra.mxu0 %v5258
    %5417 = vmatprep.subr.mxu0 0.0
    %5418 = vmatpush1.msra.mxu0 %v5257
    %5419 = vmatprep.subr.mxu0 0.0
    %5420 = vmatpush1.msra.mxu0 %v5256
    %5421 = vmatprep.subr.mxu0 0.0
    %5422 = vmatpush1.msra.mxu0 %v5255
    %5423 = vmatprep.subr.mxu0 0.0
    %5424 = vmatpush1.msra.mxu0 %v5254
    %5425 = vmatprep.subr.mxu0 0.0
    %5426 = vmatpush1.msra.mxu0 %v5253
    %5427 = vmatprep.subr.mxu0 0.0
    %5428 = vmatpush1.msra.mxu0 %v5252
    %5429 = vmatprep.subr.mxu0 0.0
    %5430 = vmatpush1.msra.mxu0 %v5251
    %5431 = vmatprep.subr.mxu0 0.0
    %5432 = vmatpush1.msra.mxu0 %v5250
    %5433 = vmatprep.subr.mxu0 0.0
    %5434 = vmatpush1.msra.mxu0 %v5249
    %5435 = vmatprep.subr.mxu0 0.0
    %5436 = vmatpush1.msra.mxu0 %v5248
    %5437 = vmatprep.subr.mxu0 0.0
    %5438 = vmatpush2.msra.mxu0 0.0
    %5439 = vmatprep.subr.mxu0 0.0
    %5440 = vmatpush2.msra.mxu0 0.0
    %5441 = vmatprep.subr.mxu0 0.0
    %5442 = vmatpush2.msra.mxu0 0.0
    %5443 = vmatprep.subr.mxu0 0.0
    %5444 = vmatpush2.msra.mxu0 0.0
    %5445 = vmatprep.subr.mxu0 0.0
    %5446 = vmatpush2.msra.mxu0 0.0
    %5447 = vmatprep.subr.mxu0 0.0
    %5448 = vmatpush2.msra.mxu0 0.0
    %5449 = vmatprep.subr.mxu0 0.0
    %5450 = vmatpush2.msra.mxu0 0.0
    %5451 = vmatprep.subr.mxu0 0.0
    %5452 = vmatpush2.msra.mxu0 0.0
    %5453 = vmatprep.subr.mxu0 0.0
    %5454 = vmatpush2.msra.mxu0 0.0
    %5455 = vmatprep.subr.mxu0 0.0
    %5456 = vmatpush2.msra.mxu0 0.0
    %5457 = vmatprep.subr.mxu0 0.0
    %5458 = vmatpush2.msra.mxu0 0.0
    %5459 = vmatprep.subr.mxu0 0.0
    %5460 = vmatpush2.msra.mxu0 0.0
    %5461 = vmatprep.subr.mxu0 0.0
    %5462 = vmatpush2.msra.mxu0 0.0
    %5463 = vmatprep.subr.mxu0 0.0
    %5464 = vmatpush2.msra.mxu0 0.0
    %5465 = vmatprep.subr.mxu0 0.0
    %5466 = vmatpush2.msra.mxu0 0.0
    %5467 = vmatprep.subr.mxu0 0.0
    %5468 = vmatpush2.msra.mxu0 %v5264
    %5469 = vmatprep.mubr.f32.mxu0 %v4972
    %5470 = vmatmul.mubr.f32.gmra.mxu0 %v4961
    %v5471 = vpop.f32.mrf.mxu0
    %v5472 = vadd.f32 %v5402, %v5471
    %v5473 = vpop.f32.mrf.mxu0
    %5474 = vdwg.mxu0
    %v5475 = vrcp.pop 512.0
    %v5476 = vmul.f32 %v5181, %v5475
    %v5477 = vmul.f32 %v5472, %v5475
    %v5478 = vmul.f32 %v5476, %v5476
    %v5479 = vsub.f32 %v5477, %v5478
    %v5480 = vld [vmem:[%s2] sm:$0x1]
    %v5481 = vadd.f32 %v5479, 1e-05
    %v5482 = vrsqrt.pop %v5481
    %v5483 = vmul.f32 %v5480, %v5482
    %v5484 = vlaneseq
    %v5485 = vshrl.u32 %v5484, 7
    %v5486 = vsub.s32 0, %v5485
    %v5487 = vrot.slane %v5476, %v5486
    %v5488 = vsub.f32 %v4537, %v5487
    %v5489 = vsub.f32 %v4542, %v5487
    %v5490 = vsub.f32 %v4547, %v5487
    %v5491 = vsub.f32 %v4552, %v5487
    %v5492 = vsub.f32 %v4557, %v5487
    %v5493 = vsub.f32 %v4562, %v5487
    %v5494 = vsub.f32 %v4567, %v5487
    %v5495 = vsub.f32 %v4572, %v5487
    %v5496 = vsub.f32 %v4577, %v5487
    %v5497 = vsub.f32 %v4582, %v5487
    %v5498 = vsub.f32 %v4587, %v5487
    %v5499 = vsub.f32 %v4592, %v5487
    %v5500 = vsub.f32 %v4597, %v5487
    %v5501 = vsub.f32 %v4602, %v5487
    %v5502 = vsub.f32 %v4607, %v5487
    %v5503 = vsub.f32 %v4612, %v5487
    %v5504 = vsub.f32 %v4617, %v5487
    %v5505 = vsub.f32 %v4622, %v5487
    %v5506 = vsub.f32 %v4627, %v5487
    %v5507 = vsub.f32 %v4632, %v5487
    %v5508 = vsub.f32 %v4637, %v5487
    %v5509 = vsub.f32 %v4642, %v5487
    %v5510 = vsub.f32 %v4647, %v5487
    %v5511 = vsub.f32 %v4652, %v5487
    %v5512 = vsub.f32 %v4657, %v5487
    %v5513 = vsub.f32 %v4662, %v5487
    %v5514 = vsub.f32 %v4667, %v5487
    %v5515 = vsub.f32 %v4672, %v5487
    %v5516 = vsub.f32 %v4677, %v5487
    %v5517 = vsub.f32 %v4682, %v5487
    %v5518 = vsub.f32 %v4687, %v5487
    %v5519 = vsub.f32 %v4692, %v5487
    %v5520 = vsub.f32 %v4697, %v5487
    %v5521 = vsub.f32 %v4702, %v5487
    %v5522 = vsub.f32 %v4707, %v5487
    %v5523 = vsub.f32 %v4712, %v5487
    %v5524 = vsub.f32 %v4717, %v5487
    %v5525 = vsub.f32 %v4722, %v5487
    %v5526 = vsub.f32 %v4727, %v5487
    %v5527 = vsub.f32 %v4732, %v5487
    %v5528 = vsub.f32 %v4737, %v5487
    %v5529 = vsub.f32 %v4742, %v5487
    %v5530 = vsub.f32 %v4747, %v5487
    %v5531 = vsub.f32 %v4752, %v5487
    %v5532 = vsub.f32 %v4757, %v5487
    %v5533 = vsub.f32 %v4762, %v5487
    %v5534 = vsub.f32 %v4767, %v5487
    %v5535 = vsub.f32 %v4772, %v5487
    %v5536 = vsub.f32 %v4777, %v5487
    %v5537 = vsub.f32 %v4782, %v5487
    %v5538 = vsub.f32 %v4787, %v5487
    %v5539 = vsub.f32 %v4792, %v5487
    %v5540 = vsub.f32 %v4797, %v5487
    %v5541 = vsub.f32 %v4802, %v5487
    %v5542 = vsub.f32 %v4807, %v5487
    %v5543 = vsub.f32 %v4812, %v5487
    %v5544 = vsub.f32 %v4817, %v5487
    %v5545 = vsub.f32 %v4822, %v5487
    %v5546 = vsub.f32 %v4827, %v5487
    %v5547 = vsub.f32 %v4832, %v5487
    %v5548 = vsub.f32 %v4837, %v5487
    %v5549 = vsub.f32 %v4842, %v5487
    %v5550 = vsub.f32 %v4847, %v5487
    %v5551 = vsub.f32 %v4852, %v5487
    %v5552 = vsub.f32 %v4857, %v5487
    %v5553 = vsub.f32 %v4862, %v5487
    %v5554 = vsub.f32 %v4867, %v5487
    %v5555 = vsub.f32 %v4872, %v5487
    %v5556 = vsub.f32 %v4877, %v5487
    %v5557 = vsub.f32 %v4882, %v5487
    %v5558 = vsub.f32 %v4887, %v5487
    %v5559 = vsub.f32 %v4892, %v5487
    %v5560 = vsub.f32 %v4897, %v5487
    %v5561 = vsub.f32 %v4902, %v5487
    %v5562 = vsub.f32 %v4907, %v5487
    %v5563 = vsub.f32 %v4912, %v5487
    %v5564 = vsub.f32 %v4917, %v5487
    %v5565 = vsub.f32 %v4922, %v5487
    %v5566 = vsub.f32 %v4927, %v5487
    %v5567 = vsub.f32 %v4932, %v5487
    %v5568 = vsub.f32 %v4937, %v5487
    %v5570 = vlaneseq
    %v5571 = vshrl.u32 %v5570, 7
    %v5572 = vsub.s32 0, %v5571
    %v5573 = vrot.slane %v5483, %v5572
    %v5575 = vmul.f32 %v5488, %v5573
    %v5576 = vmul.f32 %v5489, %v5573
    %v5577 = vmul.f32 %v5490, %v5573
    %v5578 = vmul.f32 %v5491, %v5573
    %v5579 = vmul.f32 %v5492, %v5573
    %v5580 = vmul.f32 %v5493, %v5573
    %v5581 = vmul.f32 %v5494, %v5573
    %v5582 = vmul.f32 %v5495, %v5573
    %v5583 = vmul.f32 %v5496, %v5573
    %v5584 = vmul.f32 %v5497, %v5573
    %v5585 = vmul.f32 %v5498, %v5573
    %v5586 = vmul.f32 %v5499, %v5573
    %v5587 = vmul.f32 %v5500, %v5573
    %v5588 = vmul.f32 %v5501, %v5573
    %v5589 = vmul.f32 %v5502, %v5573
    %v5590 = vmul.f32 %v5503, %v5573
    %v5591 = vmul.f32 %v5504, %v5573
    %v5592 = vmul.f32 %v5505, %v5573
    %v5593 = vmul.f32 %v5506, %v5573
    %v5594 = vmul.f32 %v5507, %v5573
    %v5595 = vmul.f32 %v5508, %v5573
    %v5596 = vmul.f32 %v5509, %v5573
    %v5597 = vmul.f32 %v5510, %v5573
    %v5598 = vmul.f32 %v5511, %v5573
    %v5599 = vmul.f32 %v5512, %v5573
    %v5600 = vmul.f32 %v5513, %v5573
    %v5601 = vmul.f32 %v5514, %v5573
    %v5602 = vmul.f32 %v5515, %v5573
    %v5603 = vmul.f32 %v5516, %v5573
    %v5604 = vmul.f32 %v5517, %v5573
    %v5605 = vmul.f32 %v5518, %v5573
    %v5606 = vmul.f32 %v5519, %v5573
    %v5607 = vmul.f32 %v5520, %v5573
    %v5608 = vmul.f32 %v5521, %v5573
    %v5609 = vmul.f32 %v5522, %v5573
    %v5610 = vmul.f32 %v5523, %v5573
    %v5611 = vmul.f32 %v5524, %v5573
    %v5612 = vmul.f32 %v5525, %v5573
    %v5613 = vmul.f32 %v5526, %v5573
    %v5614 = vmul.f32 %v5527, %v5573
    %v5615 = vmul.f32 %v5528, %v5573
    %v5616 = vmul.f32 %v5529, %v5573
    %v5617 = vmul.f32 %v5530, %v5573
    %v5618 = vmul.f32 %v5531, %v5573
    %v5619 = vmul.f32 %v5532, %v5573
    %v5620 = vmul.f32 %v5533, %v5573
    %v5621 = vmul.f32 %v5534, %v5573
    %v5622 = vmul.f32 %v5535, %v5573
    %v5623 = vmul.f32 %v5536, %v5573
    %v5624 = vmul.f32 %v5537, %v5573
    %v5625 = vmul.f32 %v5538, %v5573
    %v5626 = vmul.f32 %v5539, %v5573
    %v5627 = vmul.f32 %v5540, %v5573
    %v5628 = vmul.f32 %v5541, %v5573
    %v5629 = vmul.f32 %v5542, %v5573
    %v5630 = vmul.f32 %v5543, %v5573
    %v5631 = vmul.f32 %v5544, %v5573
    %v5632 = vmul.f32 %v5545, %v5573
    %v5633 = vmul.f32 %v5546, %v5573
    %v5634 = vmul.f32 %v5547, %v5573
    %v5635 = vmul.f32 %v5548, %v5573
    %v5636 = vmul.f32 %v5549, %v5573
    %v5637 = vmul.f32 %v5550, %v5573
    %v5638 = vmul.f32 %v5551, %v5573
    %v5639 = vmul.f32 %v5552, %v5573
    %v5640 = vmul.f32 %v5553, %v5573
    %v5641 = vmul.f32 %v5554, %v5573
    %v5642 = vmul.f32 %v5555, %v5573
    %v5643 = vmul.f32 %v5556, %v5573
    %v5644 = vmul.f32 %v5557, %v5573
    %v5645 = vmul.f32 %v5558, %v5573
    %v5646 = vmul.f32 %v5559, %v5573
    %v5647 = vmul.f32 %v5560, %v5573
    %v5648 = vmul.f32 %v5561, %v5573
    %v5649 = vmul.f32 %v5562, %v5573
    %v5650 = vmul.f32 %v5563, %v5573
    %v5651 = vmul.f32 %v5564, %v5573
    %v5652 = vmul.f32 %v5565, %v5573
    %v5653 = vmul.f32 %v5566, %v5573
    %v5654 = vmul.f32 %v5567, %v5573
    %v5655 = vmul.f32 %v5568, %v5573
    %v5656 = vld [vmem:[%s3] sm:$0x1]
    %v5658 = vlaneseq
    %v5659 = vshrl.u32 %v5658, 7
    %v5660 = vsub.s32 0, %v5659
    %v5661 = vrot.slane %v5656, %v5660
    %v5663 = vadd.f32 %v5575, %v5661
    %v5664 = vadd.f32 %v5576, %v5661
    %v5665 = vadd.f32 %v5577, %v5661
    %v5666 = vadd.f32 %v5578, %v5661
    %v5667 = vadd.f32 %v5579, %v5661
    %v5668 = vadd.f32 %v5580, %v5661
    %v5669 = vadd.f32 %v5581, %v5661
    %v5670 = vadd.f32 %v5582, %v5661
    %v5671 = vadd.f32 %v5583, %v5661
    %v5672 = vadd.f32 %v5584, %v5661
    %v5673 = vadd.f32 %v5585, %v5661
    %v5674 = vadd.f32 %v5586, %v5661
    %v5675 = vadd.f32 %v5587, %v5661
    %v5676 = vadd.f32 %v5588, %v5661
    %v5677 = vadd.f32 %v5589, %v5661
    %v5678 = vadd.f32 %v5590, %v5661
    %v5679 = vadd.f32 %v5591, %v5661
    %v5680 = vadd.f32 %v5592, %v5661
    %v5681 = vadd.f32 %v5593, %v5661
    %v5682 = vadd.f32 %v5594, %v5661
    %v5683 = vadd.f32 %v5595, %v5661
    %v5684 = vadd.f32 %v5596, %v5661
    %v5685 = vadd.f32 %v5597, %v5661
    %v5686 = vadd.f32 %v5598, %v5661
    %v5687 = vadd.f32 %v5599, %v5661
    %v5688 = vadd.f32 %v5600, %v5661
    %v5689 = vadd.f32 %v5601, %v5661
    %v5690 = vadd.f32 %v5602, %v5661
    %v5691 = vadd.f32 %v5603, %v5661
    %v5692 = vadd.f32 %v5604, %v5661
    %v5693 = vadd.f32 %v5605, %v5661
    %v5694 = vadd.f32 %v5606, %v5661
    %v5695 = vadd.f32 %v5607, %v5661
    %v5696 = vadd.f32 %v5608, %v5661
    %v5697 = vadd.f32 %v5609, %v5661
    %v5698 = vadd.f32 %v5610, %v5661
    %v5699 = vadd.f32 %v5611, %v5661
    %v5700 = vadd.f32 %v5612, %v5661
    %v5701 = vadd.f32 %v5613, %v5661
    %v5702 = vadd.f32 %v5614, %v5661
    %v5703 = vadd.f32 %v5615, %v5661
    %v5704 = vadd.f32 %v5616, %v5661
    %v5705 = vadd.f32 %v5617, %v5661
    %v5706 = vadd.f32 %v5618, %v5661
    %v5707 = vadd.f32 %v5619, %v5661
    %v5708 = vadd.f32 %v5620, %v5661
    %v5709 = vadd.f32 %v5621, %v5661
    %v5710 = vadd.f32 %v5622, %v5661
    %v5711 = vadd.f32 %v5623, %v5661
    %v5712 = vadd.f32 %v5624, %v5661
    %v5713 = vadd.f32 %v5625, %v5661
    %v5714 = vadd.f32 %v5626, %v5661
    %v5715 = vadd.f32 %v5627, %v5661
    %v5716 = vadd.f32 %v5628, %v5661
    %v5717 = vadd.f32 %v5629, %v5661
    %v5718 = vadd.f32 %v5630, %v5661
    %v5719 = vadd.f32 %v5631, %v5661
    %v5720 = vadd.f32 %v5632, %v5661
    %v5721 = vadd.f32 %v5633, %v5661
    %v5722 = vadd.f32 %v5634, %v5661
    %v5723 = vadd.f32 %v5635, %v5661
    %v5724 = vadd.f32 %v5636, %v5661
    %v5725 = vadd.f32 %v5637, %v5661
    %v5726 = vadd.f32 %v5638, %v5661
    %v5727 = vadd.f32 %v5639, %v5661
    %v5728 = vadd.f32 %v5640, %v5661
    %v5729 = vadd.f32 %v5641, %v5661
    %v5730 = vadd.f32 %v5642, %v5661
    %v5731 = vadd.f32 %v5643, %v5661
    %v5732 = vadd.f32 %v5644, %v5661
    %v5733 = vadd.f32 %v5645, %v5661
    %v5734 = vadd.f32 %v5646, %v5661
    %v5735 = vadd.f32 %v5647, %v5661
    %v5736 = vadd.f32 %v5648, %v5661
    %v5737 = vadd.f32 %v5649, %v5661
    %v5738 = vadd.f32 %v5650, %v5661
    %v5739 = vadd.f32 %v5651, %v5661
    %v5740 = vadd.f32 %v5652, %v5661
    %v5741 = vadd.f32 %v5653, %v5661
    %v5742 = vadd.f32 %v5654, %v5661
    %v5743 = vadd.f32 %v5655, %v5661
    %v5744 = vmax.f32 %v5663, 0.0
    %v5745 = vmax.f32 %v5664, 0.0
    %v5746 = vmax.f32 %v5665, 0.0
    %v5747 = vmax.f32 %v5666, 0.0
    %v5748 = vmax.f32 %v5667, 0.0
    %v5749 = vmax.f32 %v5668, 0.0
    %v5750 = vmax.f32 %v5669, 0.0
    %v5751 = vmax.f32 %v5670, 0.0
    %v5752 = vmax.f32 %v5671, 0.0
    %v5753 = vmax.f32 %v5672, 0.0
    %v5754 = vmax.f32 %v5673, 0.0
    %v5755 = vmax.f32 %v5674, 0.0
    %v5756 = vmax.f32 %v5675, 0.0
    %v5757 = vmax.f32 %v5676, 0.0
    %v5758 = vmax.f32 %v5677, 0.0
    %v5759 = vmax.f32 %v5678, 0.0
    %v5760 = vmax.f32 %v5679, 0.0
    %v5761 = vmax.f32 %v5680, 0.0
    %v5762 = vmax.f32 %v5681, 0.0
    %v5763 = vmax.f32 %v5682, 0.0
    %v5764 = vmax.f32 %v5683, 0.0
    %v5765 = vmax.f32 %v5684, 0.0
    %v5766 = vmax.f32 %v5685, 0.0
    %v5767 = vmax.f32 %v5686, 0.0
    %v5768 = vmax.f32 %v5687, 0.0
    %v5769 = vmax.f32 %v5688, 0.0
    %v5770 = vmax.f32 %v5689, 0.0
    %v5771 = vmax.f32 %v5690, 0.0
    %v5772 = vmax.f32 %v5691, 0.0
    %v5773 = vmax.f32 %v5692, 0.0
    %v5774 = vmax.f32 %v5693, 0.0
    %v5775 = vmax.f32 %v5694, 0.0
    %v5776 = vmax.f32 %v5695, 0.0
    %v5777 = vmax.f32 %v5696, 0.0
    %v5778 = vmax.f32 %v5697, 0.0
    %v5779 = vmax.f32 %v5698, 0.0
    %v5780 = vmax.f32 %v5699, 0.0
    %v5781 = vmax.f32 %v5700, 0.0
    %v5782 = vmax.f32 %v5701, 0.0
    %v5783 = vmax.f32 %v5702, 0.0
    %v5784 = vmax.f32 %v5703, 0.0
    %v5785 = vmax.f32 %v5704, 0.0
    %v5786 = vmax.f32 %v5705, 0.0
    %v5787 = vmax.f32 %v5706, 0.0
    %v5788 = vmax.f32 %v5707, 0.0
    %v5789 = vmax.f32 %v5708, 0.0
    %v5790 = vmax.f32 %v5709, 0.0
    %v5791 = vmax.f32 %v5710, 0.0
    %v5792 = vmax.f32 %v5711, 0.0
    %v5793 = vmax.f32 %v5712, 0.0
    %v5794 = vmax.f32 %v5713, 0.0
    %v5795 = vmax.f32 %v5714, 0.0
    %v5796 = vmax.f32 %v5715, 0.0
    %v5797 = vmax.f32 %v5716, 0.0
    %v5798 = vmax.f32 %v5717, 0.0
    %v5799 = vmax.f32 %v5718, 0.0
    %v5800 = vmax.f32 %v5719, 0.0
    %v5801 = vmax.f32 %v5720, 0.0
    %v5802 = vmax.f32 %v5721, 0.0
    %v5803 = vmax.f32 %v5722, 0.0
    %v5804 = vmax.f32 %v5723, 0.0
    %v5805 = vmax.f32 %v5724, 0.0
    %v5806 = vmax.f32 %v5725, 0.0
    %v5807 = vmax.f32 %v5726, 0.0
    %v5808 = vmax.f32 %v5727, 0.0
    %v5809 = vmax.f32 %v5728, 0.0
    %v5810 = vmax.f32 %v5729, 0.0
    %v5811 = vmax.f32 %v5730, 0.0
    %v5812 = vmax.f32 %v5731, 0.0
    %v5813 = vmax.f32 %v5732, 0.0
    %v5814 = vmax.f32 %v5733, 0.0
    %v5815 = vmax.f32 %v5734, 0.0
    %v5816 = vmax.f32 %v5735, 0.0
    %v5817 = vmax.f32 %v5736, 0.0
    %v5818 = vmax.f32 %v5737, 0.0
    %v5819 = vmax.f32 %v5738, 0.0
    %v5820 = vmax.f32 %v5739, 0.0
    %v5821 = vmax.f32 %v5740, 0.0
    %v5822 = vmax.f32 %v5741, 0.0
    %v5823 = vmax.f32 %v5742, 0.0
    %v5824 = vmax.f32 %v5743, 0.0
    %5825 = vst.msk [vmem:[#allocation6] sm:$0xff] %vm27, %v5744
    %5826 = vst.msk [vmem:[#allocation6 + $0x8] sm:$0xff] %vm27, %v5745
    %5827 = vst.msk [vmem:[#allocation6 + $0x10] sm:$0xff] %vm27, %v5746
    %5828 = vst.msk [vmem:[#allocation6 + $0x18] sm:$0xff] %vm27, %v5747
    %5829 = vst.msk [vmem:[#allocation6 + $0x20] sm:$0xff] %vm27, %v5748
    %5830 = vst.msk [vmem:[#allocation6 + $0x28] sm:$0xff] %vm27, %v5749
    %5831 = vst.msk [vmem:[#allocation6 + $0x30] sm:$0xff] %vm27, %v5750
    %5832 = vst.msk [vmem:[#allocation6 + $0x38] sm:$0xff] %vm27, %v5751
    %5833 = vst.msk [vmem:[#allocation6 + $0x40] sm:$0xff] %vm27, %v5752
    %5834 = vst.msk [vmem:[#allocation6 + $0x48] sm:$0xff] %vm27, %v5753
    %5835 = vst.msk [vmem:[#allocation6 + $0x50] sm:$0xff] %vm27, %v5754
    %5836 = vst.msk [vmem:[#allocation6 + $0x58] sm:$0xff] %vm27, %v5755
    %5837 = vst.msk [vmem:[#allocation6 + $0x60] sm:$0xff] %vm27, %v5756
    %5838 = vst.msk [vmem:[#allocation6 + $0x68] sm:$0xff] %vm27, %v5757
    %5839 = vst.msk [vmem:[#allocation6 + $0x70] sm:$0xff] %vm27, %v5758
    %5840 = vst.msk [vmem:[#allocation6 + $0x78] sm:$0xff] %vm27, %v5759
    %5841 = vst.msk [vmem:[#allocation6 + $0x80] sm:$0xff] %vm27, %v5760
    %5842 = vst.msk [vmem:[#allocation6 + $0x88] sm:$0xff] %vm27, %v5761
    %5843 = vst.msk [vmem:[#allocation6 + $0x90] sm:$0xff] %vm27, %v5762
    %5844 = vst.msk [vmem:[#allocation6 + $0x98] sm:$0xff] %vm27, %v5763
    %5845 = vst.msk [vmem:[#allocation6 + $0xa0] sm:$0xff] %vm27, %v5764
    %5846 = vst.msk [vmem:[#allocation6 + $0xa8] sm:$0xff] %vm27, %v5765
    %5847 = vst.msk [vmem:[#allocation6 + $0xb0] sm:$0xff] %vm27, %v5766
    %5848 = vst.msk [vmem:[#allocation6 + $0xb8] sm:$0xff] %vm27, %v5767
    %5849 = vst.msk [vmem:[#allocation6 + $0xc0] sm:$0xff] %vm27, %v5768
    %5850 = vst.msk [vmem:[#allocation6 + $0xc8] sm:$0xff] %vm27, %v5769
    %5851 = vst.msk [vmem:[#allocation6 + $0xd0] sm:$0xff] %vm27, %v5770
    %5852 = vst.msk [vmem:[#allocation6 + $0xd8] sm:$0xff] %vm27, %v5771
    %5853 = vst.msk [vmem:[#allocation6 + $0xe0] sm:$0xff] %vm27, %v5772
    %5854 = vst.msk [vmem:[#allocation6 + $0xe8] sm:$0xff] %vm27, %v5773
    %5855 = vst.msk [vmem:[#allocation6 + $0xf0] sm:$0xff] %vm27, %v5774
    %5856 = vst.msk [vmem:[#allocation6 + $0xf8] sm:$0xff] %vm27, %v5775
    %5857 = vst.msk [vmem:[#allocation6 + $0x100] sm:$0xff] %vm27, %v5776
    %5858 = vst.msk [vmem:[#allocation6 + $0x108] sm:$0xff] %vm27, %v5777
    %5859 = vst.msk [vmem:[#allocation6 + $0x110] sm:$0xff] %vm27, %v5778
    %5860 = vst.msk [vmem:[#allocation6 + $0x118] sm:$0xff] %vm27, %v5779
    %5861 = vst.msk [vmem:[#allocation6 + $0x120] sm:$0xff] %vm27, %v5780
    %5862 = vst.msk [vmem:[#allocation6 + $0x128] sm:$0xff] %vm27, %v5781
    %5863 = vst.msk [vmem:[#allocation6 + $0x130] sm:$0xff] %vm27, %v5782
    %5864 = vst.msk [vmem:[#allocation6 + $0x138] sm:$0xff] %vm27, %v5783
    %5865 = vst.msk [vmem:[#allocation6 + $0x140] sm:$0xff] %vm27, %v5784
    %5866 = vst.msk [vmem:[#allocation6 + $0x148] sm:$0xff] %vm27, %v5785
    %5867 = vst.msk [vmem:[#allocation6 + $0x150] sm:$0xff] %vm27, %v5786
    %5868 = vst.msk [vmem:[#allocation6 + $0x158] sm:$0xff] %vm27, %v5787
    %5869 = vst.msk [vmem:[#allocation6 + $0x160] sm:$0xff] %vm27, %v5788
    %5870 = vst.msk [vmem:[#allocation6 + $0x168] sm:$0xff] %vm27, %v5789
    %5871 = vst.msk [vmem:[#allocation6 + $0x170] sm:$0xff] %vm27, %v5790
    %5872 = vst.msk [vmem:[#allocation6 + $0x178] sm:$0xff] %vm27, %v5791
    %5873 = vst.msk [vmem:[#allocation6 + $0x180] sm:$0xff] %vm27, %v5792
    %5874 = vst.msk [vmem:[#allocation6 + $0x188] sm:$0xff] %vm27, %v5793
    %5875 = vst.msk [vmem:[#allocation6 + $0x190] sm:$0xff] %vm27, %v5794
    %5876 = vst.msk [vmem:[#allocation6 + $0x198] sm:$0xff] %vm27, %v5795
    %5877 = vst.msk [vmem:[#allocation6 + $0x1a0] sm:$0xff] %vm27, %v5796
    %5878 = vst.msk [vmem:[#allocation6 + $0x1a8] sm:$0xff] %vm27, %v5797
    %5879 = vst.msk [vmem:[#allocation6 + $0x1b0] sm:$0xff] %vm27, %v5798
    %5880 = vst.msk [vmem:[#allocation6 + $0x1b8] sm:$0xff] %vm27, %v5799
    %5881 = vst.msk [vmem:[#allocation6 + $0x1c0] sm:$0xff] %vm27, %v5800
    %5882 = vst.msk [vmem:[#allocation6 + $0x1c8] sm:$0xff] %vm27, %v5801
    %5883 = vst.msk [vmem:[#allocation6 + $0x1d0] sm:$0xff] %vm27, %v5802
    %5884 = vst.msk [vmem:[#allocation6 + $0x1d8] sm:$0xff] %vm27, %v5803
    %5885 = vst.msk [vmem:[#allocation6 + $0x1e0] sm:$0xff] %vm27, %v5804
    %5886 = vst.msk [vmem:[#allocation6 + $0x1e8] sm:$0xff] %vm27, %v5805
    %5887 = vst.msk [vmem:[#allocation6 + $0x1f0] sm:$0xff] %vm27, %v5806
    %5888 = vst.msk [vmem:[#allocation6 + $0x1f8] sm:$0xff] %vm27, %v5807
    %5889 = vst.msk [vmem:[#allocation6 + $0x200] sm:$0xff] %vm27, %v5808
    %5890 = vst.msk [vmem:[#allocation6 + $0x208] sm:$0xff] %vm27, %v5809
    %5891 = vst.msk [vmem:[#allocation6 + $0x210] sm:$0xff] %vm27, %v5810
    %5892 = vst.msk [vmem:[#allocation6 + $0x218] sm:$0xff] %vm27, %v5811
    %5893 = vst.msk [vmem:[#allocation6 + $0x220] sm:$0xff] %vm27, %v5812
    %5894 = vst.msk [vmem:[#allocation6 + $0x228] sm:$0xff] %vm27, %v5813
    %5895 = vst.msk [vmem:[#allocation6 + $0x230] sm:$0xff] %vm27, %v5814
    %5896 = vst.msk [vmem:[#allocation6 + $0x238] sm:$0xff] %vm27, %v5815
    %5897 = vst.msk [vmem:[#allocation6 + $0x240] sm:$0xff] %vm27, %v5816
    %5898 = vst.msk [vmem:[#allocation6 + $0x248] sm:$0xff] %vm27, %v5817
    %5899 = vst.msk [vmem:[#allocation6 + $0x250] sm:$0xff] %vm27, %v5818
    %5900 = vst.msk [vmem:[#allocation6 + $0x258] sm:$0xff] %vm27, %v5819
    %5901 = vst.msk [vmem:[#allocation6 + $0x260] sm:$0xff] %vm27, %v5820
    %5902 = vst.msk [vmem:[#allocation6 + $0x268] sm:$0xff] %vm27, %v5821
    %5903 = vst.msk [vmem:[#allocation6 + $0x270] sm:$0xff] %vm27, %v5822
    %5904 = vst.msk [vmem:[#allocation6 + $0x278] sm:$0xff] %vm27, %v5823
    %5905 = vst.msk [vmem:[#allocation6 + $0x280] sm:$0xff] %vm27, %v5824
    %v5906 = vld [vmem:[#allocation6] ss:$2 sm:$0xff]
    %s5907 = scalar_lea.vmem [#allocation6], 1
    %v5908 = vld [vmem:[%s5907] ss:$2 sm:$0xff]
    %s5909 = scalar_lea.vmem [#allocation6], 18
    %v5910 = vld [vmem:[%s5909] ss:$2 sm:$0xff]
    %s5911 = scalar_lea.vmem [#allocation6], 19
    %v5912 = vld [vmem:[%s5911] ss:$2 sm:$0xff]
    %v5913 = vmax.f32 %v5906, %v5908
    %v5914 = vmax.f32 %v5910, %v5912
    %v5915 = vmax.f32 %v5913, %v5914
    %5916 = vst.msk [vmem:[#allocation2 + $0xb] sm:$0xff] %vm27, %v5915
    %s5917 = scalar_lea.vmem [#allocation6], 36
    %v5918 = vld [vmem:[%s5917] ss:$2 sm:$0xff]
    %s5919 = scalar_lea.vmem [#allocation6], 37
    %v5920 = vld [vmem:[%s5919] ss:$2 sm:$0xff]
    %s5921 = scalar_lea.vmem [#allocation6], 54
    %v5922 = vld [vmem:[%s5921] ss:$2 sm:$0xff]
    %s5923 = scalar_lea.vmem [#allocation6], 55
    %v5924 = vld [vmem:[%s5923] ss:$2 sm:$0xff]
    %v5925 = vmax.f32 %v5918, %v5920
    %v5926 = vmax.f32 %v5922, %v5924
    %v5927 = vmax.f32 %v5925, %v5926
    %5928 = vst.msk [vmem:[#allocation2 + $0x15] sm:$0xff] %vm27, %v5927
    %s5929 = scalar_lea.vmem [#allocation6], 72
    %v5930 = vld [vmem:[%s5929] ss:$2 sm:$0xff]
    %s5931 = scalar_lea.vmem [#allocation6], 73
    %v5932 = vld [vmem:[%s5931] ss:$2 sm:$0xff]
    %s5933 = scalar_lea.vmem [#allocation6], 90
    %v5934 = vld [vmem:[%s5933] ss:$2 sm:$0xff]
    %s5935 = scalar_lea.vmem [#allocation6], 91
    %v5936 = vld [vmem:[%s5935] ss:$2 sm:$0xff]
    %v5937 = vmax.f32 %v5930, %v5932
    %v5938 = vmax.f32 %v5934, %v5936
    %v5939 = vmax.f32 %v5937, %v5938
    %5940 = vst.msk [vmem:[#allocation2 + $0x1f] sm:$0xff] %vm27, %v5939
    %s5941 = scalar_lea.vmem [#allocation6], 108
    %v5942 = vld [vmem:[%s5941] ss:$2 sm:$0xff]
    %s5943 = scalar_lea.vmem [#allocation6], 109
    %v5944 = vld [vmem:[%s5943] ss:$2 sm:$0xff]
    %s5945 = scalar_lea.vmem [#allocation6], 126
    %v5946 = vld [vmem:[%s5945] ss:$2 sm:$0xff]
    %s5947 = scalar_lea.vmem [#allocation6], 127
    %v5948 = vld [vmem:[%s5947] ss:$2 sm:$0xff]
    %v5949 = vmax.f32 %v5942, %v5944
    %v5950 = vmax.f32 %v5946, %v5948
    %v5951 = vmax.f32 %v5949, %v5950
    %5952 = vst.msk [vmem:[#allocation2 + $0x29] sm:$0xff] %vm27, %v5951
    %s5953 = scalar_lea.vmem [#allocation6], 144
    %v5954 = vld [vmem:[%s5953] ss:$2 sm:$0xff]
    %s5955 = scalar_lea.vmem [#allocation6], 145
    %v5956 = vld [vmem:[%s5955] ss:$2 sm:$0xff]
    %s5957 = scalar_lea.vmem [#allocation6], 162
    %v5958 = vld [vmem:[%s5957] ss:$2 sm:$0xff]
    %s5959 = scalar_lea.vmem [#allocation6], 163
    %v5960 = vld [vmem:[%s5959] ss:$2 sm:$0xff]
    %v5961 = vmax.f32 %v5954, %v5956
    %v5962 = vmax.f32 %v5958, %v5960
    %v5963 = vmax.f32 %v5961, %v5962
    %5964 = vst.msk [vmem:[#allocation2 + $0x33] sm:$0xff] %vm27, %v5963
    %s5965 = scalar_lea.vmem [#allocation6], 180
    %v5966 = vld [vmem:[%s5965] ss:$2 sm:$0xff]
    %s5967 = scalar_lea.vmem [#allocation6], 181
    %v5968 = vld [vmem:[%s5967] ss:$2 sm:$0xff]
    %s5969 = scalar_lea.vmem [#allocation6], 198
    %v5970 = vld [vmem:[%s5969] ss:$2 sm:$0xff]
    %s5971 = scalar_lea.vmem [#allocation6], 199
    %v5972 = vld [vmem:[%s5971] ss:$2 sm:$0xff]
    %v5973 = vmax.f32 %v5966, %v5968
    %v5974 = vmax.f32 %v5970, %v5972
    %v5975 = vmax.f32 %v5973, %v5974
    %5976 = vst.msk [vmem:[#allocation2 + $0x3d] sm:$0xff] %vm27, %v5975
    %s5977 = scalar_lea.vmem [#allocation6], 216
    %v5978 = vld [vmem:[%s5977] ss:$2 sm:$0xff]
    %s5979 = scalar_lea.vmem [#allocation6], 217
    %v5980 = vld [vmem:[%s5979] ss:$2 sm:$0xff]
    %s5981 = scalar_lea.vmem [#allocation6], 234
    %v5982 = vld [vmem:[%s5981] ss:$2 sm:$0xff]
    %s5983 = scalar_lea.vmem [#allocation6], 235
    %v5984 = vld [vmem:[%s5983] ss:$2 sm:$0xff]
    %v5985 = vmax.f32 %v5978, %v5980
    %v5986 = vmax.f32 %v5982, %v5984
    %v5987 = vmax.f32 %v5985, %v5986
    %5988 = vst.msk [vmem:[#allocation2 + $0x47] sm:$0xff] %vm27, %v5987
    %s5989 = scalar_lea.vmem [#allocation6], 252
    %v5990 = vld [vmem:[%s5989] ss:$2 sm:$0xff]
    %s5991 = scalar_lea.vmem [#allocation6], 253
    %v5992 = vld [vmem:[%s5991] ss:$2 sm:$0xff]
    %s5993 = scalar_lea.vmem [#allocation6], 270
    %v5994 = vld [vmem:[%s5993] ss:$2 sm:$0xff]
    %s5995 = scalar_lea.vmem [#allocation6], 271
    %v5996 = vld [vmem:[%s5995] ss:$2 sm:$0xff]
    %v5997 = vmax.f32 %v5990, %v5992
    %v5998 = vmax.f32 %v5994, %v5996
    %v5999 = vmax.f32 %v5997, %v5998
    %6000 = vst.msk [vmem:[#allocation2 + $0x51] sm:$0xff] %vm27, %v5999
    %s6001 = scalar_lea.vmem [#allocation6], 324
    %v6002 = vld [vmem:[%s6001] ss:$2 sm:$0xff]
    %s6003 = scalar_lea.vmem [#allocation6], 325
    %v6004 = vld [vmem:[%s6003] ss:$2 sm:$0xff]
    %s6005 = scalar_lea.vmem [#allocation6], 342
    %v6006 = vld [vmem:[%s6005] ss:$2 sm:$0xff]
    %s6007 = scalar_lea.vmem [#allocation6], 343
    %v6008 = vld [vmem:[%s6007] ss:$2 sm:$0xff]
    %v6009 = vmax.f32 %v6002, %v6004
    %v6010 = vmax.f32 %v6006, %v6008
    %v6011 = vmax.f32 %v6009, %v6010
    %6012 = vst.msk [vmem:[#allocation2 + $0x6f] sm:$0xff] %vm27, %v6011
    %s6013 = scalar_lea.vmem [#allocation6], 360
    %v6014 = vld [vmem:[%s6013] ss:$2 sm:$0xff]
    %s6015 = scalar_lea.vmem [#allocation6], 361
    %v6016 = vld [vmem:[%s6015] ss:$2 sm:$0xff]
    %s6017 = scalar_lea.vmem [#allocation6], 378
    %v6018 = vld [vmem:[%s6017] ss:$2 sm:$0xff]
    %s6019 = scalar_lea.vmem [#allocation6], 379
    %v6020 = vld [vmem:[%s6019] ss:$2 sm:$0xff]
    %v6021 = vmax.f32 %v6014, %v6016
    %v6022 = vmax.f32 %v6018, %v6020
    %v6023 = vmax.f32 %v6021, %v6022
    %6024 = vst.msk [vmem:[#allocation2 + $0x79] sm:$0xff] %vm27, %v6023
    %s6025 = scalar_lea.vmem [#allocation6], 396
    %v6026 = vld [vmem:[%s6025] ss:$2 sm:$0xff]
    %s6027 = scalar_lea.vmem [#allocation6], 397
    %v6028 = vld [vmem:[%s6027] ss:$2 sm:$0xff]
    %s6029 = scalar_lea.vmem [#allocation6], 414
    %v6030 = vld [vmem:[%s6029] ss:$2 sm:$0xff]
    %s6031 = scalar_lea.vmem [#allocation6], 415
    %v6032 = vld [vmem:[%s6031] ss:$2 sm:$0xff]
    %v6033 = vmax.f32 %v6026, %v6028
    %v6034 = vmax.f32 %v6030, %v6032
    %v6035 = vmax.f32 %v6033, %v6034
    %6036 = vst.msk [vmem:[#allocation2 + $0x83] sm:$0xff] %vm27, %v6035
    %s6037 = scalar_lea.vmem [#allocation6], 432
    %v6038 = vld [vmem:[%s6037] ss:$2 sm:$0xff]
    %s6039 = scalar_lea.vmem [#allocation6], 433
    %v6040 = vld [vmem:[%s6039] ss:$2 sm:$0xff]
    %s6041 = scalar_lea.vmem [#allocation6], 450
    %v6042 = vld [vmem:[%s6041] ss:$2 sm:$0xff]
    %s6043 = scalar_lea.vmem [#allocation6], 451
    %v6044 = vld [vmem:[%s6043] ss:$2 sm:$0xff]
    %v6045 = vmax.f32 %v6038, %v6040
    %v6046 = vmax.f32 %v6042, %v6044
    %v6047 = vmax.f32 %v6045, %v6046
    %6048 = vst.msk [vmem:[#allocation2 + $0x8d] sm:$0xff] %vm27, %v6047
    %s6049 = scalar_lea.vmem [#allocation6], 468
    %v6050 = vld [vmem:[%s6049] ss:$2 sm:$0xff]
    %s6051 = scalar_lea.vmem [#allocation6], 469
    %v6052 = vld [vmem:[%s6051] ss:$2 sm:$0xff]
    %s6053 = scalar_lea.vmem [#allocation6], 486
    %v6054 = vld [vmem:[%s6053] ss:$2 sm:$0xff]
    %s6055 = scalar_lea.vmem [#allocation6], 487
    %v6056 = vld [vmem:[%s6055] ss:$2 sm:$0xff]
    %v6057 = vmax.f32 %v6050, %v6052
    %v6058 = vmax.f32 %v6054, %v6056
    %v6059 = vmax.f32 %v6057, %v6058
    %6060 = vst.msk [vmem:[#allocation2 + $0x97] sm:$0xff] %vm27, %v6059
    %s6061 = scalar_lea.vmem [#allocation6], 504
    %v6062 = vld [vmem:[%s6061] ss:$2 sm:$0xff]
    %s6063 = scalar_lea.vmem [#allocation6], 505
    %v6064 = vld [vmem:[%s6063] ss:$2 sm:$0xff]
    %s6065 = scalar_lea.vmem [#allocation6], 522
    %v6066 = vld [vmem:[%s6065] ss:$2 sm:$0xff]
    %s6067 = scalar_lea.vmem [#allocation6], 523
    %v6068 = vld [vmem:[%s6067] ss:$2 sm:$0xff]
    %v6069 = vmax.f32 %v6062, %v6064
    %v6070 = vmax.f32 %v6066, %v6068
    %v6071 = vmax.f32 %v6069, %v6070
    %6072 = vst.msk [vmem:[#allocation2 + $0xa1] sm:$0xff] %vm27, %v6071
    %s6073 = scalar_lea.vmem [#allocation6], 540
    %v6074 = vld [vmem:[%s6073] ss:$2 sm:$0xff]
    %s6075 = scalar_lea.vmem [#allocation6], 541
    %v6076 = vld [vmem:[%s6075] ss:$2 sm:$0xff]
    %s6077 = scalar_lea.vmem [#allocation6], 558
    %v6078 = vld [vmem:[%s6077] ss:$2 sm:$0xff]
    %s6079 = scalar_lea.vmem [#allocation6], 559
    %v6080 = vld [vmem:[%s6079] ss:$2 sm:$0xff]
    %v6081 = vmax.f32 %v6074, %v6076
    %v6082 = vmax.f32 %v6078, %v6080
    %v6083 = vmax.f32 %v6081, %v6082
    %6084 = vst.msk [vmem:[#allocation2 + $0xab] sm:$0xff] %vm27, %v6083
    %s6085 = scalar_lea.vmem [#allocation6], 576
    %v6086 = vld [vmem:[%s6085] ss:$2 sm:$0xff]
    %s6087 = scalar_lea.vmem [#allocation6], 577
    %v6088 = vld [vmem:[%s6087] ss:$2 sm:$0xff]
    %s6089 = scalar_lea.vmem [#allocation6], 594
    %v6090 = vld [vmem:[%s6089] ss:$2 sm:$0xff]
    %s6091 = scalar_lea.vmem [#allocation6], 595
    %v6092 = vld [vmem:[%s6091] ss:$2 sm:$0xff]
    %v6093 = vmax.f32 %v6086, %v6088
    %v6094 = vmax.f32 %v6090, %v6092
    %v6095 = vmax.f32 %v6093, %v6094
    %6096 = vst.msk [vmem:[#allocation2 + $0xb5] sm:$0xff] %vm27, %v6095
    %v6097 = vld [vmem:[#allocation2] sm:$0xff]
    %v6098 = vld [vmem:[#allocation2 + $0x8] sm:$0xff]
    %v6099 = vld [vmem:[#allocation2 + $0x10] sm:$0xff]
    %v6100 = vld [vmem:[#allocation2 + $0x18] sm:$0xff]
    %v6101 = vld [vmem:[#allocation2 + $0x20] sm:$0xff]
    %v6102 = vld [vmem:[#allocation2 + $0x28] sm:$0xff]
    %v6103 = vld [vmem:[#allocation2 + $0x30] sm:$0xff]
    %v6104 = vld [vmem:[#allocation2 + $0x38] sm:$0xff]
    %v6105 = vld [vmem:[#allocation2 + $0x40] sm:$0xff]
    %v6106 = vld [vmem:[#allocation2 + $0x48] sm:$0xff]
    %v6107 = vld [vmem:[#allocation2 + $0x50] sm:$0xff]
    %v6108 = vld [vmem:[#allocation2 + $0x58] sm:$0xff]
    %v6109 = vld [vmem:[#allocation2 + $0x60] sm:$0xff]
    %v6110 = vld [vmem:[#allocation2 + $0x68] sm:$0xff]
    %v6111 = vld [vmem:[#allocation2 + $0x70] sm:$0xff]
    %v6112 = vld [vmem:[#allocation2 + $0x78] sm:$0xff]
    %v6113 = vld [vmem:[#allocation2 + $0x80] sm:$0xff]
    %v6114 = vld [vmem:[#allocation2 + $0x88] sm:$0xff]
    %v6115 = vld [vmem:[#allocation2 + $0x90] sm:$0xff]
    %v6116 = vld [vmem:[#allocation2 + $0x98] sm:$0xff]
    %v6117 = vld [vmem:[#allocation2 + $0xa0] sm:$0xff]
    %v6118 = vld [vmem:[#allocation2 + $0xa8] sm:$0xff]
    %v6119 = vld [vmem:[#allocation2 + $0xb0] sm:$0xff]
    %v6120 = vld [vmem:[#allocation2 + $0xb8] sm:$0xff]
    %v6121 = vld [vmem:[#allocation2 + $0xc0] sm:$0xff]
    %6122 = vst.msk [vmem:[#allocation5] sm:$0xff] %vm27, %v6097
    %6123 = vst.msk [vmem:[#allocation5 + $0x18] sm:$0xff] %vm27, %v6098
    %6124 = vst.msk [vmem:[#allocation5 + $0x30] sm:$0xff] %vm27, %v6099
    %6125 = vst.msk [vmem:[#allocation5 + $0x48] sm:$0xff] %vm27, %v6100
    %6126 = vst.msk [vmem:[#allocation5 + $0x60] sm:$0xff] %vm27, %v6101
    %6127 = vst.msk [vmem:[#allocation5 + $0x78] sm:$0xff] %vm27, %v6102
    %6128 = vst.msk [vmem:[#allocation5 + $0x90] sm:$0xff] %vm27, %v6103
    %6129 = vst.msk [vmem:[#allocation5 + $0xa8] sm:$0xff] %vm27, %v6104
    %6130 = vst.msk [vmem:[#allocation5 + $0xc0] sm:$0xff] %vm27, %v6105
    %6131 = vst.msk [vmem:[#allocation5 + $0xd8] sm:$0xff] %vm27, %v6106
    %6132 = vst.msk [vmem:[#allocation5 + $0xf0] sm:$0xff] %vm27, %v6107
    %6133 = vst.msk [vmem:[#allocation5 + $0x108] sm:$0xff] %vm27, %v6108
    %6134 = vst.msk [vmem:[#allocation5 + $0x120] sm:$0xff] %vm27, %v6109
    %6135 = vst.msk [vmem:[#allocation5 + $0x138] sm:$0xff] %vm27, %v6110
    %6136 = vst.msk [vmem:[#allocation5 + $0x150] sm:$0xff] %vm27, %v6111
    %6137 = vst.msk [vmem:[#allocation5 + $0x168] sm:$0xff] %vm27, %v6112
    %6138 = vst.msk [vmem:[#allocation5 + $0x180] sm:$0xff] %vm27, %v6113
    %6139 = vst.msk [vmem:[#allocation5 + $0x198] sm:$0xff] %vm27, %v6114
    %6140 = vst.msk [vmem:[#allocation5 + $0x1b0] sm:$0xff] %vm27, %v6115
    %6141 = vst.msk [vmem:[#allocation5 + $0x1c8] sm:$0xff] %vm27, %v6116
    %6142 = vst.msk [vmem:[#allocation5 + $0x1e0] sm:$0xff] %vm27, %v6117
    %6143 = vst.msk [vmem:[#allocation5 + $0x1f8] sm:$0xff] %vm27, %v6118
    %6144 = vst.msk [vmem:[#allocation5 + $0x210] sm:$0xff] %vm27, %v6119
    %6145 = vst.msk [vmem:[#allocation5 + $0x228] sm:$0xff] %vm27, %v6120
    %6146 = vst.msk [vmem:[#allocation5 + $0x240] sm:$0xff] %vm27, %v6121
    %v6147 = vld [vmem:[#allocation2 + $0x1] sm:$0xff]
    %v6148 = vld [vmem:[#allocation2 + $0x9] sm:$0xff]
    %v6149 = vld [vmem:[#allocation2 + $0x11] sm:$0xff]
    %v6150 = vld [vmem:[#allocation2 + $0x19] sm:$0xff]
    %v6151 = vld [vmem:[#allocation2 + $0x21] sm:$0xff]
    %v6152 = vld [vmem:[#allocation2 + $0x29] sm:$0xff]
    %v6153 = vld [vmem:[#allocation2 + $0x31] sm:$0xff]
    %v6154 = vld [vmem:[#allocation2 + $0x39] sm:$0xff]
    %v6155 = vld [vmem:[#allocation2 + $0x41] sm:$0xff]
    %v6156 = vld [vmem:[#allocation2 + $0x49] sm:$0xff]
    %v6157 = vld [vmem:[#allocation2 + $0x51] sm:$0xff]
    %v6158 = vld [vmem:[#allocation2 + $0x59] sm:$0xff]
    %v6159 = vld [vmem:[#allocation2 + $0x61] sm:$0xff]
    %v6160 = vld [vmem:[#allocation2 + $0x69] sm:$0xff]
    %v6161 = vld [vmem:[#allocation2 + $0x71] sm:$0xff]
    %v6162 = vld [vmem:[#allocation2 + $0x79] sm:$0xff]
    %v6163 = vld [vmem:[#allocation2 + $0x81] sm:$0xff]
    %v6164 = vld [vmem:[#allocation2 + $0x89] sm:$0xff]
    %v6165 = vld [vmem:[#allocation2 + $0x91] sm:$0xff]
    %v6166 = vld [vmem:[#allocation2 + $0x99] sm:$0xff]
    %v6167 = vld [vmem:[#allocation2 + $0xa1] sm:$0xff]
    %v6168 = vld [vmem:[#allocation2 + $0xa9] sm:$0xff]
    %v6169 = vld [vmem:[#allocation2 + $0xb1] sm:$0xff]
    %v6170 = vld [vmem:[#allocation2 + $0xb9] sm:$0xff]
    %v6171 = vld [vmem:[#allocation2 + $0xc1] sm:$0xff]
    %6197 = vrot.lane.b32.xlu0 %v6147, 32
    %v6198 = vpop.permute.xlu0 %6197
    %6199 = vrot.lane.b32.xlu0 %v6148, 32
    %v6200 = vpop.permute.xlu0 %6199
    %6201 = vrot.lane.b32.xlu0 %v6149, 32
    %v6202 = vpop.permute.xlu0 %6201
    %6203 = vrot.lane.b32.xlu0 %v6150, 32
    %v6204 = vpop.permute.xlu0 %6203
    %6205 = vrot.lane.b32.xlu0 %v6151, 32
    %v6206 = vpop.permute.xlu0 %6205
    %6207 = vrot.lane.b32.xlu0 %v6152, 32
    %v6208 = vpop.permute.xlu0 %6207
    %6209 = vrot.lane.b32.xlu0 %v6153, 32
    %v6210 = vpop.permute.xlu0 %6209
    %6211 = vrot.lane.b32.xlu0 %v6154, 32
    %v6212 = vpop.permute.xlu0 %6211
    %6213 = vrot.lane.b32.xlu0 %v6155, 32
    %v6214 = vpop.permute.xlu0 %6213
    %6215 = vrot.lane.b32.xlu0 %v6156, 32
    %v6216 = vpop.permute.xlu0 %6215
    %6217 = vrot.lane.b32.xlu0 %v6157, 32
    %v6218 = vpop.permute.xlu0 %6217
    %6219 = vrot.lane.b32.xlu0 %v6158, 32
    %v6220 = vpop.permute.xlu0 %6219
    %6221 = vrot.lane.b32.xlu0 %v6159, 32
    %v6222 = vpop.permute.xlu0 %6221
    %6223 = vrot.lane.b32.xlu0 %v6160, 32
    %v6224 = vpop.permute.xlu0 %6223
    %6225 = vrot.lane.b32.xlu0 %v6161, 32
    %v6226 = vpop.permute.xlu0 %6225
    %6227 = vrot.lane.b32.xlu0 %v6162, 32
    %v6228 = vpop.permute.xlu0 %6227
    %6229 = vrot.lane.b32.xlu0 %v6163, 32
    %v6230 = vpop.permute.xlu0 %6229
    %6231 = vrot.lane.b32.xlu0 %v6164, 32
    %v6232 = vpop.permute.xlu0 %6231
    %6233 = vrot.lane.b32.xlu0 %v6165, 32
    %v6234 = vpop.permute.xlu0 %6233
    %6235 = vrot.lane.b32.xlu0 %v6166, 32
    %v6236 = vpop.permute.xlu0 %6235
    %6237 = vrot.lane.b32.xlu0 %v6167, 32
    %v6238 = vpop.permute.xlu0 %6237
    %6239 = vrot.lane.b32.xlu0 %v6168, 32
    %v6240 = vpop.permute.xlu0 %6239
    %6241 = vrot.lane.b32.xlu0 %v6169, 32
    %v6242 = vpop.permute.xlu0 %6241
    %6243 = vrot.lane.b32.xlu0 %v6170, 32
    %v6244 = vpop.permute.xlu0 %6243
    %6245 = vrot.lane.b32.xlu0 %v6171, 32
    %v6246 = vpop.permute.xlu0 %6245
    %6272 = vst.msk [vmem:[#allocation5] sm:$0xff] %vm640, %v6198
    %6273 = vst.msk [vmem:[#allocation5 + $0x18] sm:$0xff] %vm640, %v6200
    %6274 = vst.msk [vmem:[#allocation5 + $0x30] sm:$0xff] %vm640, %v6202
    %6275 = vst.msk [vmem:[#allocation5 + $0x48] sm:$0xff] %vm640, %v6204
    %6276 = vst.msk [vmem:[#allocation5 + $0x60] sm:$0xff] %vm640, %v6206
    %6277 = vst.msk [vmem:[#allocation5 + $0x78] sm:$0xff] %vm640, %v6208
    %6278 = vst.msk [vmem:[#allocation5 + $0x90] sm:$0xff] %vm640, %v6210
    %6279 = vst.msk [vmem:[#allocation5 + $0xa8] sm:$0xff] %vm640, %v6212
    %6280 = vst.msk [vmem:[#allocation5 + $0xc0] sm:$0xff] %vm640, %v6214
    %6281 = vst.msk [vmem:[#allocation5 + $0xd8] sm:$0xff] %vm640, %v6216
    %6282 = vst.msk [vmem:[#allocation5 + $0xf0] sm:$0xff] %vm640, %v6218
    %6283 = vst.msk [vmem:[#allocation5 + $0x108] sm:$0xff] %vm640, %v6220
    %6284 = vst.msk [vmem:[#allocation5 + $0x120] sm:$0xff] %vm640, %v6222
    %6285 = vst.msk [vmem:[#allocation5 + $0x138] sm:$0xff] %vm640, %v6224
    %6286 = vst.msk [vmem:[#allocation5 + $0x150] sm:$0xff] %vm640, %v6226
    %6287 = vst.msk [vmem:[#allocation5 + $0x168] sm:$0xff] %vm640, %v6228
    %6288 = vst.msk [vmem:[#allocation5 + $0x180] sm:$0xff] %vm640, %v6230
    %6289 = vst.msk [vmem:[#allocation5 + $0x198] sm:$0xff] %vm640, %v6232
    %6290 = vst.msk [vmem:[#allocation5 + $0x1b0] sm:$0xff] %vm640, %v6234
    %6291 = vst.msk [vmem:[#allocation5 + $0x1c8] sm:$0xff] %vm640, %v6236
    %6292 = vst.msk [vmem:[#allocation5 + $0x1e0] sm:$0xff] %vm640, %v6238
    %6293 = vst.msk [vmem:[#allocation5 + $0x1f8] sm:$0xff] %vm640, %v6240
    %6294 = vst.msk [vmem:[#allocation5 + $0x210] sm:$0xff] %vm640, %v6242
    %6295 = vst.msk [vmem:[#allocation5 + $0x228] sm:$0xff] %vm640, %v6244
    %6296 = vst.msk [vmem:[#allocation5 + $0x240] sm:$0xff] %vm640, %v6246
    %v6297 = vld [vmem:[#allocation2 + $0x2] sm:$0xff]
    %v6298 = vld [vmem:[#allocation2 + $0xa] sm:$0xff]
    %v6299 = vld [vmem:[#allocation2 + $0x12] sm:$0xff]
    %v6300 = vld [vmem:[#allocation2 + $0x1a] sm:$0xff]
    %v6301 = vld [vmem:[#allocation2 + $0x22] sm:$0xff]
    %v6302 = vld [vmem:[#allocation2 + $0x2a] sm:$0xff]
    %v6303 = vld [vmem:[#allocation2 + $0x32] sm:$0xff]
    %v6304 = vld [vmem:[#allocation2 + $0x3a] sm:$0xff]
    %v6305 = vld [vmem:[#allocation2 + $0x42] sm:$0xff]
    %v6306 = vld [vmem:[#allocation2 + $0x4a] sm:$0xff]
    %v6307 = vld [vmem:[#allocation2 + $0x52] sm:$0xff]
    %v6308 = vld [vmem:[#allocation2 + $0x5a] sm:$0xff]
    %v6309 = vld [vmem:[#allocation2 + $0x62] sm:$0xff]
    %v6310 = vld [vmem:[#allocation2 + $0x6a] sm:$0xff]
    %v6311 = vld [vmem:[#allocation2 + $0x72] sm:$0xff]
    %v6312 = vld [vmem:[#allocation2 + $0x7a] sm:$0xff]
    %v6313 = vld [vmem:[#allocation2 + $0x82] sm:$0xff]
    %v6314 = vld [vmem:[#allocation2 + $0x8a] sm:$0xff]
    %v6315 = vld [vmem:[#allocation2 + $0x92] sm:$0xff]
    %v6316 = vld [vmem:[#allocation2 + $0x9a] sm:$0xff]
    %v6317 = vld [vmem:[#allocation2 + $0xa2] sm:$0xff]
    %v6318 = vld [vmem:[#allocation2 + $0xaa] sm:$0xff]
    %v6319 = vld [vmem:[#allocation2 + $0xb2] sm:$0xff]
    %v6320 = vld [vmem:[#allocation2 + $0xba] sm:$0xff]
    %v6321 = vld [vmem:[#allocation2 + $0xc2] sm:$0xff]
    %6347 = vrot.lane.b32.xlu0 %v6297, 64
    %v6348 = vpop.permute.xlu0 %6347
    %6349 = vrot.lane.b32.xlu0 %v6298, 64
    %v6350 = vpop.permute.xlu0 %6349
    %6351 = vrot.lane.b32.xlu0 %v6299, 64
    %v6352 = vpop.permute.xlu0 %6351
    %6353 = vrot.lane.b32.xlu0 %v6300, 64
    %v6354 = vpop.permute.xlu0 %6353
    %6355 = vrot.lane.b32.xlu0 %v6301, 64
    %v6356 = vpop.permute.xlu0 %6355
    %6357 = vrot.lane.b32.xlu0 %v6302, 64
    %v6358 = vpop.permute.xlu0 %6357
    %6359 = vrot.lane.b32.xlu0 %v6303, 64
    %v6360 = vpop.permute.xlu0 %6359
    %6361 = vrot.lane.b32.xlu0 %v6304, 64
    %v6362 = vpop.permute.xlu0 %6361
    %6363 = vrot.lane.b32.xlu0 %v6305, 64
    %v6364 = vpop.permute.xlu0 %6363
    %6365 = vrot.lane.b32.xlu0 %v6306, 64
    %v6366 = vpop.permute.xlu0 %6365
    %6367 = vrot.lane.b32.xlu0 %v6307, 64
    %v6368 = vpop.permute.xlu0 %6367
    %6369 = vrot.lane.b32.xlu0 %v6308, 64
    %v6370 = vpop.permute.xlu0 %6369
    %6371 = vrot.lane.b32.xlu0 %v6309, 64
    %v6372 = vpop.permute.xlu0 %6371
    %6373 = vrot.lane.b32.xlu0 %v6310, 64
    %v6374 = vpop.permute.xlu0 %6373
    %6375 = vrot.lane.b32.xlu0 %v6311, 64
    %v6376 = vpop.permute.xlu0 %6375
    %6377 = vrot.lane.b32.xlu0 %v6312, 64
    %v6378 = vpop.permute.xlu0 %6377
    %6379 = vrot.lane.b32.xlu0 %v6313, 64
    %v6380 = vpop.permute.xlu0 %6379
    %6381 = vrot.lane.b32.xlu0 %v6314, 64
    %v6382 = vpop.permute.xlu0 %6381
    %6383 = vrot.lane.b32.xlu0 %v6315, 64
    %v6384 = vpop.permute.xlu0 %6383
    %6385 = vrot.lane.b32.xlu0 %v6316, 64
    %v6386 = vpop.permute.xlu0 %6385
    %6387 = vrot.lane.b32.xlu0 %v6317, 64
    %v6388 = vpop.permute.xlu0 %6387
    %6389 = vrot.lane.b32.xlu0 %v6318, 64
    %v6390 = vpop.permute.xlu0 %6389
    %6391 = vrot.lane.b32.xlu0 %v6319, 64
    %v6392 = vpop.permute.xlu0 %6391
    %6393 = vrot.lane.b32.xlu0 %v6320, 64
    %v6394 = vpop.permute.xlu0 %6393
    %6395 = vrot.lane.b32.xlu0 %v6321, 64
    %v6396 = vpop.permute.xlu0 %6395
    %6422 = vst.msk [vmem:[#allocation5] sm:$0xff] %vm1127, %v6348
    %6423 = vst.msk [vmem:[#allocation5 + $0x18] sm:$0xff] %vm1127, %v6350
    %6424 = vst.msk [vmem:[#allocation5 + $0x30] sm:$0xff] %vm1127, %v6352
    %6425 = vst.msk [vmem:[#allocation5 + $0x48] sm:$0xff] %vm1127, %v6354
    %6426 = vst.msk [vmem:[#allocation5 + $0x60] sm:$0xff] %vm1127, %v6356
    %6427 = vst.msk [vmem:[#allocation5 + $0x78] sm:$0xff] %vm1127, %v6358
    %6428 = vst.msk [vmem:[#allocation5 + $0x90] sm:$0xff] %vm1127, %v6360
    %6429 = vst.msk [vmem:[#allocation5 + $0xa8] sm:$0xff] %vm1127, %v6362
    %6430 = vst.msk [vmem:[#allocation5 + $0xc0] sm:$0xff] %vm1127, %v6364
    %6431 = vst.msk [vmem:[#allocation5 + $0xd8] sm:$0xff] %vm1127, %v6366
    %6432 = vst.msk [vmem:[#allocation5 + $0xf0] sm:$0xff] %vm1127, %v6368
    %6433 = vst.msk [vmem:[#allocation5 + $0x108] sm:$0xff] %vm1127, %v6370
    %6434 = vst.msk [vmem:[#allocation5 + $0x120] sm:$0xff] %vm1127, %v6372
    %6435 = vst.msk [vmem:[#allocation5 + $0x138] sm:$0xff] %vm1127, %v6374
    %6436 = vst.msk [vmem:[#allocation5 + $0x150] sm:$0xff] %vm1127, %v6376
    %6437 = vst.msk [vmem:[#allocation5 + $0x168] sm:$0xff] %vm1127, %v6378
    %6438 = vst.msk [vmem:[#allocation5 + $0x180] sm:$0xff] %vm1127, %v6380
    %6439 = vst.msk [vmem:[#allocation5 + $0x198] sm:$0xff] %vm1127, %v6382
    %6440 = vst.msk [vmem:[#allocation5 + $0x1b0] sm:$0xff] %vm1127, %v6384
    %6441 = vst.msk [vmem:[#allocation5 + $0x1c8] sm:$0xff] %vm1127, %v6386
    %6442 = vst.msk [vmem:[#allocation5 + $0x1e0] sm:$0xff] %vm1127, %v6388
    %6443 = vst.msk [vmem:[#allocation5 + $0x1f8] sm:$0xff] %vm1127, %v6390
    %6444 = vst.msk [vmem:[#allocation5 + $0x210] sm:$0xff] %vm1127, %v6392
    %6445 = vst.msk [vmem:[#allocation5 + $0x228] sm:$0xff] %vm1127, %v6394
    %6446 = vst.msk [vmem:[#allocation5 + $0x240] sm:$0xff] %vm1127, %v6396
    %v6447 = vld [vmem:[#allocation2 + $0xa] sm:$0xff]
    %v6448 = vld [vmem:[#allocation2 + $0x12] sm:$0xff]
    %v6449 = vld [vmem:[#allocation2 + $0x1a] sm:$0xff]
    %v6450 = vld [vmem:[#allocation2 + $0x22] sm:$0xff]
    %v6451 = vld [vmem:[#allocation2 + $0x2a] sm:$0xff]
    %v6452 = vld [vmem:[#allocation2 + $0x32] sm:$0xff]
    %v6453 = vld [vmem:[#allocation2 + $0x3a] sm:$0xff]
    %v6454 = vld [vmem:[#allocation2 + $0x42] sm:$0xff]
    %v6455 = vld [vmem:[#allocation2 + $0x4a] sm:$0xff]
    %v6456 = vld [vmem:[#allocation2 + $0x52] sm:$0xff]
    %v6457 = vld [vmem:[#allocation2 + $0x5a] sm:$0xff]
    %v6458 = vld [vmem:[#allocation2 + $0x62] sm:$0xff]
    %v6459 = vld [vmem:[#allocation2 + $0x6a] sm:$0xff]
    %v6460 = vld [vmem:[#allocation2 + $0x72] sm:$0xff]
    %v6461 = vld [vmem:[#allocation2 + $0x7a] sm:$0xff]
    %v6462 = vld [vmem:[#allocation2 + $0x82] sm:$0xff]
    %v6463 = vld [vmem:[#allocation2 + $0x8a] sm:$0xff]
    %v6464 = vld [vmem:[#allocation2 + $0x92] sm:$0xff]
    %v6465 = vld [vmem:[#allocation2 + $0x9a] sm:$0xff]
    %v6466 = vld [vmem:[#allocation2 + $0xa2] sm:$0xff]
    %v6467 = vld [vmem:[#allocation2 + $0xaa] sm:$0xff]
    %v6468 = vld [vmem:[#allocation2 + $0xb2] sm:$0xff]
    %v6469 = vld [vmem:[#allocation2 + $0xba] sm:$0xff]
    %v6470 = vld [vmem:[#allocation2 + $0xc2] sm:$0xff]
    %v6471 = vld [vmem:[#allocation2 + $0xca] sm:$0xff]
    %6497 = vrot.lane.b32.xlu0 %v6447, 96
    %v6498 = vpop.permute.xlu0 %6497
    %6499 = vrot.lane.b32.xlu0 %v6448, 96
    %v6500 = vpop.permute.xlu0 %6499
    %6501 = vrot.lane.b32.xlu0 %v6449, 96
    %v6502 = vpop.permute.xlu0 %6501
    %6503 = vrot.lane.b32.xlu0 %v6450, 96
    %v6504 = vpop.permute.xlu0 %6503
    %6505 = vrot.lane.b32.xlu0 %v6451, 96
    %v6506 = vpop.permute.xlu0 %6505
    %6507 = vrot.lane.b32.xlu0 %v6452, 96
    %v6508 = vpop.permute.xlu0 %6507
    %6509 = vrot.lane.b32.xlu0 %v6453, 96
    %v6510 = vpop.permute.xlu0 %6509
    %6511 = vrot.lane.b32.xlu0 %v6454, 96
    %v6512 = vpop.permute.xlu0 %6511
    %6513 = vrot.lane.b32.xlu0 %v6455, 96
    %v6514 = vpop.permute.xlu0 %6513
    %6515 = vrot.lane.b32.xlu0 %v6456, 96
    %v6516 = vpop.permute.xlu0 %6515
    %6517 = vrot.lane.b32.xlu0 %v6457, 96
    %v6518 = vpop.permute.xlu0 %6517
    %6519 = vrot.lane.b32.xlu0 %v6458, 96
    %v6520 = vpop.permute.xlu0 %6519
    %6521 = vrot.lane.b32.xlu0 %v6459, 96
    %v6522 = vpop.permute.xlu0 %6521
    %6523 = vrot.lane.b32.xlu0 %v6460, 96
    %v6524 = vpop.permute.xlu0 %6523
    %6525 = vrot.lane.b32.xlu0 %v6461, 96
    %v6526 = vpop.permute.xlu0 %6525
    %6527 = vrot.lane.b32.xlu0 %v6462, 96
    %v6528 = vpop.permute.xlu0 %6527
    %6529 = vrot.lane.b32.xlu0 %v6463, 96
    %v6530 = vpop.permute.xlu0 %6529
    %6531 = vrot.lane.b32.xlu0 %v6464, 96
    %v6532 = vpop.permute.xlu0 %6531
    %6533 = vrot.lane.b32.xlu0 %v6465, 96
    %v6534 = vpop.permute.xlu0 %6533
    %6535 = vrot.lane.b32.xlu0 %v6466, 96
    %v6536 = vpop.permute.xlu0 %6535
    %6537 = vrot.lane.b32.xlu0 %v6467, 96
    %v6538 = vpop.permute.xlu0 %6537
    %6539 = vrot.lane.b32.xlu0 %v6468, 96
    %v6540 = vpop.permute.xlu0 %6539
    %6541 = vrot.lane.b32.xlu0 %v6469, 96
    %v6542 = vpop.permute.xlu0 %6541
    %6543 = vrot.lane.b32.xlu0 %v6470, 96
    %v6544 = vpop.permute.xlu0 %6543
    %6545 = vrot.lane.b32.xlu0 %v6471, 96
    %v6546 = vpop.permute.xlu0 %6545
    %6572 = vst.msk [vmem:[#allocation5] sm:$0xff] %vm1614, %v6498
    %6573 = vst.msk [vmem:[#allocation5 + $0x18] sm:$0xff] %vm1614, %v6500
    %6574 = vst.msk [vmem:[#allocation5 + $0x30] sm:$0xff] %vm1614, %v6502
    %6575 = vst.msk [vmem:[#allocation5 + $0x48] sm:$0xff] %vm1614, %v6504
    %6576 = vst.msk [vmem:[#allocation5 + $0x60] sm:$0xff] %vm1614, %v6506
    %6577 = vst.msk [vmem:[#allocation5 + $0x78] sm:$0xff] %vm1614, %v6508
    %6578 = vst.msk [vmem:[#allocation5 + $0x90] sm:$0xff] %vm1614, %v6510
    %6579 = vst.msk [vmem:[#allocation5 + $0xa8] sm:$0xff] %vm1614, %v6512
    %6580 = vst.msk [vmem:[#allocation5 + $0xc0] sm:$0xff] %vm1614, %v6514
    %6581 = vst.msk [vmem:[#allocation5 + $0xd8] sm:$0xff] %vm1614, %v6516
    %6582 = vst.msk [vmem:[#allocation5 + $0xf0] sm:$0xff] %vm1614, %v6518
    %6583 = vst.msk [vmem:[#allocation5 + $0x108] sm:$0xff] %vm1614, %v6520
    %6584 = vst.msk [vmem:[#allocation5 + $0x120] sm:$0xff] %vm1614, %v6522
    %6585 = vst.msk [vmem:[#allocation5 + $0x138] sm:$0xff] %vm1614, %v6524
    %6586 = vst.msk [vmem:[#allocation5 + $0x150] sm:$0xff] %vm1614, %v6526
    %6587 = vst.msk [vmem:[#allocation5 + $0x168] sm:$0xff] %vm1614, %v6528
    %6588 = vst.msk [vmem:[#allocation5 + $0x180] sm:$0xff] %vm1614, %v6530
    %6589 = vst.msk [vmem:[#allocation5 + $0x198] sm:$0xff] %vm1614, %v6532
    %6590 = vst.msk [vmem:[#allocation5 + $0x1b0] sm:$0xff] %vm1614, %v6534
    %6591 = vst.msk [vmem:[#allocation5 + $0x1c8] sm:$0xff] %vm1614, %v6536
    %6592 = vst.msk [vmem:[#allocation5 + $0x1e0] sm:$0xff] %vm1614, %v6538
    %6593 = vst.msk [vmem:[#allocation5 + $0x1f8] sm:$0xff] %vm1614, %v6540
    %6594 = vst.msk [vmem:[#allocation5 + $0x210] sm:$0xff] %vm1614, %v6542
    %6595 = vst.msk [vmem:[#allocation5 + $0x228] sm:$0xff] %vm1614, %v6544
    %6596 = vst.msk [vmem:[#allocation5 + $0x240] sm:$0xff] %vm1614, %v6546
    %v6597 = vld [vmem:[#allocation2 + $0xb] sm:$0xff]
    %v6598 = vld [vmem:[#allocation2 + $0x13] sm:$0xff]
    %v6599 = vld [vmem:[#allocation2 + $0x1b] sm:$0xff]
    %v6600 = vld [vmem:[#allocation2 + $0x23] sm:$0xff]
    %v6601 = vld [vmem:[#allocation2 + $0x2b] sm:$0xff]
    %v6602 = vld [vmem:[#allocation2 + $0x33] sm:$0xff]
    %v6603 = vld [vmem:[#allocation2 + $0x3b] sm:$0xff]
    %v6604 = vld [vmem:[#allocation2 + $0x43] sm:$0xff]
    %v6605 = vld [vmem:[#allocation2 + $0x4b] sm:$0xff]
    %v6606 = vld [vmem:[#allocation2 + $0x53] sm:$0xff]
    %v6607 = vld [vmem:[#allocation2 + $0x5b] sm:$0xff]
    %v6608 = vld [vmem:[#allocation2 + $0x63] sm:$0xff]
    %v6609 = vld [vmem:[#allocation2 + $0x6b] sm:$0xff]
    %v6610 = vld [vmem:[#allocation2 + $0x73] sm:$0xff]
    %v6611 = vld [vmem:[#allocation2 + $0x7b] sm:$0xff]
    %v6612 = vld [vmem:[#allocation2 + $0x83] sm:$0xff]
    %v6613 = vld [vmem:[#allocation2 + $0x8b] sm:$0xff]
    %v6614 = vld [vmem:[#allocation2 + $0x93] sm:$0xff]
    %v6615 = vld [vmem:[#allocation2 + $0x9b] sm:$0xff]
    %v6616 = vld [vmem:[#allocation2 + $0xa3] sm:$0xff]
    %v6617 = vld [vmem:[#allocation2 + $0xab] sm:$0xff]
    %v6618 = vld [vmem:[#allocation2 + $0xb3] sm:$0xff]
    %v6619 = vld [vmem:[#allocation2 + $0xbb] sm:$0xff]
    %v6620 = vld [vmem:[#allocation2 + $0xc3] sm:$0xff]
    %v6621 = vld [vmem:[#allocation2 + $0xcb] sm:$0xff]
    %6622 = vst.msk [vmem:[#allocation5 + $0x8] sm:$0xff] %vm27, %v6597
    %6623 = vst.msk [vmem:[#allocation5 + $0x20] sm:$0xff] %vm27, %v6598
    %6624 = vst.msk [vmem:[#allocation5 + $0x38] sm:$0xff] %vm27, %v6599
    %6625 = vst.msk [vmem:[#allocation5 + $0x50] sm:$0xff] %vm27, %v6600
    %6626 = vst.msk [vmem:[#allocation5 + $0x68] sm:$0xff] %vm27, %v6601
    %6627 = vst.msk [vmem:[#allocation5 + $0x80] sm:$0xff] %vm27, %v6602
    %6628 = vst.msk [vmem:[#allocation5 + $0x98] sm:$0xff] %vm27, %v6603
    %6629 = vst.msk [vmem:[#allocation5 + $0xb0] sm:$0xff] %vm27, %v6604
    %6630 = vst.msk [vmem:[#allocation5 + $0xc8] sm:$0xff] %vm27, %v6605
    %6631 = vst.msk [vmem:[#allocation5 + $0xe0] sm:$0xff] %vm27, %v6606
    %6632 = vst.msk [vmem:[#allocation5 + $0xf8] sm:$0xff] %vm27, %v6607
    %6633 = vst.msk [vmem:[#allocation5 + $0x110] sm:$0xff] %vm27, %v6608
    %6634 = vst.msk [vmem:[#allocation5 + $0x128] sm:$0xff] %vm27, %v6609
    %6635 = vst.msk [vmem:[#allocation5 + $0x140] sm:$0xff] %vm27, %v6610
    %6636 = vst.msk [vmem:[#allocation5 + $0x158] sm:$0xff] %vm27, %v6611
    %6637 = vst.msk [vmem:[#allocation5 + $0x170] sm:$0xff] %vm27, %v6612
    %6638 = vst.msk [vmem:[#allocation5 + $0x188] sm:$0xff] %vm27, %v6613
    %6639 = vst.msk [vmem:[#allocation5 + $0x1a0] sm:$0xff] %vm27, %v6614
    %6640 = vst.msk [vmem:[#allocation5 + $0x1b8] sm:$0xff] %vm27, %v6615
    %6641 = vst.msk [vmem:[#allocation5 + $0x1d0] sm:$0xff] %vm27, %v6616
    %6642 = vst.msk [vmem:[#allocation5 + $0x1e8] sm:$0xff] %vm27, %v6617
    %6643 = vst.msk [vmem:[#allocation5 + $0x200] sm:$0xff] %vm27, %v6618
    %6644 = vst.msk [vmem:[#allocation5 + $0x218] sm:$0xff] %vm27, %v6619
    %6645 = vst.msk [vmem:[#allocation5 + $0x230] sm:$0xff] %vm27, %v6620
    %6646 = vst.msk [vmem:[#allocation5 + $0x248] sm:$0xff] %vm27, %v6621
    %v6647 = vld [vmem:[#allocation2 + $0xc] sm:$0xff]
    %v6648 = vld [vmem:[#allocation2 + $0x14] sm:$0xff]
    %v6649 = vld [vmem:[#allocation2 + $0x1c] sm:$0xff]
    %v6650 = vld [vmem:[#allocation2 + $0x24] sm:$0xff]
    %v6651 = vld [vmem:[#allocation2 + $0x2c] sm:$0xff]
    %v6652 = vld [vmem:[#allocation2 + $0x34] sm:$0xff]
    %v6653 = vld [vmem:[#allocation2 + $0x3c] sm:$0xff]
    %v6654 = vld [vmem:[#allocation2 + $0x44] sm:$0xff]
    %v6655 = vld [vmem:[#allocation2 + $0x4c] sm:$0xff]
    %v6656 = vld [vmem:[#allocation2 + $0x54] sm:$0xff]
    %v6657 = vld [vmem:[#allocation2 + $0x5c] sm:$0xff]
    %v6658 = vld [vmem:[#allocation2 + $0x64] sm:$0xff]
    %v6659 = vld [vmem:[#allocation2 + $0x6c] sm:$0xff]
    %v6660 = vld [vmem:[#allocation2 + $0x74] sm:$0xff]
    %v6661 = vld [vmem:[#allocation2 + $0x7c] sm:$0xff]
    %v6662 = vld [vmem:[#allocation2 + $0x84] sm:$0xff]
    %v6663 = vld [vmem:[#allocation2 + $0x8c] sm:$0xff]
    %v6664 = vld [vmem:[#allocation2 + $0x94] sm:$0xff]
    %v6665 = vld [vmem:[#allocation2 + $0x9c] sm:$0xff]
    %v6666 = vld [vmem:[#allocation2 + $0xa4] sm:$0xff]
    %v6667 = vld [vmem:[#allocation2 + $0xac] sm:$0xff]
    %v6668 = vld [vmem:[#allocation2 + $0xb4] sm:$0xff]
    %v6669 = vld [vmem:[#allocation2 + $0xbc] sm:$0xff]
    %v6670 = vld [vmem:[#allocation2 + $0xc4] sm:$0xff]
    %v6671 = vld [vmem:[#allocation2 + $0xcc] sm:$0xff]
    %6697 = vrot.lane.b32.xlu0 %v6647, 32
    %v6698 = vpop.permute.xlu0 %6697
    %6699 = vrot.lane.b32.xlu0 %v6648, 32
    %v6700 = vpop.permute.xlu0 %6699
    %6701 = vrot.lane.b32.xlu0 %v6649, 32
    %v6702 = vpop.permute.xlu0 %6701
    %6703 = vrot.lane.b32.xlu0 %v6650, 32
    %v6704 = vpop.permute.xlu0 %6703
    %6705 = vrot.lane.b32.xlu0 %v6651, 32
    %v6706 = vpop.permute.xlu0 %6705
    %6707 = vrot.lane.b32.xlu0 %v6652, 32
    %v6708 = vpop.permute.xlu0 %6707
    %6709 = vrot.lane.b32.xlu0 %v6653, 32
    %v6710 = vpop.permute.xlu0 %6709
    %6711 = vrot.lane.b32.xlu0 %v6654, 32
    %v6712 = vpop.permute.xlu0 %6711
    %6713 = vrot.lane.b32.xlu0 %v6655, 32
    %v6714 = vpop.permute.xlu0 %6713
    %6715 = vrot.lane.b32.xlu0 %v6656, 32
    %v6716 = vpop.permute.xlu0 %6715
    %6717 = vrot.lane.b32.xlu0 %v6657, 32
    %v6718 = vpop.permute.xlu0 %6717
    %6719 = vrot.lane.b32.xlu0 %v6658, 32
    %v6720 = vpop.permute.xlu0 %6719
    %6721 = vrot.lane.b32.xlu0 %v6659, 32
    %v6722 = vpop.permute.xlu0 %6721
    %6723 = vrot.lane.b32.xlu0 %v6660, 32
    %v6724 = vpop.permute.xlu0 %6723
    %6725 = vrot.lane.b32.xlu0 %v6661, 32
    %v6726 = vpop.permute.xlu0 %6725
    %6727 = vrot.lane.b32.xlu0 %v6662, 32
    %v6728 = vpop.permute.xlu0 %6727
    %6729 = vrot.lane.b32.xlu0 %v6663, 32
    %v6730 = vpop.permute.xlu0 %6729
    %6731 = vrot.lane.b32.xlu0 %v6664, 32
    %v6732 = vpop.permute.xlu0 %6731
    %6733 = vrot.lane.b32.xlu0 %v6665, 32
    %v6734 = vpop.permute.xlu0 %6733
    %6735 = vrot.lane.b32.xlu0 %v6666, 32
    %v6736 = vpop.permute.xlu0 %6735
    %6737 = vrot.lane.b32.xlu0 %v6667, 32
    %v6738 = vpop.permute.xlu0 %6737
    %6739 = vrot.lane.b32.xlu0 %v6668, 32
    %v6740 = vpop.permute.xlu0 %6739
    %6741 = vrot.lane.b32.xlu0 %v6669, 32
    %v6742 = vpop.permute.xlu0 %6741
    %6743 = vrot.lane.b32.xlu0 %v6670, 32
    %v6744 = vpop.permute.xlu0 %6743
    %6745 = vrot.lane.b32.xlu0 %v6671, 32
    %v6746 = vpop.permute.xlu0 %6745
    %6772 = vst.msk [vmem:[#allocation5 + $0x8] sm:$0xff] %vm640, %v6698
    %6773 = vst.msk [vmem:[#allocation5 + $0x20] sm:$0xff] %vm640, %v6700
    %6774 = vst.msk [vmem:[#allocation5 + $0x38] sm:$0xff] %vm640, %v6702
    %6775 = vst.msk [vmem:[#allocation5 + $0x50] sm:$0xff] %vm640, %v6704
    %6776 = vst.msk [vmem:[#allocation5 + $0x68] sm:$0xff] %vm640, %v6706
    %6777 = vst.msk [vmem:[#allocation5 + $0x80] sm:$0xff] %vm640, %v6708
    %6778 = vst.msk [vmem:[#allocation5 + $0x98] sm:$0xff] %vm640, %v6710
    %6779 = vst.msk [vmem:[#allocation5 + $0xb0] sm:$0xff] %vm640, %v6712
    %6780 = vst.msk [vmem:[#allocation5 + $0xc8] sm:$0xff] %vm640, %v6714
    %6781 = vst.msk [vmem:[#allocation5 + $0xe0] sm:$0xff] %vm640, %v6716
    %6782 = vst.msk [vmem:[#allocation5 + $0xf8] sm:$0xff] %vm640, %v6718
    %6783 = vst.msk [vmem:[#allocation5 + $0x110] sm:$0xff] %vm640, %v6720
    %6784 = vst.msk [vmem:[#allocation5 + $0x128] sm:$0xff] %vm640, %v6722
    %6785 = vst.msk [vmem:[#allocation5 + $0x140] sm:$0xff] %vm640, %v6724
    %6786 = vst.msk [vmem:[#allocation5 + $0x158] sm:$0xff] %vm640, %v6726
    %6787 = vst.msk [vmem:[#allocation5 + $0x170] sm:$0xff] %vm640, %v6728
    %6788 = vst.msk [vmem:[#allocation5 + $0x188] sm:$0xff] %vm640, %v6730
    %6789 = vst.msk [vmem:[#allocation5 + $0x1a0] sm:$0xff] %vm640, %v6732
    %6790 = vst.msk [vmem:[#allocation5 + $0x1b8] sm:$0xff] %vm640, %v6734
    %6791 = vst.msk [vmem:[#allocation5 + $0x1d0] sm:$0xff] %vm640, %v6736
    %6792 = vst.msk [vmem:[#allocation5 + $0x1e8] sm:$0xff] %vm640, %v6738
    %6793 = vst.msk [vmem:[#allocation5 + $0x200] sm:$0xff] %vm640, %v6740
    %6794 = vst.msk [vmem:[#allocation5 + $0x218] sm:$0xff] %vm640, %v6742
    %6795 = vst.msk [vmem:[#allocation5 + $0x230] sm:$0xff] %vm640, %v6744
    %6796 = vst.msk [vmem:[#allocation5 + $0x248] sm:$0xff] %vm640, %v6746
    %v6797 = vld [vmem:[#allocation2 + $0x14] sm:$0xff]
    %v6798 = vld [vmem:[#allocation2 + $0x1c] sm:$0xff]
    %v6799 = vld [vmem:[#allocation2 + $0x24] sm:$0xff]
    %v6800 = vld [vmem:[#allocation2 + $0x2c] sm:$0xff]
    %v6801 = vld [vmem:[#allocation2 + $0x34] sm:$0xff]
    %v6802 = vld [vmem:[#allocation2 + $0x3c] sm:$0xff]
    %v6803 = vld [vmem:[#allocation2 + $0x44] sm:$0xff]
    %v6804 = vld [vmem:[#allocation2 + $0x4c] sm:$0xff]
    %v6805 = vld [vmem:[#allocation2 + $0x54] sm:$0xff]
    %v6806 = vld [vmem:[#allocation2 + $0x5c] sm:$0xff]
    %v6807 = vld [vmem:[#allocation2 + $0x64] sm:$0xff]
    %v6808 = vld [vmem:[#allocation2 + $0x6c] sm:$0xff]
    %v6809 = vld [vmem:[#allocation2 + $0x74] sm:$0xff]
    %v6810 = vld [vmem:[#allocation2 + $0x7c] sm:$0xff]
    %v6811 = vld [vmem:[#allocation2 + $0x84] sm:$0xff]
    %v6812 = vld [vmem:[#allocation2 + $0x8c] sm:$0xff]
    %v6813 = vld [vmem:[#allocation2 + $0x94] sm:$0xff]
    %v6814 = vld [vmem:[#allocation2 + $0x9c] sm:$0xff]
    %v6815 = vld [vmem:[#allocation2 + $0xa4] sm:$0xff]
    %v6816 = vld [vmem:[#allocation2 + $0xac] sm:$0xff]
    %v6817 = vld [vmem:[#allocation2 + $0xb4] sm:$0xff]
    %v6818 = vld [vmem:[#allocation2 + $0xbc] sm:$0xff]
    %v6819 = vld [vmem:[#allocation2 + $0xc4] sm:$0xff]
    %v6820 = vld [vmem:[#allocation2 + $0xcc] sm:$0xff]
    %v6821 = vld [vmem:[#allocation2 + $0xd4] sm:$0xff]
    %6847 = vrot.lane.b32.xlu0 %v6797, 64
    %v6848 = vpop.permute.xlu0 %6847
    %6849 = vrot.lane.b32.xlu0 %v6798, 64
    %v6850 = vpop.permute.xlu0 %6849
    %6851 = vrot.lane.b32.xlu0 %v6799, 64
    %v6852 = vpop.permute.xlu0 %6851
    %6853 = vrot.lane.b32.xlu0 %v6800, 64
    %v6854 = vpop.permute.xlu0 %6853
    %6855 = vrot.lane.b32.xlu0 %v6801, 64
    %v6856 = vpop.permute.xlu0 %6855
    %6857 = vrot.lane.b32.xlu0 %v6802, 64
    %v6858 = vpop.permute.xlu0 %6857
    %6859 = vrot.lane.b32.xlu0 %v6803, 64
    %v6860 = vpop.permute.xlu0 %6859
    %6861 = vrot.lane.b32.xlu0 %v6804, 64
    %v6862 = vpop.permute.xlu0 %6861
    %6863 = vrot.lane.b32.xlu0 %v6805, 64
    %v6864 = vpop.permute.xlu0 %6863
    %6865 = vrot.lane.b32.xlu0 %v6806, 64
    %v6866 = vpop.permute.xlu0 %6865
    %6867 = vrot.lane.b32.xlu0 %v6807, 64
    %v6868 = vpop.permute.xlu0 %6867
    %6869 = vrot.lane.b32.xlu0 %v6808, 64
    %v6870 = vpop.permute.xlu0 %6869
    %6871 = vrot.lane.b32.xlu0 %v6809, 64
    %v6872 = vpop.permute.xlu0 %6871
    %6873 = vrot.lane.b32.xlu0 %v6810, 64
    %v6874 = vpop.permute.xlu0 %6873
    %6875 = vrot.lane.b32.xlu0 %v6811, 64
    %v6876 = vpop.permute.xlu0 %6875
    %6877 = vrot.lane.b32.xlu0 %v6812, 64
    %v6878 = vpop.permute.xlu0 %6877
    %6879 = vrot.lane.b32.xlu0 %v6813, 64
    %v6880 = vpop.permute.xlu0 %6879
    %6881 = vrot.lane.b32.xlu0 %v6814, 64
    %v6882 = vpop.permute.xlu0 %6881
    %6883 = vrot.lane.b32.xlu0 %v6815, 64
    %v6884 = vpop.permute.xlu0 %6883
    %6885 = vrot.lane.b32.xlu0 %v6816, 64
    %v6886 = vpop.permute.xlu0 %6885
    %6887 = vrot.lane.b32.xlu0 %v6817, 64
    %v6888 = vpop.permute.xlu0 %6887
    %6889 = vrot.lane.b32.xlu0 %v6818, 64
    %v6890 = vpop.permute.xlu0 %6889
    %6891 = vrot.lane.b32.xlu0 %v6819, 64
    %v6892 = vpop.permute.xlu0 %6891
    %6893 = vrot.lane.b32.xlu0 %v6820, 64
    %v6894 = vpop.permute.xlu0 %6893
    %6895 = vrot.lane.b32.xlu0 %v6821, 64
    %v6896 = vpop.permute.xlu0 %6895
    %6922 = vst.msk [vmem:[#allocation5 + $0x8] sm:$0xff] %vm1127, %v6848
    %6923 = vst.msk [vmem:[#allocation5 + $0x20] sm:$0xff] %vm1127, %v6850
    %6924 = vst.msk [vmem:[#allocation5 + $0x38] sm:$0xff] %vm1127, %v6852
    %6925 = vst.msk [vmem:[#allocation5 + $0x50] sm:$0xff] %vm1127, %v6854
    %6926 = vst.msk [vmem:[#allocation5 + $0x68] sm:$0xff] %vm1127, %v6856
    %6927 = vst.msk [vmem:[#allocation5 + $0x80] sm:$0xff] %vm1127, %v6858
    %6928 = vst.msk [vmem:[#allocation5 + $0x98] sm:$0xff] %vm1127, %v6860
    %6929 = vst.msk [vmem:[#allocation5 + $0xb0] sm:$0xff] %vm1127, %v6862
    %6930 = vst.msk [vmem:[#allocation5 + $0xc8] sm:$0xff] %vm1127, %v6864
    %6931 = vst.msk [vmem:[#allocation5 + $0xe0] sm:$0xff] %vm1127, %v6866
    %6932 = vst.msk [vmem:[#allocation5 + $0xf8] sm:$0xff] %vm1127, %v6868
    %6933 = vst.msk [vmem:[#allocation5 + $0x110] sm:$0xff] %vm1127, %v6870
    %6934 = vst.msk [vmem:[#allocation5 + $0x128] sm:$0xff] %vm1127, %v6872
    %6935 = vst.msk [vmem:[#allocation5 + $0x140] sm:$0xff] %vm1127, %v6874
    %6936 = vst.msk [vmem:[#allocation5 + $0x158] sm:$0xff] %vm1127, %v6876
    %6937 = vst.msk [vmem:[#allocation5 + $0x170] sm:$0xff] %vm1127, %v6878
    %6938 = vst.msk [vmem:[#allocation5 + $0x188] sm:$0xff] %vm1127, %v6880
    %6939 = vst.msk [vmem:[#allocation5 + $0x1a0] sm:$0xff] %vm1127, %v6882
    %6940 = vst.msk [vmem:[#allocation5 + $0x1b8] sm:$0xff] %vm1127, %v6884
    %6941 = vst.msk [vmem:[#allocation5 + $0x1d0] sm:$0xff] %vm1127, %v6886
    %6942 = vst.msk [vmem:[#allocation5 + $0x1e8] sm:$0xff] %vm1127, %v6888
    %6943 = vst.msk [vmem:[#allocation5 + $0x200] sm:$0xff] %vm1127, %v6890
    %6944 = vst.msk [vmem:[#allocation5 + $0x218] sm:$0xff] %vm1127, %v6892
    %6945 = vst.msk [vmem:[#allocation5 + $0x230] sm:$0xff] %vm1127, %v6894
    %6946 = vst.msk [vmem:[#allocation5 + $0x248] sm:$0xff] %vm1127, %v6896
    %v6947 = vld [vmem:[#allocation2 + $0x15] sm:$0xff]
    %v6948 = vld [vmem:[#allocation2 + $0x1d] sm:$0xff]
    %v6949 = vld [vmem:[#allocation2 + $0x25] sm:$0xff]
    %v6950 = vld [vmem:[#allocation2 + $0x2d] sm:$0xff]
    %v6951 = vld [vmem:[#allocation2 + $0x35] sm:$0xff]
    %v6952 = vld [vmem:[#allocation2 + $0x3d] sm:$0xff]
    %v6953 = vld [vmem:[#allocation2 + $0x45] sm:$0xff]
    %v6954 = vld [vmem:[#allocation2 + $0x4d] sm:$0xff]
    %v6955 = vld [vmem:[#allocation2 + $0x55] sm:$0xff]
    %v6956 = vld [vmem:[#allocation2 + $0x5d] sm:$0xff]
    %v6957 = vld [vmem:[#allocation2 + $0x65] sm:$0xff]
    %v6958 = vld [vmem:[#allocation2 + $0x6d] sm:$0xff]
    %v6959 = vld [vmem:[#allocation2 + $0x75] sm:$0xff]
    %v6960 = vld [vmem:[#allocation2 + $0x7d] sm:$0xff]
    %v6961 = vld [vmem:[#allocation2 + $0x85] sm:$0xff]
    %v6962 = vld [vmem:[#allocation2 + $0x8d] sm:$0xff]
    %v6963 = vld [vmem:[#allocation2 + $0x95] sm:$0xff]
    %v6964 = vld [vmem:[#allocation2 + $0x9d] sm:$0xff]
    %v6965 = vld [vmem:[#allocation2 + $0xa5] sm:$0xff]
    %v6966 = vld [vmem:[#allocation2 + $0xad] sm:$0xff]
    %v6967 = vld [vmem:[#allocation2 + $0xb5] sm:$0xff]
    %v6968 = vld [vmem:[#allocation2 + $0xbd] sm:$0xff]
    %v6969 = vld [vmem:[#allocation2 + $0xc5] sm:$0xff]
    %v6970 = vld [vmem:[#allocation2 + $0xcd] sm:$0xff]
    %v6971 = vld [vmem:[#allocation2 + $0xd5] sm:$0xff]
    %6997 = vrot.lane.b32.xlu0 %v6947, 96
    %v6998 = vpop.permute.xlu0 %6997
    %6999 = vrot.lane.b32.xlu0 %v6948, 96
    %v7000 = vpop.permute.xlu0 %6999
    %7001 = vrot.lane.b32.xlu0 %v6949, 96
    %v7002 = vpop.permute.xlu0 %7001
    %7003 = vrot.lane.b32.xlu0 %v6950, 96
    %v7004 = vpop.permute.xlu0 %7003
    %7005 = vrot.lane.b32.xlu0 %v6951, 96
    %v7006 = vpop.permute.xlu0 %7005
    %7007 = vrot.lane.b32.xlu0 %v6952, 96
    %v7008 = vpop.permute.xlu0 %7007
    %7009 = vrot.lane.b32.xlu0 %v6953, 96
    %v7010 = vpop.permute.xlu0 %7009
    %7011 = vrot.lane.b32.xlu0 %v6954, 96
    %v7012 = vpop.permute.xlu0 %7011
    %7013 = vrot.lane.b32.xlu0 %v6955, 96
    %v7014 = vpop.permute.xlu0 %7013
    %7015 = vrot.lane.b32.xlu0 %v6956, 96
    %v7016 = vpop.permute.xlu0 %7015
    %7017 = vrot.lane.b32.xlu0 %v6957, 96
    %v7018 = vpop.permute.xlu0 %7017
    %7019 = vrot.lane.b32.xlu0 %v6958, 96
    %v7020 = vpop.permute.xlu0 %7019
    %7021 = vrot.lane.b32.xlu0 %v6959, 96
    %v7022 = vpop.permute.xlu0 %7021
    %7023 = vrot.lane.b32.xlu0 %v6960, 96
    %v7024 = vpop.permute.xlu0 %7023
    %7025 = vrot.lane.b32.xlu0 %v6961, 96
    %v7026 = vpop.permute.xlu0 %7025
    %7027 = vrot.lane.b32.xlu0 %v6962, 96
    %v7028 = vpop.permute.xlu0 %7027
    %7029 = vrot.lane.b32.xlu0 %v6963, 96
    %v7030 = vpop.permute.xlu0 %7029
    %7031 = vrot.lane.b32.xlu0 %v6964, 96
    %v7032 = vpop.permute.xlu0 %7031
    %7033 = vrot.lane.b32.xlu0 %v6965, 96
    %v7034 = vpop.permute.xlu0 %7033
    %7035 = vrot.lane.b32.xlu0 %v6966, 96
    %v7036 = vpop.permute.xlu0 %7035
    %7037 = vrot.lane.b32.xlu0 %v6967, 96
    %v7038 = vpop.permute.xlu0 %7037
    %7039 = vrot.lane.b32.xlu0 %v6968, 96
    %v7040 = vpop.permute.xlu0 %7039
    %7041 = vrot.lane.b32.xlu0 %v6969, 96
    %v7042 = vpop.permute.xlu0 %7041
    %7043 = vrot.lane.b32.xlu0 %v6970, 96
    %v7044 = vpop.permute.xlu0 %7043
    %7045 = vrot.lane.b32.xlu0 %v6971, 96
    %v7046 = vpop.permute.xlu0 %7045
    %7072 = vst.msk [vmem:[#allocation5 + $0x8] sm:$0xff] %vm1614, %v6998
    %7073 = vst.msk [vmem:[#allocation5 + $0x20] sm:$0xff] %vm1614, %v7000
    %7074 = vst.msk [vmem:[#allocation5 + $0x38] sm:$0xff] %vm1614, %v7002
    %7075 = vst.msk [vmem:[#allocation5 + $0x50] sm:$0xff] %vm1614, %v7004
    %7076 = vst.msk [vmem:[#allocation5 + $0x68] sm:$0xff] %vm1614, %v7006
    %7077 = vst.msk [vmem:[#allocation5 + $0x80] sm:$0xff] %vm1614, %v7008
    %7078 = vst.msk [vmem:[#allocation5 + $0x98] sm:$0xff] %vm1614, %v7010
    %7079 = vst.msk [vmem:[#allocation5 + $0xb0] sm:$0xff] %vm1614, %v7012
    %7080 = vst.msk [vmem:[#allocation5 + $0xc8] sm:$0xff] %vm1614, %v7014
    %7081 = vst.msk [vmem:[#allocation5 + $0xe0] sm:$0xff] %vm1614, %v7016
    %7082 = vst.msk [vmem:[#allocation5 + $0xf8] sm:$0xff] %vm1614, %v7018
    %7083 = vst.msk [vmem:[#allocation5 + $0x110] sm:$0xff] %vm1614, %v7020
    %7084 = vst.msk [vmem:[#allocation5 + $0x128] sm:$0xff] %vm1614, %v7022
    %7085 = vst.msk [vmem:[#allocation5 + $0x140] sm:$0xff] %vm1614, %v7024
    %7086 = vst.msk [vmem:[#allocation5 + $0x158] sm:$0xff] %vm1614, %v7026
    %7087 = vst.msk [vmem:[#allocation5 + $0x170] sm:$0xff] %vm1614, %v7028
    %7088 = vst.msk [vmem:[#allocation5 + $0x188] sm:$0xff] %vm1614, %v7030
    %7089 = vst.msk [vmem:[#allocation5 + $0x1a0] sm:$0xff] %vm1614, %v7032
    %7090 = vst.msk [vmem:[#allocation5 + $0x1b8] sm:$0xff] %vm1614, %v7034
    %7091 = vst.msk [vmem:[#allocation5 + $0x1d0] sm:$0xff] %vm1614, %v7036
    %7092 = vst.msk [vmem:[#allocation5 + $0x1e8] sm:$0xff] %vm1614, %v7038
    %7093 = vst.msk [vmem:[#allocation5 + $0x200] sm:$0xff] %vm1614, %v7040
    %7094 = vst.msk [vmem:[#allocation5 + $0x218] sm:$0xff] %vm1614, %v7042
    %7095 = vst.msk [vmem:[#allocation5 + $0x230] sm:$0xff] %vm1614, %v7044
    %7096 = vst.msk [vmem:[#allocation5 + $0x248] sm:$0xff] %vm1614, %v7046
    %v7097 = vld [vmem:[#allocation2 + $0x16] sm:$0xff]
    %v7098 = vld [vmem:[#allocation2 + $0x1e] sm:$0xff]
    %v7099 = vld [vmem:[#allocation2 + $0x26] sm:$0xff]
    %v7100 = vld [vmem:[#allocation2 + $0x2e] sm:$0xff]
    %v7101 = vld [vmem:[#allocation2 + $0x36] sm:$0xff]
    %v7102 = vld [vmem:[#allocation2 + $0x3e] sm:$0xff]
    %v7103 = vld [vmem:[#allocation2 + $0x46] sm:$0xff]
    %v7104 = vld [vmem:[#allocation2 + $0x4e] sm:$0xff]
    %v7105 = vld [vmem:[#allocation2 + $0x56] sm:$0xff]
    %v7106 = vld [vmem:[#allocation2 + $0x5e] sm:$0xff]
    %v7107 = vld [vmem:[#allocation2 + $0x66] sm:$0xff]
    %v7108 = vld [vmem:[#allocation2 + $0x6e] sm:$0xff]
    %v7109 = vld [vmem:[#allocation2 + $0x76] sm:$0xff]
    %v7110 = vld [vmem:[#allocation2 + $0x7e] sm:$0xff]
    %v7111 = vld [vmem:[#allocation2 + $0x86] sm:$0xff]
    %v7112 = vld [vmem:[#allocation2 + $0x8e] sm:$0xff]
    %v7113 = vld [vmem:[#allocation2 + $0x96] sm:$0xff]
    %v7114 = vld [vmem:[#allocation2 + $0x9e] sm:$0xff]
    %v7115 = vld [vmem:[#allocation2 + $0xa6] sm:$0xff]
    %v7116 = vld [vmem:[#allocation2 + $0xae] sm:$0xff]
    %v7117 = vld [vmem:[#allocation2 + $0xb6] sm:$0xff]
    %v7118 = vld [vmem:[#allocation2 + $0xbe] sm:$0xff]
    %v7119 = vld [vmem:[#allocation2 + $0xc6] sm:$0xff]
    %v7120 = vld [vmem:[#allocation2 + $0xce] sm:$0xff]
    %v7121 = vld [vmem:[#allocation2 + $0xd6] sm:$0xff]
    %7122 = vst.msk [vmem:[#allocation5 + $0x10] sm:$0xff] %vm27, %v7097
    %7123 = vst.msk [vmem:[#allocation5 + $0x28] sm:$0xff] %vm27, %v7098
    %7124 = vst.msk [vmem:[#allocation5 + $0x40] sm:$0xff] %vm27, %v7099
    %7125 = vst.msk [vmem:[#allocation5 + $0x58] sm:$0xff] %vm27, %v7100
    %7126 = vst.msk [vmem:[#allocation5 + $0x70] sm:$0xff] %vm27, %v7101
    %7127 = vst.msk [vmem:[#allocation5 + $0x88] sm:$0xff] %vm27, %v7102
    %7128 = vst.msk [vmem:[#allocation5 + $0xa0] sm:$0xff] %vm27, %v7103
    %7129 = vst.msk [vmem:[#allocation5 + $0xb8] sm:$0xff] %vm27, %v7104
    %7130 = vst.msk [vmem:[#allocation5 + $0xd0] sm:$0xff] %vm27, %v7105
    %7131 = vst.msk [vmem:[#allocation5 + $0xe8] sm:$0xff] %vm27, %v7106
    %7132 = vst.msk [vmem:[#allocation5 + $0x100] sm:$0xff] %vm27, %v7107
    %7133 = vst.msk [vmem:[#allocation5 + $0x118] sm:$0xff] %vm27, %v7108
    %7134 = vst.msk [vmem:[#allocation5 + $0x130] sm:$0xff] %vm27, %v7109
    %7135 = vst.msk [vmem:[#allocation5 + $0x148] sm:$0xff] %vm27, %v7110
    %7136 = vst.msk [vmem:[#allocation5 + $0x160] sm:$0xff] %vm27, %v7111
    %7137 = vst.msk [vmem:[#allocation5 + $0x178] sm:$0xff] %vm27, %v7112
    %7138 = vst.msk [vmem:[#allocation5 + $0x190] sm:$0xff] %vm27, %v7113
    %7139 = vst.msk [vmem:[#allocation5 + $0x1a8] sm:$0xff] %vm27, %v7114
    %7140 = vst.msk [vmem:[#allocation5 + $0x1c0] sm:$0xff] %vm27, %v7115
    %7141 = vst.msk [vmem:[#allocation5 + $0x1d8] sm:$0xff] %vm27, %v7116
    %7142 = vst.msk [vmem:[#allocation5 + $0x1f0] sm:$0xff] %vm27, %v7117
    %7143 = vst.msk [vmem:[#allocation5 + $0x208] sm:$0xff] %vm27, %v7118
    %7144 = vst.msk [vmem:[#allocation5 + $0x220] sm:$0xff] %vm27, %v7119
    %7145 = vst.msk [vmem:[#allocation5 + $0x238] sm:$0xff] %vm27, %v7120
    %7146 = vst.msk [vmem:[#allocation5 + $0x250] sm:$0xff] %vm27, %v7121
    %v7147 = vld [vmem:[#allocation5] sm:$0xff]
    %v7148 = vld [vmem:[#allocation5 + $0x8] sm:$0xff]
    %v7149 = vld [vmem:[#allocation5 + $0x10] sm:$0xff]
    %v7150 = vld [vmem:[#allocation5 + $0x18] sm:$0xff]
    %v7151 = vld [vmem:[#allocation5 + $0x20] sm:$0xff]
    %v7152 = vld [vmem:[#allocation5 + $0x28] sm:$0xff]
    %v7153 = vld [vmem:[#allocation5 + $0x30] sm:$0xff]
    %v7154 = vld [vmem:[#allocation5 + $0x38] sm:$0xff]
    %v7155 = vld [vmem:[#allocation5 + $0x40] sm:$0xff]
    %v7156 = vld [vmem:[#allocation5 + $0x48] sm:$0xff]
    %v7157 = vld [vmem:[#allocation5 + $0x50] sm:$0xff]
    %v7158 = vld [vmem:[#allocation5 + $0x58] sm:$0xff]
    %v7159 = vld [vmem:[#allocation5 + $0x60] sm:$0xff]
    %v7160 = vld [vmem:[#allocation5 + $0x68] sm:$0xff]
    %v7161 = vld [vmem:[#allocation5 + $0x70] sm:$0xff]
    %v7162 = vld [vmem:[#allocation5 + $0x78] sm:$0xff]
    %v7163 = vld [vmem:[#allocation5 + $0x80] sm:$0xff]
    %v7164 = vld [vmem:[#allocation5 + $0x88] sm:$0xff]
    %v7165 = vld [vmem:[#allocation5 + $0x90] sm:$0xff]
    %v7166 = vld [vmem:[#allocation5 + $0x98] sm:$0xff]
    %v7167 = vld [vmem:[#allocation5 + $0xa0] sm:$0xff]
    %v7168 = vld [vmem:[#allocation5 + $0xa8] sm:$0xff]
    %v7169 = vld [vmem:[#allocation5 + $0xb0] sm:$0xff]
    %v7170 = vld [vmem:[#allocation5 + $0xb8] sm:$0xff]
    %v7171 = vld [vmem:[#allocation5 + $0xc0] sm:$0xff]
    %v7172 = vld [vmem:[#allocation5 + $0xc8] sm:$0xff]
    %v7173 = vld [vmem:[#allocation5 + $0xd0] sm:$0xff]
    %v7174 = vld [vmem:[#allocation5 + $0xd8] sm:$0xff]
    %v7175 = vld [vmem:[#allocation5 + $0xe0] sm:$0xff]
    %v7176 = vld [vmem:[#allocation5 + $0xe8] sm:$0xff]
    %v7177 = vld [vmem:[#allocation5 + $0xf0] sm:$0xff]
    %v7178 = vld [vmem:[#allocation5 + $0xf8] sm:$0xff]
    %v7179 = vld [vmem:[#allocation5 + $0x100] sm:$0xff]
    %v7180 = vld [vmem:[#allocation5 + $0x108] sm:$0xff]
    %v7181 = vld [vmem:[#allocation5 + $0x110] sm:$0xff]
    %v7182 = vld [vmem:[#allocation5 + $0x118] sm:$0xff]
    %v7183 = vld [vmem:[#allocation5 + $0x120] sm:$0xff]
    %v7184 = vld [vmem:[#allocation5 + $0x128] sm:$0xff]
    %v7185 = vld [vmem:[#allocation5 + $0x130] sm:$0xff]
    %v7186 = vld [vmem:[#allocation5 + $0x138] sm:$0xff]
    %v7187 = vld [vmem:[#allocation5 + $0x140] sm:$0xff]
    %v7188 = vld [vmem:[#allocation5 + $0x148] sm:$0xff]
    %v7189 = vld [vmem:[#allocation5 + $0x150] sm:$0xff]
    %v7190 = vld [vmem:[#allocation5 + $0x158] sm:$0xff]
    %v7191 = vld [vmem:[#allocation5 + $0x160] sm:$0xff]
    %v7192 = vld [vmem:[#allocation5 + $0x168] sm:$0xff]
    %v7193 = vld [vmem:[#allocation5 + $0x170] sm:$0xff]
    %v7194 = vld [vmem:[#allocation5 + $0x178] sm:$0xff]
    %v7195 = vld [vmem:[#allocation5 + $0x180] sm:$0xff]
    %v7196 = vld [vmem:[#allocation5 + $0x188] sm:$0xff]
    %v7197 = vld [vmem:[#allocation5 + $0x190] sm:$0xff]
    %v7198 = vld [vmem:[#allocation5 + $0x198] sm:$0xff]
    %v7199 = vld [vmem:[#allocation5 + $0x1a0] sm:$0xff]
    %v7200 = vld [vmem:[#allocation5 + $0x1a8] sm:$0xff]
    %v7201 = vld [vmem:[#allocation5 + $0x1b0] sm:$0xff]
    %v7202 = vld [vmem:[#allocation5 + $0x1b8] sm:$0xff]
    %v7203 = vld [vmem:[#allocation5 + $0x1c0] sm:$0xff]
    %v7204 = vld [vmem:[#allocation5 + $0x1c8] sm:$0xff]
    %v7205 = vld [vmem:[#allocation5 + $0x1d0] sm:$0xff]
    %v7206 = vld [vmem:[#allocation5 + $0x1d8] sm:$0xff]
    %v7207 = vld [vmem:[#allocation5 + $0x1e0] sm:$0xff]
    %v7208 = vld [vmem:[#allocation5 + $0x1e8] sm:$0xff]
    %v7209 = vld [vmem:[#allocation5 + $0x1f0] sm:$0xff]
    %v7210 = vld [vmem:[#allocation5 + $0x1f8] sm:$0xff]
    %v7211 = vld [vmem:[#allocation5 + $0x200] sm:$0xff]
    %v7212 = vld [vmem:[#allocation5 + $0x208] sm:$0xff]
    %v7213 = vld [vmem:[#allocation5 + $0x210] sm:$0xff]
    %v7214 = vld [vmem:[#allocation5 + $0x218] sm:$0xff]
    %v7215 = vld [vmem:[#allocation5 + $0x220] sm:$0xff]
    %v7216 = vld [vmem:[#allocation5 + $0x228] sm:$0xff]
    %v7217 = vld [vmem:[#allocation5 + $0x230] sm:$0xff]
    %v7218 = vld [vmem:[#allocation5 + $0x238] sm:$0xff]
    %v7219 = vld [vmem:[#allocation5 + $0x240] sm:$0xff]
    %v7220 = vld [vmem:[#allocation5 + $0x248] sm:$0xff]
    %v7221 = vld [vmem:[#allocation5 + $0x250] sm:$0xff]
    %s7222 = scalar_lea.vmem %s1, 288
    %v7223 = vld [vmem:[%s7222] sm:$0xff]
    %v7224 = vld [vmem:[%s7222 + $0x8] sm:$0xff]
    %v7225 = vld [vmem:[%s7222 + $0x10] sm:$0xff]
    %v7226 = vld [vmem:[%s7222 + $0x18] sm:$0xff]
    %v7227 = vld [vmem:[%s7222 + $0x20] sm:$0xff]
    %v7228 = vld [vmem:[%s7222 + $0x28] sm:$0xff]
    %v7229 = vld [vmem:[%s7222 + $0x30] sm:$0xff]
    %v7230 = vld [vmem:[%s7222 + $0x38] sm:$0xff]
    %v7231 = vld [vmem:[%s7222 + $0x40] sm:$0xff]
    %v7232 = vld [vmem:[%s7222 + $0x48] sm:$0xff]
    %v7233 = vld [vmem:[%s7222 + $0x50] sm:$0xff]
    %v7234 = vld [vmem:[%s7222 + $0x58] sm:$0xff]
    %v7235 = vld [vmem:[%s7222 + $0x60] sm:$0xff]
    %v7236 = vld [vmem:[%s7222 + $0x68] sm:$0xff]
    %v7237 = vld [vmem:[%s7222 + $0x70] sm:$0xff]
    %v7238 = vld [vmem:[%s7222 + $0x78] sm:$0xff]
    %v7239 = vld [vmem:[%s7222 + $0x80] sm:$0xff]
    %v7240 = vld [vmem:[%s7222 + $0x88] sm:$0xff]
    %v7241 = vld [vmem:[%s7222 + $0x90] sm:$0xff]
    %v7242 = vld [vmem:[%s7222 + $0x98] sm:$0xff]
    %v7243 = vld [vmem:[%s7222 + $0xa0] sm:$0xff]
    %v7244 = vld [vmem:[%s7222 + $0xa8] sm:$0xff]
    %v7245 = vld [vmem:[%s7222 + $0xb0] sm:$0xff]
    %v7246 = vld [vmem:[%s7222 + $0xb8] sm:$0xff]
    %v7247 = vld [vmem:[%s7222 + $0xc0] sm:$0xff]
    %v7248 = vld [vmem:[%s7222 + $0xc8] sm:$0xff]
    %v7249 = vld [vmem:[%s7222 + $0xd0] sm:$0xff]
    %v7250 = vld [vmem:[%s7222 + $0xd8] sm:$0xff]
    %v7251 = vld [vmem:[%s7222 + $0xe0] sm:$0xff]
    %v7252 = vld [vmem:[%s7222 + $0xe8] sm:$0xff]
    %v7253 = vld [vmem:[%s7222 + $0xf0] sm:$0xff]
    %v7254 = vld [vmem:[%s7222 + $0xf8] sm:$0xff]
    %v7255 = vld [vmem:[%s7222 + $0x100] sm:$0xff]
    %v7256 = vld [vmem:[%s7222 + $0x108] sm:$0xff]
    %v7257 = vld [vmem:[%s7222 + $0x110] sm:$0xff]
    %v7258 = vld [vmem:[%s7222 + $0x118] sm:$0xff]
    %v7260 = vsel %vm27, %v7149, 0
    %v7263 = vsel %vm27, %v7152, 0
    %v7266 = vsel %vm27, %v7155, 0
    %v7269 = vsel %vm27, %v7158, 0
    %v7272 = vsel %vm27, %v7161, 0
    %v7275 = vsel %vm27, %v7164, 0
    %v7278 = vsel %vm27, %v7167, 0
    %v7281 = vsel %vm27, %v7170, 0
    %v7284 = vsel %vm27, %v7173, 0
    %v7287 = vsel %vm27, %v7176, 0
    %v7290 = vsel %vm27, %v7179, 0
    %v7293 = vsel %vm27, %v7182, 0
    %v7296 = vsel %vm27, %v7185, 0
    %v7299 = vsel %vm27, %v7188, 0
    %v7302 = vsel %vm27, %v7191, 0
    %v7305 = vsel %vm27, %v7194, 0
    %v7308 = vsel %vm27, %v7197, 0
    %v7311 = vsel %vm27, %v7200, 0
    %v7314 = vsel %vm27, %v7203, 0
    %v7317 = vsel %vm27, %v7206, 0
    %v7320 = vsel %vm27, %v7209, 0
    %v7323 = vsel %vm27, %v7212, 0
    %v7326 = vsel %vm27, %v7215, 0
    %v7329 = vsel %vm27, %v7218, 0
    %v7332 = vsel %vm27, %v7221, 0
    %7334 = vmatprep.subr.mxu0 0.0
    %7335 = vmatpush1.msra.mxu0 %v7238
    %7336 = vmatprep.subr.mxu0 0.0
    %7337 = vmatpush1.msra.mxu0 %v7237
    %7338 = vmatprep.subr.mxu0 0.0
    %7339 = vmatpush1.msra.mxu0 %v7236
    %7340 = vmatprep.subr.mxu0 0.0
    %7341 = vmatpush1.msra.mxu0 %v7235
    %7342 = vmatprep.subr.mxu0 0.0
    %7343 = vmatpush1.msra.mxu0 %v7234
    %7344 = vmatprep.subr.mxu0 0.0
    %7345 = vmatpush1.msra.mxu0 %v7233
    %7346 = vmatprep.subr.mxu0 0.0
    %7347 = vmatpush1.msra.mxu0 %v7232
    %7348 = vmatprep.subr.mxu0 0.0
    %7349 = vmatpush1.msra.mxu0 %v7231
    %7350 = vmatprep.subr.mxu0 0.0
    %7351 = vmatpush1.msra.mxu0 %v7230
    %7352 = vmatprep.subr.mxu0 0.0
    %7353 = vmatpush1.msra.mxu0 %v7229
    %7354 = vmatprep.subr.mxu0 0.0
    %7355 = vmatpush1.msra.mxu0 %v7228
    %7356 = vmatprep.subr.mxu0 0.0
    %7357 = vmatpush1.msra.mxu0 %v7227
    %7358 = vmatprep.subr.mxu0 0.0
    %7359 = vmatpush1.msra.mxu0 %v7226
    %7360 = vmatprep.subr.mxu0 0.0
    %7361 = vmatpush1.msra.mxu0 %v7225
    %7362 = vmatprep.subr.mxu0 0.0
    %7363 = vmatpush1.msra.mxu0 %v7224
    %7364 = vmatprep.subr.mxu0 0.0
    %7365 = vmatpush1.msra.mxu0 %v7223
    %7366 = vmatprep.subr.mxu0 0.0
    %7367 = vmatpush2.msra.mxu0 %v7254
    %7368 = vmatprep.subr.mxu0 0.0
    %7369 = vmatpush2.msra.mxu0 %v7253
    %7370 = vmatprep.subr.mxu0 0.0
    %7371 = vmatpush2.msra.mxu0 %v7252
    %7372 = vmatprep.subr.mxu0 0.0
    %7373 = vmatpush2.msra.mxu0 %v7251
    %7374 = vmatprep.subr.mxu0 0.0
    %7375 = vmatpush2.msra.mxu0 %v7250
    %7376 = vmatprep.subr.mxu0 0.0
    %7377 = vmatpush2.msra.mxu0 %v7249
    %7378 = vmatprep.subr.mxu0 0.0
    %7379 = vmatpush2.msra.mxu0 %v7248
    %7380 = vmatprep.subr.mxu0 0.0
    %7381 = vmatpush2.msra.mxu0 %v7247
    %7382 = vmatprep.subr.mxu0 0.0
    %7383 = vmatpush2.msra.mxu0 %v7246
    %7384 = vmatprep.subr.mxu0 0.0
    %7385 = vmatpush2.msra.mxu0 %v7245
    %7386 = vmatprep.subr.mxu0 0.0
    %7387 = vmatpush2.msra.mxu0 %v7244
    %7388 = vmatprep.subr.mxu0 0.0
    %7389 = vmatpush2.msra.mxu0 %v7243
    %7390 = vmatprep.subr.mxu0 0.0
    %7391 = vmatpush2.msra.mxu0 %v7242
    %7392 = vmatprep.subr.mxu0 0.0
    %7393 = vmatpush2.msra.mxu0 %v7241
    %7394 = vmatprep.subr.mxu0 0.0
    %7395 = vmatpush2.msra.mxu0 %v7240
    %7396 = vmatprep.subr.mxu0 0.0
    %7397 = vmatpush2.msra.mxu0 %v7239
    %7398 = vmatprep.mubr.f32.mxu0 %v7148
    %7399 = vmatmul.mubr.f32.gmra.mxu0 %v7147
    %v7400 = vpop.f32.mrf.mxu0
    %v7401 = vadd.f32 0.0, %v7400
    %v7402 = vpop.f32.mrf.mxu0
    %7403 = vmatprep.mubr.f32.mxu0 %v7151
    %7404 = vmatmul.mubr.f32.gmra.mxu0 %v7150
    %v7405 = vpop.f32.mrf.mxu0
    %v7406 = vadd.f32 0.0, %v7405
    %v7407 = vpop.f32.mrf.mxu0
    %7408 = vmatprep.mubr.f32.mxu0 %v7154
    %7409 = vmatmul.mubr.f32.gmra.mxu0 %v7153
    %v7410 = vpop.f32.mrf.mxu0
    %v7411 = vadd.f32 0.0, %v7410
    %v7412 = vpop.f32.mrf.mxu0
    %7413 = vmatprep.mubr.f32.mxu0 %v7157
    %7414 = vmatmul.mubr.f32.gmra.mxu0 %v7156
    %v7415 = vpop.f32.mrf.mxu0
    %v7416 = vadd.f32 0.0, %v7415
    %v7417 = vpop.f32.mrf.mxu0
    %7418 = vmatprep.mubr.f32.mxu0 %v7160
    %7419 = vmatmul.mubr.f32.gmra.mxu0 %v7159
    %v7420 = vpop.f32.mrf.mxu0
    %v7421 = vadd.f32 0.0, %v7420
    %v7422 = vpop.f32.mrf.mxu0
    %7423 = vmatprep.mubr.f32.mxu0 %v7163
    %7424 = vmatmul.mubr.f32.gmra.mxu0 %v7162
    %v7425 = vpop.f32.mrf.mxu0
    %v7426 = vadd.f32 0.0, %v7425
    %v7427 = vpop.f32.mrf.mxu0
    %7428 = vmatprep.mubr.f32.mxu0 %v7166
    %7429 = vmatmul.mubr.f32.gmra.mxu0 %v7165
    %v7430 = vpop.f32.mrf.mxu0
    %v7431 = vadd.f32 0.0, %v7430
    %v7432 = vpop.f32.mrf.mxu0
    %7433 = vmatprep.mubr.f32.mxu0 %v7169
    %7434 = vmatmul.mubr.f32.gmra.mxu0 %v7168
    %v7435 = vpop.f32.mrf.mxu0
    %v7436 = vadd.f32 0.0, %v7435
    %v7437 = vpop.f32.mrf.mxu0
    %7438 = vmatprep.mubr.f32.mxu0 %v7172
    %7439 = vmatmul.mubr.f32.gmra.mxu0 %v7171
    %v7440 = vpop.f32.mrf.mxu0
    %v7441 = vadd.f32 0.0, %v7440
    %v7442 = vpop.f32.mrf.mxu0
    %7443 = vmatprep.mubr.f32.mxu0 %v7175
    %7444 = vmatmul.mubr.f32.gmra.mxu0 %v7174
    %v7445 = vpop.f32.mrf.mxu0
    %v7446 = vadd.f32 0.0, %v7445
    %v7447 = vpop.f32.mrf.mxu0
    %7448 = vmatprep.mubr.f32.mxu0 %v7178
    %7449 = vmatmul.mubr.f32.gmra.mxu0 %v7177
    %v7450 = vpop.f32.mrf.mxu0
    %v7451 = vadd.f32 0.0, %v7450
    %v7452 = vpop.f32.mrf.mxu0
    %7453 = vmatprep.mubr.f32.mxu0 %v7181
    %7454 = vmatmul.mubr.f32.gmra.mxu0 %v7180
    %v7455 = vpop.f32.mrf.mxu0
    %v7456 = vadd.f32 0.0, %v7455
    %v7457 = vpop.f32.mrf.mxu0
    %7458 = vmatprep.mubr.f32.mxu0 %v7184
    %7459 = vmatmul.mubr.f32.gmra.mxu0 %v7183
    %v7460 = vpop.f32.mrf.mxu0
    %v7461 = vadd.f32 0.0, %v7460
    %v7462 = vpop.f32.mrf.mxu0
    %7463 = vmatprep.mubr.f32.mxu0 %v7187
    %7464 = vmatmul.mubr.f32.gmra.mxu0 %v7186
    %v7465 = vpop.f32.mrf.mxu0
    %v7466 = vadd.f32 0.0, %v7465
    %v7467 = vpop.f32.mrf.mxu0
    %7468 = vmatprep.mubr.f32.mxu0 %v7190
    %7469 = vmatmul.mubr.f32.gmra.mxu0 %v7189
    %v7470 = vpop.f32.mrf.mxu0
    %v7471 = vadd.f32 0.0, %v7470
    %v7472 = vpop.f32.mrf.mxu0
    %7473 = vmatprep.mubr.f32.mxu0 %v7193
    %7474 = vmatmul.mubr.f32.gmra.mxu0 %v7192
    %v7475 = vpop.f32.mrf.mxu0
    %v7476 = vadd.f32 0.0, %v7475
    %v7477 = vpop.f32.mrf.mxu0
    %7478 = vmatprep.mubr.f32.mxu0 %v7196
    %7479 = vmatmul.mubr.f32.gmra.mxu0 %v7195
    %v7480 = vpop.f32.mrf.mxu0
    %v7481 = vadd.f32 0.0, %v7480
    %v7482 = vpop.f32.mrf.mxu0
    %7483 = vmatprep.mubr.f32.mxu0 %v7199
    %7484 = vmatmul.mubr.f32.gmra.mxu0 %v7198
    %v7485 = vpop.f32.mrf.mxu0
    %v7486 = vadd.f32 0.0, %v7485
    %v7487 = vpop.f32.mrf.mxu0
    %7488 = vmatprep.mubr.f32.mxu0 %v7202
    %7489 = vmatmul.mubr.f32.gmra.mxu0 %v7201
    %v7490 = vpop.f32.mrf.mxu0
    %v7491 = vadd.f32 0.0, %v7490
    %v7492 = vpop.f32.mrf.mxu0
    %7493 = vmatprep.mubr.f32.mxu0 %v7205
    %7494 = vmatmul.mubr.f32.gmra.mxu0 %v7204
    %v7495 = vpop.f32.mrf.mxu0
    %v7496 = vadd.f32 0.0, %v7495
    %v7497 = vpop.f32.mrf.mxu0
    %7498 = vmatprep.mubr.f32.mxu0 %v7208
    %7499 = vmatmul.mubr.f32.gmra.mxu0 %v7207
    %v7500 = vpop.f32.mrf.mxu0
    %v7501 = vadd.f32 0.0, %v7500
    %v7502 = vpop.f32.mrf.mxu0
    %7503 = vmatprep.mubr.f32.mxu0 %v7211
    %7504 = vmatmul.mubr.f32.gmra.mxu0 %v7210
    %v7505 = vpop.f32.mrf.mxu0
    %v7506 = vadd.f32 0.0, %v7505
    %v7507 = vpop.f32.mrf.mxu0
    %7508 = vmatprep.mubr.f32.mxu0 %v7214
    %7509 = vmatmul.mubr.f32.gmra.mxu0 %v7213
    %v7510 = vpop.f32.mrf.mxu0
    %v7511 = vadd.f32 0.0, %v7510
    %v7512 = vpop.f32.mrf.mxu0
    %7513 = vmatprep.mubr.f32.mxu0 %v7217
    %7514 = vmatmul.mubr.f32.gmra.mxu0 %v7216
    %v7515 = vpop.f32.mrf.mxu0
    %v7516 = vadd.f32 0.0, %v7515
    %v7517 = vpop.f32.mrf.mxu0
    %7518 = vmatprep.mubr.f32.mxu0 %v7220
    %7519 = vmatmul.mubr.f32.gmra.mxu0 %v7219
    %v7520 = vpop.f32.mrf.mxu0
    %v7521 = vadd.f32 0.0, %v7520
    %v7522 = vpop.f32.mrf.mxu0
    %7523 = vdwg.mxu0
    %7524 = vmatprep.subr.mxu0 0.0
    %7525 = vmatpush1.msra.mxu0 0.0
    %7526 = vmatprep.subr.mxu0 0.0
    %7527 = vmatpush1.msra.mxu0 0.0
    %7528 = vmatprep.subr.mxu0 0.0
    %7529 = vmatpush1.msra.mxu0 0.0
    %7530 = vmatprep.subr.mxu0 0.0
    %7531 = vmatpush1.msra.mxu0 0.0
    %7532 = vmatprep.subr.mxu0 0.0
    %7533 = vmatpush1.msra.mxu0 0.0
    %7534 = vmatprep.subr.mxu0 0.0
    %7535 = vmatpush1.msra.mxu0 0.0
    %7536 = vmatprep.subr.mxu0 0.0
    %7537 = vmatpush1.msra.mxu0 0.0
    %7538 = vmatprep.subr.mxu0 0.0
    %7539 = vmatpush1.msra.mxu0 0.0
    %7540 = vmatprep.subr.mxu0 0.0
    %7541 = vmatpush1.msra.mxu0 0.0
    %7542 = vmatprep.subr.mxu0 0.0
    %7543 = vmatpush1.msra.mxu0 0.0
    %7544 = vmatprep.subr.mxu0 0.0
    %7545 = vmatpush1.msra.mxu0 0.0
    %7546 = vmatprep.subr.mxu0 0.0
    %7547 = vmatpush1.msra.mxu0 0.0
    %7548 = vmatprep.subr.mxu0 0.0
    %7549 = vmatpush1.msra.mxu0 %v7258
    %7550 = vmatprep.subr.mxu0 0.0
    %7551 = vmatpush1.msra.mxu0 %v7257
    %7552 = vmatprep.subr.mxu0 0.0
    %7553 = vmatpush1.msra.mxu0 %v7256
    %7554 = vmatprep.subr.mxu0 0.0
    %7555 = vmatpush1.msra.mxu0 %v7255
    %7556 = vmatprep.subr.mxu0 0.0
    %7557 = vmatpush2.msra.mxu0 0.0
    %7558 = vmatprep.subr.mxu0 0.0
    %7559 = vmatpush2.msra.mxu0 0.0
    %7560 = vmatprep.subr.mxu0 0.0
    %7561 = vmatpush2.msra.mxu0 0.0
    %7562 = vmatprep.subr.mxu0 0.0
    %7563 = vmatpush2.msra.mxu0 0.0
    %7564 = vmatprep.subr.mxu0 0.0
    %7565 = vmatpush2.msra.mxu0 0.0
    %7566 = vmatprep.subr.mxu0 0.0
    %7567 = vmatpush2.msra.mxu0 0.0
    %7568 = vmatprep.subr.mxu0 0.0
    %7569 = vmatpush2.msra.mxu0 0.0
    %7570 = vmatprep.subr.mxu0 0.0
    %7571 = vmatpush2.msra.mxu0 0.0
    %7572 = vmatprep.subr.mxu0 0.0
    %7573 = vmatpush2.msra.mxu0 0.0
    %7574 = vmatprep.subr.mxu0 0.0
    %7575 = vmatpush2.msra.mxu0 0.0
    %7576 = vmatprep.subr.mxu0 0.0
    %7577 = vmatpush2.msra.mxu0 0.0
    %7578 = vmatprep.subr.mxu0 0.0
    %7579 = vmatpush2.msra.mxu0 0.0
    %7580 = vmatprep.subr.mxu0 0.0
    %7581 = vmatpush2.msra.mxu0 0.0
    %7582 = vmatprep.subr.mxu0 0.0
    %7583 = vmatpush2.msra.mxu0 0.0
    %7584 = vmatprep.subr.mxu0 0.0
    %7585 = vmatpush2.msra.mxu0 0.0
    %7586 = vmatprep.subr.mxu0 0.0
    %7587 = vmatpush2.msra.mxu0 0.0
    %7588 = vmatprep.mubr.f32.mxu0 0.0
    %7589 = vmatmul.mubr.f32.gmra.mxu0 %v7260
    %v7590 = vpop.f32.mrf.mxu0
    %v7591 = vadd.f32 %v7401, %v7590
    %v7592 = vpop.f32.mrf.mxu0
    %7593 = vmatprep.mubr.f32.mxu0 0.0
    %7594 = vmatmul.mubr.f32.gmra.mxu0 %v7263
    %v7595 = vpop.f32.mrf.mxu0
    %v7596 = vadd.f32 %v7406, %v7595
    %v7597 = vpop.f32.mrf.mxu0
    %7598 = vmatprep.mubr.f32.mxu0 0.0
    %7599 = vmatmul.mubr.f32.gmra.mxu0 %v7266
    %v7600 = vpop.f32.mrf.mxu0
    %v7601 = vadd.f32 %v7411, %v7600
    %v7602 = vpop.f32.mrf.mxu0
    %7603 = vmatprep.mubr.f32.mxu0 0.0
    %7604 = vmatmul.mubr.f32.gmra.mxu0 %v7269
    %v7605 = vpop.f32.mrf.mxu0
    %v7606 = vadd.f32 %v7416, %v7605
    %v7607 = vpop.f32.mrf.mxu0
    %7608 = vmatprep.mubr.f32.mxu0 0.0
    %7609 = vmatmul.mubr.f32.gmra.mxu0 %v7272
    %v7610 = vpop.f32.mrf.mxu0
    %v7611 = vadd.f32 %v7421, %v7610
    %v7612 = vpop.f32.mrf.mxu0
    %7613 = vmatprep.mubr.f32.mxu0 0.0
    %7614 = vmatmul.mubr.f32.gmra.mxu0 %v7275
    %v7615 = vpop.f32.mrf.mxu0
    %v7616 = vadd.f32 %v7426, %v7615
    %v7617 = vpop.f32.mrf.mxu0
    %7618 = vmatprep.mubr.f32.mxu0 0.0
    %7619 = vmatmul.mubr.f32.gmra.mxu0 %v7278
    %v7620 = vpop.f32.mrf.mxu0
    %v7621 = vadd.f32 %v7431, %v7620
    %v7622 = vpop.f32.mrf.mxu0
    %7623 = vmatprep.mubr.f32.mxu0 0.0
    %7624 = vmatmul.mubr.f32.gmra.mxu0 %v7281
    %v7625 = vpop.f32.mrf.mxu0
    %v7626 = vadd.f32 %v7436, %v7625
    %v7627 = vpop.f32.mrf.mxu0
    %7628 = vmatprep.mubr.f32.mxu0 0.0
    %7629 = vmatmul.mubr.f32.gmra.mxu0 %v7284
    %v7630 = vpop.f32.mrf.mxu0
    %v7631 = vadd.f32 %v7441, %v7630
    %v7632 = vpop.f32.mrf.mxu0
    %7633 = vmatprep.mubr.f32.mxu0 0.0
    %7634 = vmatmul.mubr.f32.gmra.mxu0 %v7287
    %v7635 = vpop.f32.mrf.mxu0
    %v7636 = vadd.f32 %v7446, %v7635
    %v7637 = vpop.f32.mrf.mxu0
    %7638 = vmatprep.mubr.f32.mxu0 0.0
    %7639 = vmatmul.mubr.f32.gmra.mxu0 %v7290
    %v7640 = vpop.f32.mrf.mxu0
    %v7641 = vadd.f32 %v7451, %v7640
    %v7642 = vpop.f32.mrf.mxu0
    %7643 = vmatprep.mubr.f32.mxu0 0.0
    %7644 = vmatmul.mubr.f32.gmra.mxu0 %v7293
    %v7645 = vpop.f32.mrf.mxu0
    %v7646 = vadd.f32 %v7456, %v7645
    %v7647 = vpop.f32.mrf.mxu0
    %7648 = vmatprep.mubr.f32.mxu0 0.0
    %7649 = vmatmul.mubr.f32.gmra.mxu0 %v7296
    %v7650 = vpop.f32.mrf.mxu0
    %v7651 = vadd.f32 %v7461, %v7650
    %v7652 = vpop.f32.mrf.mxu0
    %7653 = vmatprep.mubr.f32.mxu0 0.0
    %7654 = vmatmul.mubr.f32.gmra.mxu0 %v7299
    %v7655 = vpop.f32.mrf.mxu0
    %v7656 = vadd.f32 %v7466, %v7655
    %v7657 = vpop.f32.mrf.mxu0
    %7658 = vmatprep.mubr.f32.mxu0 0.0
    %7659 = vmatmul.mubr.f32.gmra.mxu0 %v7302
    %v7660 = vpop.f32.mrf.mxu0
    %v7661 = vadd.f32 %v7471, %v7660
    %v7662 = vpop.f32.mrf.mxu0
    %7663 = vmatprep.mubr.f32.mxu0 0.0
    %7664 = vmatmul.mubr.f32.gmra.mxu0 %v7305
    %v7665 = vpop.f32.mrf.mxu0
    %v7666 = vadd.f32 %v7476, %v7665
    %v7667 = vpop.f32.mrf.mxu0
    %7668 = vmatprep.mubr.f32.mxu0 0.0
    %7669 = vmatmul.mubr.f32.gmra.mxu0 %v7308
    %v7670 = vpop.f32.mrf.mxu0
    %v7671 = vadd.f32 %v7481, %v7670
    %v7672 = vpop.f32.mrf.mxu0
    %7673 = vmatprep.mubr.f32.mxu0 0.0
    %7674 = vmatmul.mubr.f32.gmra.mxu0 %v7311
    %v7675 = vpop.f32.mrf.mxu0
    %v7676 = vadd.f32 %v7486, %v7675
    %v7677 = vpop.f32.mrf.mxu0
    %7678 = vmatprep.mubr.f32.mxu0 0.0
    %7679 = vmatmul.mubr.f32.gmra.mxu0 %v7314
    %v7680 = vpop.f32.mrf.mxu0
    %v7681 = vadd.f32 %v7491, %v7680
    %v7682 = vpop.f32.mrf.mxu0
    %7683 = vmatprep.mubr.f32.mxu0 0.0
    %7684 = vmatmul.mubr.f32.gmra.mxu0 %v7317
    %v7685 = vpop.f32.mrf.mxu0
    %v7686 = vadd.f32 %v7496, %v7685
    %v7687 = vpop.f32.mrf.mxu0
    %7688 = vmatprep.mubr.f32.mxu0 0.0
    %7689 = vmatmul.mubr.f32.gmra.mxu0 %v7320
    %v7690 = vpop.f32.mrf.mxu0
    %v7691 = vadd.f32 %v7501, %v7690
    %v7692 = vpop.f32.mrf.mxu0
    %7693 = vmatprep.mubr.f32.mxu0 0.0
    %7694 = vmatmul.mubr.f32.gmra.mxu0 %v7323
    %v7695 = vpop.f32.mrf.mxu0
    %v7696 = vadd.f32 %v7506, %v7695
    %v7697 = vpop.f32.mrf.mxu0
    %7698 = vmatprep.mubr.f32.mxu0 0.0
    %7699 = vmatmul.mubr.f32.gmra.mxu0 %v7326
    %v7700 = vpop.f32.mrf.mxu0
    %v7701 = vadd.f32 %v7511, %v7700
    %v7702 = vpop.f32.mrf.mxu0
    %7703 = vmatprep.mubr.f32.mxu0 0.0
    %7704 = vmatmul.mubr.f32.gmra.mxu0 %v7329
    %v7705 = vpop.f32.mrf.mxu0
    %v7706 = vadd.f32 %v7516, %v7705
    %v7707 = vpop.f32.mrf.mxu0
    %7708 = vmatprep.mubr.f32.mxu0 0.0
    %7709 = vmatmul.mubr.f32.gmra.mxu0 %v7332
    %v7710 = vpop.f32.mrf.mxu0
    %v7711 = vadd.f32 %v7521, %v7710
    %v7712 = vpop.f32.mrf.mxu0
    %7713 = vdwg.mxu0
    %s7714 = scalar_lea.vmem %s4, 1
    %v7715 = vld [vmem:[%s7714] ss:$4 sm:$0x3]
    %v7717 = vlaneseq
    %v7718 = vshrl.u32 %v7717, 7
    %v7719 = vsub.s32 0, %v7718
    %v7720 = vrot.slane %v7715, %v7719
    %v7721 = vlaneseq
    %v7722 = vshrl.u32 %v7721, 7
    %v7723 = vsub.s32 1, %v7722
    %v7724 = vrot.slane %v7715, %v7723
    %vm7726 = vcmask 588800
    %v7727 = vsel %vm7726, %v7724, 0
    %7729 = vmatprep.subr.mxu0 0.0
    %7730 = vmatpush1.msra.mxu0 %v7666
    %7731 = vmatprep.subr.mxu0 0.0
    %7732 = vmatpush1.msra.mxu0 %v7661
    %7733 = vmatprep.subr.mxu0 0.0
    %7734 = vmatpush1.msra.mxu0 %v7656
    %7735 = vmatprep.subr.mxu0 0.0
    %7736 = vmatpush1.msra.mxu0 %v7651
    %7737 = vmatprep.subr.mxu0 0.0
    %7738 = vmatpush1.msra.mxu0 %v7646
    %7739 = vmatprep.subr.mxu0 0.0
    %7740 = vmatpush1.msra.mxu0 %v7641
    %7741 = vmatprep.subr.mxu0 0.0
    %7742 = vmatpush1.msra.mxu0 %v7636
    %7743 = vmatprep.subr.mxu0 0.0
    %7744 = vmatpush1.msra.mxu0 %v7631
    %7745 = vmatprep.subr.mxu0 0.0
    %7746 = vmatpush1.msra.mxu0 %v7626
    %7747 = vmatprep.subr.mxu0 0.0
    %7748 = vmatpush1.msra.mxu0 %v7621
    %7749 = vmatprep.subr.mxu0 0.0
    %7750 = vmatpush1.msra.mxu0 %v7616
    %7751 = vmatprep.subr.mxu0 0.0
    %7752 = vmatpush1.msra.mxu0 %v7611
    %7753 = vmatprep.subr.mxu0 0.0
    %7754 = vmatpush1.msra.mxu0 %v7606
    %7755 = vmatprep.subr.mxu0 0.0
    %7756 = vmatpush1.msra.mxu0 %v7601
    %7757 = vmatprep.subr.mxu0 0.0
    %7758 = vmatpush1.msra.mxu0 %v7596
    %7759 = vmatprep.subr.mxu0 0.0
    %7760 = vmatpush1.msra.mxu0 %v7591
    %7761 = vmatprep.subr.mxu0 0.0
    %7762 = vmatpush2.msra.mxu0 0.0
    %7763 = vmatprep.subr.mxu0 0.0
    %7764 = vmatpush2.msra.mxu0 0.0
    %7765 = vmatprep.subr.mxu0 0.0
    %7766 = vmatpush2.msra.mxu0 0.0
    %7767 = vmatprep.subr.mxu0 0.0
    %7768 = vmatpush2.msra.mxu0 0.0
    %7769 = vmatprep.subr.mxu0 0.0
    %7770 = vmatpush2.msra.mxu0 0.0
    %7771 = vmatprep.subr.mxu0 0.0
    %7772 = vmatpush2.msra.mxu0 0.0
    %7773 = vmatprep.subr.mxu0 0.0
    %7774 = vmatpush2.msra.mxu0 0.0
    %7775 = vmatprep.subr.mxu0 0.0
    %7776 = vmatpush2.msra.mxu0 %v7711
    %7777 = vmatprep.subr.mxu0 0.0
    %7778 = vmatpush2.msra.mxu0 %v7706
    %7779 = vmatprep.subr.mxu0 0.0
    %7780 = vmatpush2.msra.mxu0 %v7701
    %7781 = vmatprep.subr.mxu0 0.0
    %7782 = vmatpush2.msra.mxu0 %v7696
    %7783 = vmatprep.subr.mxu0 0.0
    %7784 = vmatpush2.msra.mxu0 %v7691
    %7785 = vmatprep.subr.mxu0 0.0
    %7786 = vmatpush2.msra.mxu0 %v7686
    %7787 = vmatprep.subr.mxu0 0.0
    %7788 = vmatpush2.msra.mxu0 %v7681
    %7789 = vmatprep.subr.mxu0 0.0
    %7790 = vmatpush2.msra.mxu0 %v7676
    %7791 = vmatprep.subr.mxu0 0.0
    %7792 = vmatpush2.msra.mxu0 %v7671
    %7793 = vmatprep.mubr.f32.mxu0 %v7727
    %7794 = vmatmul.mubr.f32.gmra.mxu0 %v7720
    %v7795 = vpop.f32.mrf.mxu0
    %v7796 = vadd.f32 0.0, %v7795
    %v7797 = vpop.f32.mrf.mxu0
    %7798 = vdwg.mxu0
    %v7799 = vmul.f32 %v7591, %v7591
    %v7800 = vmul.f32 %v7596, %v7596
    %v7801 = vmul.f32 %v7601, %v7601
    %v7802 = vmul.f32 %v7606, %v7606
    %v7803 = vmul.f32 %v7611, %v7611
    %v7804 = vmul.f32 %v7616, %v7616
    %v7805 = vmul.f32 %v7621, %v7621
    %v7806 = vmul.f32 %v7626, %v7626
    %v7807 = vmul.f32 %v7631, %v7631
    %v7808 = vmul.f32 %v7636, %v7636
    %v7809 = vmul.f32 %v7641, %v7641
    %v7810 = vmul.f32 %v7646, %v7646
    %v7811 = vmul.f32 %v7651, %v7651
    %v7812 = vmul.f32 %v7656, %v7656
    %v7813 = vmul.f32 %v7661, %v7661
    %v7814 = vmul.f32 %v7666, %v7666
    %v7815 = vmul.f32 %v7671, %v7671
    %v7816 = vmul.f32 %v7676, %v7676
    %v7817 = vmul.f32 %v7681, %v7681
    %v7818 = vmul.f32 %v7686, %v7686
    %v7819 = vmul.f32 %v7691, %v7691
    %v7820 = vmul.f32 %v7696, %v7696
    %v7821 = vmul.f32 %v7701, %v7701
    %v7822 = vmul.f32 %v7706, %v7706
    %v7823 = vmul.f32 %v7711, %v7711
    %7824 = vmatprep.subr.mxu0 0.0
    %7825 = vmatpush1.msra.mxu0 %v7814
    %7826 = vmatprep.subr.mxu0 0.0
    %7827 = vmatpush1.msra.mxu0 %v7813
    %7828 = vmatprep.subr.mxu0 0.0
    %7829 = vmatpush1.msra.mxu0 %v7812
    %7830 = vmatprep.subr.mxu0 0.0
    %7831 = vmatpush1.msra.mxu0 %v7811
    %7832 = vmatprep.subr.mxu0 0.0
    %7833 = vmatpush1.msra.mxu0 %v7810
    %7834 = vmatprep.subr.mxu0 0.0
    %7835 = vmatpush1.msra.mxu0 %v7809
    %7836 = vmatprep.subr.mxu0 0.0
    %7837 = vmatpush1.msra.mxu0 %v7808
    %7838 = vmatprep.subr.mxu0 0.0
    %7839 = vmatpush1.msra.mxu0 %v7807
    %7840 = vmatprep.subr.mxu0 0.0
    %7841 = vmatpush1.msra.mxu0 %v7806
    %7842 = vmatprep.subr.mxu0 0.0
    %7843 = vmatpush1.msra.mxu0 %v7805
    %7844 = vmatprep.subr.mxu0 0.0
    %7845 = vmatpush1.msra.mxu0 %v7804
    %7846 = vmatprep.subr.mxu0 0.0
    %7847 = vmatpush1.msra.mxu0 %v7803
    %7848 = vmatprep.subr.mxu0 0.0
    %7849 = vmatpush1.msra.mxu0 %v7802
    %7850 = vmatprep.subr.mxu0 0.0
    %7851 = vmatpush1.msra.mxu0 %v7801
    %7852 = vmatprep.subr.mxu0 0.0
    %7853 = vmatpush1.msra.mxu0 %v7800
    %7854 = vmatprep.subr.mxu0 0.0
    %7855 = vmatpush1.msra.mxu0 %v7799
    %7856 = vmatprep.subr.mxu0 0.0
    %7857 = vmatpush2.msra.mxu0 0.0
    %7858 = vmatprep.subr.mxu0 0.0
    %7859 = vmatpush2.msra.mxu0 0.0
    %7860 = vmatprep.subr.mxu0 0.0
    %7861 = vmatpush2.msra.mxu0 0.0
    %7862 = vmatprep.subr.mxu0 0.0
    %7863 = vmatpush2.msra.mxu0 0.0
    %7864 = vmatprep.subr.mxu0 0.0
    %7865 = vmatpush2.msra.mxu0 0.0
    %7866 = vmatprep.subr.mxu0 0.0
    %7867 = vmatpush2.msra.mxu0 0.0
    %7868 = vmatprep.subr.mxu0 0.0
    %7869 = vmatpush2.msra.mxu0 0.0
    %7870 = vmatprep.subr.mxu0 0.0
    %7871 = vmatpush2.msra.mxu0 %v7823
    %7872 = vmatprep.subr.mxu0 0.0
    %7873 = vmatpush2.msra.mxu0 %v7822
    %7874 = vmatprep.subr.mxu0 0.0
    %7875 = vmatpush2.msra.mxu0 %v7821
    %7876 = vmatprep.subr.mxu0 0.0
    %7877 = vmatpush2.msra.mxu0 %v7820
    %7878 = vmatprep.subr.mxu0 0.0
    %7879 = vmatpush2.msra.mxu0 %v7819
    %7880 = vmatprep.subr.mxu0 0.0
    %7881 = vmatpush2.msra.mxu0 %v7818
    %7882 = vmatprep.subr.mxu0 0.0
    %7883 = vmatpush2.msra.mxu0 %v7817
    %7884 = vmatprep.subr.mxu0 0.0
    %7885 = vmatpush2.msra.mxu0 %v7816
    %7886 = vmatprep.subr.mxu0 0.0
    %7887 = vmatpush2.msra.mxu0 %v7815
    %7888 = vmatprep.mubr.f32.mxu0 %v7727
    %7889 = vmatmul.mubr.f32.gmra.mxu0 %v7720
    %v7890 = vpop.f32.mrf.mxu0
    %v7891 = vadd.f32 0.0, %v7890
    %v7892 = vpop.f32.mrf.mxu0
    %7893 = vdwg.mxu0
    %v7894 = vrcp.pop 128.0
    %v7895 = vmul.f32 %v7796, %v7894
    %v7896 = vmul.f32 %v7891, %v7894
    %v7897 = vmul.f32 %v7895, %v7895
    %v7898 = vsub.f32 %v7896, %v7897
    %s7899 = scalar_lea.vmem %s2, 1
    %v7900 = vld [vmem:[%s7899] sm:$0x1]
    %v7901 = vadd.f32 %v7898, 1e-05
    %v7902 = vrsqrt.pop %v7901
    %v7903 = vmul.f32 %v7900, %v7902
    %v7904 = vlaneseq
    %v7905 = vshrl.u32 %v7904, 7
    %v7906 = vsub.s32 0, %v7905
    %v7907 = vrot.slane %v7895, %v7906
    %v7908 = vsub.f32 %v7591, %v7907
    %v7909 = vsub.f32 %v7596, %v7907
    %v7910 = vsub.f32 %v7601, %v7907
    %v7911 = vsub.f32 %v7606, %v7907
    %v7912 = vsub.f32 %v7611, %v7907
    %v7913 = vsub.f32 %v7616, %v7907
    %v7914 = vsub.f32 %v7621, %v7907
    %v7915 = vsub.f32 %v7626, %v7907
    %v7916 = vsub.f32 %v7631, %v7907
    %v7917 = vsub.f32 %v7636, %v7907
    %v7918 = vsub.f32 %v7641, %v7907
    %v7919 = vsub.f32 %v7646, %v7907
    %v7920 = vsub.f32 %v7651, %v7907
    %v7921 = vsub.f32 %v7656, %v7907
    %v7922 = vsub.f32 %v7661, %v7907
    %v7923 = vsub.f32 %v7666, %v7907
    %v7924 = vsub.f32 %v7671, %v7907
    %v7925 = vsub.f32 %v7676, %v7907
    %v7926 = vsub.f32 %v7681, %v7907
    %v7927 = vsub.f32 %v7686, %v7907
    %v7928 = vsub.f32 %v7691, %v7907
    %v7929 = vsub.f32 %v7696, %v7907
    %v7930 = vsub.f32 %v7701, %v7907
    %v7931 = vsub.f32 %v7706, %v7907
    %v7932 = vsub.f32 %v7711, %v7907
    %v7934 = vlaneseq
    %v7935 = vshrl.u32 %v7934, 7
    %v7936 = vsub.s32 0, %v7935
    %v7937 = vrot.slane %v7903, %v7936
    %v7939 = vmul.f32 %v7908, %v7937
    %v7940 = vmul.f32 %v7909, %v7937
    %v7941 = vmul.f32 %v7910, %v7937
    %v7942 = vmul.f32 %v7911, %v7937
    %v7943 = vmul.f32 %v7912, %v7937
    %v7944 = vmul.f32 %v7913, %v7937
    %v7945 = vmul.f32 %v7914, %v7937
    %v7946 = vmul.f32 %v7915, %v7937
    %v7947 = vmul.f32 %v7916, %v7937
    %v7948 = vmul.f32 %v7917, %v7937
    %v7949 = vmul.f32 %v7918, %v7937
    %v7950 = vmul.f32 %v7919, %v7937
    %v7951 = vmul.f32 %v7920, %v7937
    %v7952 = vmul.f32 %v7921, %v7937
    %v7953 = vmul.f32 %v7922, %v7937
    %v7954 = vmul.f32 %v7923, %v7937
    %v7955 = vmul.f32 %v7924, %v7937
    %v7956 = vmul.f32 %v7925, %v7937
    %v7957 = vmul.f32 %v7926, %v7937
    %v7958 = vmul.f32 %v7927, %v7937
    %v7959 = vmul.f32 %v7928, %v7937
    %v7960 = vmul.f32 %v7929, %v7937
    %v7961 = vmul.f32 %v7930, %v7937
    %v7962 = vmul.f32 %v7931, %v7937
    %v7963 = vmul.f32 %v7932, %v7937
    %s7964 = scalar_lea.vmem %s3, 1
    %v7965 = vld [vmem:[%s7964] sm:$0x1]
    %v7967 = vlaneseq
    %v7968 = vshrl.u32 %v7967, 7
    %v7969 = vsub.s32 0, %v7968
    %v7970 = vrot.slane %v7965, %v7969
    %v7972 = vadd.f32 %v7939, %v7970
    %v7973 = vadd.f32 %v7940, %v7970
    %v7974 = vadd.f32 %v7941, %v7970
    %v7975 = vadd.f32 %v7942, %v7970
    %v7976 = vadd.f32 %v7943, %v7970
    %v7977 = vadd.f32 %v7944, %v7970
    %v7978 = vadd.f32 %v7945, %v7970
    %v7979 = vadd.f32 %v7946, %v7970
    %v7980 = vadd.f32 %v7947, %v7970
    %v7981 = vadd.f32 %v7948, %v7970
    %v7982 = vadd.f32 %v7949, %v7970
    %v7983 = vadd.f32 %v7950, %v7970
    %v7984 = vadd.f32 %v7951, %v7970
    %v7985 = vadd.f32 %v7952, %v7970
    %v7986 = vadd.f32 %v7953, %v7970
    %v7987 = vadd.f32 %v7954, %v7970
    %v7988 = vadd.f32 %v7955, %v7970
    %v7989 = vadd.f32 %v7956, %v7970
    %v7990 = vadd.f32 %v7957, %v7970
    %v7991 = vadd.f32 %v7958, %v7970
    %v7992 = vadd.f32 %v7959, %v7970
    %v7993 = vadd.f32 %v7960, %v7970
    %v7994 = vadd.f32 %v7961, %v7970
    %v7995 = vadd.f32 %v7962, %v7970
    %v7996 = vadd.f32 %v7963, %v7970
    %v7997 = vmax.f32 %v7972, 0.0
    %v7998 = vmax.f32 %v7973, 0.0
    %v7999 = vmax.f32 %v7974, 0.0
    %v8000 = vmax.f32 %v7975, 0.0
    %v8001 = vmax.f32 %v7976, 0.0
    %v8002 = vmax.f32 %v7977, 0.0
    %v8003 = vmax.f32 %v7978, 0.0
    %v8004 = vmax.f32 %v7979, 0.0
    %v8005 = vmax.f32 %v7980, 0.0
    %v8006 = vmax.f32 %v7981, 0.0
    %v8007 = vmax.f32 %v7982, 0.0
    %v8008 = vmax.f32 %v7983, 0.0
    %v8009 = vmax.f32 %v7984, 0.0
    %v8010 = vmax.f32 %v7985, 0.0
    %v8011 = vmax.f32 %v7986, 0.0
    %v8012 = vmax.f32 %v7987, 0.0
    %v8013 = vmax.f32 %v7988, 0.0
    %v8014 = vmax.f32 %v7989, 0.0
    %v8015 = vmax.f32 %v7990, 0.0
    %v8016 = vmax.f32 %v7991, 0.0
    %v8017 = vmax.f32 %v7992, 0.0
    %v8018 = vmax.f32 %v7993, 0.0
    %v8019 = vmax.f32 %v7994, 0.0
    %v8020 = vmax.f32 %v7995, 0.0
    %v8021 = vmax.f32 %v7996, 0.0
    %8022 = vst.msk [vmem:[#allocation6] sm:$0xff] %vm27, %v7997
    %8023 = vst.msk [vmem:[#allocation6 + $0x8] sm:$0xff] %vm27, %v7998
    %8024 = vst.msk [vmem:[#allocation6 + $0x10] sm:$0xff] %vm27, %v7999
    %8025 = vst.msk [vmem:[#allocation6 + $0x18] sm:$0xff] %vm27, %v8000
    %8026 = vst.msk [vmem:[#allocation6 + $0x20] sm:$0xff] %vm27, %v8001
    %8027 = vst.msk [vmem:[#allocation6 + $0x28] sm:$0xff] %vm27, %v8002
    %8028 = vst.msk [vmem:[#allocation6 + $0x30] sm:$0xff] %vm27, %v8003
    %8029 = vst.msk [vmem:[#allocation6 + $0x38] sm:$0xff] %vm27, %v8004
    %8030 = vst.msk [vmem:[#allocation6 + $0x40] sm:$0xff] %vm27, %v8005
    %8031 = vst.msk [vmem:[#allocation6 + $0x48] sm:$0xff] %vm27, %v8006
    %8032 = vst.msk [vmem:[#allocation6 + $0x50] sm:$0xff] %vm27, %v8007
    %8033 = vst.msk [vmem:[#allocation6 + $0x58] sm:$0xff] %vm27, %v8008
    %8034 = vst.msk [vmem:[#allocation6 + $0x60] sm:$0xff] %vm27, %v8009
    %8035 = vst.msk [vmem:[#allocation6 + $0x68] sm:$0xff] %vm27, %v8010
    %8036 = vst.msk [vmem:[#allocation6 + $0x70] sm:$0xff] %vm27, %v8011
    %8037 = vst.msk [vmem:[#allocation6 + $0x78] sm:$0xff] %vm27, %v8012
    %8038 = vst.msk [vmem:[#allocation6 + $0x80] sm:$0xff] %vm27, %v8013
    %8039 = vst.msk [vmem:[#allocation6 + $0x88] sm:$0xff] %vm27, %v8014
    %8040 = vst.msk [vmem:[#allocation6 + $0x90] sm:$0xff] %vm27, %v8015
    %8041 = vst.msk [vmem:[#allocation6 + $0x98] sm:$0xff] %vm27, %v8016
    %8042 = vst.msk [vmem:[#allocation6 + $0xa0] sm:$0xff] %vm27, %v8017
    %8043 = vst.msk [vmem:[#allocation6 + $0xa8] sm:$0xff] %vm27, %v8018
    %8044 = vst.msk [vmem:[#allocation6 + $0xb0] sm:$0xff] %vm27, %v8019
    %8045 = vst.msk [vmem:[#allocation6 + $0xb8] sm:$0xff] %vm27, %v8020
    %8046 = vst.msk [vmem:[#allocation6 + $0xc0] sm:$0xff] %vm27, %v8021
    %v8047 = vld [vmem:[#allocation6] ss:$2 sm:$0xf]
    %v8048 = vld [vmem:[%s5907] ss:$2 sm:$0xf]
    %s8049 = scalar_lea.vmem [#allocation6], 10
    %v8050 = vld [vmem:[%s8049] ss:$2 sm:$0xf]
    %s8051 = scalar_lea.vmem [#allocation6], 11
    %v8052 = vld [vmem:[%s8051] ss:$2 sm:$0xf]
    %v8053 = vmax.f32 %v8047, %v8048
    %v8054 = vmax.f32 %v8050, %v8052
    %v8055 = vmax.f32 %v8053, %v8054
    %vm8056 = vcmask 257024
    %8057 = vst.msk [vmem:[#allocation3 + $0x7] sm:$0xf] %vm8056, %v8055
    %s8058 = scalar_lea.vmem [#allocation6], 20
    %v8059 = vld [vmem:[%s8058] ss:$2 sm:$0xf]
    %s8060 = scalar_lea.vmem [#allocation6], 21
    %v8061 = vld [vmem:[%s8060] ss:$2 sm:$0xf]
    %s8062 = scalar_lea.vmem [#allocation6], 30
    %v8063 = vld [vmem:[%s8062] ss:$2 sm:$0xf]
    %s8064 = scalar_lea.vmem [#allocation6], 31
    %v8065 = vld [vmem:[%s8064] ss:$2 sm:$0xf]
    %v8066 = vmax.f32 %v8059, %v8061
    %v8067 = vmax.f32 %v8063, %v8065
    %v8068 = vmax.f32 %v8066, %v8067
    %8069 = vst.msk [vmem:[#allocation3 + $0xd] sm:$0xf] %vm8056, %v8068
    %s8070 = scalar_lea.vmem [#allocation6], 40
    %v8071 = vld [vmem:[%s8070] ss:$2 sm:$0xf]
    %s8072 = scalar_lea.vmem [#allocation6], 41
    %v8073 = vld [vmem:[%s8072] ss:$2 sm:$0xf]
    %s8074 = scalar_lea.vmem [#allocation6], 50
    %v8075 = vld [vmem:[%s8074] ss:$2 sm:$0xf]
    %s8076 = scalar_lea.vmem [#allocation6], 51
    %v8077 = vld [vmem:[%s8076] ss:$2 sm:$0xf]
    %v8078 = vmax.f32 %v8071, %v8073
    %v8079 = vmax.f32 %v8075, %v8077
    %v8080 = vmax.f32 %v8078, %v8079
    %8081 = vst.msk [vmem:[#allocation3 + $0x13] sm:$0xf] %vm8056, %v8080
    %s8082 = scalar_lea.vmem [#allocation6], 60
    %v8083 = vld [vmem:[%s8082] ss:$2 sm:$0xf]
    %s8084 = scalar_lea.vmem [#allocation6], 61
    %v8085 = vld [vmem:[%s8084] ss:$2 sm:$0xf]
    %s8086 = scalar_lea.vmem [#allocation6], 70
    %v8087 = vld [vmem:[%s8086] ss:$2 sm:$0xf]
    %s8088 = scalar_lea.vmem [#allocation6], 71
    %v8089 = vld [vmem:[%s8088] ss:$2 sm:$0xf]
    %v8090 = vmax.f32 %v8083, %v8085
    %v8091 = vmax.f32 %v8087, %v8089
    %v8092 = vmax.f32 %v8090, %v8091
    %8093 = vst.msk [vmem:[#allocation3 + $0x19] sm:$0xf] %vm8056, %v8092
    %s8094 = scalar_lea.vmem [#allocation6], 100
    %v8095 = vld [vmem:[%s8094] ss:$2 sm:$0xf]
    %s8096 = scalar_lea.vmem [#allocation6], 101
    %v8097 = vld [vmem:[%s8096] ss:$2 sm:$0xf]
    %s8098 = scalar_lea.vmem [#allocation6], 110
    %v8099 = vld [vmem:[%s8098] ss:$2 sm:$0xf]
    %s8100 = scalar_lea.vmem [#allocation6], 111
    %v8101 = vld [vmem:[%s8100] ss:$2 sm:$0xf]
    %v8102 = vmax.f32 %v8095, %v8097
    %v8103 = vmax.f32 %v8099, %v8101
    %v8104 = vmax.f32 %v8102, %v8103
    %8105 = vst.msk [vmem:[#allocation3 + $0x2b] sm:$0xf] %vm8056, %v8104
    %s8106 = scalar_lea.vmem [#allocation6], 120
    %v8107 = vld [vmem:[%s8106] ss:$2 sm:$0xf]
    %s8108 = scalar_lea.vmem [#allocation6], 121
    %v8109 = vld [vmem:[%s8108] ss:$2 sm:$0xf]
    %s8110 = scalar_lea.vmem [#allocation6], 130
    %v8111 = vld [vmem:[%s8110] ss:$2 sm:$0xf]
    %s8112 = scalar_lea.vmem [#allocation6], 131
    %v8113 = vld [vmem:[%s8112] ss:$2 sm:$0xf]
    %v8114 = vmax.f32 %v8107, %v8109
    %v8115 = vmax.f32 %v8111, %v8113
    %v8116 = vmax.f32 %v8114, %v8115
    %8117 = vst.msk [vmem:[#allocation3 + $0x31] sm:$0xf] %vm8056, %v8116
    %s8118 = scalar_lea.vmem [#allocation6], 140
    %v8119 = vld [vmem:[%s8118] ss:$2 sm:$0xf]
    %s8120 = scalar_lea.vmem [#allocation6], 141
    %v8121 = vld [vmem:[%s8120] ss:$2 sm:$0xf]
    %s8122 = scalar_lea.vmem [#allocation6], 150
    %v8123 = vld [vmem:[%s8122] ss:$2 sm:$0xf]
    %s8124 = scalar_lea.vmem [#allocation6], 151
    %v8125 = vld [vmem:[%s8124] ss:$2 sm:$0xf]
    %v8126 = vmax.f32 %v8119, %v8121
    %v8127 = vmax.f32 %v8123, %v8125
    %v8128 = vmax.f32 %v8126, %v8127
    %8129 = vst.msk [vmem:[#allocation3 + $0x37] sm:$0xf] %vm8056, %v8128
    %s8130 = scalar_lea.vmem [#allocation6], 160
    %v8131 = vld [vmem:[%s8130] ss:$2 sm:$0xf]
    %s8132 = scalar_lea.vmem [#allocation6], 161
    %v8133 = vld [vmem:[%s8132] ss:$2 sm:$0xf]
    %s8134 = scalar_lea.vmem [#allocation6], 170
    %v8135 = vld [vmem:[%s8134] ss:$2 sm:$0xf]
    %s8136 = scalar_lea.vmem [#allocation6], 171
    %v8137 = vld [vmem:[%s8136] ss:$2 sm:$0xf]
    %v8138 = vmax.f32 %v8131, %v8133
    %v8139 = vmax.f32 %v8135, %v8137
    %v8140 = vmax.f32 %v8138, %v8139
    %8141 = vst.msk [vmem:[#allocation3 + $0x3d] sm:$0xf] %vm8056, %v8140
    %v8142 = vld [vmem:[#allocation3] sm:$0xff]
    %v8143 = vld [vmem:[#allocation3 + $0x8] sm:$0xff]
    %v8144 = vld [vmem:[#allocation3 + $0x10] sm:$0xff]
    %v8145 = vld [vmem:[#allocation3 + $0x18] sm:$0xff]
    %v8146 = vld [vmem:[#allocation3 + $0x20] sm:$0xff]
    %v8147 = vld [vmem:[#allocation3 + $0x28] sm:$0xff]
    %v8148 = vld [vmem:[#allocation3 + $0x30] sm:$0xff]
    %v8149 = vld [vmem:[#allocation3 + $0x38] sm:$0xff]
    %v8150 = vld [vmem:[#allocation3 + $0x40] sm:$0xff]
    %8151 = vst.msk [vmem:[#allocation5] sm:$0xff] %vm27, %v8142
    %8152 = vst.msk [vmem:[#allocation5 + $0x18] sm:$0xff] %vm27, %v8143
    %8153 = vst.msk [vmem:[#allocation5 + $0x30] sm:$0xff] %vm27, %v8144
    %8154 = vst.msk [vmem:[#allocation5 + $0x48] sm:$0xff] %vm27, %v8145
    %8155 = vst.msk [vmem:[#allocation5 + $0x60] sm:$0xff] %vm27, %v8146
    %8156 = vst.msk [vmem:[#allocation5 + $0x78] sm:$0xff] %vm27, %v8147
    %8157 = vst.msk [vmem:[#allocation5 + $0x90] sm:$0xff] %vm27, %v8148
    %8158 = vst.msk [vmem:[#allocation5 + $0xa8] sm:$0xff] %vm27, %v8149
    %8159 = vst.msk [vmem:[#allocation5 + $0xc0] sm:$0xff] %vm27, %v8150
    %v8160 = vld [vmem:[#allocation3 + $0x1] sm:$0xff]
    %v8161 = vld [vmem:[#allocation3 + $0x9] sm:$0xff]
    %v8162 = vld [vmem:[#allocation3 + $0x11] sm:$0xff]
    %v8163 = vld [vmem:[#allocation3 + $0x19] sm:$0xff]
    %v8164 = vld [vmem:[#allocation3 + $0x21] sm:$0xff]
    %v8165 = vld [vmem:[#allocation3 + $0x29] sm:$0xff]
    %v8166 = vld [vmem:[#allocation3 + $0x31] sm:$0xff]
    %v8167 = vld [vmem:[#allocation3 + $0x39] sm:$0xff]
    %v8168 = vld [vmem:[#allocation3 + $0x41] sm:$0xff]
    %8178 = vrot.lane.b32.xlu0 %v8160, 32
    %v8179 = vpop.permute.xlu0 %8178
    %8180 = vrot.lane.b32.xlu0 %v8161, 32
    %v8181 = vpop.permute.xlu0 %8180
    %8182 = vrot.lane.b32.xlu0 %v8162, 32
    %v8183 = vpop.permute.xlu0 %8182
    %8184 = vrot.lane.b32.xlu0 %v8163, 32
    %v8185 = vpop.permute.xlu0 %8184
    %8186 = vrot.lane.b32.xlu0 %v8164, 32
    %v8187 = vpop.permute.xlu0 %8186
    %8188 = vrot.lane.b32.xlu0 %v8165, 32
    %v8189 = vpop.permute.xlu0 %8188
    %8190 = vrot.lane.b32.xlu0 %v8166, 32
    %v8191 = vpop.permute.xlu0 %8190
    %8192 = vrot.lane.b32.xlu0 %v8167, 32
    %v8193 = vpop.permute.xlu0 %8192
    %8194 = vrot.lane.b32.xlu0 %v8168, 32
    %v8195 = vpop.permute.xlu0 %8194
    %8205 = vst.msk [vmem:[#allocation5] sm:$0xff] %vm640, %v8179
    %8206 = vst.msk [vmem:[#allocation5 + $0x18] sm:$0xff] %vm640, %v8181
    %8207 = vst.msk [vmem:[#allocation5 + $0x30] sm:$0xff] %vm640, %v8183
    %8208 = vst.msk [vmem:[#allocation5 + $0x48] sm:$0xff] %vm640, %v8185
    %8209 = vst.msk [vmem:[#allocation5 + $0x60] sm:$0xff] %vm640, %v8187
    %8210 = vst.msk [vmem:[#allocation5 + $0x78] sm:$0xff] %vm640, %v8189
    %8211 = vst.msk [vmem:[#allocation5 + $0x90] sm:$0xff] %vm640, %v8191
    %8212 = vst.msk [vmem:[#allocation5 + $0xa8] sm:$0xff] %vm640, %v8193
    %8213 = vst.msk [vmem:[#allocation5 + $0xc0] sm:$0xff] %vm640, %v8195
    %v8214 = vld [vmem:[#allocation3 + $0x2] sm:$0xff]
    %v8215 = vld [vmem:[#allocation3 + $0xa] sm:$0xff]
    %v8216 = vld [vmem:[#allocation3 + $0x12] sm:$0xff]
    %v8217 = vld [vmem:[#allocation3 + $0x1a] sm:$0xff]
    %v8218 = vld [vmem:[#allocation3 + $0x22] sm:$0xff]
    %v8219 = vld [vmem:[#allocation3 + $0x2a] sm:$0xff]
    %v8220 = vld [vmem:[#allocation3 + $0x32] sm:$0xff]
    %v8221 = vld [vmem:[#allocation3 + $0x3a] sm:$0xff]
    %v8222 = vld [vmem:[#allocation3 + $0x42] sm:$0xff]
    %8232 = vrot.lane.b32.xlu0 %v8214, 64
    %v8233 = vpop.permute.xlu0 %8232
    %8234 = vrot.lane.b32.xlu0 %v8215, 64
    %v8235 = vpop.permute.xlu0 %8234
    %8236 = vrot.lane.b32.xlu0 %v8216, 64
    %v8237 = vpop.permute.xlu0 %8236
    %8238 = vrot.lane.b32.xlu0 %v8217, 64
    %v8239 = vpop.permute.xlu0 %8238
    %8240 = vrot.lane.b32.xlu0 %v8218, 64
    %v8241 = vpop.permute.xlu0 %8240
    %8242 = vrot.lane.b32.xlu0 %v8219, 64
    %v8243 = vpop.permute.xlu0 %8242
    %8244 = vrot.lane.b32.xlu0 %v8220, 64
    %v8245 = vpop.permute.xlu0 %8244
    %8246 = vrot.lane.b32.xlu0 %v8221, 64
    %v8247 = vpop.permute.xlu0 %8246
    %8248 = vrot.lane.b32.xlu0 %v8222, 64
    %v8249 = vpop.permute.xlu0 %8248
    %8259 = vst.msk [vmem:[#allocation5] sm:$0xff] %vm1127, %v8233
    %8260 = vst.msk [vmem:[#allocation5 + $0x18] sm:$0xff] %vm1127, %v8235
    %8261 = vst.msk [vmem:[#allocation5 + $0x30] sm:$0xff] %vm1127, %v8237
    %8262 = vst.msk [vmem:[#allocation5 + $0x48] sm:$0xff] %vm1127, %v8239
    %8263 = vst.msk [vmem:[#allocation5 + $0x60] sm:$0xff] %vm1127, %v8241
    %8264 = vst.msk [vmem:[#allocation5 + $0x78] sm:$0xff] %vm1127, %v8243
    %8265 = vst.msk [vmem:[#allocation5 + $0x90] sm:$0xff] %vm1127, %v8245
    %8266 = vst.msk [vmem:[#allocation5 + $0xa8] sm:$0xff] %vm1127, %v8247
    %8267 = vst.msk [vmem:[#allocation5 + $0xc0] sm:$0xff] %vm1127, %v8249
    %v8268 = vld [vmem:[#allocation3 + $0x6] sm:$0xff]
    %v8269 = vld [vmem:[#allocation3 + $0xe] sm:$0xff]
    %v8270 = vld [vmem:[#allocation3 + $0x16] sm:$0xff]
    %v8271 = vld [vmem:[#allocation3 + $0x1e] sm:$0xff]
    %v8272 = vld [vmem:[#allocation3 + $0x26] sm:$0xff]
    %v8273 = vld [vmem:[#allocation3 + $0x2e] sm:$0xff]
    %v8274 = vld [vmem:[#allocation3 + $0x36] sm:$0xff]
    %v8275 = vld [vmem:[#allocation3 + $0x3e] sm:$0xff]
    %v8276 = vld [vmem:[#allocation3 + $0x46] sm:$0xff]
    %8286 = vrot.lane.b32.xlu0 %v8268, 96
    %v8287 = vpop.permute.xlu0 %8286
    %8288 = vrot.lane.b32.xlu0 %v8269, 96
    %v8289 = vpop.permute.xlu0 %8288
    %8290 = vrot.lane.b32.xlu0 %v8270, 96
    %v8291 = vpop.permute.xlu0 %8290
    %8292 = vrot.lane.b32.xlu0 %v8271, 96
    %v8293 = vpop.permute.xlu0 %8292
    %8294 = vrot.lane.b32.xlu0 %v8272, 96
    %v8295 = vpop.permute.xlu0 %8294
    %8296 = vrot.lane.b32.xlu0 %v8273, 96
    %v8297 = vpop.permute.xlu0 %8296
    %8298 = vrot.lane.b32.xlu0 %v8274, 96
    %v8299 = vpop.permute.xlu0 %8298
    %8300 = vrot.lane.b32.xlu0 %v8275, 96
    %v8301 = vpop.permute.xlu0 %8300
    %8302 = vrot.lane.b32.xlu0 %v8276, 96
    %v8303 = vpop.permute.xlu0 %8302
    %8313 = vst.msk [vmem:[#allocation5] sm:$0xff] %vm1614, %v8287
    %8314 = vst.msk [vmem:[#allocation5 + $0x18] sm:$0xff] %vm1614, %v8289
    %8315 = vst.msk [vmem:[#allocation5 + $0x30] sm:$0xff] %vm1614, %v8291
    %8316 = vst.msk [vmem:[#allocation5 + $0x48] sm:$0xff] %vm1614, %v8293
    %8317 = vst.msk [vmem:[#allocation5 + $0x60] sm:$0xff] %vm1614, %v8295
    %8318 = vst.msk [vmem:[#allocation5 + $0x78] sm:$0xff] %vm1614, %v8297
    %8319 = vst.msk [vmem:[#allocation5 + $0x90] sm:$0xff] %vm1614, %v8299
    %8320 = vst.msk [vmem:[#allocation5 + $0xa8] sm:$0xff] %vm1614, %v8301
    %8321 = vst.msk [vmem:[#allocation5 + $0xc0] sm:$0xff] %vm1614, %v8303
    %v8322 = vld [vmem:[#allocation3 + $0x7] sm:$0xff]
    %v8323 = vld [vmem:[#allocation3 + $0xf] sm:$0xff]
    %v8324 = vld [vmem:[#allocation3 + $0x17] sm:$0xff]
    %v8325 = vld [vmem:[#allocation3 + $0x1f] sm:$0xff]
    %v8326 = vld [vmem:[#allocation3 + $0x27] sm:$0xff]
    %v8327 = vld [vmem:[#allocation3 + $0x2f] sm:$0xff]
    %v8328 = vld [vmem:[#allocation3 + $0x37] sm:$0xff]
    %v8329 = vld [vmem:[#allocation3 + $0x3f] sm:$0xff]
    %v8330 = vld [vmem:[#allocation3 + $0x47] sm:$0xff]
    %8331 = vst.msk [vmem:[#allocation5 + $0x8] sm:$0xff] %vm27, %v8322
    %8332 = vst.msk [vmem:[#allocation5 + $0x20] sm:$0xff] %vm27, %v8323
    %8333 = vst.msk [vmem:[#allocation5 + $0x38] sm:$0xff] %vm27, %v8324
    %8334 = vst.msk [vmem:[#allocation5 + $0x50] sm:$0xff] %vm27, %v8325
    %8335 = vst.msk [vmem:[#allocation5 + $0x68] sm:$0xff] %vm27, %v8326
    %8336 = vst.msk [vmem:[#allocation5 + $0x80] sm:$0xff] %vm27, %v8327
    %8337 = vst.msk [vmem:[#allocation5 + $0x98] sm:$0xff] %vm27, %v8328
    %8338 = vst.msk [vmem:[#allocation5 + $0xb0] sm:$0xff] %vm27, %v8329
    %8339 = vst.msk [vmem:[#allocation5 + $0xc8] sm:$0xff] %vm27, %v8330
    %v8340 = vld [vmem:[#allocation3 + $0x8] sm:$0xff]
    %v8341 = vld [vmem:[#allocation3 + $0x10] sm:$0xff]
    %v8342 = vld [vmem:[#allocation3 + $0x18] sm:$0xff]
    %v8343 = vld [vmem:[#allocation3 + $0x20] sm:$0xff]
    %v8344 = vld [vmem:[#allocation3 + $0x28] sm:$0xff]
    %v8345 = vld [vmem:[#allocation3 + $0x30] sm:$0xff]
    %v8346 = vld [vmem:[#allocation3 + $0x38] sm:$0xff]
    %v8347 = vld [vmem:[#allocation3 + $0x40] sm:$0xff]
    %v8348 = vld [vmem:[#allocation3 + $0x48] sm:$0xff]
    %8358 = vrot.lane.b32.xlu0 %v8340, 32
    %v8359 = vpop.permute.xlu0 %8358
    %8360 = vrot.lane.b32.xlu0 %v8341, 32
    %v8361 = vpop.permute.xlu0 %8360
    %8362 = vrot.lane.b32.xlu0 %v8342, 32
    %v8363 = vpop.permute.xlu0 %8362
    %8364 = vrot.lane.b32.xlu0 %v8343, 32
    %v8365 = vpop.permute.xlu0 %8364
    %8366 = vrot.lane.b32.xlu0 %v8344, 32
    %v8367 = vpop.permute.xlu0 %8366
    %8368 = vrot.lane.b32.xlu0 %v8345, 32
    %v8369 = vpop.permute.xlu0 %8368
    %8370 = vrot.lane.b32.xlu0 %v8346, 32
    %v8371 = vpop.permute.xlu0 %8370
    %8372 = vrot.lane.b32.xlu0 %v8347, 32
    %v8373 = vpop.permute.xlu0 %8372
    %8374 = vrot.lane.b32.xlu0 %v8348, 32
    %v8375 = vpop.permute.xlu0 %8374
    %8385 = vst.msk [vmem:[#allocation5 + $0x8] sm:$0xff] %vm640, %v8359
    %8386 = vst.msk [vmem:[#allocation5 + $0x20] sm:$0xff] %vm640, %v8361
    %8387 = vst.msk [vmem:[#allocation5 + $0x38] sm:$0xff] %vm640, %v8363
    %8388 = vst.msk [vmem:[#allocation5 + $0x50] sm:$0xff] %vm640, %v8365
    %8389 = vst.msk [vmem:[#allocation5 + $0x68] sm:$0xff] %vm640, %v8367
    %8390 = vst.msk [vmem:[#allocation5 + $0x80] sm:$0xff] %vm640, %v8369
    %8391 = vst.msk [vmem:[#allocation5 + $0x98] sm:$0xff] %vm640, %v8371
    %8392 = vst.msk [vmem:[#allocation5 + $0xb0] sm:$0xff] %vm640, %v8373
    %8393 = vst.msk [vmem:[#allocation5 + $0xc8] sm:$0xff] %vm640, %v8375
    %v8394 = vld [vmem:[#allocation3 + $0xc] sm:$0xff]
    %v8395 = vld [vmem:[#allocation3 + $0x14] sm:$0xff]
    %v8396 = vld [vmem:[#allocation3 + $0x1c] sm:$0xff]
    %v8397 = vld [vmem:[#allocation3 + $0x24] sm:$0xff]
    %v8398 = vld [vmem:[#allocation3 + $0x2c] sm:$0xff]
    %v8399 = vld [vmem:[#allocation3 + $0x34] sm:$0xff]
    %v8400 = vld [vmem:[#allocation3 + $0x3c] sm:$0xff]
    %v8401 = vld [vmem:[#allocation3 + $0x44] sm:$0xff]
    %v8402 = vld [vmem:[#allocation3 + $0x4c] sm:$0xff]
    %8412 = vrot.lane.b32.xlu0 %v8394, 64
    %v8413 = vpop.permute.xlu0 %8412
    %8414 = vrot.lane.b32.xlu0 %v8395, 64
    %v8415 = vpop.permute.xlu0 %8414
    %8416 = vrot.lane.b32.xlu0 %v8396, 64
    %v8417 = vpop.permute.xlu0 %8416
    %8418 = vrot.lane.b32.xlu0 %v8397, 64
    %v8419 = vpop.permute.xlu0 %8418
    %8420 = vrot.lane.b32.xlu0 %v8398, 64
    %v8421 = vpop.permute.xlu0 %8420
    %8422 = vrot.lane.b32.xlu0 %v8399, 64
    %v8423 = vpop.permute.xlu0 %8422
    %8424 = vrot.lane.b32.xlu0 %v8400, 64
    %v8425 = vpop.permute.xlu0 %8424
    %8426 = vrot.lane.b32.xlu0 %v8401, 64
    %v8427 = vpop.permute.xlu0 %8426
    %8428 = vrot.lane.b32.xlu0 %v8402, 64
    %v8429 = vpop.permute.xlu0 %8428
    %8439 = vst.msk [vmem:[#allocation5 + $0x8] sm:$0xff] %vm1127, %v8413
    %8440 = vst.msk [vmem:[#allocation5 + $0x20] sm:$0xff] %vm1127, %v8415
    %8441 = vst.msk [vmem:[#allocation5 + $0x38] sm:$0xff] %vm1127, %v8417
    %8442 = vst.msk [vmem:[#allocation5 + $0x50] sm:$0xff] %vm1127, %v8419
    %8443 = vst.msk [vmem:[#allocation5 + $0x68] sm:$0xff] %vm1127, %v8421
    %8444 = vst.msk [vmem:[#allocation5 + $0x80] sm:$0xff] %vm1127, %v8423
    %8445 = vst.msk [vmem:[#allocation5 + $0x98] sm:$0xff] %vm1127, %v8425
    %8446 = vst.msk [vmem:[#allocation5 + $0xb0] sm:$0xff] %vm1127, %v8427
    %8447 = vst.msk [vmem:[#allocation5 + $0xc8] sm:$0xff] %vm1127, %v8429
    %v8448 = vld [vmem:[#allocation3 + $0xd] sm:$0xff]
    %v8449 = vld [vmem:[#allocation3 + $0x15] sm:$0xff]
    %v8450 = vld [vmem:[#allocation3 + $0x1d] sm:$0xff]
    %v8451 = vld [vmem:[#allocation3 + $0x25] sm:$0xff]
    %v8452 = vld [vmem:[#allocation3 + $0x2d] sm:$0xff]
    %v8453 = vld [vmem:[#allocation3 + $0x35] sm:$0xff]
    %v8454 = vld [vmem:[#allocation3 + $0x3d] sm:$0xff]
    %v8455 = vld [vmem:[#allocation3 + $0x45] sm:$0xff]
    %v8456 = vld [vmem:[#allocation3 + $0x4d] sm:$0xff]
    %8466 = vrot.lane.b32.xlu0 %v8448, 96
    %v8467 = vpop.permute.xlu0 %8466
    %8468 = vrot.lane.b32.xlu0 %v8449, 96
    %v8469 = vpop.permute.xlu0 %8468
    %8470 = vrot.lane.b32.xlu0 %v8450, 96
    %v8471 = vpop.permute.xlu0 %8470
    %8472 = vrot.lane.b32.xlu0 %v8451, 96
    %v8473 = vpop.permute.xlu0 %8472
    %8474 = vrot.lane.b32.xlu0 %v8452, 96
    %v8475 = vpop.permute.xlu0 %8474
    %8476 = vrot.lane.b32.xlu0 %v8453, 96
    %v8477 = vpop.permute.xlu0 %8476
    %8478 = vrot.lane.b32.xlu0 %v8454, 96
    %v8479 = vpop.permute.xlu0 %8478
    %8480 = vrot.lane.b32.xlu0 %v8455, 96
    %v8481 = vpop.permute.xlu0 %8480
    %8482 = vrot.lane.b32.xlu0 %v8456, 96
    %v8483 = vpop.permute.xlu0 %8482
    %8493 = vst.msk [vmem:[#allocation5 + $0x8] sm:$0xff] %vm1614, %v8467
    %8494 = vst.msk [vmem:[#allocation5 + $0x20] sm:$0xff] %vm1614, %v8469
    %8495 = vst.msk [vmem:[#allocation5 + $0x38] sm:$0xff] %vm1614, %v8471
    %8496 = vst.msk [vmem:[#allocation5 + $0x50] sm:$0xff] %vm1614, %v8473
    %8497 = vst.msk [vmem:[#allocation5 + $0x68] sm:$0xff] %vm1614, %v8475
    %8498 = vst.msk [vmem:[#allocation5 + $0x80] sm:$0xff] %vm1614, %v8477
    %8499 = vst.msk [vmem:[#allocation5 + $0x98] sm:$0xff] %vm1614, %v8479
    %8500 = vst.msk [vmem:[#allocation5 + $0xb0] sm:$0xff] %vm1614, %v8481
    %8501 = vst.msk [vmem:[#allocation5 + $0xc8] sm:$0xff] %vm1614, %v8483
    %v8502 = vld [vmem:[#allocation3 + $0xe] sm:$0xff]
    %v8503 = vld [vmem:[#allocation3 + $0x16] sm:$0xff]
    %v8504 = vld [vmem:[#allocation3 + $0x1e] sm:$0xff]
    %v8505 = vld [vmem:[#allocation3 + $0x26] sm:$0xff]
    %v8506 = vld [vmem:[#allocation3 + $0x2e] sm:$0xff]
    %v8507 = vld [vmem:[#allocation3 + $0x36] sm:$0xff]
    %v8508 = vld [vmem:[#allocation3 + $0x3e] sm:$0xff]
    %v8509 = vld [vmem:[#allocation3 + $0x46] sm:$0xff]
    %v8510 = vld [vmem:[#allocation3 + $0x4e] sm:$0xff]
    %8511 = vst.msk [vmem:[#allocation5 + $0x10] sm:$0xff] %vm27, %v8502
    %8512 = vst.msk [vmem:[#allocation5 + $0x28] sm:$0xff] %vm27, %v8503
    %8513 = vst.msk [vmem:[#allocation5 + $0x40] sm:$0xff] %vm27, %v8504
    %8514 = vst.msk [vmem:[#allocation5 + $0x58] sm:$0xff] %vm27, %v8505
    %8515 = vst.msk [vmem:[#allocation5 + $0x70] sm:$0xff] %vm27, %v8506
    %8516 = vst.msk [vmem:[#allocation5 + $0x88] sm:$0xff] %vm27, %v8507
    %8517 = vst.msk [vmem:[#allocation5 + $0xa0] sm:$0xff] %vm27, %v8508
    %8518 = vst.msk [vmem:[#allocation5 + $0xb8] sm:$0xff] %vm27, %v8509
    %8519 = vst.msk [vmem:[#allocation5 + $0xd0] sm:$0xff] %vm27, %v8510
    %v8520 = vld [vmem:[#allocation5] sm:$0xff]
    %v8521 = vld [vmem:[#allocation5 + $0x8] sm:$0xff]
    %v8522 = vld [vmem:[#allocation5 + $0x10] sm:$0xff]
    %v8523 = vld [vmem:[#allocation5 + $0x18] sm:$0xff]
    %v8524 = vld [vmem:[#allocation5 + $0x20] sm:$0xff]
    %v8525 = vld [vmem:[#allocation5 + $0x28] sm:$0xff]
    %v8526 = vld [vmem:[#allocation5 + $0x30] sm:$0xff]
    %v8527 = vld [vmem:[#allocation5 + $0x38] sm:$0xff]
    %v8528 = vld [vmem:[#allocation5 + $0x40] sm:$0xff]
    %v8529 = vld [vmem:[#allocation5 + $0x48] sm:$0xff]
    %v8530 = vld [vmem:[#allocation5 + $0x50] sm:$0xff]
    %v8531 = vld [vmem:[#allocation5 + $0x58] sm:$0xff]
    %v8532 = vld [vmem:[#allocation5 + $0x60] sm:$0xff]
    %v8533 = vld [vmem:[#allocation5 + $0x68] sm:$0xff]
    %v8534 = vld [vmem:[#allocation5 + $0x70] sm:$0xff]
    %v8535 = vld [vmem:[#allocation5 + $0x78] sm:$0xff]
    %v8536 = vld [vmem:[#allocation5 + $0x80] sm:$0xff]
    %v8537 = vld [vmem:[#allocation5 + $0x88] sm:$0xff]
    %v8538 = vld [vmem:[#allocation5 + $0x90] sm:$0xff]
    %v8539 = vld [vmem:[#allocation5 + $0x98] sm:$0xff]
    %v8540 = vld [vmem:[#allocation5 + $0xa0] sm:$0xff]
    %v8541 = vld [vmem:[#allocation5 + $0xa8] sm:$0xff]
    %v8542 = vld [vmem:[#allocation5 + $0xb0] sm:$0xff]
    %v8543 = vld [vmem:[#allocation5 + $0xb8] sm:$0xff]
    %v8544 = vld [vmem:[#allocation5 + $0xc0] sm:$0xff]
    %v8545 = vld [vmem:[#allocation5 + $0xc8] sm:$0xff]
    %v8546 = vld [vmem:[#allocation5 + $0xd0] sm:$0xff]
    %s8547 = scalar_lea.vmem %s1, 576
    %v8548 = vld [vmem:[%s8547] sm:$0xff]
    %v8549 = vld [vmem:[%s8547 + $0x8] sm:$0xff]
    %v8550 = vld [vmem:[%s8547 + $0x10] sm:$0xff]
    %v8551 = vld [vmem:[%s8547 + $0x18] sm:$0xff]
    %v8552 = vld [vmem:[%s8547 + $0x20] sm:$0xff]
    %v8553 = vld [vmem:[%s8547 + $0x28] sm:$0xff]
    %v8554 = vld [vmem:[%s8547 + $0x30] sm:$0xff]
    %v8555 = vld [vmem:[%s8547 + $0x38] sm:$0xff]
    %v8556 = vld [vmem:[%s8547 + $0x40] sm:$0xff]
    %v8557 = vld [vmem:[%s8547 + $0x48] sm:$0xff]
    %v8558 = vld [vmem:[%s8547 + $0x50] sm:$0xff]
    %v8559 = vld [vmem:[%s8547 + $0x58] sm:$0xff]
    %v8560 = vld [vmem:[%s8547 + $0x60] sm:$0xff]
    %v8561 = vld [vmem:[%s8547 + $0x68] sm:$0xff]
    %v8562 = vld [vmem:[%s8547 + $0x70] sm:$0xff]
    %v8563 = vld [vmem:[%s8547 + $0x78] sm:$0xff]
    %v8564 = vld [vmem:[%s8547 + $0x80] sm:$0xff]
    %v8565 = vld [vmem:[%s8547 + $0x88] sm:$0xff]
    %v8566 = vld [vmem:[%s8547 + $0x90] sm:$0xff]
    %v8567 = vld [vmem:[%s8547 + $0x98] sm:$0xff]
    %v8568 = vld [vmem:[%s8547 + $0xa0] sm:$0xff]
    %v8569 = vld [vmem:[%s8547 + $0xa8] sm:$0xff]
    %v8570 = vld [vmem:[%s8547 + $0xb0] sm:$0xff]
    %v8571 = vld [vmem:[%s8547 + $0xb8] sm:$0xff]
    %v8572 = vld [vmem:[%s8547 + $0xc0] sm:$0xff]
    %v8573 = vld [vmem:[%s8547 + $0xc8] sm:$0xff]
    %v8574 = vld [vmem:[%s8547 + $0xd0] sm:$0xff]
    %v8575 = vld [vmem:[%s8547 + $0xd8] sm:$0xff]
    %v8576 = vld [vmem:[%s8547 + $0xe0] sm:$0xff]
    %v8577 = vld [vmem:[%s8547 + $0xe8] sm:$0xff]
    %v8578 = vld [vmem:[%s8547 + $0xf0] sm:$0xff]
    %v8579 = vld [vmem:[%s8547 + $0xf8] sm:$0xff]
    %v8580 = vld [vmem:[%s8547 + $0x100] sm:$0xff]
    %v8581 = vld [vmem:[%s8547 + $0x108] sm:$0xff]
    %v8582 = vld [vmem:[%s8547 + $0x110] sm:$0xff]
    %v8583 = vld [vmem:[%s8547 + $0x118] sm:$0xff]
    %v8585 = vsel %vm27, %v8522, 0
    %v8588 = vsel %vm27, %v8525, 0
    %v8591 = vsel %vm27, %v8528, 0
    %v8594 = vsel %vm27, %v8531, 0
    %v8597 = vsel %vm27, %v8534, 0
    %v8600 = vsel %vm27, %v8537, 0
    %v8603 = vsel %vm27, %v8540, 0
    %v8606 = vsel %vm27, %v8543, 0
    %v8609 = vsel %vm27, %v8546, 0
    %8611 = vmatprep.subr.mxu0 0.0
    %8612 = vmatpush1.msra.mxu0 %v8563
    %8613 = vmatprep.subr.mxu0 0.0
    %8614 = vmatpush1.msra.mxu0 %v8562
    %8615 = vmatprep.subr.mxu0 0.0
    %8616 = vmatpush1.msra.mxu0 %v8561
    %8617 = vmatprep.subr.mxu0 0.0
    %8618 = vmatpush1.msra.mxu0 %v8560
    %8619 = vmatprep.subr.mxu0 0.0
    %8620 = vmatpush1.msra.mxu0 %v8559
    %8621 = vmatprep.subr.mxu0 0.0
    %8622 = vmatpush1.msra.mxu0 %v8558
    %8623 = vmatprep.subr.mxu0 0.0
    %8624 = vmatpush1.msra.mxu0 %v8557
    %8625 = vmatprep.subr.mxu0 0.0
    %8626 = vmatpush1.msra.mxu0 %v8556
    %8627 = vmatprep.subr.mxu0 0.0
    %8628 = vmatpush1.msra.mxu0 %v8555
    %8629 = vmatprep.subr.mxu0 0.0
    %8630 = vmatpush1.msra.mxu0 %v8554
    %8631 = vmatprep.subr.mxu0 0.0
    %8632 = vmatpush1.msra.mxu0 %v8553
    %8633 = vmatprep.subr.mxu0 0.0
    %8634 = vmatpush1.msra.mxu0 %v8552
    %8635 = vmatprep.subr.mxu0 0.0
    %8636 = vmatpush1.msra.mxu0 %v8551
    %8637 = vmatprep.subr.mxu0 0.0
    %8638 = vmatpush1.msra.mxu0 %v8550
    %8639 = vmatprep.subr.mxu0 0.0
    %8640 = vmatpush1.msra.mxu0 %v8549
    %8641 = vmatprep.subr.mxu0 0.0
    %8642 = vmatpush1.msra.mxu0 %v8548
    %8643 = vmatprep.subr.mxu0 0.0
    %8644 = vmatpush2.msra.mxu0 %v8579
    %8645 = vmatprep.subr.mxu0 0.0
    %8646 = vmatpush2.msra.mxu0 %v8578
    %8647 = vmatprep.subr.mxu0 0.0
    %8648 = vmatpush2.msra.mxu0 %v8577
    %8649 = vmatprep.subr.mxu0 0.0
    %8650 = vmatpush2.msra.mxu0 %v8576
    %8651 = vmatprep.subr.mxu0 0.0
    %8652 = vmatpush2.msra.mxu0 %v8575
    %8653 = vmatprep.subr.mxu0 0.0
    %8654 = vmatpush2.msra.mxu0 %v8574
    %8655 = vmatprep.subr.mxu0 0.0
    %8656 = vmatpush2.msra.mxu0 %v8573
    %8657 = vmatprep.subr.mxu0 0.0
    %8658 = vmatpush2.msra.mxu0 %v8572
    %8659 = vmatprep.subr.mxu0 0.0
    %8660 = vmatpush2.msra.mxu0 %v8571
    %8661 = vmatprep.subr.mxu0 0.0
    %8662 = vmatpush2.msra.mxu0 %v8570
    %8663 = vmatprep.subr.mxu0 0.0
    %8664 = vmatpush2.msra.mxu0 %v8569
    %8665 = vmatprep.subr.mxu0 0.0
    %8666 = vmatpush2.msra.mxu0 %v8568
    %8667 = vmatprep.subr.mxu0 0.0
    %8668 = vmatpush2.msra.mxu0 %v8567
    %8669 = vmatprep.subr.mxu0 0.0
    %8670 = vmatpush2.msra.mxu0 %v8566
    %8671 = vmatprep.subr.mxu0 0.0
    %8672 = vmatpush2.msra.mxu0 %v8565
    %8673 = vmatprep.subr.mxu0 0.0
    %8674 = vmatpush2.msra.mxu0 %v8564
    %8675 = vmatprep.mubr.f32.mxu0 %v8521
    %8676 = vmatmul.mubr.f32.gmra.mxu0 %v8520
    %v8677 = vpop.f32.mrf.mxu0
    %v8678 = vadd.f32 0.0, %v8677
    %v8679 = vpop.f32.mrf.mxu0
    %8680 = vmatprep.mubr.f32.mxu0 %v8524
    %8681 = vmatmul.mubr.f32.gmra.mxu0 %v8523
    %v8682 = vpop.f32.mrf.mxu0
    %v8683 = vadd.f32 0.0, %v8682
    %v8684 = vpop.f32.mrf.mxu0
    %8685 = vmatprep.mubr.f32.mxu0 %v8527
    %8686 = vmatmul.mubr.f32.gmra.mxu0 %v8526
    %v8687 = vpop.f32.mrf.mxu0
    %v8688 = vadd.f32 0.0, %v8687
    %v8689 = vpop.f32.mrf.mxu0
    %8690 = vmatprep.mubr.f32.mxu0 %v8530
    %8691 = vmatmul.mubr.f32.gmra.mxu0 %v8529
    %v8692 = vpop.f32.mrf.mxu0
    %v8693 = vadd.f32 0.0, %v8692
    %v8694 = vpop.f32.mrf.mxu0
    %8695 = vmatprep.mubr.f32.mxu0 %v8533
    %8696 = vmatmul.mubr.f32.gmra.mxu0 %v8532
    %v8697 = vpop.f32.mrf.mxu0
    %v8698 = vadd.f32 0.0, %v8697
    %v8699 = vpop.f32.mrf.mxu0
    %8700 = vmatprep.mubr.f32.mxu0 %v8536
    %8701 = vmatmul.mubr.f32.gmra.mxu0 %v8535
    %v8702 = vpop.f32.mrf.mxu0
    %v8703 = vadd.f32 0.0, %v8702
    %v8704 = vpop.f32.mrf.mxu0
    %8705 = vmatprep.mubr.f32.mxu0 %v8539
    %8706 = vmatmul.mubr.f32.gmra.mxu0 %v8538
    %v8707 = vpop.f32.mrf.mxu0
    %v8708 = vadd.f32 0.0, %v8707
    %v8709 = vpop.f32.mrf.mxu0
    %8710 = vmatprep.mubr.f32.mxu0 %v8542
    %8711 = vmatmul.mubr.f32.gmra.mxu0 %v8541
    %v8712 = vpop.f32.mrf.mxu0
    %v8713 = vadd.f32 0.0, %v8712
    %v8714 = vpop.f32.mrf.mxu0
    %8715 = vmatprep.mubr.f32.mxu0 %v8545
    %8716 = vmatmul.mubr.f32.gmra.mxu0 %v8544
    %v8717 = vpop.f32.mrf.mxu0
    %v8718 = vadd.f32 0.0, %v8717
    %v8719 = vpop.f32.mrf.mxu0
    %8720 = vdwg.mxu0
    %8721 = vmatprep.subr.mxu0 0.0
    %8722 = vmatpush1.msra.mxu0 0.0
    %8723 = vmatprep.subr.mxu0 0.0
    %8724 = vmatpush1.msra.mxu0 0.0
    %8725 = vmatprep.subr.mxu0 0.0
    %8726 = vmatpush1.msra.mxu0 0.0
    %8727 = vmatprep.subr.mxu0 0.0
    %8728 = vmatpush1.msra.mxu0 0.0
    %8729 = vmatprep.subr.mxu0 0.0
    %8730 = vmatpush1.msra.mxu0 0.0
    %8731 = vmatprep.subr.mxu0 0.0
    %8732 = vmatpush1.msra.mxu0 0.0
    %8733 = vmatprep.subr.mxu0 0.0
    %8734 = vmatpush1.msra.mxu0 0.0
    %8735 = vmatprep.subr.mxu0 0.0
    %8736 = vmatpush1.msra.mxu0 0.0
    %8737 = vmatprep.subr.mxu0 0.0
    %8738 = vmatpush1.msra.mxu0 0.0
    %8739 = vmatprep.subr.mxu0 0.0
    %8740 = vmatpush1.msra.mxu0 0.0
    %8741 = vmatprep.subr.mxu0 0.0
    %8742 = vmatpush1.msra.mxu0 0.0
    %8743 = vmatprep.subr.mxu0 0.0
    %8744 = vmatpush1.msra.mxu0 0.0
    %8745 = vmatprep.subr.mxu0 0.0
    %8746 = vmatpush1.msra.mxu0 %v8583
    %8747 = vmatprep.subr.mxu0 0.0
    %8748 = vmatpush1.msra.mxu0 %v8582
    %8749 = vmatprep.subr.mxu0 0.0
    %8750 = vmatpush1.msra.mxu0 %v8581
    %8751 = vmatprep.subr.mxu0 0.0
    %8752 = vmatpush1.msra.mxu0 %v8580
    %8753 = vmatprep.subr.mxu0 0.0
    %8754 = vmatpush2.msra.mxu0 0.0
    %8755 = vmatprep.subr.mxu0 0.0
    %8756 = vmatpush2.msra.mxu0 0.0
    %8757 = vmatprep.subr.mxu0 0.0
    %8758 = vmatpush2.msra.mxu0 0.0
    %8759 = vmatprep.subr.mxu0 0.0
    %8760 = vmatpush2.msra.mxu0 0.0
    %8761 = vmatprep.subr.mxu0 0.0
    %8762 = vmatpush2.msra.mxu0 0.0
    %8763 = vmatprep.subr.mxu0 0.0
    %8764 = vmatpush2.msra.mxu0 0.0
    %8765 = vmatprep.subr.mxu0 0.0
    %8766 = vmatpush2.msra.mxu0 0.0
    %8767 = vmatprep.subr.mxu0 0.0
    %8768 = vmatpush2.msra.mxu0 0.0
    %8769 = vmatprep.subr.mxu0 0.0
    %8770 = vmatpush2.msra.mxu0 0.0
    %8771 = vmatprep.subr.mxu0 0.0
    %8772 = vmatpush2.msra.mxu0 0.0
    %8773 = vmatprep.subr.mxu0 0.0
    %8774 = vmatpush2.msra.mxu0 0.0
    %8775 = vmatprep.subr.mxu0 0.0
    %8776 = vmatpush2.msra.mxu0 0.0
    %8777 = vmatprep.subr.mxu0 0.0
    %8778 = vmatpush2.msra.mxu0 0.0
    %8779 = vmatprep.subr.mxu0 0.0
    %8780 = vmatpush2.msra.mxu0 0.0
    %8781 = vmatprep.subr.mxu0 0.0
    %8782 = vmatpush2.msra.mxu0 0.0
    %8783 = vmatprep.subr.mxu0 0.0
    %8784 = vmatpush2.msra.mxu0 0.0
    %8785 = vmatprep.mubr.f32.mxu0 0.0
    %8786 = vmatmul.mubr.f32.gmra.mxu0 %v8585
    %v8787 = vpop.f32.mrf.mxu0
    %v8788 = vadd.f32 %v8678, %v8787
    %v8789 = vpop.f32.mrf.mxu0
    %8790 = vmatprep.mubr.f32.mxu0 0.0
    %8791 = vmatmul.mubr.f32.gmra.mxu0 %v8588
    %v8792 = vpop.f32.mrf.mxu0
    %v8793 = vadd.f32 %v8683, %v8792
    %v8794 = vpop.f32.mrf.mxu0
    %8795 = vmatprep.mubr.f32.mxu0 0.0
    %8796 = vmatmul.mubr.f32.gmra.mxu0 %v8591
    %v8797 = vpop.f32.mrf.mxu0
    %v8798 = vadd.f32 %v8688, %v8797
    %v8799 = vpop.f32.mrf.mxu0
    %8800 = vmatprep.mubr.f32.mxu0 0.0
    %8801 = vmatmul.mubr.f32.gmra.mxu0 %v8594
    %v8802 = vpop.f32.mrf.mxu0
    %v8803 = vadd.f32 %v8693, %v8802
    %v8804 = vpop.f32.mrf.mxu0
    %8805 = vmatprep.mubr.f32.mxu0 0.0
    %8806 = vmatmul.mubr.f32.gmra.mxu0 %v8597
    %v8807 = vpop.f32.mrf.mxu0
    %v8808 = vadd.f32 %v8698, %v8807
    %v8809 = vpop.f32.mrf.mxu0
    %8810 = vmatprep.mubr.f32.mxu0 0.0
    %8811 = vmatmul.mubr.f32.gmra.mxu0 %v8600
    %v8812 = vpop.f32.mrf.mxu0
    %v8813 = vadd.f32 %v8703, %v8812
    %v8814 = vpop.f32.mrf.mxu0
    %8815 = vmatprep.mubr.f32.mxu0 0.0
    %8816 = vmatmul.mubr.f32.gmra.mxu0 %v8603
    %v8817 = vpop.f32.mrf.mxu0
    %v8818 = vadd.f32 %v8708, %v8817
    %v8819 = vpop.f32.mrf.mxu0
    %8820 = vmatprep.mubr.f32.mxu0 0.0
    %8821 = vmatmul.mubr.f32.gmra.mxu0 %v8606
    %v8822 = vpop.f32.mrf.mxu0
    %v8823 = vadd.f32 %v8713, %v8822
    %v8824 = vpop.f32.mrf.mxu0
    %8825 = vmatprep.mubr.f32.mxu0 0.0
    %8826 = vmatmul.mubr.f32.gmra.mxu0 %v8609
    %v8827 = vpop.f32.mrf.mxu0
    %v8828 = vadd.f32 %v8718, %v8827
    %v8829 = vpop.f32.mrf.mxu0
    %8830 = vdwg.mxu0
    %v8831 = vld [vmem:[%s4 + $0x2] sm:$0x1]
    %v8833 = vsel %vm7726, %v8831, 0
    %8835 = vmatprep.subr.mxu0 0.0
    %8836 = vmatpush1.msra.mxu0 0.0
    %8837 = vmatprep.subr.mxu0 0.0
    %8838 = vmatpush1.msra.mxu0 0.0
    %8839 = vmatprep.subr.mxu0 0.0
    %8840 = vmatpush1.msra.mxu0 0.0
    %8841 = vmatprep.subr.mxu0 0.0
    %8842 = vmatpush1.msra.mxu0 0.0
    %8843 = vmatprep.subr.mxu0 0.0
    %8844 = vmatpush1.msra.mxu0 0.0
    %8845 = vmatprep.subr.mxu0 0.0
    %8846 = vmatpush1.msra.mxu0 0.0
    %8847 = vmatprep.subr.mxu0 0.0
    %8848 = vmatpush1.msra.mxu0 0.0
    %8849 = vmatprep.subr.mxu0 0.0
    %8850 = vmatpush1.msra.mxu0 %v8828
    %8851 = vmatprep.subr.mxu0 0.0
    %8852 = vmatpush1.msra.mxu0 %v8823
    %8853 = vmatprep.subr.mxu0 0.0
    %8854 = vmatpush1.msra.mxu0 %v8818
    %8855 = vmatprep.subr.mxu0 0.0
    %8856 = vmatpush1.msra.mxu0 %v8813
    %8857 = vmatprep.subr.mxu0 0.0
    %8858 = vmatpush1.msra.mxu0 %v8808
    %8859 = vmatprep.subr.mxu0 0.0
    %8860 = vmatpush1.msra.mxu0 %v8803
    %8861 = vmatprep.subr.mxu0 0.0
    %8862 = vmatpush1.msra.mxu0 %v8798
    %8863 = vmatprep.subr.mxu0 0.0
    %8864 = vmatpush1.msra.mxu0 %v8793
    %8865 = vmatprep.subr.mxu0 0.0
    %8866 = vmatpush1.msra.mxu0 %v8788
    %8867 = vmatprep.subr.mxu0 0.0
    %8868 = vmatpush2.msra.mxu0 0.0
    %8869 = vmatprep.subr.mxu0 0.0
    %8870 = vmatpush2.msra.mxu0 0.0
    %8871 = vmatprep.subr.mxu0 0.0
    %8872 = vmatpush2.msra.mxu0 0.0
    %8873 = vmatprep.subr.mxu0 0.0
    %8874 = vmatpush2.msra.mxu0 0.0
    %8875 = vmatprep.subr.mxu0 0.0
    %8876 = vmatpush2.msra.mxu0 0.0
    %8877 = vmatprep.subr.mxu0 0.0
    %8878 = vmatpush2.msra.mxu0 0.0
    %8879 = vmatprep.subr.mxu0 0.0
    %8880 = vmatpush2.msra.mxu0 0.0
    %8881 = vmatprep.subr.mxu0 0.0
    %8882 = vmatpush2.msra.mxu0 0.0
    %8883 = vmatprep.subr.mxu0 0.0
    %8884 = vmatpush2.msra.mxu0 0.0
    %8885 = vmatprep.subr.mxu0 0.0
    %8886 = vmatpush2.msra.mxu0 0.0
    %8887 = vmatprep.subr.mxu0 0.0
    %8888 = vmatpush2.msra.mxu0 0.0
    %8889 = vmatprep.subr.mxu0 0.0
    %8890 = vmatpush2.msra.mxu0 0.0
    %8891 = vmatprep.subr.mxu0 0.0
    %8892 = vmatpush2.msra.mxu0 0.0
    %8893 = vmatprep.subr.mxu0 0.0
    %8894 = vmatpush2.msra.mxu0 0.0
    %8895 = vmatprep.subr.mxu0 0.0
    %8896 = vmatpush2.msra.mxu0 0.0
    %8897 = vmatprep.subr.mxu0 0.0
    %8898 = vmatpush2.msra.mxu0 0.0
    %8899 = vmatprep.mubr.f32.mxu0 0.0
    %8900 = vmatmul.mubr.f32.gmra.mxu0 %v8833
    %v8901 = vpop.f32.mrf.mxu0
    %v8902 = vadd.f32 0.0, %v8901
    %v8903 = vpop.f32.mrf.mxu0
    %8904 = vdwg.mxu0
    %v8905 = vmul.f32 %v8788, %v8788
    %v8906 = vmul.f32 %v8793, %v8793
    %v8907 = vmul.f32 %v8798, %v8798
    %v8908 = vmul.f32 %v8803, %v8803
    %v8909 = vmul.f32 %v8808, %v8808
    %v8910 = vmul.f32 %v8813, %v8813
    %v8911 = vmul.f32 %v8818, %v8818
    %v8912 = vmul.f32 %v8823, %v8823
    %v8913 = vmul.f32 %v8828, %v8828
    %8914 = vmatprep.subr.mxu0 0.0
    %8915 = vmatpush1.msra.mxu0 0.0
    %8916 = vmatprep.subr.mxu0 0.0
    %8917 = vmatpush1.msra.mxu0 0.0
    %8918 = vmatprep.subr.mxu0 0.0
    %8919 = vmatpush1.msra.mxu0 0.0
    %8920 = vmatprep.subr.mxu0 0.0
    %8921 = vmatpush1.msra.mxu0 0.0
    %8922 = vmatprep.subr.mxu0 0.0
    %8923 = vmatpush1.msra.mxu0 0.0
    %8924 = vmatprep.subr.mxu0 0.0
    %8925 = vmatpush1.msra.mxu0 0.0
    %8926 = vmatprep.subr.mxu0 0.0
    %8927 = vmatpush1.msra.mxu0 0.0
    %8928 = vmatprep.subr.mxu0 0.0
    %8929 = vmatpush1.msra.mxu0 %v8913
    %8930 = vmatprep.subr.mxu0 0.0
    %8931 = vmatpush1.msra.mxu0 %v8912
    %8932 = vmatprep.subr.mxu0 0.0
    %8933 = vmatpush1.msra.mxu0 %v8911
    %8934 = vmatprep.subr.mxu0 0.0
    %8935 = vmatpush1.msra.mxu0 %v8910
    %8936 = vmatprep.subr.mxu0 0.0
    %8937 = vmatpush1.msra.mxu0 %v8909
    %8938 = vmatprep.subr.mxu0 0.0
    %8939 = vmatpush1.msra.mxu0 %v8908
    %8940 = vmatprep.subr.mxu0 0.0
    %8941 = vmatpush1.msra.mxu0 %v8907
    %8942 = vmatprep.subr.mxu0 0.0
    %8943 = vmatpush1.msra.mxu0 %v8906
    %8944 = vmatprep.subr.mxu0 0.0
    %8945 = vmatpush1.msra.mxu0 %v8905
    %8946 = vmatprep.subr.mxu0 0.0
    %8947 = vmatpush2.msra.mxu0 0.0
    %8948 = vmatprep.subr.mxu0 0.0
    %8949 = vmatpush2.msra.mxu0 0.0
    %8950 = vmatprep.subr.mxu0 0.0
    %8951 = vmatpush2.msra.mxu0 0.0
    %8952 = vmatprep.subr.mxu0 0.0
    %8953 = vmatpush2.msra.mxu0 0.0
    %8954 = vmatprep.subr.mxu0 0.0
    %8955 = vmatpush2.msra.mxu0 0.0
    %8956 = vmatprep.subr.mxu0 0.0
    %8957 = vmatpush2.msra.mxu0 0.0
    %8958 = vmatprep.subr.mxu0 0.0
    %8959 = vmatpush2.msra.mxu0 0.0
    %8960 = vmatprep.subr.mxu0 0.0
    %8961 = vmatpush2.msra.mxu0 0.0
    %8962 = vmatprep.subr.mxu0 0.0
    %8963 = vmatpush2.msra.mxu0 0.0
    %8964 = vmatprep.subr.mxu0 0.0
    %8965 = vmatpush2.msra.mxu0 0.0
    %8966 = vmatprep.subr.mxu0 0.0
    %8967 = vmatpush2.msra.mxu0 0.0
    %8968 = vmatprep.subr.mxu0 0.0
    %8969 = vmatpush2.msra.mxu0 0.0
    %8970 = vmatprep.subr.mxu0 0.0
    %8971 = vmatpush2.msra.mxu0 0.0
    %8972 = vmatprep.subr.mxu0 0.0
    %8973 = vmatpush2.msra.mxu0 0.0
    %8974 = vmatprep.subr.mxu0 0.0
    %8975 = vmatpush2.msra.mxu0 0.0
    %8976 = vmatprep.subr.mxu0 0.0
    %8977 = vmatpush2.msra.mxu0 0.0
    %8978 = vmatprep.mubr.f32.mxu0 0.0
    %8979 = vmatmul.mubr.f32.gmra.mxu0 %v8833
    %v8980 = vpop.f32.mrf.mxu0
    %v8981 = vadd.f32 0.0, %v8980
    %v8982 = vpop.f32.mrf.mxu0
    %8983 = vdwg.mxu0
    %v8984 = vrcp.pop 32.0
    %v8985 = vmul.f32 %v8902, %v8984
    %v8986 = vmul.f32 %v8981, %v8984
    %v8987 = vmul.f32 %v8985, %v8985
    %v8988 = vsub.f32 %v8986, %v8987
    %s8989 = scalar_lea.vmem %s2, 2
    %v8990 = vld [vmem:[%s8989] sm:$0x1]
    %v8991 = vadd.f32 %v8988, 1e-05
    %v8992 = vrsqrt.pop %v8991
    %v8993 = vmul.f32 %v8990, %v8992
    %v8994 = vlaneseq
    %v8995 = vshrl.u32 %v8994, 7
    %v8996 = vsub.s32 0, %v8995
    %v8997 = vrot.slane %v8985, %v8996
    %v8998 = vsub.f32 %v8788, %v8997
    %v8999 = vsub.f32 %v8793, %v8997
    %v9000 = vsub.f32 %v8798, %v8997
    %v9001 = vsub.f32 %v8803, %v8997
    %v9002 = vsub.f32 %v8808, %v8997
    %v9003 = vsub.f32 %v8813, %v8997
    %v9004 = vsub.f32 %v8818, %v8997
    %v9005 = vsub.f32 %v8823, %v8997
    %v9006 = vsub.f32 %v8828, %v8997
    %v9008 = vlaneseq
    %v9009 = vshrl.u32 %v9008, 7
    %v9010 = vsub.s32 0, %v9009
    %v9011 = vrot.slane %v8993, %v9010
    %v9013 = vmul.f32 %v8998, %v9011
    %v9014 = vmul.f32 %v8999, %v9011
    %v9015 = vmul.f32 %v9000, %v9011
    %v9016 = vmul.f32 %v9001, %v9011
    %v9017 = vmul.f32 %v9002, %v9011
    %v9018 = vmul.f32 %v9003, %v9011
    %v9019 = vmul.f32 %v9004, %v9011
    %v9020 = vmul.f32 %v9005, %v9011
    %v9021 = vmul.f32 %v9006, %v9011
    %s9022 = scalar_lea.vmem %s3, 2
    %v9023 = vld [vmem:[%s9022] sm:$0x1]
    %v9025 = vlaneseq
    %v9026 = vshrl.u32 %v9025, 7
    %v9027 = vsub.s32 0, %v9026
    %v9028 = vrot.slane %v9023, %v9027
    %v9030 = vadd.f32 %v9013, %v9028
    %v9031 = vadd.f32 %v9014, %v9028
    %v9032 = vadd.f32 %v9015, %v9028
    %v9033 = vadd.f32 %v9016, %v9028
    %v9034 = vadd.f32 %v9017, %v9028
    %v9035 = vadd.f32 %v9018, %v9028
    %v9036 = vadd.f32 %v9019, %v9028
    %v9037 = vadd.f32 %v9020, %v9028
    %v9038 = vadd.f32 %v9021, %v9028
    %v9039 = vmax.f32 %v9030, 0.0
    %v9040 = vmax.f32 %v9031, 0.0
    %v9041 = vmax.f32 %v9032, 0.0
    %v9042 = vmax.f32 %v9033, 0.0
    %v9043 = vmax.f32 %v9034, 0.0
    %v9044 = vmax.f32 %v9035, 0.0
    %v9045 = vmax.f32 %v9036, 0.0
    %v9046 = vmax.f32 %v9037, 0.0
    %v9047 = vmax.f32 %v9038, 0.0
    %9048 = vst.msk [vmem:[#allocation6] sm:$0xff] %vm27, %v9039
    %9049 = vst.msk [vmem:[#allocation6 + $0x8] sm:$0xff] %vm27, %v9040
    %9050 = vst.msk [vmem:[#allocation6 + $0x10] sm:$0xff] %vm27, %v9041
    %9051 = vst.msk [vmem:[#allocation6 + $0x18] sm:$0xff] %vm27, %v9042
    %9052 = vst.msk [vmem:[#allocation6 + $0x20] sm:$0xff] %vm27, %v9043
    %9053 = vst.msk [vmem:[#allocation6 + $0x28] sm:$0xff] %vm27, %v9044
    %9054 = vst.msk [vmem:[#allocation6 + $0x30] sm:$0xff] %vm27, %v9045
    %9055 = vst.msk [vmem:[#allocation6 + $0x38] sm:$0xff] %vm27, %v9046
    %9056 = vst.msk [vmem:[#allocation6 + $0x40] sm:$0xff] %vm27, %v9047
    %v9057 = vld [vmem:[#allocation6] ss:$2 sm:$0x3]
    %v9058 = vld [vmem:[%s5907] ss:$2 sm:$0x3]
    %s9059 = scalar_lea.vmem [#allocation6], 6
    %v9060 = vld [vmem:[%s9059] ss:$2 sm:$0x3]
    %s9061 = scalar_lea.vmem [#allocation6], 7
    %v9062 = vld [vmem:[%s9061] ss:$2 sm:$0x3]
    %v9063 = vmax.f32 %v9057, %v9058
    %v9064 = vmax.f32 %v9060, %v9062
    %v9065 = vmax.f32 %v9063, %v9064
    %vm9066 = vcmask 254976
    %9067 = vst.msk [vmem:[#allocation4 + $0x5] sm:$0x3] %vm9066, %v9065
    %s9068 = scalar_lea.vmem [#allocation6], 12
    %v9069 = vld [vmem:[%s9068] ss:$2 sm:$0x3]
    %s9070 = scalar_lea.vmem [#allocation6], 13
    %v9071 = vld [vmem:[%s9070] ss:$2 sm:$0x3]
    %v9072 = vld [vmem:[%s5909] ss:$2 sm:$0x3]
    %v9073 = vld [vmem:[%s5911] ss:$2 sm:$0x3]
    %v9074 = vmax.f32 %v9069, %v9071
    %v9075 = vmax.f32 %v9072, %v9073
    %v9076 = vmax.f32 %v9074, %v9075
    %9077 = vst.msk [vmem:[#allocation4 + $0x9] sm:$0x3] %vm9066, %v9076
    %v9078 = vld [vmem:[%s5917] ss:$2 sm:$0x3]
    %v9079 = vld [vmem:[%s5919] ss:$2 sm:$0x3]
    %s9080 = scalar_lea.vmem [#allocation6], 42
    %v9081 = vld [vmem:[%s9080] ss:$2 sm:$0x3]
    %s9082 = scalar_lea.vmem [#allocation6], 43
    %v9083 = vld [vmem:[%s9082] ss:$2 sm:$0x3]
    %v9084 = vmax.f32 %v9078, %v9079
    %v9085 = vmax.f32 %v9081, %v9083
    %v9086 = vmax.f32 %v9084, %v9085
    %9087 = vst.msk [vmem:[#allocation4 + $0x15] sm:$0x3] %vm9066, %v9086
    %s9088 = scalar_lea.vmem [#allocation6], 48
    %v9089 = vld [vmem:[%s9088] ss:$2 sm:$0x3]
    %s9090 = scalar_lea.vmem [#allocation6], 49
    %v9091 = vld [vmem:[%s9090] ss:$2 sm:$0x3]
    %v9092 = vld [vmem:[%s5921] ss:$2 sm:$0x3]
    %v9093 = vld [vmem:[%s5923] ss:$2 sm:$0x3]
    %v9094 = vmax.f32 %v9089, %v9091
    %v9095 = vmax.f32 %v9092, %v9093
    %v9096 = vmax.f32 %v9094, %v9095
    %9097 = vst.msk [vmem:[#allocation4 + $0x19] sm:$0x3] %vm9066, %v9096
    %v9098 = vld [vmem:[#allocation4] sm:$0xff]
    %v9099 = vld [vmem:[#allocation4 + $0x8] sm:$0xff]
    %v9100 = vld [vmem:[#allocation4 + $0x10] sm:$0xff]
    %v9101 = vld [vmem:[#allocation4 + $0x18] sm:$0xff]
    %9102 = vst.msk [vmem:[#allocation5] sm:$0xff] %vm27, %v9098
    %9103 = vst.msk [vmem:[#allocation5 + $0x18] sm:$0xff] %vm27, %v9099
    %9104 = vst.msk [vmem:[#allocation5 + $0x30] sm:$0xff] %vm27, %v9100
    %9105 = vst.msk [vmem:[#allocation5 + $0x48] sm:$0xff] %vm27, %v9101
    %v9106 = vld [vmem:[#allocation4 + $0x1] sm:$0xff]
    %v9107 = vld [vmem:[#allocation4 + $0x9] sm:$0xff]
    %v9108 = vld [vmem:[#allocation4 + $0x11] sm:$0xff]
    %v9109 = vld [vmem:[#allocation4 + $0x19] sm:$0xff]
    %9114 = vrot.lane.b32.xlu0 %v9106, 32
    %v9115 = vpop.permute.xlu0 %9114
    %9116 = vrot.lane.b32.xlu0 %v9107, 32
    %v9117 = vpop.permute.xlu0 %9116
    %9118 = vrot.lane.b32.xlu0 %v9108, 32
    %v9119 = vpop.permute.xlu0 %9118
    %9120 = vrot.lane.b32.xlu0 %v9109, 32
    %v9121 = vpop.permute.xlu0 %9120
    %9126 = vst.msk [vmem:[#allocation5] sm:$0xff] %vm640, %v9115
    %9127 = vst.msk [vmem:[#allocation5 + $0x18] sm:$0xff] %vm640, %v9117
    %9128 = vst.msk [vmem:[#allocation5 + $0x30] sm:$0xff] %vm640, %v9119
    %9129 = vst.msk [vmem:[#allocation5 + $0x48] sm:$0xff] %vm640, %v9121
    %v9130 = vld [vmem:[#allocation4 + $0x2] sm:$0xff]
    %v9131 = vld [vmem:[#allocation4 + $0xa] sm:$0xff]
    %v9132 = vld [vmem:[#allocation4 + $0x12] sm:$0xff]
    %v9133 = vld [vmem:[#allocation4 + $0x1a] sm:$0xff]
    %9138 = vrot.lane.b32.xlu0 %v9130, 64
    %v9139 = vpop.permute.xlu0 %9138
    %9140 = vrot.lane.b32.xlu0 %v9131, 64
    %v9141 = vpop.permute.xlu0 %9140
    %9142 = vrot.lane.b32.xlu0 %v9132, 64
    %v9143 = vpop.permute.xlu0 %9142
    %9144 = vrot.lane.b32.xlu0 %v9133, 64
    %v9145 = vpop.permute.xlu0 %9144
    %9150 = vst.msk [vmem:[#allocation5] sm:$0xff] %vm1127, %v9139
    %9151 = vst.msk [vmem:[#allocation5 + $0x18] sm:$0xff] %vm1127, %v9141
    %9152 = vst.msk [vmem:[#allocation5 + $0x30] sm:$0xff] %vm1127, %v9143
    %9153 = vst.msk [vmem:[#allocation5 + $0x48] sm:$0xff] %vm1127, %v9145
    %v9154 = vld [vmem:[#allocation4 + $0x4] sm:$0xff]
    %v9155 = vld [vmem:[#allocation4 + $0xc] sm:$0xff]
    %v9156 = vld [vmem:[#allocation4 + $0x14] sm:$0xff]
    %v9157 = vld [vmem:[#allocation4 + $0x1c] sm:$0xff]
    %9162 = vrot.lane.b32.xlu0 %v9154, 96
    %v9163 = vpop.permute.xlu0 %9162
    %9164 = vrot.lane.b32.xlu0 %v9155, 96
    %v9165 = vpop.permute.xlu0 %9164
    %9166 = vrot.lane.b32.xlu0 %v9156, 96
    %v9167 = vpop.permute.xlu0 %9166
    %9168 = vrot.lane.b32.xlu0 %v9157, 96
    %v9169 = vpop.permute.xlu0 %9168
    %9174 = vst.msk [vmem:[#allocation5] sm:$0xff] %vm1614, %v9163
    %9175 = vst.msk [vmem:[#allocation5 + $0x18] sm:$0xff] %vm1614, %v9165
    %9176 = vst.msk [vmem:[#allocation5 + $0x30] sm:$0xff] %vm1614, %v9167
    %9177 = vst.msk [vmem:[#allocation5 + $0x48] sm:$0xff] %vm1614, %v9169
    %v9178 = vld [vmem:[#allocation4 + $0x5] sm:$0xff]
    %v9179 = vld [vmem:[#allocation4 + $0xd] sm:$0xff]
    %v9180 = vld [vmem:[#allocation4 + $0x15] sm:$0xff]
    %v9181 = vld [vmem:[#allocation4 + $0x1d] sm:$0xff]
    %9182 = vst.msk [vmem:[#allocation5 + $0x8] sm:$0xff] %vm27, %v9178
    %9183 = vst.msk [vmem:[#allocation5 + $0x20] sm:$0xff] %vm27, %v9179
    %9184 = vst.msk [vmem:[#allocation5 + $0x38] sm:$0xff] %vm27, %v9180
    %9185 = vst.msk [vmem:[#allocation5 + $0x50] sm:$0xff] %vm27, %v9181
    %v9186 = vld [vmem:[#allocation4 + $0x6] sm:$0xff]
    %v9187 = vld [vmem:[#allocation4 + $0xe] sm:$0xff]
    %v9188 = vld [vmem:[#allocation4 + $0x16] sm:$0xff]
    %v9189 = vld [vmem:[#allocation4 + $0x1e] sm:$0xff]
    %9194 = vrot.lane.b32.xlu0 %v9186, 32
    %v9195 = vpop.permute.xlu0 %9194
    %9196 = vrot.lane.b32.xlu0 %v9187, 32
    %v9197 = vpop.permute.xlu0 %9196
    %9198 = vrot.lane.b32.xlu0 %v9188, 32
    %v9199 = vpop.permute.xlu0 %9198
    %9200 = vrot.lane.b32.xlu0 %v9189, 32
    %v9201 = vpop.permute.xlu0 %9200
    %9206 = vst.msk [vmem:[#allocation5 + $0x8] sm:$0xff] %vm640, %v9195
    %9207 = vst.msk [vmem:[#allocation5 + $0x20] sm:$0xff] %vm640, %v9197
    %9208 = vst.msk [vmem:[#allocation5 + $0x38] sm:$0xff] %vm640, %v9199
    %9209 = vst.msk [vmem:[#allocation5 + $0x50] sm:$0xff] %vm640, %v9201
    %v9210 = vld [vmem:[#allocation4 + $0x8] sm:$0xff]
    %v9211 = vld [vmem:[#allocation4 + $0x10] sm:$0xff]
    %v9212 = vld [vmem:[#allocation4 + $0x18] sm:$0xff]
    %v9213 = vld [vmem:[#allocation4 + $0x20] sm:$0xff]
    %9218 = vrot.lane.b32.xlu0 %v9210, 64
    %v9219 = vpop.permute.xlu0 %9218
    %9220 = vrot.lane.b32.xlu0 %v9211, 64
    %v9221 = vpop.permute.xlu0 %9220
    %9222 = vrot.lane.b32.xlu0 %v9212, 64
    %v9223 = vpop.permute.xlu0 %9222
    %9224 = vrot.lane.b32.xlu0 %v9213, 64
    %v9225 = vpop.permute.xlu0 %9224
    %9230 = vst.msk [vmem:[#allocation5 + $0x8] sm:$0xff] %vm1127, %v9219
    %9231 = vst.msk [vmem:[#allocation5 + $0x20] sm:$0xff] %vm1127, %v9221
    %9232 = vst.msk [vmem:[#allocation5 + $0x38] sm:$0xff] %vm1127, %v9223
    %9233 = vst.msk [vmem:[#allocation5 + $0x50] sm:$0xff] %vm1127, %v9225
    %v9234 = vld [vmem:[#allocation4 + $0x9] sm:$0xff]
    %v9235 = vld [vmem:[#allocation4 + $0x11] sm:$0xff]
    %v9236 = vld [vmem:[#allocation4 + $0x19] sm:$0xff]
    %v9237 = vld [vmem:[#allocation4 + $0x21] sm:$0xff]
    %9242 = vrot.lane.b32.xlu0 %v9234, 96
    %v9243 = vpop.permute.xlu0 %9242
    %9244 = vrot.lane.b32.xlu0 %v9235, 96
    %v9245 = vpop.permute.xlu0 %9244
    %9246 = vrot.lane.b32.xlu0 %v9236, 96
    %v9247 = vpop.permute.xlu0 %9246
    %9248 = vrot.lane.b32.xlu0 %v9237, 96
    %v9249 = vpop.permute.xlu0 %9248
    %9254 = vst.msk [vmem:[#allocation5 + $0x8] sm:$0xff] %vm1614, %v9243
    %9255 = vst.msk [vmem:[#allocation5 + $0x20] sm:$0xff] %vm1614, %v9245
    %9256 = vst.msk [vmem:[#allocation5 + $0x38] sm:$0xff] %vm1614, %v9247
    %9257 = vst.msk [vmem:[#allocation5 + $0x50] sm:$0xff] %vm1614, %v9249
    %v9258 = vld [vmem:[#allocation4 + $0xa] sm:$0xff]
    %v9259 = vld [vmem:[#allocation4 + $0x12] sm:$0xff]
    %v9260 = vld [vmem:[#allocation4 + $0x1a] sm:$0xff]
    %v9261 = vld [vmem:[#allocation4 + $0x22] sm:$0xff]
    %9262 = vst.msk [vmem:[#allocation5 + $0x10] sm:$0xff] %vm27, %v9258
    %9263 = vst.msk [vmem:[#allocation5 + $0x28] sm:$0xff] %vm27, %v9259
    %9264 = vst.msk [vmem:[#allocation5 + $0x40] sm:$0xff] %vm27, %v9260
    %9265 = vst.msk [vmem:[#allocation5 + $0x58] sm:$0xff] %vm27, %v9261
    %v9266 = vld [vmem:[#allocation5] sm:$0xff]
    %v9267 = vld [vmem:[#allocation5 + $0x8] sm:$0xff]
    %v9268 = vld [vmem:[#allocation5 + $0x10] sm:$0xff]
    %v9269 = vld [vmem:[#allocation5 + $0x18] sm:$0xff]
    %v9270 = vld [vmem:[#allocation5 + $0x20] sm:$0xff]
    %v9271 = vld [vmem:[#allocation5 + $0x28] sm:$0xff]
    %v9272 = vld [vmem:[#allocation5 + $0x30] sm:$0xff]
    %v9273 = vld [vmem:[#allocation5 + $0x38] sm:$0xff]
    %v9274 = vld [vmem:[#allocation5 + $0x40] sm:$0xff]
    %v9275 = vld [vmem:[#allocation5 + $0x48] sm:$0xff]
    %v9276 = vld [vmem:[#allocation5 + $0x50] sm:$0xff]
    %v9277 = vld [vmem:[#allocation5 + $0x58] sm:$0xff]
    %s9278 = scalar_lea.vmem %s1, 864
    %v9279 = vld [vmem:[%s9278] sm:$0xff]
    %v9280 = vld [vmem:[%s9278 + $0x8] sm:$0xff]
    %v9281 = vld [vmem:[%s9278 + $0x10] sm:$0xff]
    %v9282 = vld [vmem:[%s9278 + $0x18] sm:$0xff]
    %v9283 = vld [vmem:[%s9278 + $0x20] sm:$0xff]
    %v9284 = vld [vmem:[%s9278 + $0x28] sm:$0xff]
    %v9285 = vld [vmem:[%s9278 + $0x30] sm:$0xff]
    %v9286 = vld [vmem:[%s9278 + $0x38] sm:$0xff]
    %v9287 = vld [vmem:[%s9278 + $0x40] sm:$0xff]
    %v9288 = vld [vmem:[%s9278 + $0x48] sm:$0xff]
    %v9289 = vld [vmem:[%s9278 + $0x50] sm:$0xff]
    %v9290 = vld [vmem:[%s9278 + $0x58] sm:$0xff]
    %v9291 = vld [vmem:[%s9278 + $0x60] sm:$0xff]
    %v9292 = vld [vmem:[%s9278 + $0x68] sm:$0xff]
    %v9293 = vld [vmem:[%s9278 + $0x70] sm:$0xff]
    %v9294 = vld [vmem:[%s9278 + $0x78] sm:$0xff]
    %v9295 = vld [vmem:[%s9278 + $0x80] sm:$0xff]
    %v9296 = vld [vmem:[%s9278 + $0x88] sm:$0xff]
    %v9297 = vld [vmem:[%s9278 + $0x90] sm:$0xff]
    %v9298 = vld [vmem:[%s9278 + $0x98] sm:$0xff]
    %v9299 = vld [vmem:[%s9278 + $0xa0] sm:$0xff]
    %v9300 = vld [vmem:[%s9278 + $0xa8] sm:$0xff]
    %v9301 = vld [vmem:[%s9278 + $0xb0] sm:$0xff]
    %v9302 = vld [vmem:[%s9278 + $0xb8] sm:$0xff]
    %v9303 = vld [vmem:[%s9278 + $0xc0] sm:$0xff]
    %v9304 = vld [vmem:[%s9278 + $0xc8] sm:$0xff]
    %v9305 = vld [vmem:[%s9278 + $0xd0] sm:$0xff]
    %v9306 = vld [vmem:[%s9278 + $0xd8] sm:$0xff]
    %v9307 = vld [vmem:[%s9278 + $0xe0] sm:$0xff]
    %v9308 = vld [vmem:[%s9278 + $0xe8] sm:$0xff]
    %v9309 = vld [vmem:[%s9278 + $0xf0] sm:$0xff]
    %v9310 = vld [vmem:[%s9278 + $0xf8] sm:$0xff]
    %v9311 = vld [vmem:[%s9278 + $0x100] sm:$0xff]
    %v9312 = vld [vmem:[%s9278 + $0x108] sm:$0xff]
    %v9313 = vld [vmem:[%s9278 + $0x110] sm:$0xff]
    %v9314 = vld [vmem:[%s9278 + $0x118] sm:$0xff]
    %v9316 = vsel %vm27, %v9268, 0
    %v9319 = vsel %vm27, %v9271, 0
    %v9322 = vsel %vm27, %v9274, 0
    %v9325 = vsel %vm27, %v9277, 0
    %9327 = vmatprep.subr.mxu0 0.0
    %9328 = vmatpush1.msra.mxu0 %v9294
    %9329 = vmatprep.subr.mxu0 0.0
    %9330 = vmatpush1.msra.mxu0 %v9293
    %9331 = vmatprep.subr.mxu0 0.0
    %9332 = vmatpush1.msra.mxu0 %v9292
    %9333 = vmatprep.subr.mxu0 0.0
    %9334 = vmatpush1.msra.mxu0 %v9291
    %9335 = vmatprep.subr.mxu0 0.0
    %9336 = vmatpush1.msra.mxu0 %v9290
    %9337 = vmatprep.subr.mxu0 0.0
    %9338 = vmatpush1.msra.mxu0 %v9289
    %9339 = vmatprep.subr.mxu0 0.0
    %9340 = vmatpush1.msra.mxu0 %v9288
    %9341 = vmatprep.subr.mxu0 0.0
    %9342 = vmatpush1.msra.mxu0 %v9287
    %9343 = vmatprep.subr.mxu0 0.0
    %9344 = vmatpush1.msra.mxu0 %v9286
    %9345 = vmatprep.subr.mxu0 0.0
    %9346 = vmatpush1.msra.mxu0 %v9285
    %9347 = vmatprep.subr.mxu0 0.0
    %9348 = vmatpush1.msra.mxu0 %v9284
    %9349 = vmatprep.subr.mxu0 0.0
    %9350 = vmatpush1.msra.mxu0 %v9283
    %9351 = vmatprep.subr.mxu0 0.0
    %9352 = vmatpush1.msra.mxu0 %v9282
    %9353 = vmatprep.subr.mxu0 0.0
    %9354 = vmatpush1.msra.mxu0 %v9281
    %9355 = vmatprep.subr.mxu0 0.0
    %9356 = vmatpush1.msra.mxu0 %v9280
    %9357 = vmatprep.subr.mxu0 0.0
    %9358 = vmatpush1.msra.mxu0 %v9279
    %9359 = vmatprep.subr.mxu0 0.0
    %9360 = vmatpush2.msra.mxu0 %v9310
    %9361 = vmatprep.subr.mxu0 0.0
    %9362 = vmatpush2.msra.mxu0 %v9309
    %9363 = vmatprep.subr.mxu0 0.0
    %9364 = vmatpush2.msra.mxu0 %v9308
    %9365 = vmatprep.subr.mxu0 0.0
    %9366 = vmatpush2.msra.mxu0 %v9307
    %9367 = vmatprep.subr.mxu0 0.0
    %9368 = vmatpush2.msra.mxu0 %v9306
    %9369 = vmatprep.subr.mxu0 0.0
    %9370 = vmatpush2.msra.mxu0 %v9305
    %9371 = vmatprep.subr.mxu0 0.0
    %9372 = vmatpush2.msra.mxu0 %v9304
    %9373 = vmatprep.subr.mxu0 0.0
    %9374 = vmatpush2.msra.mxu0 %v9303
    %9375 = vmatprep.subr.mxu0 0.0
    %9376 = vmatpush2.msra.mxu0 %v9302
    %9377 = vmatprep.subr.mxu0 0.0
    %9378 = vmatpush2.msra.mxu0 %v9301
    %9379 = vmatprep.subr.mxu0 0.0
    %9380 = vmatpush2.msra.mxu0 %v9300
    %9381 = vmatprep.subr.mxu0 0.0
    %9382 = vmatpush2.msra.mxu0 %v9299
    %9383 = vmatprep.subr.mxu0 0.0
    %9384 = vmatpush2.msra.mxu0 %v9298
    %9385 = vmatprep.subr.mxu0 0.0
    %9386 = vmatpush2.msra.mxu0 %v9297
    %9387 = vmatprep.subr.mxu0 0.0
    %9388 = vmatpush2.msra.mxu0 %v9296
    %9389 = vmatprep.subr.mxu0 0.0
    %9390 = vmatpush2.msra.mxu0 %v9295
    %9391 = vmatprep.mubr.f32.mxu0 %v9267
    %9392 = vmatmul.mubr.f32.gmra.mxu0 %v9266
    %v9393 = vpop.f32.mrf.mxu0
    %v9394 = vadd.f32 0.0, %v9393
    %v9395 = vpop.f32.mrf.mxu0
    %9396 = vmatprep.mubr.f32.mxu0 %v9270
    %9397 = vmatmul.mubr.f32.gmra.mxu0 %v9269
    %v9398 = vpop.f32.mrf.mxu0
    %v9399 = vadd.f32 0.0, %v9398
    %v9400 = vpop.f32.mrf.mxu0
    %9401 = vmatprep.mubr.f32.mxu0 %v9273
    %9402 = vmatmul.mubr.f32.gmra.mxu0 %v9272
    %v9403 = vpop.f32.mrf.mxu0
    %v9404 = vadd.f32 0.0, %v9403
    %v9405 = vpop.f32.mrf.mxu0
    %9406 = vmatprep.mubr.f32.mxu0 %v9276
    %9407 = vmatmul.mubr.f32.gmra.mxu0 %v9275
    %v9408 = vpop.f32.mrf.mxu0
    %v9409 = vadd.f32 0.0, %v9408
    %v9410 = vpop.f32.mrf.mxu0
    %9411 = vdwg.mxu0
    %9412 = vmatprep.subr.mxu0 0.0
    %9413 = vmatpush1.msra.mxu0 0.0
    %9414 = vmatprep.subr.mxu0 0.0
    %9415 = vmatpush1.msra.mxu0 0.0
    %9416 = vmatprep.subr.mxu0 0.0
    %9417 = vmatpush1.msra.mxu0 0.0
    %9418 = vmatprep.subr.mxu0 0.0
    %9419 = vmatpush1.msra.mxu0 0.0
    %9420 = vmatprep.subr.mxu0 0.0
    %9421 = vmatpush1.msra.mxu0 0.0
    %9422 = vmatprep.subr.mxu0 0.0
    %9423 = vmatpush1.msra.mxu0 0.0
    %9424 = vmatprep.subr.mxu0 0.0
    %9425 = vmatpush1.msra.mxu0 0.0
    %9426 = vmatprep.subr.mxu0 0.0
    %9427 = vmatpush1.msra.mxu0 0.0
    %9428 = vmatprep.subr.mxu0 0.0
    %9429 = vmatpush1.msra.mxu0 0.0
    %9430 = vmatprep.subr.mxu0 0.0
    %9431 = vmatpush1.msra.mxu0 0.0
    %9432 = vmatprep.subr.mxu0 0.0
    %9433 = vmatpush1.msra.mxu0 0.0
    %9434 = vmatprep.subr.mxu0 0.0
    %9435 = vmatpush1.msra.mxu0 0.0
    %9436 = vmatprep.subr.mxu0 0.0
    %9437 = vmatpush1.msra.mxu0 %v9314
    %9438 = vmatprep.subr.mxu0 0.0
    %9439 = vmatpush1.msra.mxu0 %v9313
    %9440 = vmatprep.subr.mxu0 0.0
    %9441 = vmatpush1.msra.mxu0 %v9312
    %9442 = vmatprep.subr.mxu0 0.0
    %9443 = vmatpush1.msra.mxu0 %v9311
    %9444 = vmatprep.subr.mxu0 0.0
    %9445 = vmatpush2.msra.mxu0 0.0
    %9446 = vmatprep.subr.mxu0 0.0
    %9447 = vmatpush2.msra.mxu0 0.0
    %9448 = vmatprep.subr.mxu0 0.0
    %9449 = vmatpush2.msra.mxu0 0.0
    %9450 = vmatprep.subr.mxu0 0.0
    %9451 = vmatpush2.msra.mxu0 0.0
    %9452 = vmatprep.subr.mxu0 0.0
    %9453 = vmatpush2.msra.mxu0 0.0
    %9454 = vmatprep.subr.mxu0 0.0
    %9455 = vmatpush2.msra.mxu0 0.0
    %9456 = vmatprep.subr.mxu0 0.0
    %9457 = vmatpush2.msra.mxu0 0.0
    %9458 = vmatprep.subr.mxu0 0.0
    %9459 = vmatpush2.msra.mxu0 0.0
    %9460 = vmatprep.subr.mxu0 0.0
    %9461 = vmatpush2.msra.mxu0 0.0
    %9462 = vmatprep.subr.mxu0 0.0
    %9463 = vmatpush2.msra.mxu0 0.0
    %9464 = vmatprep.subr.mxu0 0.0
    %9465 = vmatpush2.msra.mxu0 0.0
    %9466 = vmatprep.subr.mxu0 0.0
    %9467 = vmatpush2.msra.mxu0 0.0
    %9468 = vmatprep.subr.mxu0 0.0
    %9469 = vmatpush2.msra.mxu0 0.0
    %9470 = vmatprep.subr.mxu0 0.0
    %9471 = vmatpush2.msra.mxu0 0.0
    %9472 = vmatprep.subr.mxu0 0.0
    %9473 = vmatpush2.msra.mxu0 0.0
    %9474 = vmatprep.subr.mxu0 0.0
    %9475 = vmatpush2.msra.mxu0 0.0
    %9476 = vmatprep.mubr.f32.mxu0 0.0
    %9477 = vmatmul.mubr.f32.gmra.mxu0 %v9316
    %v9478 = vpop.f32.mrf.mxu0
    %v9479 = vadd.f32 %v9394, %v9478
    %v9480 = vpop.f32.mrf.mxu0
    %9481 = vmatprep.mubr.f32.mxu0 0.0
    %9482 = vmatmul.mubr.f32.gmra.mxu0 %v9319
    %v9483 = vpop.f32.mrf.mxu0
    %v9484 = vadd.f32 %v9399, %v9483
    %v9485 = vpop.f32.mrf.mxu0
    %9486 = vmatprep.mubr.f32.mxu0 0.0
    %9487 = vmatmul.mubr.f32.gmra.mxu0 %v9322
    %v9488 = vpop.f32.mrf.mxu0
    %v9489 = vadd.f32 %v9404, %v9488
    %v9490 = vpop.f32.mrf.mxu0
    %9491 = vmatprep.mubr.f32.mxu0 0.0
    %9492 = vmatmul.mubr.f32.gmra.mxu0 %v9325
    %v9493 = vpop.f32.mrf.mxu0
    %v9494 = vadd.f32 %v9409, %v9493
    %v9495 = vpop.f32.mrf.mxu0
    %9496 = vdwg.mxu0
    %v9497 = vld [vmem:[%s4 + $0x3] sm:$0x1]
    %v9499 = vsel %vm27, %v9497, 0
    %9501 = vmatprep.subr.mxu0 0.0
    %9502 = vmatpush1.msra.mxu0 0.0
    %9503 = vmatprep.subr.mxu0 0.0
    %9504 = vmatpush1.msra.mxu0 0.0
    %9505 = vmatprep.subr.mxu0 0.0
    %9506 = vmatpush1.msra.mxu0 0.0
    %9507 = vmatprep.subr.mxu0 0.0
    %9508 = vmatpush1.msra.mxu0 0.0
    %9509 = vmatprep.subr.mxu0 0.0
    %9510 = vmatpush1.msra.mxu0 0.0
    %9511 = vmatprep.subr.mxu0 0.0
    %9512 = vmatpush1.msra.mxu0 0.0
    %9513 = vmatprep.subr.mxu0 0.0
    %9514 = vmatpush1.msra.mxu0 0.0
    %9515 = vmatprep.subr.mxu0 0.0
    %9516 = vmatpush1.msra.mxu0 0.0
    %9517 = vmatprep.subr.mxu0 0.0
    %9518 = vmatpush1.msra.mxu0 0.0
    %9519 = vmatprep.subr.mxu0 0.0
    %9520 = vmatpush1.msra.mxu0 0.0
    %9521 = vmatprep.subr.mxu0 0.0
    %9522 = vmatpush1.msra.mxu0 0.0
    %9523 = vmatprep.subr.mxu0 0.0
    %9524 = vmatpush1.msra.mxu0 0.0
    %9525 = vmatprep.subr.mxu0 0.0
    %9526 = vmatpush1.msra.mxu0 %v9494
    %9527 = vmatprep.subr.mxu0 0.0
    %9528 = vmatpush1.msra.mxu0 %v9489
    %9529 = vmatprep.subr.mxu0 0.0
    %9530 = vmatpush1.msra.mxu0 %v9484
    %9531 = vmatprep.subr.mxu0 0.0
    %9532 = vmatpush1.msra.mxu0 %v9479
    %9533 = vmatprep.subr.mxu0 0.0
    %9534 = vmatpush2.msra.mxu0 0.0
    %9535 = vmatprep.subr.mxu0 0.0
    %9536 = vmatpush2.msra.mxu0 0.0
    %9537 = vmatprep.subr.mxu0 0.0
    %9538 = vmatpush2.msra.mxu0 0.0
    %9539 = vmatprep.subr.mxu0 0.0
    %9540 = vmatpush2.msra.mxu0 0.0
    %9541 = vmatprep.subr.mxu0 0.0
    %9542 = vmatpush2.msra.mxu0 0.0
    %9543 = vmatprep.subr.mxu0 0.0
    %9544 = vmatpush2.msra.mxu0 0.0
    %9545 = vmatprep.subr.mxu0 0.0
    %9546 = vmatpush2.msra.mxu0 0.0
    %9547 = vmatprep.subr.mxu0 0.0
    %9548 = vmatpush2.msra.mxu0 0.0
    %9549 = vmatprep.subr.mxu0 0.0
    %9550 = vmatpush2.msra.mxu0 0.0
    %9551 = vmatprep.subr.mxu0 0.0
    %9552 = vmatpush2.msra.mxu0 0.0
    %9553 = vmatprep.subr.mxu0 0.0
    %9554 = vmatpush2.msra.mxu0 0.0
    %9555 = vmatprep.subr.mxu0 0.0
    %9556 = vmatpush2.msra.mxu0 0.0
    %9557 = vmatprep.subr.mxu0 0.0
    %9558 = vmatpush2.msra.mxu0 0.0
    %9559 = vmatprep.subr.mxu0 0.0
    %9560 = vmatpush2.msra.mxu0 0.0
    %9561 = vmatprep.subr.mxu0 0.0
    %9562 = vmatpush2.msra.mxu0 0.0
    %9563 = vmatprep.subr.mxu0 0.0
    %9564 = vmatpush2.msra.mxu0 0.0
    %9565 = vmatprep.mubr.f32.mxu0 0.0
    %9566 = vmatmul.mubr.f32.gmra.mxu0 %v9499
    %v9567 = vpop.f32.mrf.mxu0
    %v9568 = vadd.f32 0.0, %v9567
    %v9569 = vpop.f32.mrf.mxu0
    %9570 = vdwg.mxu0
    %v9571 = vmul.f32 %v9479, %v9479
    %v9572 = vmul.f32 %v9484, %v9484
    %v9573 = vmul.f32 %v9489, %v9489
    %v9574 = vmul.f32 %v9494, %v9494
    %9575 = vmatprep.subr.mxu0 0.0
    %9576 = vmatpush1.msra.mxu0 0.0
    %9577 = vmatprep.subr.mxu0 0.0
    %9578 = vmatpush1.msra.mxu0 0.0
    %9579 = vmatprep.subr.mxu0 0.0
    %9580 = vmatpush1.msra.mxu0 0.0
    %9581 = vmatprep.subr.mxu0 0.0
    %9582 = vmatpush1.msra.mxu0 0.0
    %9583 = vmatprep.subr.mxu0 0.0
    %9584 = vmatpush1.msra.mxu0 0.0
    %9585 = vmatprep.subr.mxu0 0.0
    %9586 = vmatpush1.msra.mxu0 0.0
    %9587 = vmatprep.subr.mxu0 0.0
    %9588 = vmatpush1.msra.mxu0 0.0
    %9589 = vmatprep.subr.mxu0 0.0
    %9590 = vmatpush1.msra.mxu0 0.0
    %9591 = vmatprep.subr.mxu0 0.0
    %9592 = vmatpush1.msra.mxu0 0.0
    %9593 = vmatprep.subr.mxu0 0.0
    %9594 = vmatpush1.msra.mxu0 0.0
    %9595 = vmatprep.subr.mxu0 0.0
    %9596 = vmatpush1.msra.mxu0 0.0
    %9597 = vmatprep.subr.mxu0 0.0
    %9598 = vmatpush1.msra.mxu0 0.0
    %9599 = vmatprep.subr.mxu0 0.0
    %9600 = vmatpush1.msra.mxu0 %v9574
    %9601 = vmatprep.subr.mxu0 0.0
    %9602 = vmatpush1.msra.mxu0 %v9573
    %9603 = vmatprep.subr.mxu0 0.0
    %9604 = vmatpush1.msra.mxu0 %v9572
    %9605 = vmatprep.subr.mxu0 0.0
    %9606 = vmatpush1.msra.mxu0 %v9571
    %9607 = vmatprep.subr.mxu0 0.0
    %9608 = vmatpush2.msra.mxu0 0.0
    %9609 = vmatprep.subr.mxu0 0.0
    %9610 = vmatpush2.msra.mxu0 0.0
    %9611 = vmatprep.subr.mxu0 0.0
    %9612 = vmatpush2.msra.mxu0 0.0
    %9613 = vmatprep.subr.mxu0 0.0
    %9614 = vmatpush2.msra.mxu0 0.0
    %9615 = vmatprep.subr.mxu0 0.0
    %9616 = vmatpush2.msra.mxu0 0.0
    %9617 = vmatprep.subr.mxu0 0.0
    %9618 = vmatpush2.msra.mxu0 0.0
    %9619 = vmatprep.subr.mxu0 0.0
    %9620 = vmatpush2.msra.mxu0 0.0
    %9621 = vmatprep.subr.mxu0 0.0
    %9622 = vmatpush2.msra.mxu0 0.0
    %9623 = vmatprep.subr.mxu0 0.0
    %9624 = vmatpush2.msra.mxu0 0.0
    %9625 = vmatprep.subr.mxu0 0.0
    %9626 = vmatpush2.msra.mxu0 0.0
    %9627 = vmatprep.subr.mxu0 0.0
    %9628 = vmatpush2.msra.mxu0 0.0
    %9629 = vmatprep.subr.mxu0 0.0
    %9630 = vmatpush2.msra.mxu0 0.0
    %9631 = vmatprep.subr.mxu0 0.0
    %9632 = vmatpush2.msra.mxu0 0.0
    %9633 = vmatprep.subr.mxu0 0.0
    %9634 = vmatpush2.msra.mxu0 0.0
    %9635 = vmatprep.subr.mxu0 0.0
    %9636 = vmatpush2.msra.mxu0 0.0
    %9637 = vmatprep.subr.mxu0 0.0
    %9638 = vmatpush2.msra.mxu0 0.0
    %9639 = vmatprep.mubr.f32.mxu0 0.0
    %9640 = vmatmul.mubr.f32.gmra.mxu0 %v9499
    %v9641 = vpop.f32.mrf.mxu0
    %v9642 = vadd.f32 0.0, %v9641
    %v9643 = vpop.f32.mrf.mxu0
    %9644 = vdwg.mxu0
    %v9645 = vrcp.pop 8.0
    %v9646 = vmul.f32 %v9568, %v9645
    %v9647 = vmul.f32 %v9642, %v9645
    %v9648 = vmul.f32 %v9646, %v9646
    %v9649 = vsub.f32 %v9647, %v9648
    %s9650 = scalar_lea.vmem %s2, 3
    %v9651 = vld [vmem:[%s9650] sm:$0x1]
    %v9652 = vadd.f32 %v9649, 1e-05
    %v9653 = vrsqrt.pop %v9652
    %v9654 = vmul.f32 %v9651, %v9653
    %v9655 = vlaneseq
    %v9656 = vshrl.u32 %v9655, 7
    %v9657 = vsub.s32 0, %v9656
    %v9658 = vrot.slane %v9646, %v9657
    %v9659 = vsub.f32 %v9479, %v9658
    %v9660 = vsub.f32 %v9484, %v9658
    %v9661 = vsub.f32 %v9489, %v9658
    %v9662 = vsub.f32 %v9494, %v9658
    %v9664 = vlaneseq
    %v9665 = vshrl.u32 %v9664, 7
    %v9666 = vsub.s32 0, %v9665
    %v9667 = vrot.slane %v9654, %v9666
    %v9669 = vmul.f32 %v9659, %v9667
    %v9670 = vmul.f32 %v9660, %v9667
    %v9671 = vmul.f32 %v9661, %v9667
    %v9672 = vmul.f32 %v9662, %v9667
    %s9673 = scalar_lea.vmem %s3, 3
    %v9674 = vld [vmem:[%s9673] sm:$0x1]
    %v9676 = vlaneseq
    %v9677 = vshrl.u32 %v9676, 7
    %v9678 = vsub.s32 0, %v9677
    %v9679 = vrot.slane %v9674, %v9678
    %v9681 = vadd.f32 %v9669, %v9679
    %v9682 = vadd.f32 %v9670, %v9679
    %v9683 = vadd.f32 %v9671, %v9679
    %v9684 = vadd.f32 %v9672, %v9679
    %v9685 = vmax.f32 %v9681, 0.0
    %v9686 = vmax.f32 %v9682, 0.0
    %v9687 = vmax.f32 %v9683, 0.0
    %v9688 = vmax.f32 %v9684, 0.0
    %9689 = vst.msk [vmem:[#allocation6] sm:$0xff] %vm27, %v9685
    %9690 = vst.msk [vmem:[#allocation6 + $0x8] sm:$0xff] %vm27, %v9686
    %9691 = vst.msk [vmem:[#allocation6 + $0x10] sm:$0xff] %vm27, %v9687
    %9692 = vst.msk [vmem:[#allocation6 + $0x18] sm:$0xff] %vm27, %v9688
    %v9693 = vld [vmem:[#allocation6] ss:$2 sm:$0x1]
    %v9694 = vld [vmem:[%s5907] ss:$2 sm:$0x1]
    %s9695 = scalar_lea.vmem [#allocation6], 4
    %v9696 = vld [vmem:[%s9695] ss:$2 sm:$0x1]
    %s9697 = scalar_lea.vmem [#allocation6], 5
    %v9698 = vld [vmem:[%s9697] ss:$2 sm:$0x1]
    %v9699 = vmax.f32 %v9693, %v9694
    %v9700 = vmax.f32 %v9696, %v9698
    %v9701 = vmax.f32 %v9699, %v9700
    %vm9702 = vcmask 253952
    %9703 = vst.msk [vmem:[#allocation7] sm:$0x1] %vm9702, %v9701
    %s9704 = scalar_lea.vmem [#allocation6], 16
    %v9705 = vld [vmem:[%s9704] ss:$2 sm:$0x1]
    %s9706 = scalar_lea.vmem [#allocation6], 17
    %v9707 = vld [vmem:[%s9706] ss:$2 sm:$0x1]
    %v9708 = vld [vmem:[%s8058] ss:$2 sm:$0x1]
    %v9709 = vld [vmem:[%s8060] ss:$2 sm:$0x1]
    %v9710 = vmax.f32 %v9705, %v9707
    %v9711 = vmax.f32 %v9708, %v9709
    %v9712 = vmax.f32 %v9710, %v9711
    %9713 = vst.msk [vmem:[#allocation7 + $0x1] sm:$0x1] %vm9702, %v9712
    %v9714 = vld [vmem:[#allocation7] sm:$0x3]
    %v9715 = vld [vmem:[%s5] sm:$0xff]
    %v9716 = vld [vmem:[%s5 + $0x8] sm:$0xff]
    %v9717 = vld [vmem:[%s5 + $0x10] sm:$0xff]
    %v9718 = vld [vmem:[%s5 + $0x18] sm:$0xff]
    %v9719 = vld [vmem:[%s6] sm:$0x1]
    %v9721 = vlaneseq
    %v9722 = vshrl.u32 %v9721, 7
    %v9723 = vsub.s32 0, %v9722
    %v9724 = vrot.slane %v9719, %v9723
    %v9727 = vsel %vm27, %v9714, 0
    %9729 = vmatprep.subr.mxu0 0.0
    %9730 = vmatpush1.msra.mxu0 0.0
    %9731 = vmatprep.subr.mxu0 0.0
    %9732 = vmatpush1.msra.mxu0 0.0
    %9733 = vmatprep.subr.mxu0 0.0
    %9734 = vmatpush1.msra.mxu0 0.0
    %9735 = vmatprep.subr.mxu0 0.0
    %9736 = vmatpush1.msra.mxu0 0.0
    %9737 = vmatprep.subr.mxu0 0.0
    %9738 = vmatpush1.msra.mxu0 0.0
    %9739 = vmatprep.subr.mxu0 0.0
    %9740 = vmatpush1.msra.mxu0 0.0
    %9741 = vmatprep.subr.mxu0 0.0
    %9742 = vmatpush1.msra.mxu0 0.0
    %9743 = vmatprep.subr.mxu0 0.0
    %9744 = vmatpush1.msra.mxu0 0.0
    %9745 = vmatprep.subr.mxu0 0.0
    %9746 = vmatpush1.msra.mxu0 0.0
    %9747 = vmatprep.subr.mxu0 0.0
    %9748 = vmatpush1.msra.mxu0 0.0
    %9749 = vmatprep.subr.mxu0 0.0
    %9750 = vmatpush1.msra.mxu0 0.0
    %9751 = vmatprep.subr.mxu0 0.0
    %9752 = vmatpush1.msra.mxu0 0.0
    %9753 = vmatprep.subr.mxu0 0.0
    %9754 = vmatpush1.msra.mxu0 %v9718
    %9755 = vmatprep.subr.mxu0 0.0
    %9756 = vmatpush1.msra.mxu0 %v9717
    %9757 = vmatprep.subr.mxu0 0.0
    %9758 = vmatpush1.msra.mxu0 %v9716
    %9759 = vmatprep.subr.mxu0 0.0
    %9760 = vmatpush1.msra.mxu0 %v9715
    %9761 = vmatprep.subr.mxu0 0.0
    %9762 = vmatpush2.msra.mxu0 0.0
    %9763 = vmatprep.subr.mxu0 0.0
    %9764 = vmatpush2.msra.mxu0 0.0
    %9765 = vmatprep.subr.mxu0 0.0
    %9766 = vmatpush2.msra.mxu0 0.0
    %9767 = vmatprep.subr.mxu0 0.0
    %9768 = vmatpush2.msra.mxu0 0.0
    %9769 = vmatprep.subr.mxu0 0.0
    %9770 = vmatpush2.msra.mxu0 0.0
    %9771 = vmatprep.subr.mxu0 0.0
    %9772 = vmatpush2.msra.mxu0 0.0
    %9773 = vmatprep.subr.mxu0 0.0
    %9774 = vmatpush2.msra.mxu0 0.0
    %9775 = vmatprep.subr.mxu0 0.0
    %9776 = vmatpush2.msra.mxu0 0.0
    %9777 = vmatprep.subr.mxu0 0.0
    %9778 = vmatpush2.msra.mxu0 0.0
    %9779 = vmatprep.subr.mxu0 0.0
    %9780 = vmatpush2.msra.mxu0 0.0
    %9781 = vmatprep.subr.mxu0 0.0
    %9782 = vmatpush2.msra.mxu0 0.0
    %9783 = vmatprep.subr.mxu0 0.0
    %9784 = vmatpush2.msra.mxu0 0.0
    %9785 = vmatprep.subr.mxu0 0.0
    %9786 = vmatpush2.msra.mxu0 0.0
    %9787 = vmatprep.subr.mxu0 0.0
    %9788 = vmatpush2.msra.mxu0 0.0
    %9789 = vmatprep.subr.mxu0 0.0
    %9790 = vmatpush2.msra.mxu0 0.0
    %9791 = vmatprep.subr.mxu0 0.0
    %9792 = vmatpush2.msra.mxu0 0.0
    %9793 = vmatprep.mubr.f32.mxu0 0.0
    %9794 = vmatmul.mubr.f32.gmra.mxu0 %v9727
    %v9795 = vpop.f32.mrf.mxu0
    %v9796 = vadd.f32 %v9724, %v9795
    %v9797 = vpop.f32.mrf.mxu0
    %9798 = vdwg.mxu0
    %vm9799 = vcmask 58368
    %9800 = vst.msk [vmem:[#allocation8] sm:$0x3] %vm9799, %v9796
    // Predicated region
    $region30: #{cnn4_forward.1} parent=1 // pred_check
      _
    $region31: #{cnn4_forward.1} parent=1 // pred_check_branch
      %9802 = sbr.rel (0) target = $region33
    $region32: #{cnn4_forward.1} parent=1 // pred_region
      %s9804 = ssub.s32 32, 32
      %9805 = vsyncadd [#allocation9], %s9804
      %s9807 = sshll.u32 [#allocation8], 4
      %s9808 = int_to_ptr.vmem [resolvable:$true] %s9807
      %9810 = dma.vmem_to_hbm [thread:$0]  %s9808, 32, %s7, [#allocation9]
    $region33: #{cnn4_forward.1} parent=1 // pred_fallthru
      _
    // Predicated region
    $region34: #{cnn4_forward.1} parent=1 // pred_check
      _
    $region35: #{cnn4_forward.1} parent=1 // pred_check_branch
      %9812 = sbr.rel (0) target = $region37
    $region36: #{cnn4_forward.1} parent=1 // pred_region
      %9813 = dma.done [#allocation9], 32
    $region37: #{cnn4_forward.1} parent=1 // pred_fallthru
      _
    %9814 = vsyncpa [#allocation9], 1

</llo_original>
